<compile_context>
chip_gen: v5e
topology: v5e:2x2
jax: 0.10.0
libtpu: 0.0.40
codegen_flags: <defaults>
</compile_context>

<pallas_src>
import jax
import jax.numpy as jnp
from jax.experimental import pallas as pl
from jax.experimental.pallas import tpu as pltpu

_HID_WIDTHS = (512, 256, 256, 512)  # intermediate widths after the w3@w4 fold


def _mlp_kernel(x_ref,
                w1_ref, b1_ref, w2_ref, b2_ref,
                w34_ref, b34_ref, w5_ref, b5_ref, w6_ref, b6_ref,
                o_ref):
    bf16 = jnp.bfloat16
    x = x_ref[...]
    if x.dtype != bf16:            # static (trace-time) dtype check
        x = x.astype(bf16)

    # ----- encoder -----
    h = jnp.dot(x, w1_ref[...], preferred_element_type=jnp.float32) + b1_ref[...]
    h = jnp.maximum(h, 0.0).astype(bf16)                 # ReLU in f32, cast for MXU
    h = jnp.dot(h, w2_ref[...], preferred_element_type=jnp.float32) + b2_ref[...]
    h = jnp.maximum(h, 0.0).astype(bf16)

    # ----- fused bottleneck + first decoder linear -----
    # (h @ w3 + b3) @ w4 + b4  ==  h @ (w3 @ w4) + (b3 @ w4 + b4)
    # (exact: the original module has no activation between w3 and w4)
    h = jnp.dot(h, w34_ref[...], preferred_element_type=jnp.float32) + b34_ref[...]
    h = jnp.maximum(h, 0.0).astype(bf16)                 # ReLU after first decoder linear

    # ----- rest of decoder -----
    h = jnp.dot(h, w5_ref[...], preferred_element_type=jnp.float32) + b5_ref[...]
    h = jnp.maximum(h, 0.0).astype(bf16)
    y = jnp.dot(h, w6_ref[...], preferred_element_type=jnp.float32) + b6_ref[...]

    o_ref[...] = y.astype(o_ref.dtype)


def _vmem_limit_bytes():
    """Per-generation scoped-VMEM budget (48 MiB on 64-MiB chips, 64 MiB on 128-MiB chips)."""
    cap = None
    try:
        info = pltpu.get_tpu_info()
        for attr in ("vmem_capacity_bytes", "vmem_size_bytes", "vmem_bytes"):
            v = getattr(info, attr, None)
            if v:
                cap = int(v)
                break
    except Exception:
        cap = None
    if cap is None:
        cap = 64 * 1024 * 1024                  # conservative default: v7x per-TC VMEM
    if cap <= 64 * 1024 * 1024:                 # v7x: budget against 64 MiB
        return 48 * 1024 * 1024
    return 64 * 1024 * 1024                     # v5e / v6e: 128 MiB physical


def _pick_tile_b(B, F, x_itemsize, out_itemsize, weight_bytes, vmem_limit):
    """Largest batch tile that divides B, is sublane-aligned, fits VMEM, and
    (for v7x's two TensorCores) keeps >= 2 grid steps when B is large."""

    def fits(t):
        act = 2 * t * F * (x_itemsize + out_itemsize)   # double-buffered x + out tiles
        inter = t * sum(_HID_WIDTHS) * 4                 # f32 intermediates (rough)
        return act + inter + weight_bytes + (4 << 20) <= vmem_limit

    cands = [t for t in (1024, 512, 256, 128, 64, 32, 16, 8) if t <= B and B % t == 0]
    if not cands:
        return B                                         # tiny / odd batch: one full-batch block
    fitting = [t for t in cands if fits(t)] or [cands[-1]]
    tile_b = fitting[0]                                  # candidates are descending
    # Keep both TensorCores busy on v7x: avoid a 1-step grid for big batches.
    if B // tile_b < 2 and B >= 256:
        smaller = [t for t in fitting if t <= B // 2]
        if smaller:
            tile_b = smaller[0]
    return tile_b


def encoder_decoder_mlp(x, fused, *, tile_b=None, out_dtype=None):
    """x: (B, input_dim*input_dim*3).  fused: dict from prepare_params().
    Pass bf16 `x` / `out_dtype=jnp.bfloat16` for bf16 activation I/O."""
    B, F = x.shape
    out_dtype = x.dtype if out_dtype is None else jnp.dtype(out_dtype)

    w1, b1 = fused["w1"], fused["b1"]
    w2, b2 = fused["w2"], fused["b2"]
    w34, b34 = fused["w34"], fused["b34"]
    w5, b5 = fused["w5"], fused["b5"]
    w6, b6 = fused["w6"], fused["b6"]
    weights = (w1, b1, w2, b2, w34, b34, w5, b5, w6, b6)
    weight_bytes = sum(int(a.size) * a.dtype.itemsize for a in weights)

    vmem_limit = _vmem_limit_bytes()

    if tile_b is None:
        tile_b = _pick_tile_b(B, F, x.dtype.itemsize, jnp.dtype(out_dtype).itemsize,
                              weight_bytes, vmem_limit)
    else:
        tile_b = min(tile_b, B)
    assert B % tile_b == 0, "batch must be divisible by tile_b"
    assert tile_b == B or tile_b % 8 == 0, "tile_b must be the full batch or a multiple of 8"

    grid = (B // tile_b,)

    # Advisory cost estimate (post-fusion flops; weights counted once, plus
    # full activation read + write in their actual dtypes).
    flops = 2 * B * (F * 512 + 512 * 256 + 256 * 256 + 256 * 512 + 512 * F)
    bytes_accessed = (weight_bytes
                      + B * F * x.dtype.itemsize
                      + B * F * jnp.dtype(out_dtype).itemsize)
    cost = pl.CostEstimate(flops=flops, transcendentals=0, bytes_accessed=bytes_accessed)

    def build(single_buffer_weights):
        def full(arr):
            kw = {}
            if single_buffer_weights:
                # fetched once (constant index_map) -> no need for 2 pipeline buffers
                kw["pipeline_mode"] = pl.Buffered(1)
            return pl.BlockSpec(arr.shape, lambda i: (0,) * arr.ndim, **kw)

        return pl.pallas_call(
            _mlp_kernel,
            out_shape=jax.ShapeDtypeStruct((B, F), out_dtype),
            grid_spec=pltpu.PrefetchScalarGridSpec(
                num_scalar_prefetch=0,
                grid=grid,
                in_specs=[
                    pl.BlockSpec((tile_b, F), lambda i: (i, 0)),   # x tile
                    full(w1), full(b1),
                    full(w2), full(b2),
                    full(w34), full(b34),
                    full(w5), full(b5),
                    full(w6), full(b6),
                ],
                out_specs=pl.BlockSpec((tile_b, F), lambda i: (i, 0)),
            ),
            compiler_params=pltpu.CompilerParams(
                dimension_semantics=("parallel",),    # batch tiles shard across TCs on v7x
                vmem_limit_bytes=vmem_limit,
            ),
            cost_estimate=cost,
        )

    args = (x, *weights)
    try:
        return build(True)(*args)
    except Exception:
        # Fallback: default double-buffering of the constant weight blocks
        # (identical math, slightly larger VMEM footprint).
        return build(False)(*args)


def init_params(key, input_dim, encode_dim, dtype=jnp.float32):
    """Deterministic synthetic init (PyTorch-Linear-style uniform bounds), f32."""
    F = input_dim * input_dim * 3
    dims = [(F, 512), (512, 256), (256, encode_dim),
            (encode_dim, 256), (256, 512), (512, F)]
    params = {}
    keys = jax.random.split(key, 2 * len(dims))
    for idx, (fan_in, fan_out) in enumerate(dims):
        bound = 1.0 / (fan_in ** 0.5)
        w = jax.random.uniform(keys[2 * idx], (fan_in, fan_out),
                               minval=-bound, maxval=bound, dtype=dtype)
        b = jax.random.uniform(keys[2 * idx + 1], (1, fan_out),
                               minval=-bound, maxval=bound, dtype=dtype)
        params[f"w{idx + 1}"] = w
        params[f"b{idx + 1}"] = b
    return params


def prepare_params(params, *, compute_dtype=jnp.bfloat16):
    """Fold w3@w4 (no activation between them in the module) and cast matmul
    operands to bf16.  NOTE: if encode_dim grows toward 256 the fold's
    2*256*256 FLOPs exceed the unfused pair -- re-check before reusing."""
    w34 = params["w3"] @ params["w4"]                    # (256, 256), computed in f32
    b34 = params["b3"] @ params["w4"] + params["b4"]     # (1, 256)
    return {
        "w1": params["w1"].astype(compute_dtype), "b1": params["b1"].astype(jnp.float32),
        "w2": params["w2"].astype(compute_dtype), "b2": params["b2"].astype(jnp.float32),
        "w34": w34.astype(compute_dtype),         "b34": b34.astype(jnp.float32),
        "w5": params["w5"].astype(compute_dtype), "b5": params["b5"].astype(jnp.float32),
        "w6": params["w6"].astype(compute_dtype), "b6": params["b6"].astype(jnp.float32),
    }


def reference_forward_f32(x, params):
    """Exact f32 semantics of the original PyTorch module."""
    h = jnp.maximum(x @ params["w1"] + params["b1"], 0.0)
    h = jnp.maximum(h @ params["w2"] + params["b2"], 0.0)
    z = h @ params["w3"] + params["b3"]
    h = jnp.maximum(z @ params["w4"] + params["b4"], 0.0)
    h = jnp.maximum(h @ params["w5"] + params["b5"], 0.0)
    return h @ params["w6"] + params["b6"]


def reference_forward_fused(x, fused):
    """Same math/precision as the kernel (bf16 matmul operands, f32 accumulate)."""
    bf16 = jnp.bfloat16

    def lin(h, w, b):
        return jnp.dot(h.astype(bf16), w, preferred_element_type=jnp.float32) + b

    h = jnp.maximum(lin(x, fused["w1"], fused["b1"]), 0.0)
    h = jnp.maximum(lin(h, fused["w2"], fused["b2"]), 0.0)
    h = jnp.maximum(lin(h, fused["w34"], fused["b34"]), 0.0)
    h = jnp.maximum(lin(h, fused["w5"], fused["b5"]), 0.0)
    return lin(h, fused["w6"], fused["b6"])


if __name__ == "__main__":
    input_dim = 16          # -> flattened feature dim = 16*16*3 = 768
    encode_dim = 32
    batch = 16              # small test batch -> tile_b auto-selects 16 (single grid step)

    key = jax.random.PRNGKey(0)
    k_x, k_p = jax.random.split(key)
    F = input_dim * input_dim * 3
    x = jax.random.normal(k_x, (batch, F), dtype=jnp.float32)

    params = init_params(k_p, input_dim, encode_dim)
    fused = prepare_params(params)

    out = encoder_decoder_mlp(x, fused)
    out = jax.block_until_ready(out)

    assert out.shape == (batch, F)
    assert bool(jnp.all(jnp.isfinite(out)))

    # Tight check against a reference with identical precision/fusion.
    ref_bf16 = reference_forward_fused(x, fused)
    assert jnp.allclose(out, ref_bf16, atol=1e-3, rtol=1e-2), "mismatch vs bf16-consistent reference"

    # Loose sanity check against the exact f32 PyTorch-equivalent forward
    # (bf16 MXU operands loosen agreement, per design).
    ref_f32 = reference_forward_f32(x, params)
    assert jnp.allclose(out, ref_f32, atol=5e-2, rtol=5e-2), "mismatch vs f32 reference"

    print("KERNEL_OK")
</pallas_src>

<mosaic_0001>
module attributes {stable_mosaic.version = 11 : i64} {
  func.func @_mlp_kernel(%arg0: i32, %arg1: memref<16x768xf32, #tpu.memory_space<vmem>>, %arg2: memref<768x512xbf16, #tpu.memory_space<vmem>>, %arg3: memref<1x512xf32, #tpu.memory_space<vmem>>, %arg4: memref<512x256xbf16, #tpu.memory_space<vmem>>, %arg5: memref<1x256xf32, #tpu.memory_space<vmem>>, %arg6: memref<256x256xbf16, #tpu.memory_space<vmem>>, %arg7: memref<1x256xf32, #tpu.memory_space<vmem>>, %arg8: memref<256x512xbf16, #tpu.memory_space<vmem>>, %arg9: memref<1x512xf32, #tpu.memory_space<vmem>>, %arg10: memref<512x768xbf16, #tpu.memory_space<vmem>>, %arg11: memref<1x768xf32, #tpu.memory_space<vmem>>, %arg12: memref<16x768xf32, #tpu.memory_space<vmem>>) attributes {dimension_semantics = [#tpu.dimension_semantics<parallel>], iteration_bounds = array<i64: 1>, scalar_prefetch = 0 : i64, scratch_operands = 0 : i64, tpu.core_type = #tpu.core_type<tc>, window_params = [{transform_indices = @transform_0, window_bounds = array<i64: 16, 768>}, {pipeline_mode = #tpu.pipeline_mode<synchronous>, transform_indices = @transform_1, window_bounds = array<i64: 768, 512>}, {pipeline_mode = #tpu.pipeline_mode<synchronous>, transform_indices = @transform_2, window_bounds = array<i64: 1, 512>}, {pipeline_mode = #tpu.pipeline_mode<synchronous>, transform_indices = @transform_3, window_bounds = array<i64: 512, 256>}, {pipeline_mode = #tpu.pipeline_mode<synchronous>, transform_indices = @transform_4, window_bounds = array<i64: 1, 256>}, {pipeline_mode = #tpu.pipeline_mode<synchronous>, transform_indices = @transform_5, window_bounds = array<i64: 256, 256>}, {pipeline_mode = #tpu.pipeline_mode<synchronous>, transform_indices = @transform_6, window_bounds = array<i64: 1, 256>}, {pipeline_mode = #tpu.pipeline_mode<synchronous>, transform_indices = @transform_7, window_bounds = array<i64: 256, 512>}, {pipeline_mode = #tpu.pipeline_mode<synchronous>, transform_indices = @transform_8, window_bounds = array<i64: 1, 512>}, {pipeline_mode = #tpu.pipeline_mode<synchronous>, transform_indices = @transform_9, window_bounds = array<i64: 512, 768>}, {pipeline_mode = #tpu.pipeline_mode<synchronous>, transform_indices = @transform_10, window_bounds = array<i64: 1, 768>}, {transform_indices = @transform_11, window_bounds = array<i64: 16, 768>}]} {
    %c0 = arith.constant 0 : index
    %c0_0 = arith.constant 0 : index
    %0 = vector.load %arg1[%c0, %c0_0] : memref<16x768xf32, #tpu.memory_space<vmem>>, vector<16x768xf32>
    %1 = arith.truncf %0 : vector<16x768xf32> to vector<16x768xbf16>
    %c0_1 = arith.constant 0 : index
    %c0_2 = arith.constant 0 : index
    %2 = vector.load %arg2[%c0_1, %c0_2] : memref<768x512xbf16, #tpu.memory_space<vmem>>, vector<768x512xbf16>
    %cst = arith.constant dense<0.000000e+00> : vector<16x512xf32>
    %3 = tpu.matmul %1, %2, %cst {dimension_numbers = #tpu.dot_dimension_numbers<[1], [0], [0], [1], [0, 0, 1, 1], [], []>} : vector<16x768xbf16>, vector<768x512xbf16>, vector<16x512xf32> -> vector<16x512xf32>
    %c0_3 = arith.constant 0 : index
    %c0_4 = arith.constant 0 : index
    %4 = vector.load %arg3[%c0_3, %c0_4] : memref<1x512xf32, #tpu.memory_space<vmem>>, vector<1x512xf32>
    %5 = vector.broadcast %4 : vector<1x512xf32> to vector<16x512xf32>
    %6 = arith.addf %3, %5 : vector<16x512xf32>
    %cst_5 = arith.constant 0.000000e+00 : f32
    %7 = vector.broadcast %cst_5 : f32 to vector<16x512xf32>
    %8 = arith.maximumf %6, %7 : vector<16x512xf32>
    %9 = arith.truncf %8 : vector<16x512xf32> to vector<16x512xbf16>
    %c0_6 = arith.constant 0 : index
    %c0_7 = arith.constant 0 : index
    %10 = vector.load %arg4[%c0_6, %c0_7] : memref<512x256xbf16, #tpu.memory_space<vmem>>, vector<512x256xbf16>
    %cst_8 = arith.constant dense<0.000000e+00> : vector<16x256xf32>
    %11 = tpu.matmul %9, %10, %cst_8 {dimension_numbers = #tpu.dot_dimension_numbers<[1], [0], [0], [1], [0, 0, 1, 1], [], []>} : vector<16x512xbf16>, vector<512x256xbf16>, vector<16x256xf32> -> vector<16x256xf32>
    %c0_9 = arith.constant 0 : index
    %c0_10 = arith.constant 0 : index
    %12 = vector.load %arg5[%c0_9, %c0_10] : memref<1x256xf32, #tpu.memory_space<vmem>>, vector<1x256xf32>
    %13 = vector.broadcast %12 : vector<1x256xf32> to vector<16x256xf32>
    %14 = arith.addf %11, %13 : vector<16x256xf32>
    %cst_11 = arith.constant 0.000000e+00 : f32
    %15 = vector.broadcast %cst_11 : f32 to vector<16x256xf32>
    %16 = arith.maximumf %14, %15 : vector<16x256xf32>
    %17 = arith.truncf %16 : vector<16x256xf32> to vector<16x256xbf16>
    %c0_12 = arith.constant 0 : index
    %c0_13 = arith.constant 0 : index
    %18 = vector.load %arg6[%c0_12, %c0_13] : memref<256x256xbf16, #tpu.memory_space<vmem>>, vector<256x256xbf16>
    %cst_14 = arith.constant dense<0.000000e+00> : vector<16x256xf32>
    %19 = tpu.matmul %17, %18, %cst_14 {dimension_numbers = #tpu.dot_dimension_numbers<[1], [0], [0], [1], [0, 0, 1, 1], [], []>} : vector<16x256xbf16>, vector<256x256xbf16>, vector<16x256xf32> -> vector<16x256xf32>
    %c0_15 = arith.constant 0 : index
    %c0_16 = arith.constant 0 : index
    %20 = vector.load %arg7[%c0_15, %c0_16] : memref<1x256xf32, #tpu.memory_space<vmem>>, vector<1x256xf32>
    %21 = vector.broadcast %20 : vector<1x256xf32> to vector<16x256xf32>
    %22 = arith.addf %19, %21 : vector<16x256xf32>
    %cst_17 = arith.constant 0.000000e+00 : f32
    %23 = vector.broadcast %cst_17 : f32 to vector<16x256xf32>
    %24 = arith.maximumf %22, %23 : vector<16x256xf32>
    %25 = arith.truncf %24 : vector<16x256xf32> to vector<16x256xbf16>
    %c0_18 = arith.constant 0 : index
    %c0_19 = arith.constant 0 : index
    %26 = vector.load %arg8[%c0_18, %c0_19] : memref<256x512xbf16, #tpu.memory_space<vmem>>, vector<256x512xbf16>
    %cst_20 = arith.constant dense<0.000000e+00> : vector<16x512xf32>
    %27 = tpu.matmul %25, %26, %cst_20 {dimension_numbers = #tpu.dot_dimension_numbers<[1], [0], [0], [1], [0, 0, 1, 1], [], []>} : vector<16x256xbf16>, vector<256x512xbf16>, vector<16x512xf32> -> vector<16x512xf32>
    %c0_21 = arith.constant 0 : index
    %c0_22 = arith.constant 0 : index
    %28 = vector.load %arg9[%c0_21, %c0_22] : memref<1x512xf32, #tpu.memory_space<vmem>>, vector<1x512xf32>
    %29 = vector.broadcast %28 : vector<1x512xf32> to vector<16x512xf32>
    %30 = arith.addf %27, %29 : vector<16x512xf32>
    %cst_23 = arith.constant 0.000000e+00 : f32
    %31 = vector.broadcast %cst_23 : f32 to vector<16x512xf32>
    %32 = arith.maximumf %30, %31 : vector<16x512xf32>
    %33 = arith.truncf %32 : vector<16x512xf32> to vector<16x512xbf16>
    %c0_24 = arith.constant 0 : index
    %c0_25 = arith.constant 0 : index
    %34 = vector.load %arg10[%c0_24, %c0_25] : memref<512x768xbf16, #tpu.memory_space<vmem>>, vector<512x768xbf16>
    %cst_26 = arith.constant dense<0.000000e+00> : vector<16x768xf32>
    %35 = tpu.matmul %33, %34, %cst_26 {dimension_numbers = #tpu.dot_dimension_numbers<[1], [0], [0], [1], [0, 0, 1, 1], [], []>} : vector<16x512xbf16>, vector<512x768xbf16>, vector<16x768xf32> -> vector<16x768xf32>
    %c0_27 = arith.constant 0 : index
    %c0_28 = arith.constant 0 : index
    %36 = vector.load %arg11[%c0_27, %c0_28] : memref<1x768xf32, #tpu.memory_space<vmem>>, vector<1x768xf32>
    %37 = vector.broadcast %36 : vector<1x768xf32> to vector<16x768xf32>
    %38 = arith.addf %35, %37 : vector<16x768xf32>
    %c0_29 = arith.constant 0 : index
    %c0_30 = arith.constant 0 : index
    %39 = vector.load %arg12[%c0_29, %c0_30] : memref<16x768xf32, #tpu.memory_space<vmem>>, vector<16x768xf32>
    tpu.vector_store %arg12[%c0_29, %c0_30], %38 {strides = array<i32>} : memref<16x768xf32, #tpu.memory_space<vmem>>, vector<16x768xf32>,
    return
  }
  func.func @transform_0(%arg0: i32) -> (i32, i32) {
    %c0_i32 = arith.constant 0 : i32
    %c0_i32_0 = arith.constant 0 : i32
    return %arg0, %c0_i32 : i32, i32
  }
  func.func @transform_1(%arg0: i32) -> (i32, i32) {
    %c0_i32 = arith.constant 0 : i32
    %c0_i32_0 = arith.constant 0 : i32
    %c0_i32_1 = arith.constant 0 : i32
    return %c0_i32, %c0_i32_0 : i32, i32
  }
  func.func @transform_2(%arg0: i32) -> (i32, i32) {
    %c0_i32 = arith.constant 0 : i32
    %c0_i32_0 = arith.constant 0 : i32
    %c0_i32_1 = arith.constant 0 : i32
    return %c0_i32, %c0_i32_0 : i32, i32
  }
  func.func @transform_3(%arg0: i32) -> (i32, i32) {
    %c0_i32 = arith.constant 0 : i32
    %c0_i32_0 = arith.constant 0 : i32
    %c0_i32_1 = arith.constant 0 : i32
    return %c0_i32, %c0_i32_0 : i32, i32
  }
  func.func @transform_4(%arg0: i32) -> (i32, i32) {
    %c0_i32 = arith.constant 0 : i32
    %c0_i32_0 = arith.constant 0 : i32
    %c0_i32_1 = arith.constant 0 : i32
    return %c0_i32, %c0_i32_0 : i32, i32
  }
  func.func @transform_5(%arg0: i32) -> (i32, i32) {
    %c0_i32 = arith.constant 0 : i32
    %c0_i32_0 = arith.constant 0 : i32
    %c0_i32_1 = arith.constant 0 : i32
    return %c0_i32, %c0_i32_0 : i32, i32
  }
  func.func @transform_6(%arg0: i32) -> (i32, i32) {
    %c0_i32 = arith.constant 0 : i32
    %c0_i32_0 = arith.constant 0 : i32
    %c0_i32_1 = arith.constant 0 : i32
    return %c0_i32, %c0_i32_0 : i32, i32
  }
  func.func @transform_7(%arg0: i32) -> (i32, i32) {
    %c0_i32 = arith.constant 0 : i32
    %c0_i32_0 = arith.constant 0 : i32
    %c0_i32_1 = arith.constant 0 : i32
    return %c0_i32, %c0_i32_0 : i32, i32
  }
  func.func @transform_8(%arg0: i32) -> (i32, i32) {
    %c0_i32 = arith.constant 0 : i32
    %c0_i32_0 = arith.constant 0 : i32
    %c0_i32_1 = arith.constant 0 : i32
    return %c0_i32, %c0_i32_0 : i32, i32
  }
  func.func @transform_9(%arg0: i32) -> (i32, i32) {
    %c0_i32 = arith.constant 0 : i32
    %c0_i32_0 = arith.constant 0 : i32
    %c0_i32_1 = arith.constant 0 : i32
    return %c0_i32, %c0_i32_0 : i32, i32
  }
  func.func @transform_10(%arg0: i32) -> (i32, i32) {
    %c0_i32 = arith.constant 0 : i32
    %c0_i32_0 = arith.constant 0 : i32
    %c0_i32_1 = arith.constant 0 : i32
    return %c0_i32, %c0_i32_0 : i32, i32
  }
  func.func @transform_11(%arg0: i32) -> (i32, i32) {
    %c0_i32 = arith.constant 0 : i32
    %c0_i32_0 = arith.constant 0 : i32
    return %arg0, %c0_i32 : i32, i32
  }
}

module attributes {stable_mosaic.version = 11 : i64} {
  func.func @_mlp_kernel(%arg0: i32, %arg1: memref<16x768xf32, #tpu.memory_space<vmem>>, %arg2: memref<768x512xbf16, #tpu.memory_space<vmem>>, %arg3: memref<1x512xf32, #tpu.memory_space<vmem>>, %arg4: memref<512x256xbf16, #tpu.memory_space<vmem>>, %arg5: memref<1x256xf32, #tpu.memory_space<vmem>>, %arg6: memref<256x256xbf16, #tpu.memory_space<vmem>>, %arg7: memref<1x256xf32, #tpu.memory_space<vmem>>, %arg8: memref<256x512xbf16, #tpu.memory_space<vmem>>, %arg9: memref<1x512xf32, #tpu.memory_space<vmem>>, %arg10: memref<512x768xbf16, #tpu.memory_space<vmem>>, %arg11: memref<1x768xf32, #tpu.memory_space<vmem>>, %arg12: memref<16x768xf32, #tpu.memory_space<vmem>>) attributes {dimension_semantics = [#tpu.dimension_semantics<parallel>], iteration_bounds = array<i64: 1>, scalar_prefetch = 0 : i64, scratch_operands = 0 : i64, tpu.core_type = #tpu.core_type<tc>, window_params = [{transform_indices = @transform_0, window_bounds = array<i64: 16, 768>}, {pipeline_mode = #tpu.pipeline_mode<synchronous>, transform_indices = @transform_1, window_bounds = array<i64: 768, 512>}, {pipeline_mode = #tpu.pipeline_mode<synchronous>, transform_indices = @transform_2, window_bounds = array<i64: 1, 512>}, {pipeline_mode = #tpu.pipeline_mode<synchronous>, transform_indices = @transform_3, window_bounds = array<i64: 512, 256>}, {pipeline_mode = #tpu.pipeline_mode<synchronous>, transform_indices = @transform_4, window_bounds = array<i64: 1, 256>}, {pipeline_mode = #tpu.pipeline_mode<synchronous>, transform_indices = @transform_5, window_bounds = array<i64: 256, 256>}, {pipeline_mode = #tpu.pipeline_mode<synchronous>, transform_indices = @transform_6, window_bounds = array<i64: 1, 256>}, {pipeline_mode = #tpu.pipeline_mode<synchronous>, transform_indices = @transform_7, window_bounds = array<i64: 256, 512>}, {pipeline_mode = #tpu.pipeline_mode<synchronous>, transform_indices = @transform_8, window_bounds = array<i64: 1, 512>}, {pipeline_mode = #tpu.pipeline_mode<synchronous>, transform_indices = @transform_9, window_bounds = array<i64: 512, 768>}, {pipeline_mode = #tpu.pipeline_mode<synchronous>, transform_indices = @transform_10, window_bounds = array<i64: 1, 768>}, {transform_indices = @transform_11, window_bounds = array<i64: 16, 768>}]} {
    %c0 = arith.constant 0 : index
    %c0_0 = arith.constant 0 : index
    %0 = vector.load %arg1[%c0, %c0_0] : memref<16x768xf32, #tpu.memory_space<vmem>>, vector<16x768xf32>
    %1 = arith.truncf %0 : vector<16x768xf32> to vector<16x768xbf16>
    %c0_1 = arith.constant 0 : index
    %c0_2 = arith.constant 0 : index
    %2 = vector.load %arg2[%c0_1, %c0_2] : memref<768x512xbf16, #tpu.memory_space<vmem>>, vector<768x512xbf16>
    %cst = arith.constant dense<0.000000e+00> : vector<16x512xf32>
    %3 = tpu.matmul %1, %2, %cst {dimension_numbers = #tpu.dot_dimension_numbers<[1], [0], [0], [1], [0, 0, 1, 1], [], []>} : vector<16x768xbf16>, vector<768x512xbf16>, vector<16x512xf32> -> vector<16x512xf32>
    %c0_3 = arith.constant 0 : index
    %c0_4 = arith.constant 0 : index
    %4 = vector.load %arg3[%c0_3, %c0_4] : memref<1x512xf32, #tpu.memory_space<vmem>>, vector<1x512xf32>
    %5 = vector.broadcast %4 : vector<1x512xf32> to vector<16x512xf32>
    %6 = arith.addf %3, %5 : vector<16x512xf32>
    %cst_5 = arith.constant 0.000000e+00 : f32
    %7 = vector.broadcast %cst_5 : f32 to vector<16x512xf32>
    %8 = arith.maximumf %6, %7 : vector<16x512xf32>
    %9 = arith.truncf %8 : vector<16x512xf32> to vector<16x512xbf16>
    %c0_6 = arith.constant 0 : index
    %c0_7 = arith.constant 0 : index
    %10 = vector.load %arg4[%c0_6, %c0_7] : memref<512x256xbf16, #tpu.memory_space<vmem>>, vector<512x256xbf16>
    %cst_8 = arith.constant dense<0.000000e+00> : vector<16x256xf32>
    %11 = tpu.matmul %9, %10, %cst_8 {dimension_numbers = #tpu.dot_dimension_numbers<[1], [0], [0], [1], [0, 0, 1, 1], [], []>} : vector<16x512xbf16>, vector<512x256xbf16>, vector<16x256xf32> -> vector<16x256xf32>
    %c0_9 = arith.constant 0 : index
    %c0_10 = arith.constant 0 : index
    %12 = vector.load %arg5[%c0_9, %c0_10] : memref<1x256xf32, #tpu.memory_space<vmem>>, vector<1x256xf32>
    %13 = vector.broadcast %12 : vector<1x256xf32> to vector<16x256xf32>
    %14 = arith.addf %11, %13 : vector<16x256xf32>
    %cst_11 = arith.constant 0.000000e+00 : f32
    %15 = vector.broadcast %cst_11 : f32 to vector<16x256xf32>
    %16 = arith.maximumf %14, %15 : vector<16x256xf32>
    %17 = arith.truncf %16 : vector<16x256xf32> to vector<16x256xbf16>
    %c0_12 = arith.constant 0 : index
    %c0_13 = arith.constant 0 : index
    %18 = vector.load %arg6[%c0_12, %c0_13] : memref<256x256xbf16, #tpu.memory_space<vmem>>, vector<256x256xbf16>
    %cst_14 = arith.constant dense<0.000000e+00> : vector<16x256xf32>
    %19 = tpu.matmul %17, %18, %cst_14 {dimension_numbers = #tpu.dot_dimension_numbers<[1], [0], [0], [1], [0, 0, 1, 1], [], []>} : vector<16x256xbf16>, vector<256x256xbf16>, vector<16x256xf32> -> vector<16x256xf32>
    %c0_15 = arith.constant 0 : index
    %c0_16 = arith.constant 0 : index
    %20 = vector.load %arg7[%c0_15, %c0_16] : memref<1x256xf32, #tpu.memory_space<vmem>>, vector<1x256xf32>
    %21 = vector.broadcast %20 : vector<1x256xf32> to vector<16x256xf32>
    %22 = arith.addf %19, %21 : vector<16x256xf32>
    %cst_17 = arith.constant 0.000000e+00 : f32
    %23 = vector.broadcast %cst_17 : f32 to vector<16x256xf32>
    %24 = arith.maximumf %22, %23 : vector<16x256xf32>
    %25 = arith.truncf %24 : vector<16x256xf32> to vector<16x256xbf16>
    %c0_18 = arith.constant 0 : index
    %c0_19 = arith.constant 0 : index
    %26 = vector.load %arg8[%c0_18, %c0_19] : memref<256x512xbf16, #tpu.memory_space<vmem>>, vector<256x512xbf16>
    %cst_20 = arith.constant dense<0.000000e+00> : vector<16x512xf32>
    %27 = tpu.matmul %25, %26, %cst_20 {dimension_numbers = #tpu.dot_dimension_numbers<[1], [0], [0], [1], [0, 0, 1, 1], [], []>} : vector<16x256xbf16>, vector<256x512xbf16>, vector<16x512xf32> -> vector<16x512xf32>
    %c0_21 = arith.constant 0 : index
    %c0_22 = arith.constant 0 : index
    %28 = vector.load %arg9[%c0_21, %c0_22] : memref<1x512xf32, #tpu.memory_space<vmem>>, vector<1x512xf32>
    %29 = vector.broadcast %28 : vector<1x512xf32> to vector<16x512xf32>
    %30 = arith.addf %27, %29 : vector<16x512xf32>
    %cst_23 = arith.constant 0.000000e+00 : f32
    %31 = vector.broadcast %cst_23 : f32 to vector<16x512xf32>
    %32 = arith.maximumf %30, %31 : vector<16x512xf32>
    %33 = arith.truncf %32 : vector<16x512xf32> to vector<16x512xbf16>
    %c0_24 = arith.constant 0 : index
    %c0_25 = arith.constant 0 : index
    %34 = vector.load %arg10[%c0_24, %c0_25] : memref<512x768xbf16, #tpu.memory_space<vmem>>, vector<512x768xbf16>
    %cst_26 = arith.constant dense<0.000000e+00> : vector<16x768xf32>
    %35 = tpu.matmul %33, %34, %cst_26 {dimension_numbers = #tpu.dot_dimension_numbers<[1], [0], [0], [1], [0, 0, 1, 1], [], []>} : vector<16x512xbf16>, vector<512x768xbf16>, vector<16x768xf32> -> vector<16x768xf32>
    %c0_27 = arith.constant 0 : index
    %c0_28 = arith.constant 0 : index
    %36 = vector.load %arg11[%c0_27, %c0_28] : memref<1x768xf32, #tpu.memory_space<vmem>>, vector<1x768xf32>
    %37 = vector.broadcast %36 : vector<1x768xf32> to vector<16x768xf32>
    %38 = arith.addf %35, %37 : vector<16x768xf32>
    %c0_29 = arith.constant 0 : index
    %c0_30 = arith.constant 0 : index
    %39 = vector.load %arg12[%c0_29, %c0_30] : memref<16x768xf32, #tpu.memory_space<vmem>>, vector<16x768xf32>
    tpu.vector_store %arg12[%c0_29, %c0_30], %38 {strides = array<i32>} : memref<16x768xf32, #tpu.memory_space<vmem>>, vector<16x768xf32>,
    return
  }
  func.func @transform_0(%arg0: i32) -> (i32, i32) {
    %c0_i32 = arith.constant 0 : i32
    %c0_i32_0 = arith.constant 0 : i32
    return %arg0, %c0_i32 : i32, i32
  }
  func.func @transform_1(%arg0: i32) -> (i32, i32) {
    %c0_i32 = arith.constant 0 : i32
    %c0_i32_0 = arith.constant 0 : i32
    %c0_i32_1 = arith.constant 0 : i32
    return %c0_i32, %c0_i32_0 : i32, i32
  }
  func.func @transform_2(%arg0: i32) -> (i32, i32) {
    %c0_i32 = arith.constant 0 : i32
    %c0_i32_0 = arith.constant 0 : i32
    %c0_i32_1 = arith.constant 0 : i32
    return %c0_i32, %c0_i32_0 : i32, i32
  }
  func.func @transform_3(%arg0: i32) -> (i32, i32) {
    %c0_i32 = arith.constant 0 : i32
    %c0_i32_0 = arith.constant 0 : i32
    %c0_i32_1 = arith.constant 0 : i32
    return %c0_i32, %c0_i32_0 : i32, i32
  }
  func.func @transform_4(%arg0: i32) -> (i32, i32) {
    %c0_i32 = arith.constant 0 : i32
    %c0_i32_0 = arith.constant 0 : i32
    %c0_i32_1 = arith.constant 0 : i32
    return %c0_i32, %c0_i32_0 : i32, i32
  }
  func.func @transform_5(%arg0: i32) -> (i32, i32) {
    %c0_i32 = arith.constant 0 : i32
    %c0_i32_0 = arith.constant 0 : i32
    %c0_i32_1 = arith.constant 0 : i32
    return %c0_i32, %c0_i32_0 : i32, i32
  }
  func.func @transform_6(%arg0: i32) -> (i32, i32) {
    %c0_i32 = arith.constant 0 : i32
    %c0_i32_0 = arith.constant 0 : i32
    %c0_i32_1 = arith.constant 0 : i32
    return %c0_i32, %c0_i32_0 : i32, i32
  }
  func.func @transform_7(%arg0: i32) -> (i32, i32) {
    %c0_i32 = arith.constant 0 : i32
    %c0_i32_0 = arith.constant 0 : i32
    %c0_i32_1 = arith.constant 0 : i32
    return %c0_i32, %c0_i32_0 : i32, i32
  }
  func.func @transform_8(%arg0: i32) -> (i32, i32) {
    %c0_i32 = arith.constant 0 : i32
    %c0_i32_0 = arith.constant 0 : i32
    %c0_i32_1 = arith.constant 0 : i32
    return %c0_i32, %c0_i32_0 : i32, i32
  }
  func.func @transform_9(%arg0: i32) -> (i32, i32) {
    %c0_i32 = arith.constant 0 : i32
    %c0_i32_0 = arith.constant 0 : i32
    %c0_i32_1 = arith.constant 0 : i32
    return %c0_i32, %c0_i32_0 : i32, i32
  }
  func.func @transform_10(%arg0: i32) -> (i32, i32) {
    %c0_i32 = arith.constant 0 : i32
    %c0_i32_0 = arith.constant 0 : i32
    %c0_i32_1 = arith.constant 0 : i32
    return %c0_i32, %c0_i32_0 : i32, i32
  }
  func.func @transform_11(%arg0: i32) -> (i32, i32) {
    %c0_i32 = arith.constant 0 : i32
    %c0_i32_0 = arith.constant 0 : i32
    return %arg0, %c0_i32 : i32, i32
  }
}

</mosaic_0001>

<llo_original>
// kernel: tpu_custom_call.1
$region0: #{tpu_custom_call.1}
  #allocation0 [shape = 'u32[]', space=smem, size = 0x4, offset = 0x4, fixed_abs, tag = 'smem constant byte address 0x4 - core index']
  #allocation1 [shape = 'u32[72,128]{1,0:T(1,128)}', space=vmem, size = 0x9000, scoped, tag = 'internal scratch']
  %s0 = inlined_call_operand.hbm [shape: f32[16,768], index: 0, kind: input, shape index: {}]
  %s1 = inlined_call_operand.hbm [shape: bf16[768,512], index: 1, kind: input, shape index: {}]
  %s2 = inlined_call_operand.hbm [shape: f32[1,512], index: 2, kind: input, shape index: {}]
  %s3 = inlined_call_operand.hbm [shape: bf16[512,256], index: 3, kind: input, shape index: {}]
  %s4 = inlined_call_operand.vmem [shape: f32[1,256], index: 4, kind: input, shape index: {}]
  %s5 = inlined_call_operand.hbm [shape: bf16[256,256], index: 5, kind: input, shape index: {}]
  %s6 = inlined_call_operand.hbm [shape: f32[1,256], index: 6, kind: input, shape index: {}]
  %s7 = inlined_call_operand.hbm [shape: bf16[256,512], index: 7, kind: input, shape index: {}]
  %s8 = inlined_call_operand.hbm [shape: f32[1,512], index: 8, kind: input, shape index: {}]
  %s9 = inlined_call_operand.hbm [shape: bf16[512,768], index: 9, kind: input, shape index: {}]
  %s10 = inlined_call_operand.vmem [shape: f32[1,768], index: 10, kind: input, shape index: {}]
  %s11 = inlined_call_operand.hbm [shape: f32[16,768], index: 11, kind: output, shape index: {}]
  %s12 = sld [smem:[#allocation0]]
  $region90: #{tpu_custom_call.1} parent=0
    _
  %s14 = ssub.s32 1, %s12
  %s15 = scalar_select 0, %s14, %s12
  $region1: #{tpu_custom_call.1} parent=0
    #allocation2 [shape = 'u8[49152]{0}', space=vmem, size = 0xc000, scoped, tag = 'input window, operand 0, single buffered']
    #allocation3 [shape = 's32[1]{0}', space=sflag, size = 0x4, scoped, tag = 'scoped memory for tpu_custom_call.1']
    #allocation4 [shape = 's32[1]{0}', space=sflag, size = 0x4, scoped, tag = 'scoped memory for tpu_custom_call.1']
    #allocation5 [shape = 'u8[786432]{0}', space=vmem, size = 0xc0000, scoped, tag = 'input window, operand 1, single buffered']
    #allocation6 [shape = 's32[1]{0}', space=sflag, size = 0x4, scoped, tag = 'scoped memory for tpu_custom_call.1']
    #allocation7 [shape = 'u8[2048]{0}', space=vmem, size = 0x800, scoped, tag = 'input window, operand 2, single buffered']
    #allocation8 [shape = 'u8[262144]{0}', space=vmem, size = 0x40000, scoped, tag = 'input window, operand 3, single buffered']
    #allocation9 [shape = 's32[1]{0}', space=sflag, size = 0x4, scoped, tag = 'scoped memory for tpu_custom_call.1']
    #allocation10 [shape = 'u8[131072]{0}', space=vmem, size = 0x20000, scoped, tag = 'input window, operand 5, single buffered']
    #allocation11 [shape = 'u8[1024]{0}', space=vmem, size = 0x400, scoped, tag = 'input window, operand 6, single buffered']
    #allocation12 [shape = 's32[1]{0}', space=sflag, size = 0x4, scoped, tag = 'scoped memory for tpu_custom_call.1']
    #allocation13 [shape = 'u8[262144]{0}', space=vmem, size = 0x40000, scoped, tag = 'input window, operand 7, single buffered']
    #allocation14 [shape = 'u8[2048]{0}', space=vmem, size = 0x800, scoped, tag = 'input window, operand 8, single buffered']
    #allocation15 [shape = 's32[1]{0}', space=sflag, size = 0x4, scoped, tag = 'scoped memory for tpu_custom_call.1']
    #allocation16 [shape = 'u8[786432]{0}', space=vmem, size = 0xc0000, scoped, tag = 'input window, operand 9, single buffered']
    #allocation17 [shape = 'u8[49152]{0}', space=vmem, size = 0xc000, scoped, tag = 'output window, operand 0, single buffered']
    %16 = vsyncpa [#allocation3], 0
    %17 = vsyncpa [#allocation6], 0
    %18 = vsyncpa [#allocation9], 0
    %19 = vsyncpa [#allocation12], 0
    %20 = vsyncpa [#allocation15], 0
    %21 = vsyncpa [#allocation4], 0
    // Predicated region
    $region2: #{tpu_custom_call.1} parent=1 // pred_check
      _
    $region3: #{tpu_custom_call.1} parent=1 // pred_check_branch
      %23 = sbr.rel (0) target = $region5
    $region4: #{tpu_custom_call.1} parent=1 // pred_region
      %25 = vsyncadd [#allocation3], 0
      %s26 = sshll.u32 %s0, 4
      %s27 = int_to_ptr.hbm [resolvable:$true] %s26
      %s28 = sshll.u32 [#allocation2], 4
      %s29 = int_to_ptr.vmem [resolvable:$true] %s28
      %34 = dma.hbm_to_vmem [thread:$0]  %s27, 1536, %s29, [#allocation3], 768, 768, 48
    $region5: #{tpu_custom_call.1} parent=1 // pred_fallthru
      _
    // Predicated region
    $region6: #{tpu_custom_call.1} parent=1 // pred_check
      _
    $region7: #{tpu_custom_call.1} parent=1 // pred_check_branch
      %36 = sbr.rel (0) target = $region9
    $region8: #{tpu_custom_call.1} parent=1 // pred_region
      %38 = vsyncadd [#allocation6], 0
      %s39 = sshll.u32 %s1, 4
      %s40 = int_to_ptr.hbm [resolvable:$true] %s39
      %s41 = sshll.u32 [#allocation5], 4
      %s42 = int_to_ptr.vmem [resolvable:$true] %s41
      %47 = dma.hbm_to_vmem [thread:$0]  %s40, 24576, %s42, [#allocation6], 256, 256, 16
    $region9: #{tpu_custom_call.1} parent=1 // pred_fallthru
      _
    // Predicated region
    $region10: #{tpu_custom_call.1} parent=1 // pred_check
      _
    $region11: #{tpu_custom_call.1} parent=1 // pred_check_branch
      %49 = sbr.rel (0) target = $region13
    $region12: #{tpu_custom_call.1} parent=1 // pred_region
      %51 = vsyncadd [#allocation6], 0
      %s53 = sshll.u32 %s2, 4
      %s54 = int_to_ptr.hbm [resolvable:$true] %s53
      %s55 = sshll.u32 [#allocation7], 4
      %s56 = int_to_ptr.vmem [resolvable:$true] %s55
      %58 = dma.hbm_to_vmem [thread:$0]  %s54, 64, %s56, [#allocation6]
    $region13: #{tpu_custom_call.1} parent=1 // pred_fallthru
      _
    // Predicated region
    $region14: #{tpu_custom_call.1} parent=1 // pred_check
      _
    $region15: #{tpu_custom_call.1} parent=1 // pred_check_branch
      %60 = sbr.rel (0) target = $region17
    $region16: #{tpu_custom_call.1} parent=1 // pred_region
      %62 = vsyncadd [#allocation9], 0
      %s63 = sshll.u32 %s3, 4
      %s64 = int_to_ptr.hbm [resolvable:$true] %s63
      %s65 = sshll.u32 [#allocation8], 4
      %s66 = int_to_ptr.vmem [resolvable:$true] %s65
      %71 = dma.hbm_to_vmem [thread:$0]  %s64, 8192, %s66, [#allocation9], 128, 128, 8
    $region17: #{tpu_custom_call.1} parent=1 // pred_fallthru
      _
    // Predicated region
    $region18: #{tpu_custom_call.1} parent=1 // pred_check
      _
    $region19: #{tpu_custom_call.1} parent=1 // pred_check_branch
      %73 = sbr.rel (0) target = $region21
    $region20: #{tpu_custom_call.1} parent=1 // pred_region
      _
    $region21: #{tpu_custom_call.1} parent=1 // pred_fallthru
      _
    // Predicated region
    $region22: #{tpu_custom_call.1} parent=1 // pred_check
      _
    $region23: #{tpu_custom_call.1} parent=1 // pred_check_branch
      %75 = sbr.rel (0) target = $region25
    $region24: #{tpu_custom_call.1} parent=1 // pred_region
      %77 = vsyncadd [#allocation9], 0
      %s78 = sshll.u32 %s5, 4
      %s79 = int_to_ptr.hbm [resolvable:$true] %s78
      %s80 = sshll.u32 [#allocation10], 4
      %s81 = int_to_ptr.vmem [resolvable:$true] %s80
      %86 = dma.hbm_to_vmem [thread:$0]  %s79, 4096, %s81, [#allocation9], 128, 128, 8
    $region25: #{tpu_custom_call.1} parent=1 // pred_fallthru
      _
    // Predicated region
    $region26: #{tpu_custom_call.1} parent=1 // pred_check
      _
    $region27: #{tpu_custom_call.1} parent=1 // pred_check_branch
      %88 = sbr.rel (0) target = $region29
    $region28: #{tpu_custom_call.1} parent=1 // pred_region
      %90 = vsyncadd [#allocation12], 0
      %s92 = sshll.u32 %s6, 4
      %s93 = int_to_ptr.hbm [resolvable:$true] %s92
      %s94 = sshll.u32 [#allocation11], 4
      %s95 = int_to_ptr.vmem [resolvable:$true] %s94
      %97 = dma.hbm_to_vmem [thread:$0]  %s93, 32, %s95, [#allocation12]
    $region29: #{tpu_custom_call.1} parent=1 // pred_fallthru
      _
    // Predicated region
    $region30: #{tpu_custom_call.1} parent=1 // pred_check
      _
    $region31: #{tpu_custom_call.1} parent=1 // pred_check_branch
      %99 = sbr.rel (0) target = $region33
    $region32: #{tpu_custom_call.1} parent=1 // pred_region
      %101 = vsyncadd [#allocation12], 0
      %s102 = sshll.u32 %s7, 4
      %s103 = int_to_ptr.hbm [resolvable:$true] %s102
      %s104 = sshll.u32 [#allocation13], 4
      %s105 = int_to_ptr.vmem [resolvable:$true] %s104
      %110 = dma.hbm_to_vmem [thread:$0]  %s103, 8192, %s105, [#allocation12], 256, 256, 16
    $region33: #{tpu_custom_call.1} parent=1 // pred_fallthru
      _
    // Predicated region
    $region34: #{tpu_custom_call.1} parent=1 // pred_check
      _
    $region35: #{tpu_custom_call.1} parent=1 // pred_check_branch
      %112 = sbr.rel (0) target = $region37
    $region36: #{tpu_custom_call.1} parent=1 // pred_region
      %114 = vsyncadd [#allocation15], 0
      %s116 = sshll.u32 %s8, 4
      %s117 = int_to_ptr.hbm [resolvable:$true] %s116
      %s118 = sshll.u32 [#allocation14], 4
      %s119 = int_to_ptr.vmem [resolvable:$true] %s118
      %121 = dma.hbm_to_vmem [thread:$0]  %s117, 64, %s119, [#allocation15]
    $region37: #{tpu_custom_call.1} parent=1 // pred_fallthru
      _
    // Predicated region
    $region38: #{tpu_custom_call.1} parent=1 // pred_check
      _
    $region39: #{tpu_custom_call.1} parent=1 // pred_check_branch
      %123 = sbr.rel (0) target = $region41
    $region40: #{tpu_custom_call.1} parent=1 // pred_region
      %125 = vsyncadd [#allocation15], 0
      %s126 = sshll.u32 %s9, 4
      %s127 = int_to_ptr.hbm [resolvable:$true] %s126
      %s128 = sshll.u32 [#allocation16], 4
      %s129 = int_to_ptr.vmem [resolvable:$true] %s128
      %134 = dma.hbm_to_vmem [thread:$0]  %s127, 24576, %s129, [#allocation15], 384, 384, 24
    $region41: #{tpu_custom_call.1} parent=1 // pred_fallthru
      _
    // Predicated region
    $region42: #{tpu_custom_call.1} parent=1 // pred_check
      _
    $region43: #{tpu_custom_call.1} parent=1 // pred_check_branch
      %136 = sbr.rel (0) target = $region45
    $region44: #{tpu_custom_call.1} parent=1 // pred_region
      _
    $region45: #{tpu_custom_call.1} parent=1 // pred_fallthru
      _
    // Predicated region
    $region46: #{tpu_custom_call.1} parent=1 // pred_check
      _
    $region47: #{tpu_custom_call.1} parent=1 // pred_check_branch
      %138 = sbr.rel (0) target = $region49
    $region48: #{tpu_custom_call.1} parent=1 // pred_region
      %140 = dma.done [#allocation3], 1536
    $region49: #{tpu_custom_call.1} parent=1 // pred_fallthru
      _
    // Predicated region
    $region50: #{tpu_custom_call.1} parent=1 // pred_check
      _
    $region51: #{tpu_custom_call.1} parent=1 // pred_check_branch
      %142 = sbr.rel (0) target = $region53
    $region52: #{tpu_custom_call.1} parent=1 // pred_region
      %144 = dma.done [#allocation6], 24576
    $region53: #{tpu_custom_call.1} parent=1 // pred_fallthru
      _
    // Predicated region
    $region54: #{tpu_custom_call.1} parent=1 // pred_check
      _
    $region55: #{tpu_custom_call.1} parent=1 // pred_check_branch
      %146 = sbr.rel (0) target = $region57
    $region56: #{tpu_custom_call.1} parent=1 // pred_region
      %148 = dma.done [#allocation6], 64
    $region57: #{tpu_custom_call.1} parent=1 // pred_fallthru
      _
    // Predicated region
    $region58: #{tpu_custom_call.1} parent=1 // pred_check
      _
    $region59: #{tpu_custom_call.1} parent=1 // pred_check_branch
      %150 = sbr.rel (0) target = $region61
    $region60: #{tpu_custom_call.1} parent=1 // pred_region
      %152 = dma.done [#allocation9], 8192
    $region61: #{tpu_custom_call.1} parent=1 // pred_fallthru
      _
    // Predicated region
    $region62: #{tpu_custom_call.1} parent=1 // pred_check
      _
    $region63: #{tpu_custom_call.1} parent=1 // pred_check_branch
      %154 = sbr.rel (0) target = $region65
    $region64: #{tpu_custom_call.1} parent=1 // pred_region
      %156 = dma.done [#allocation9], 4096
    $region65: #{tpu_custom_call.1} parent=1 // pred_fallthru
      _
    // Predicated region
    $region66: #{tpu_custom_call.1} parent=1 // pred_check
      _
    $region67: #{tpu_custom_call.1} parent=1 // pred_check_branch
      %158 = sbr.rel (0) target = $region69
    $region68: #{tpu_custom_call.1} parent=1 // pred_region
      %160 = dma.done [#allocation12], 32
    $region69: #{tpu_custom_call.1} parent=1 // pred_fallthru
      _
    // Predicated region
    $region70: #{tpu_custom_call.1} parent=1 // pred_check
      _
    $region71: #{tpu_custom_call.1} parent=1 // pred_check_branch
      %162 = sbr.rel (0) target = $region73
    $region72: #{tpu_custom_call.1} parent=1 // pred_region
      %164 = dma.done [#allocation12], 8192
    $region73: #{tpu_custom_call.1} parent=1 // pred_fallthru
      _
    // Predicated region
    $region74: #{tpu_custom_call.1} parent=1 // pred_check
      _
    $region75: #{tpu_custom_call.1} parent=1 // pred_check_branch
      %166 = sbr.rel (0) target = $region77
    $region76: #{tpu_custom_call.1} parent=1 // pred_region
      %168 = dma.done [#allocation15], 64
    $region77: #{tpu_custom_call.1} parent=1 // pred_fallthru
      _
    // Predicated region
    $region78: #{tpu_custom_call.1} parent=1 // pred_check
      _
    $region79: #{tpu_custom_call.1} parent=1 // pred_check_branch
      %170 = sbr.rel (0) target = $region81
    $region80: #{tpu_custom_call.1} parent=1 // pred_region
      %172 = dma.done [#allocation15], 24576
    $region81: #{tpu_custom_call.1} parent=1 // pred_fallthru
      _
    %v173 = vld [vmem:[#allocation2] sm:$0xff]
    %v174 = vld [vmem:[#allocation2 + $0x8] sm:$0xff]
    %v175 = vld [vmem:[#allocation2 + $0x10] sm:$0xff]
    %v176 = vld [vmem:[#allocation2 + $0x18] sm:$0xff]
    %v177 = vld [vmem:[#allocation2 + $0x20] sm:$0xff]
    %v178 = vld [vmem:[#allocation2 + $0x28] sm:$0xff]
    %v179 = vld [vmem:[#allocation2 + $0x30] sm:$0xff]
    %v180 = vld [vmem:[#allocation2 + $0x38] sm:$0xff]
    %v181 = vld [vmem:[#allocation2 + $0x40] sm:$0xff]
    %v182 = vld [vmem:[#allocation2 + $0x48] sm:$0xff]
    %v183 = vld [vmem:[#allocation2 + $0x50] sm:$0xff]
    %v184 = vld [vmem:[#allocation2 + $0x58] sm:$0xff]
    %v185 = vpack.c.bf16 %v179, %v173
    %v186 = vpack.c.bf16 %v180, %v174
    %v187 = vpack.c.bf16 %v181, %v175
    %v188 = vpack.c.bf16 %v182, %v176
    %v189 = vpack.c.bf16 %v183, %v177
    %v190 = vpack.c.bf16 %v184, %v178
    %v191 = vld [vmem:[#allocation5] sm:$0xff]
    %v192 = vld [vmem:[#allocation5 + $0x8] sm:$0xff]
    %v193 = vld [vmem:[#allocation5 + $0x10] sm:$0xff]
    %v194 = vld [vmem:[#allocation5 + $0x18] sm:$0xff]
    %v195 = vld [vmem:[#allocation5 + $0x20] sm:$0xff]
    %v196 = vld [vmem:[#allocation5 + $0x28] sm:$0xff]
    %v197 = vld [vmem:[#allocation5 + $0x30] sm:$0xff]
    %v198 = vld [vmem:[#allocation5 + $0x38] sm:$0xff]
    %v199 = vld [vmem:[#allocation5 + $0x40] sm:$0xff]
    %v200 = vld [vmem:[#allocation5 + $0x48] sm:$0xff]
    %v201 = vld [vmem:[#allocation5 + $0x50] sm:$0xff]
    %v202 = vld [vmem:[#allocation5 + $0x58] sm:$0xff]
    %v203 = vld [vmem:[#allocation5 + $0x60] sm:$0xff]
    %v204 = vld [vmem:[#allocation5 + $0x68] sm:$0xff]
    %v205 = vld [vmem:[#allocation5 + $0x70] sm:$0xff]
    %v206 = vld [vmem:[#allocation5 + $0x78] sm:$0xff]
    %v207 = vld [vmem:[#allocation5 + $0x80] sm:$0xff]
    %v208 = vld [vmem:[#allocation5 + $0x88] sm:$0xff]
    %v209 = vld [vmem:[#allocation5 + $0x90] sm:$0xff]
    %v210 = vld [vmem:[#allocation5 + $0x98] sm:$0xff]
    %v211 = vld [vmem:[#allocation5 + $0xa0] sm:$0xff]
    %v212 = vld [vmem:[#allocation5 + $0xa8] sm:$0xff]
    %v213 = vld [vmem:[#allocation5 + $0xb0] sm:$0xff]
    %v214 = vld [vmem:[#allocation5 + $0xb8] sm:$0xff]
    %v215 = vld [vmem:[#allocation5 + $0xc0] sm:$0xff]
    %v216 = vld [vmem:[#allocation5 + $0xc8] sm:$0xff]
    %v217 = vld [vmem:[#allocation5 + $0xd0] sm:$0xff]
    %v218 = vld [vmem:[#allocation5 + $0xd8] sm:$0xff]
    %v219 = vld [vmem:[#allocation5 + $0xe0] sm:$0xff]
    %v220 = vld [vmem:[#allocation5 + $0xe8] sm:$0xff]
    %v221 = vld [vmem:[#allocation5 + $0xf0] sm:$0xff]
    %v222 = vld [vmem:[#allocation5 + $0xf8] sm:$0xff]
    %v223 = vld [vmem:[#allocation5 + $0x100] sm:$0xff]
    %v224 = vld [vmem:[#allocation5 + $0x108] sm:$0xff]
    %v225 = vld [vmem:[#allocation5 + $0x110] sm:$0xff]
    %v226 = vld [vmem:[#allocation5 + $0x118] sm:$0xff]
    %v227 = vld [vmem:[#allocation5 + $0x120] sm:$0xff]
    %v228 = vld [vmem:[#allocation5 + $0x128] sm:$0xff]
    %v229 = vld [vmem:[#allocation5 + $0x130] sm:$0xff]
    %v230 = vld [vmem:[#allocation5 + $0x138] sm:$0xff]
    %v231 = vld [vmem:[#allocation5 + $0x140] sm:$0xff]
    %v232 = vld [vmem:[#allocation5 + $0x148] sm:$0xff]
    %v233 = vld [vmem:[#allocation5 + $0x150] sm:$0xff]
    %v234 = vld [vmem:[#allocation5 + $0x158] sm:$0xff]
    %v235 = vld [vmem:[#allocation5 + $0x160] sm:$0xff]
    %v236 = vld [vmem:[#allocation5 + $0x168] sm:$0xff]
    %v237 = vld [vmem:[#allocation5 + $0x170] sm:$0xff]
    %v238 = vld [vmem:[#allocation5 + $0x178] sm:$0xff]
    %v239 = vld [vmem:[#allocation5 + $0x180] sm:$0xff]
    %v240 = vld [vmem:[#allocation5 + $0x188] sm:$0xff]
    %v241 = vld [vmem:[#allocation5 + $0x190] sm:$0xff]
    %v242 = vld [vmem:[#allocation5 + $0x198] sm:$0xff]
    %v243 = vld [vmem:[#allocation5 + $0x1a0] sm:$0xff]
    %v244 = vld [vmem:[#allocation5 + $0x1a8] sm:$0xff]
    %v245 = vld [vmem:[#allocation5 + $0x1b0] sm:$0xff]
    %v246 = vld [vmem:[#allocation5 + $0x1b8] sm:$0xff]
    %v247 = vld [vmem:[#allocation5 + $0x1c0] sm:$0xff]
    %v248 = vld [vmem:[#allocation5 + $0x1c8] sm:$0xff]
    %v249 = vld [vmem:[#allocation5 + $0x1d0] sm:$0xff]
    %v250 = vld [vmem:[#allocation5 + $0x1d8] sm:$0xff]
    %v251 = vld [vmem:[#allocation5 + $0x1e0] sm:$0xff]
    %v252 = vld [vmem:[#allocation5 + $0x1e8] sm:$0xff]
    %v253 = vld [vmem:[#allocation5 + $0x1f0] sm:$0xff]
    %v254 = vld [vmem:[#allocation5 + $0x1f8] sm:$0xff]
    %v255 = vld [vmem:[#allocation5 + $0x200] sm:$0xff]
    %v256 = vld [vmem:[#allocation5 + $0x208] sm:$0xff]
    %v257 = vld [vmem:[#allocation5 + $0x210] sm:$0xff]
    %v258 = vld [vmem:[#allocation5 + $0x218] sm:$0xff]
    %v259 = vld [vmem:[#allocation5 + $0x220] sm:$0xff]
    %v260 = vld [vmem:[#allocation5 + $0x228] sm:$0xff]
    %v261 = vld [vmem:[#allocation5 + $0x230] sm:$0xff]
    %v262 = vld [vmem:[#allocation5 + $0x238] sm:$0xff]
    %v263 = vld [vmem:[#allocation5 + $0x240] sm:$0xff]
    %v264 = vld [vmem:[#allocation5 + $0x248] sm:$0xff]
    %v265 = vld [vmem:[#allocation5 + $0x250] sm:$0xff]
    %v266 = vld [vmem:[#allocation5 + $0x258] sm:$0xff]
    %v267 = vld [vmem:[#allocation5 + $0x260] sm:$0xff]
    %v268 = vld [vmem:[#allocation5 + $0x268] sm:$0xff]
    %v269 = vld [vmem:[#allocation5 + $0x270] sm:$0xff]
    %v270 = vld [vmem:[#allocation5 + $0x278] sm:$0xff]
    %v271 = vld [vmem:[#allocation5 + $0x280] sm:$0xff]
    %v272 = vld [vmem:[#allocation5 + $0x288] sm:$0xff]
    %v273 = vld [vmem:[#allocation5 + $0x290] sm:$0xff]
    %v274 = vld [vmem:[#allocation5 + $0x298] sm:$0xff]
    %v275 = vld [vmem:[#allocation5 + $0x2a0] sm:$0xff]
    %v276 = vld [vmem:[#allocation5 + $0x2a8] sm:$0xff]
    %v277 = vld [vmem:[#allocation5 + $0x2b0] sm:$0xff]
    %v278 = vld [vmem:[#allocation5 + $0x2b8] sm:$0xff]
    %v279 = vld [vmem:[#allocation5 + $0x2c0] sm:$0xff]
    %v280 = vld [vmem:[#allocation5 + $0x2c8] sm:$0xff]
    %v281 = vld [vmem:[#allocation5 + $0x2d0] sm:$0xff]
    %v282 = vld [vmem:[#allocation5 + $0x2d8] sm:$0xff]
    %v283 = vld [vmem:[#allocation5 + $0x2e0] sm:$0xff]
    %v284 = vld [vmem:[#allocation5 + $0x2e8] sm:$0xff]
    %v285 = vld [vmem:[#allocation5 + $0x2f0] sm:$0xff]
    %v286 = vld [vmem:[#allocation5 + $0x2f8] sm:$0xff]
    %v287 = vld [vmem:[#allocation5 + $0x300] sm:$0xff]
    %v288 = vld [vmem:[#allocation5 + $0x308] sm:$0xff]
    %v289 = vld [vmem:[#allocation5 + $0x310] sm:$0xff]
    %v290 = vld [vmem:[#allocation5 + $0x318] sm:$0xff]
    %v291 = vld [vmem:[#allocation5 + $0x320] sm:$0xff]
    %v292 = vld [vmem:[#allocation5 + $0x328] sm:$0xff]
    %v293 = vld [vmem:[#allocation5 + $0x330] sm:$0xff]
    %v294 = vld [vmem:[#allocation5 + $0x338] sm:$0xff]
    %v295 = vld [vmem:[#allocation5 + $0x340] sm:$0xff]
    %v296 = vld [vmem:[#allocation5 + $0x348] sm:$0xff]
    %v297 = vld [vmem:[#allocation5 + $0x350] sm:$0xff]
    %v298 = vld [vmem:[#allocation5 + $0x358] sm:$0xff]
    %v299 = vld [vmem:[#allocation5 + $0x360] sm:$0xff]
    %v300 = vld [vmem:[#allocation5 + $0x368] sm:$0xff]
    %v301 = vld [vmem:[#allocation5 + $0x370] sm:$0xff]
    %v302 = vld [vmem:[#allocation5 + $0x378] sm:$0xff]
    %v303 = vld [vmem:[#allocation5 + $0x380] sm:$0xff]
    %v304 = vld [vmem:[#allocation5 + $0x388] sm:$0xff]
    %v305 = vld [vmem:[#allocation5 + $0x390] sm:$0xff]
    %v306 = vld [vmem:[#allocation5 + $0x398] sm:$0xff]
    %v307 = vld [vmem:[#allocation5 + $0x3a0] sm:$0xff]
    %v308 = vld [vmem:[#allocation5 + $0x3a8] sm:$0xff]
    %v309 = vld [vmem:[#allocation5 + $0x3b0] sm:$0xff]
    %v310 = vld [vmem:[#allocation5 + $0x3b8] sm:$0xff]
    %v311 = vld [vmem:[#allocation5 + $0x3c0] sm:$0xff]
    %v312 = vld [vmem:[#allocation5 + $0x3c8] sm:$0xff]
    %v313 = vld [vmem:[#allocation5 + $0x3d0] sm:$0xff]
    %v314 = vld [vmem:[#allocation5 + $0x3d8] sm:$0xff]
    %v315 = vld [vmem:[#allocation5 + $0x3e0] sm:$0xff]
    %v316 = vld [vmem:[#allocation5 + $0x3e8] sm:$0xff]
    %v317 = vld [vmem:[#allocation5 + $0x3f0] sm:$0xff]
    %v318 = vld [vmem:[#allocation5 + $0x3f8] sm:$0xff]
    %v319 = vld [vmem:[#allocation5 + $0x400] sm:$0xff]
    %v320 = vld [vmem:[#allocation5 + $0x408] sm:$0xff]
    %v321 = vld [vmem:[#allocation5 + $0x410] sm:$0xff]
    %v322 = vld [vmem:[#allocation5 + $0x418] sm:$0xff]
    %v323 = vld [vmem:[#allocation5 + $0x420] sm:$0xff]
    %v324 = vld [vmem:[#allocation5 + $0x428] sm:$0xff]
    %v325 = vld [vmem:[#allocation5 + $0x430] sm:$0xff]
    %v326 = vld [vmem:[#allocation5 + $0x438] sm:$0xff]
    %v327 = vld [vmem:[#allocation5 + $0x440] sm:$0xff]
    %v328 = vld [vmem:[#allocation5 + $0x448] sm:$0xff]
    %v329 = vld [vmem:[#allocation5 + $0x450] sm:$0xff]
    %v330 = vld [vmem:[#allocation5 + $0x458] sm:$0xff]
    %v331 = vld [vmem:[#allocation5 + $0x460] sm:$0xff]
    %v332 = vld [vmem:[#allocation5 + $0x468] sm:$0xff]
    %v333 = vld [vmem:[#allocation5 + $0x470] sm:$0xff]
    %v334 = vld [vmem:[#allocation5 + $0x478] sm:$0xff]
    %v335 = vld [vmem:[#allocation5 + $0x480] sm:$0xff]
    %v336 = vld [vmem:[#allocation5 + $0x488] sm:$0xff]
    %v337 = vld [vmem:[#allocation5 + $0x490] sm:$0xff]
    %v338 = vld [vmem:[#allocation5 + $0x498] sm:$0xff]
    %v339 = vld [vmem:[#allocation5 + $0x4a0] sm:$0xff]
    %v340 = vld [vmem:[#allocation5 + $0x4a8] sm:$0xff]
    %v341 = vld [vmem:[#allocation5 + $0x4b0] sm:$0xff]
    %v342 = vld [vmem:[#allocation5 + $0x4b8] sm:$0xff]
    %v343 = vld [vmem:[#allocation5 + $0x4c0] sm:$0xff]
    %v344 = vld [vmem:[#allocation5 + $0x4c8] sm:$0xff]
    %v345 = vld [vmem:[#allocation5 + $0x4d0] sm:$0xff]
    %v346 = vld [vmem:[#allocation5 + $0x4d8] sm:$0xff]
    %v347 = vld [vmem:[#allocation5 + $0x4e0] sm:$0xff]
    %v348 = vld [vmem:[#allocation5 + $0x4e8] sm:$0xff]
    %v349 = vld [vmem:[#allocation5 + $0x4f0] sm:$0xff]
    %v350 = vld [vmem:[#allocation5 + $0x4f8] sm:$0xff]
    %v351 = vld [vmem:[#allocation5 + $0x500] sm:$0xff]
    %v352 = vld [vmem:[#allocation5 + $0x508] sm:$0xff]
    %v353 = vld [vmem:[#allocation5 + $0x510] sm:$0xff]
    %v354 = vld [vmem:[#allocation5 + $0x518] sm:$0xff]
    %v355 = vld [vmem:[#allocation5 + $0x520] sm:$0xff]
    %v356 = vld [vmem:[#allocation5 + $0x528] sm:$0xff]
    %v357 = vld [vmem:[#allocation5 + $0x530] sm:$0xff]
    %v358 = vld [vmem:[#allocation5 + $0x538] sm:$0xff]
    %v359 = vld [vmem:[#allocation5 + $0x540] sm:$0xff]
    %v360 = vld [vmem:[#allocation5 + $0x548] sm:$0xff]
    %v361 = vld [vmem:[#allocation5 + $0x550] sm:$0xff]
    %v362 = vld [vmem:[#allocation5 + $0x558] sm:$0xff]
    %v363 = vld [vmem:[#allocation5 + $0x560] sm:$0xff]
    %v364 = vld [vmem:[#allocation5 + $0x568] sm:$0xff]
    %v365 = vld [vmem:[#allocation5 + $0x570] sm:$0xff]
    %v366 = vld [vmem:[#allocation5 + $0x578] sm:$0xff]
    %v367 = vld [vmem:[#allocation5 + $0x580] sm:$0xff]
    %v368 = vld [vmem:[#allocation5 + $0x588] sm:$0xff]
    %v369 = vld [vmem:[#allocation5 + $0x590] sm:$0xff]
    %v370 = vld [vmem:[#allocation5 + $0x598] sm:$0xff]
    %v371 = vld [vmem:[#allocation5 + $0x5a0] sm:$0xff]
    %v372 = vld [vmem:[#allocation5 + $0x5a8] sm:$0xff]
    %v373 = vld [vmem:[#allocation5 + $0x5b0] sm:$0xff]
    %v374 = vld [vmem:[#allocation5 + $0x5b8] sm:$0xff]
    %v375 = vld [vmem:[#allocation5 + $0x5c0] sm:$0xff]
    %v376 = vld [vmem:[#allocation5 + $0x5c8] sm:$0xff]
    %v377 = vld [vmem:[#allocation5 + $0x5d0] sm:$0xff]
    %v378 = vld [vmem:[#allocation5 + $0x5d8] sm:$0xff]
    %v379 = vld [vmem:[#allocation5 + $0x5e0] sm:$0xff]
    %v380 = vld [vmem:[#allocation5 + $0x5e8] sm:$0xff]
    %v381 = vld [vmem:[#allocation5 + $0x5f0] sm:$0xff]
    %v382 = vld [vmem:[#allocation5 + $0x5f8] sm:$0xff]
    %v383 = vld [vmem:[#allocation7] sm:$0xf]
    %v385 = vperm.slane %v383, 0
    %v386 = vperm.slane %v383, 1
    %v387 = vperm.slane %v383, 2
    %v388 = vperm.slane %v383, 3
    %v585 = vunpack.c.l.b16 %v191
    %v586 = vunpack.c.h.b16 %v191
    %v587 = vunpack.c.l.b16 %v192
    %v588 = vunpack.c.h.b16 %v192
    %v589 = vunpack.c.l.b16 %v193
    %v590 = vunpack.c.h.b16 %v193
    %v591 = vunpack.c.l.b16 %v194
    %v592 = vunpack.c.h.b16 %v194
    %v593 = vunpack.c.l.b16 %v195
    %v594 = vunpack.c.h.b16 %v195
    %v595 = vunpack.c.l.b16 %v196
    %v596 = vunpack.c.h.b16 %v196
    %v597 = vunpack.c.l.b16 %v197
    %v598 = vunpack.c.h.b16 %v197
    %v599 = vunpack.c.l.b16 %v198
    %v600 = vunpack.c.h.b16 %v198
    %v601 = vunpack.c.l.b16 %v199
    %v602 = vunpack.c.h.b16 %v199
    %v603 = vunpack.c.l.b16 %v200
    %v604 = vunpack.c.h.b16 %v200
    %v605 = vunpack.c.l.b16 %v201
    %v606 = vunpack.c.h.b16 %v201
    %v607 = vunpack.c.l.b16 %v202
    %v608 = vunpack.c.h.b16 %v202
    %v609 = vunpack.c.l.b16 %v203
    %v610 = vunpack.c.h.b16 %v203
    %v611 = vunpack.c.l.b16 %v204
    %v612 = vunpack.c.h.b16 %v204
    %v613 = vunpack.c.l.b16 %v205
    %v614 = vunpack.c.h.b16 %v205
    %v615 = vunpack.c.l.b16 %v206
    %v616 = vunpack.c.h.b16 %v206
    %v617 = vunpack.c.l.b16 %v207
    %v618 = vunpack.c.h.b16 %v207
    %v619 = vunpack.c.l.b16 %v208
    %v620 = vunpack.c.h.b16 %v208
    %v621 = vunpack.c.l.b16 %v209
    %v622 = vunpack.c.h.b16 %v209
    %v623 = vunpack.c.l.b16 %v210
    %v624 = vunpack.c.h.b16 %v210
    %v625 = vunpack.c.l.b16 %v211
    %v626 = vunpack.c.h.b16 %v211
    %v627 = vunpack.c.l.b16 %v212
    %v628 = vunpack.c.h.b16 %v212
    %v629 = vunpack.c.l.b16 %v213
    %v630 = vunpack.c.h.b16 %v213
    %v631 = vunpack.c.l.b16 %v214
    %v632 = vunpack.c.h.b16 %v214
    %v633 = vunpack.c.l.b16 %v215
    %v634 = vunpack.c.h.b16 %v215
    %v635 = vunpack.c.l.b16 %v216
    %v636 = vunpack.c.h.b16 %v216
    %v637 = vunpack.c.l.b16 %v217
    %v638 = vunpack.c.h.b16 %v217
    %v639 = vunpack.c.l.b16 %v218
    %v640 = vunpack.c.h.b16 %v218
    %v641 = vunpack.c.l.b16 %v219
    %v642 = vunpack.c.h.b16 %v219
    %v643 = vunpack.c.l.b16 %v220
    %v644 = vunpack.c.h.b16 %v220
    %v645 = vunpack.c.l.b16 %v221
    %v646 = vunpack.c.h.b16 %v221
    %v647 = vunpack.c.l.b16 %v222
    %v648 = vunpack.c.h.b16 %v222
    %v649 = vunpack.c.l.b16 %v223
    %v650 = vunpack.c.h.b16 %v223
    %v651 = vunpack.c.l.b16 %v224
    %v652 = vunpack.c.h.b16 %v224
    %v653 = vunpack.c.l.b16 %v225
    %v654 = vunpack.c.h.b16 %v225
    %v655 = vunpack.c.l.b16 %v226
    %v656 = vunpack.c.h.b16 %v226
    %v657 = vunpack.c.l.b16 %v227
    %v658 = vunpack.c.h.b16 %v227
    %v659 = vunpack.c.l.b16 %v228
    %v660 = vunpack.c.h.b16 %v228
    %v661 = vunpack.c.l.b16 %v229
    %v662 = vunpack.c.h.b16 %v229
    %v663 = vunpack.c.l.b16 %v230
    %v664 = vunpack.c.h.b16 %v230
    %v665 = vunpack.c.l.b16 %v231
    %v666 = vunpack.c.h.b16 %v231
    %v667 = vunpack.c.l.b16 %v232
    %v668 = vunpack.c.h.b16 %v232
    %v669 = vunpack.c.l.b16 %v233
    %v670 = vunpack.c.h.b16 %v233
    %v671 = vunpack.c.l.b16 %v234
    %v672 = vunpack.c.h.b16 %v234
    %v673 = vunpack.c.l.b16 %v235
    %v674 = vunpack.c.h.b16 %v235
    %v675 = vunpack.c.l.b16 %v236
    %v676 = vunpack.c.h.b16 %v236
    %v677 = vunpack.c.l.b16 %v237
    %v678 = vunpack.c.h.b16 %v237
    %v679 = vunpack.c.l.b16 %v238
    %v680 = vunpack.c.h.b16 %v238
    %v681 = vunpack.c.l.b16 %v239
    %v682 = vunpack.c.h.b16 %v239
    %v683 = vunpack.c.l.b16 %v240
    %v684 = vunpack.c.h.b16 %v240
    %v685 = vunpack.c.l.b16 %v241
    %v686 = vunpack.c.h.b16 %v241
    %v687 = vunpack.c.l.b16 %v242
    %v688 = vunpack.c.h.b16 %v242
    %v689 = vunpack.c.l.b16 %v243
    %v690 = vunpack.c.h.b16 %v243
    %v691 = vunpack.c.l.b16 %v244
    %v692 = vunpack.c.h.b16 %v244
    %v693 = vunpack.c.l.b16 %v245
    %v694 = vunpack.c.h.b16 %v245
    %v695 = vunpack.c.l.b16 %v246
    %v696 = vunpack.c.h.b16 %v246
    %v697 = vunpack.c.l.b16 %v247
    %v698 = vunpack.c.h.b16 %v247
    %v699 = vunpack.c.l.b16 %v248
    %v700 = vunpack.c.h.b16 %v248
    %v701 = vunpack.c.l.b16 %v249
    %v702 = vunpack.c.h.b16 %v249
    %v703 = vunpack.c.l.b16 %v250
    %v704 = vunpack.c.h.b16 %v250
    %v705 = vunpack.c.l.b16 %v251
    %v706 = vunpack.c.h.b16 %v251
    %v707 = vunpack.c.l.b16 %v252
    %v708 = vunpack.c.h.b16 %v252
    %v709 = vunpack.c.l.b16 %v253
    %v710 = vunpack.c.h.b16 %v253
    %v711 = vunpack.c.l.b16 %v254
    %v712 = vunpack.c.h.b16 %v254
    %v713 = vunpack.c.l.b16 %v255
    %v714 = vunpack.c.h.b16 %v255
    %v715 = vunpack.c.l.b16 %v256
    %v716 = vunpack.c.h.b16 %v256
    %v717 = vunpack.c.l.b16 %v257
    %v718 = vunpack.c.h.b16 %v257
    %v719 = vunpack.c.l.b16 %v258
    %v720 = vunpack.c.h.b16 %v258
    %v721 = vunpack.c.l.b16 %v259
    %v722 = vunpack.c.h.b16 %v259
    %v723 = vunpack.c.l.b16 %v260
    %v724 = vunpack.c.h.b16 %v260
    %v725 = vunpack.c.l.b16 %v261
    %v726 = vunpack.c.h.b16 %v261
    %v727 = vunpack.c.l.b16 %v262
    %v728 = vunpack.c.h.b16 %v262
    %v729 = vunpack.c.l.b16 %v263
    %v730 = vunpack.c.h.b16 %v263
    %v731 = vunpack.c.l.b16 %v264
    %v732 = vunpack.c.h.b16 %v264
    %v733 = vunpack.c.l.b16 %v265
    %v734 = vunpack.c.h.b16 %v265
    %v735 = vunpack.c.l.b16 %v266
    %v736 = vunpack.c.h.b16 %v266
    %v737 = vunpack.c.l.b16 %v267
    %v738 = vunpack.c.h.b16 %v267
    %v739 = vunpack.c.l.b16 %v268
    %v740 = vunpack.c.h.b16 %v268
    %v741 = vunpack.c.l.b16 %v269
    %v742 = vunpack.c.h.b16 %v269
    %v743 = vunpack.c.l.b16 %v270
    %v744 = vunpack.c.h.b16 %v270
    %v745 = vunpack.c.l.b16 %v271
    %v746 = vunpack.c.h.b16 %v271
    %v747 = vunpack.c.l.b16 %v272
    %v748 = vunpack.c.h.b16 %v272
    %v749 = vunpack.c.l.b16 %v273
    %v750 = vunpack.c.h.b16 %v273
    %v751 = vunpack.c.l.b16 %v274
    %v752 = vunpack.c.h.b16 %v274
    %v753 = vunpack.c.l.b16 %v275
    %v754 = vunpack.c.h.b16 %v275
    %v755 = vunpack.c.l.b16 %v276
    %v756 = vunpack.c.h.b16 %v276
    %v757 = vunpack.c.l.b16 %v277
    %v758 = vunpack.c.h.b16 %v277
    %v759 = vunpack.c.l.b16 %v278
    %v760 = vunpack.c.h.b16 %v278
    %v761 = vunpack.c.l.b16 %v279
    %v762 = vunpack.c.h.b16 %v279
    %v763 = vunpack.c.l.b16 %v280
    %v764 = vunpack.c.h.b16 %v280
    %v765 = vunpack.c.l.b16 %v281
    %v766 = vunpack.c.h.b16 %v281
    %v767 = vunpack.c.l.b16 %v282
    %v768 = vunpack.c.h.b16 %v282
    %v769 = vunpack.c.l.b16 %v283
    %v770 = vunpack.c.h.b16 %v283
    %v771 = vunpack.c.l.b16 %v284
    %v772 = vunpack.c.h.b16 %v284
    %v773 = vunpack.c.l.b16 %v285
    %v774 = vunpack.c.h.b16 %v285
    %v775 = vunpack.c.l.b16 %v286
    %v776 = vunpack.c.h.b16 %v286
    %v777 = vunpack.c.l.b16 %v287
    %v778 = vunpack.c.h.b16 %v287
    %v779 = vunpack.c.l.b16 %v288
    %v780 = vunpack.c.h.b16 %v288
    %v781 = vunpack.c.l.b16 %v289
    %v782 = vunpack.c.h.b16 %v289
    %v783 = vunpack.c.l.b16 %v290
    %v784 = vunpack.c.h.b16 %v290
    %v785 = vunpack.c.l.b16 %v291
    %v786 = vunpack.c.h.b16 %v291
    %v787 = vunpack.c.l.b16 %v292
    %v788 = vunpack.c.h.b16 %v292
    %v789 = vunpack.c.l.b16 %v293
    %v790 = vunpack.c.h.b16 %v293
    %v791 = vunpack.c.l.b16 %v294
    %v792 = vunpack.c.h.b16 %v294
    %v793 = vunpack.c.l.b16 %v295
    %v794 = vunpack.c.h.b16 %v295
    %v795 = vunpack.c.l.b16 %v296
    %v796 = vunpack.c.h.b16 %v296
    %v797 = vunpack.c.l.b16 %v297
    %v798 = vunpack.c.h.b16 %v297
    %v799 = vunpack.c.l.b16 %v298
    %v800 = vunpack.c.h.b16 %v298
    %v801 = vunpack.c.l.b16 %v299
    %v802 = vunpack.c.h.b16 %v299
    %v803 = vunpack.c.l.b16 %v300
    %v804 = vunpack.c.h.b16 %v300
    %v805 = vunpack.c.l.b16 %v301
    %v806 = vunpack.c.h.b16 %v301
    %v807 = vunpack.c.l.b16 %v302
    %v808 = vunpack.c.h.b16 %v302
    %v809 = vunpack.c.l.b16 %v303
    %v810 = vunpack.c.h.b16 %v303
    %v811 = vunpack.c.l.b16 %v304
    %v812 = vunpack.c.h.b16 %v304
    %v813 = vunpack.c.l.b16 %v305
    %v814 = vunpack.c.h.b16 %v305
    %v815 = vunpack.c.l.b16 %v306
    %v816 = vunpack.c.h.b16 %v306
    %v817 = vunpack.c.l.b16 %v307
    %v818 = vunpack.c.h.b16 %v307
    %v819 = vunpack.c.l.b16 %v308
    %v820 = vunpack.c.h.b16 %v308
    %v821 = vunpack.c.l.b16 %v309
    %v822 = vunpack.c.h.b16 %v309
    %v823 = vunpack.c.l.b16 %v310
    %v824 = vunpack.c.h.b16 %v310
    %v825 = vunpack.c.l.b16 %v311
    %v826 = vunpack.c.h.b16 %v311
    %v827 = vunpack.c.l.b16 %v312
    %v828 = vunpack.c.h.b16 %v312
    %v829 = vunpack.c.l.b16 %v313
    %v830 = vunpack.c.h.b16 %v313
    %v831 = vunpack.c.l.b16 %v314
    %v832 = vunpack.c.h.b16 %v314
    %v833 = vunpack.c.l.b16 %v315
    %v834 = vunpack.c.h.b16 %v315
    %v835 = vunpack.c.l.b16 %v316
    %v836 = vunpack.c.h.b16 %v316
    %v837 = vunpack.c.l.b16 %v317
    %v838 = vunpack.c.h.b16 %v317
    %v839 = vunpack.c.l.b16 %v318
    %v840 = vunpack.c.h.b16 %v318
    %v841 = vunpack.c.l.b16 %v319
    %v842 = vunpack.c.h.b16 %v319
    %v843 = vunpack.c.l.b16 %v320
    %v844 = vunpack.c.h.b16 %v320
    %v845 = vunpack.c.l.b16 %v321
    %v846 = vunpack.c.h.b16 %v321
    %v847 = vunpack.c.l.b16 %v322
    %v848 = vunpack.c.h.b16 %v322
    %v849 = vunpack.c.l.b16 %v323
    %v850 = vunpack.c.h.b16 %v323
    %v851 = vunpack.c.l.b16 %v324
    %v852 = vunpack.c.h.b16 %v324
    %v853 = vunpack.c.l.b16 %v325
    %v854 = vunpack.c.h.b16 %v325
    %v855 = vunpack.c.l.b16 %v326
    %v856 = vunpack.c.h.b16 %v326
    %v857 = vunpack.c.l.b16 %v327
    %v858 = vunpack.c.h.b16 %v327
    %v859 = vunpack.c.l.b16 %v328
    %v860 = vunpack.c.h.b16 %v328
    %v861 = vunpack.c.l.b16 %v329
    %v862 = vunpack.c.h.b16 %v329
    %v863 = vunpack.c.l.b16 %v330
    %v864 = vunpack.c.h.b16 %v330
    %v865 = vunpack.c.l.b16 %v331
    %v866 = vunpack.c.h.b16 %v331
    %v867 = vunpack.c.l.b16 %v332
    %v868 = vunpack.c.h.b16 %v332
    %v869 = vunpack.c.l.b16 %v333
    %v870 = vunpack.c.h.b16 %v333
    %v871 = vunpack.c.l.b16 %v334
    %v872 = vunpack.c.h.b16 %v334
    %v873 = vunpack.c.l.b16 %v335
    %v874 = vunpack.c.h.b16 %v335
    %v875 = vunpack.c.l.b16 %v336
    %v876 = vunpack.c.h.b16 %v336
    %v877 = vunpack.c.l.b16 %v337
    %v878 = vunpack.c.h.b16 %v337
    %v879 = vunpack.c.l.b16 %v338
    %v880 = vunpack.c.h.b16 %v338
    %v881 = vunpack.c.l.b16 %v339
    %v882 = vunpack.c.h.b16 %v339
    %v883 = vunpack.c.l.b16 %v340
    %v884 = vunpack.c.h.b16 %v340
    %v885 = vunpack.c.l.b16 %v341
    %v886 = vunpack.c.h.b16 %v341
    %v887 = vunpack.c.l.b16 %v342
    %v888 = vunpack.c.h.b16 %v342
    %v889 = vunpack.c.l.b16 %v343
    %v890 = vunpack.c.h.b16 %v343
    %v891 = vunpack.c.l.b16 %v344
    %v892 = vunpack.c.h.b16 %v344
    %v893 = vunpack.c.l.b16 %v345
    %v894 = vunpack.c.h.b16 %v345
    %v895 = vunpack.c.l.b16 %v346
    %v896 = vunpack.c.h.b16 %v346
    %v897 = vunpack.c.l.b16 %v347
    %v898 = vunpack.c.h.b16 %v347
    %v899 = vunpack.c.l.b16 %v348
    %v900 = vunpack.c.h.b16 %v348
    %v901 = vunpack.c.l.b16 %v349
    %v902 = vunpack.c.h.b16 %v349
    %v903 = vunpack.c.l.b16 %v350
    %v904 = vunpack.c.h.b16 %v350
    %v905 = vunpack.c.l.b16 %v351
    %v906 = vunpack.c.h.b16 %v351
    %v907 = vunpack.c.l.b16 %v352
    %v908 = vunpack.c.h.b16 %v352
    %v909 = vunpack.c.l.b16 %v353
    %v910 = vunpack.c.h.b16 %v353
    %v911 = vunpack.c.l.b16 %v354
    %v912 = vunpack.c.h.b16 %v354
    %v913 = vunpack.c.l.b16 %v355
    %v914 = vunpack.c.h.b16 %v355
    %v915 = vunpack.c.l.b16 %v356
    %v916 = vunpack.c.h.b16 %v356
    %v917 = vunpack.c.l.b16 %v357
    %v918 = vunpack.c.h.b16 %v357
    %v919 = vunpack.c.l.b16 %v358
    %v920 = vunpack.c.h.b16 %v358
    %v921 = vunpack.c.l.b16 %v359
    %v922 = vunpack.c.h.b16 %v359
    %v923 = vunpack.c.l.b16 %v360
    %v924 = vunpack.c.h.b16 %v360
    %v925 = vunpack.c.l.b16 %v361
    %v926 = vunpack.c.h.b16 %v361
    %v927 = vunpack.c.l.b16 %v362
    %v928 = vunpack.c.h.b16 %v362
    %v929 = vunpack.c.l.b16 %v363
    %v930 = vunpack.c.h.b16 %v363
    %v931 = vunpack.c.l.b16 %v364
    %v932 = vunpack.c.h.b16 %v364
    %v933 = vunpack.c.l.b16 %v365
    %v934 = vunpack.c.h.b16 %v365
    %v935 = vunpack.c.l.b16 %v366
    %v936 = vunpack.c.h.b16 %v366
    %v937 = vunpack.c.l.b16 %v367
    %v938 = vunpack.c.h.b16 %v367
    %v939 = vunpack.c.l.b16 %v368
    %v940 = vunpack.c.h.b16 %v368
    %v941 = vunpack.c.l.b16 %v369
    %v942 = vunpack.c.h.b16 %v369
    %v943 = vunpack.c.l.b16 %v370
    %v944 = vunpack.c.h.b16 %v370
    %v945 = vunpack.c.l.b16 %v371
    %v946 = vunpack.c.h.b16 %v371
    %v947 = vunpack.c.l.b16 %v372
    %v948 = vunpack.c.h.b16 %v372
    %v949 = vunpack.c.l.b16 %v373
    %v950 = vunpack.c.h.b16 %v373
    %v951 = vunpack.c.l.b16 %v374
    %v952 = vunpack.c.h.b16 %v374
    %v953 = vunpack.c.l.b16 %v375
    %v954 = vunpack.c.h.b16 %v375
    %v955 = vunpack.c.l.b16 %v376
    %v956 = vunpack.c.h.b16 %v376
    %v957 = vunpack.c.l.b16 %v377
    %v958 = vunpack.c.h.b16 %v377
    %v959 = vunpack.c.l.b16 %v378
    %v960 = vunpack.c.h.b16 %v378
    %v961 = vunpack.c.l.b16 %v379
    %v962 = vunpack.c.h.b16 %v379
    %v963 = vunpack.c.l.b16 %v380
    %v964 = vunpack.c.h.b16 %v380
    %v965 = vunpack.c.l.b16 %v381
    %v966 = vunpack.c.h.b16 %v381
    %v967 = vunpack.c.l.b16 %v382
    %v968 = vunpack.c.h.b16 %v382
    %v969 = vpack.c.b16 %v589, %v585
    %v970 = vpack.c.b16 %v590, %v586
    %v971 = vpack.c.b16 %v591, %v587
    %v972 = vpack.c.b16 %v592, %v588
    %v973 = vpack.c.b16 %v597, %v593
    %v974 = vpack.c.b16 %v598, %v594
    %v975 = vpack.c.b16 %v599, %v595
    %v976 = vpack.c.b16 %v600, %v596
    %v977 = vpack.c.b16 %v605, %v601
    %v978 = vpack.c.b16 %v606, %v602
    %v979 = vpack.c.b16 %v607, %v603
    %v980 = vpack.c.b16 %v608, %v604
    %v981 = vpack.c.b16 %v613, %v609
    %v982 = vpack.c.b16 %v614, %v610
    %v983 = vpack.c.b16 %v615, %v611
    %v984 = vpack.c.b16 %v616, %v612
    %v985 = vpack.c.b16 %v621, %v617
    %v986 = vpack.c.b16 %v622, %v618
    %v987 = vpack.c.b16 %v623, %v619
    %v988 = vpack.c.b16 %v624, %v620
    %v989 = vpack.c.b16 %v629, %v625
    %v990 = vpack.c.b16 %v630, %v626
    %v991 = vpack.c.b16 %v631, %v627
    %v992 = vpack.c.b16 %v632, %v628
    %v993 = vpack.c.b16 %v637, %v633
    %v994 = vpack.c.b16 %v638, %v634
    %v995 = vpack.c.b16 %v639, %v635
    %v996 = vpack.c.b16 %v640, %v636
    %v997 = vpack.c.b16 %v645, %v641
    %v998 = vpack.c.b16 %v646, %v642
    %v999 = vpack.c.b16 %v647, %v643
    %v1000 = vpack.c.b16 %v648, %v644
    %v1001 = vpack.c.b16 %v653, %v649
    %v1002 = vpack.c.b16 %v654, %v650
    %v1003 = vpack.c.b16 %v655, %v651
    %v1004 = vpack.c.b16 %v656, %v652
    %v1005 = vpack.c.b16 %v661, %v657
    %v1006 = vpack.c.b16 %v662, %v658
    %v1007 = vpack.c.b16 %v663, %v659
    %v1008 = vpack.c.b16 %v664, %v660
    %v1009 = vpack.c.b16 %v669, %v665
    %v1010 = vpack.c.b16 %v670, %v666
    %v1011 = vpack.c.b16 %v671, %v667
    %v1012 = vpack.c.b16 %v672, %v668
    %v1013 = vpack.c.b16 %v677, %v673
    %v1014 = vpack.c.b16 %v678, %v674
    %v1015 = vpack.c.b16 %v679, %v675
    %v1016 = vpack.c.b16 %v680, %v676
    %v1017 = vpack.c.b16 %v685, %v681
    %v1018 = vpack.c.b16 %v686, %v682
    %v1019 = vpack.c.b16 %v687, %v683
    %v1020 = vpack.c.b16 %v688, %v684
    %v1021 = vpack.c.b16 %v693, %v689
    %v1022 = vpack.c.b16 %v694, %v690
    %v1023 = vpack.c.b16 %v695, %v691
    %v1024 = vpack.c.b16 %v696, %v692
    %v1025 = vpack.c.b16 %v701, %v697
    %v1026 = vpack.c.b16 %v702, %v698
    %v1027 = vpack.c.b16 %v703, %v699
    %v1028 = vpack.c.b16 %v704, %v700
    %v1029 = vpack.c.b16 %v709, %v705
    %v1030 = vpack.c.b16 %v710, %v706
    %v1031 = vpack.c.b16 %v711, %v707
    %v1032 = vpack.c.b16 %v712, %v708
    %v1033 = vpack.c.b16 %v717, %v713
    %v1034 = vpack.c.b16 %v718, %v714
    %v1035 = vpack.c.b16 %v719, %v715
    %v1036 = vpack.c.b16 %v720, %v716
    %v1037 = vpack.c.b16 %v725, %v721
    %v1038 = vpack.c.b16 %v726, %v722
    %v1039 = vpack.c.b16 %v727, %v723
    %v1040 = vpack.c.b16 %v728, %v724
    %v1041 = vpack.c.b16 %v733, %v729
    %v1042 = vpack.c.b16 %v734, %v730
    %v1043 = vpack.c.b16 %v735, %v731
    %v1044 = vpack.c.b16 %v736, %v732
    %v1045 = vpack.c.b16 %v741, %v737
    %v1046 = vpack.c.b16 %v742, %v738
    %v1047 = vpack.c.b16 %v743, %v739
    %v1048 = vpack.c.b16 %v744, %v740
    %v1049 = vpack.c.b16 %v749, %v745
    %v1050 = vpack.c.b16 %v750, %v746
    %v1051 = vpack.c.b16 %v751, %v747
    %v1052 = vpack.c.b16 %v752, %v748
    %v1053 = vpack.c.b16 %v757, %v753
    %v1054 = vpack.c.b16 %v758, %v754
    %v1055 = vpack.c.b16 %v759, %v755
    %v1056 = vpack.c.b16 %v760, %v756
    %v1057 = vpack.c.b16 %v765, %v761
    %v1058 = vpack.c.b16 %v766, %v762
    %v1059 = vpack.c.b16 %v767, %v763
    %v1060 = vpack.c.b16 %v768, %v764
    %v1061 = vpack.c.b16 %v773, %v769
    %v1062 = vpack.c.b16 %v774, %v770
    %v1063 = vpack.c.b16 %v775, %v771
    %v1064 = vpack.c.b16 %v776, %v772
    %v1065 = vpack.c.b16 %v781, %v777
    %v1066 = vpack.c.b16 %v782, %v778
    %v1067 = vpack.c.b16 %v783, %v779
    %v1068 = vpack.c.b16 %v784, %v780
    %v1069 = vpack.c.b16 %v789, %v785
    %v1070 = vpack.c.b16 %v790, %v786
    %v1071 = vpack.c.b16 %v791, %v787
    %v1072 = vpack.c.b16 %v792, %v788
    %v1073 = vpack.c.b16 %v797, %v793
    %v1074 = vpack.c.b16 %v798, %v794
    %v1075 = vpack.c.b16 %v799, %v795
    %v1076 = vpack.c.b16 %v800, %v796
    %v1077 = vpack.c.b16 %v805, %v801
    %v1078 = vpack.c.b16 %v806, %v802
    %v1079 = vpack.c.b16 %v807, %v803
    %v1080 = vpack.c.b16 %v808, %v804
    %v1081 = vpack.c.b16 %v813, %v809
    %v1082 = vpack.c.b16 %v814, %v810
    %v1083 = vpack.c.b16 %v815, %v811
    %v1084 = vpack.c.b16 %v816, %v812
    %v1085 = vpack.c.b16 %v821, %v817
    %v1086 = vpack.c.b16 %v822, %v818
    %v1087 = vpack.c.b16 %v823, %v819
    %v1088 = vpack.c.b16 %v824, %v820
    %v1089 = vpack.c.b16 %v829, %v825
    %v1090 = vpack.c.b16 %v830, %v826
    %v1091 = vpack.c.b16 %v831, %v827
    %v1092 = vpack.c.b16 %v832, %v828
    %v1093 = vpack.c.b16 %v837, %v833
    %v1094 = vpack.c.b16 %v838, %v834
    %v1095 = vpack.c.b16 %v839, %v835
    %v1096 = vpack.c.b16 %v840, %v836
    %v1097 = vpack.c.b16 %v845, %v841
    %v1098 = vpack.c.b16 %v846, %v842
    %v1099 = vpack.c.b16 %v847, %v843
    %v1100 = vpack.c.b16 %v848, %v844
    %v1101 = vpack.c.b16 %v853, %v849
    %v1102 = vpack.c.b16 %v854, %v850
    %v1103 = vpack.c.b16 %v855, %v851
    %v1104 = vpack.c.b16 %v856, %v852
    %v1105 = vpack.c.b16 %v861, %v857
    %v1106 = vpack.c.b16 %v862, %v858
    %v1107 = vpack.c.b16 %v863, %v859
    %v1108 = vpack.c.b16 %v864, %v860
    %v1109 = vpack.c.b16 %v869, %v865
    %v1110 = vpack.c.b16 %v870, %v866
    %v1111 = vpack.c.b16 %v871, %v867
    %v1112 = vpack.c.b16 %v872, %v868
    %v1113 = vpack.c.b16 %v877, %v873
    %v1114 = vpack.c.b16 %v878, %v874
    %v1115 = vpack.c.b16 %v879, %v875
    %v1116 = vpack.c.b16 %v880, %v876
    %v1117 = vpack.c.b16 %v885, %v881
    %v1118 = vpack.c.b16 %v886, %v882
    %v1119 = vpack.c.b16 %v887, %v883
    %v1120 = vpack.c.b16 %v888, %v884
    %v1121 = vpack.c.b16 %v893, %v889
    %v1122 = vpack.c.b16 %v894, %v890
    %v1123 = vpack.c.b16 %v895, %v891
    %v1124 = vpack.c.b16 %v896, %v892
    %v1125 = vpack.c.b16 %v901, %v897
    %v1126 = vpack.c.b16 %v902, %v898
    %v1127 = vpack.c.b16 %v903, %v899
    %v1128 = vpack.c.b16 %v904, %v900
    %v1129 = vpack.c.b16 %v909, %v905
    %v1130 = vpack.c.b16 %v910, %v906
    %v1131 = vpack.c.b16 %v911, %v907
    %v1132 = vpack.c.b16 %v912, %v908
    %v1133 = vpack.c.b16 %v917, %v913
    %v1134 = vpack.c.b16 %v918, %v914
    %v1135 = vpack.c.b16 %v919, %v915
    %v1136 = vpack.c.b16 %v920, %v916
    %v1137 = vpack.c.b16 %v925, %v921
    %v1138 = vpack.c.b16 %v926, %v922
    %v1139 = vpack.c.b16 %v927, %v923
    %v1140 = vpack.c.b16 %v928, %v924
    %v1141 = vpack.c.b16 %v933, %v929
    %v1142 = vpack.c.b16 %v934, %v930
    %v1143 = vpack.c.b16 %v935, %v931
    %v1144 = vpack.c.b16 %v936, %v932
    %v1145 = vpack.c.b16 %v941, %v937
    %v1146 = vpack.c.b16 %v942, %v938
    %v1147 = vpack.c.b16 %v943, %v939
    %v1148 = vpack.c.b16 %v944, %v940
    %v1149 = vpack.c.b16 %v949, %v945
    %v1150 = vpack.c.b16 %v950, %v946
    %v1151 = vpack.c.b16 %v951, %v947
    %v1152 = vpack.c.b16 %v952, %v948
    %v1153 = vpack.c.b16 %v957, %v953
    %v1154 = vpack.c.b16 %v958, %v954
    %v1155 = vpack.c.b16 %v959, %v955
    %v1156 = vpack.c.b16 %v960, %v956
    %v1157 = vpack.c.b16 %v965, %v961
    %v1158 = vpack.c.b16 %v966, %v962
    %v1159 = vpack.c.b16 %v967, %v963
    %v1160 = vpack.c.b16 %v968, %v964
    %1353 = vmatpush.bf16.msra.mxu0 %v997
    %1354 = vmatpush.bf16.msra.mxu0 %v993
    %1355 = vmatpush.bf16.msra.mxu0 %v989
    %1356 = vmatpush.bf16.msra.mxu0 %v985
    %1357 = vmatpush.bf16.msra.mxu0 %v981
    %1358 = vmatpush.bf16.msra.mxu0 %v977
    %1359 = vmatpush.bf16.msra.mxu0 %v973
    %1360 = vmatpush.bf16.msra.mxu0 %v969
    %1361 = vmatmul.bf16.gmra.mxu0 %v185
    %v1362 = vpop.f32.mrf.mxu0
    %v1363 = vadd.f32 %v385, %v1362
    %v1364 = vpop.f32.mrf.mxu0
    %v1365 = vadd.f32 %v385, %v1364
    %1366 = vdwg.mxu0
    %1367 = vmatpush.bf16.msra.mxu0 %v1029
    %1368 = vmatpush.bf16.msra.mxu0 %v1025
    %1369 = vmatpush.bf16.msra.mxu0 %v1021
    %1370 = vmatpush.bf16.msra.mxu0 %v1017
    %1371 = vmatpush.bf16.msra.mxu0 %v1013
    %1372 = vmatpush.bf16.msra.mxu0 %v1009
    %1373 = vmatpush.bf16.msra.mxu0 %v1005
    %1374 = vmatpush.bf16.msra.mxu0 %v1001
    %1375 = vmatmul.bf16.gmra.mxu0 %v186
    %v1376 = vpop.f32.mrf.mxu0
    %v1377 = vadd.f32 %v1363, %v1376
    %v1378 = vpop.f32.mrf.mxu0
    %v1379 = vadd.f32 %v1365, %v1378
    %1380 = vdwg.mxu0
    %1381 = vmatpush.bf16.msra.mxu0 %v1061
    %1382 = vmatpush.bf16.msra.mxu0 %v1057
    %1383 = vmatpush.bf16.msra.mxu0 %v1053
    %1384 = vmatpush.bf16.msra.mxu0 %v1049
    %1385 = vmatpush.bf16.msra.mxu0 %v1045
    %1386 = vmatpush.bf16.msra.mxu0 %v1041
    %1387 = vmatpush.bf16.msra.mxu0 %v1037
    %1388 = vmatpush.bf16.msra.mxu0 %v1033
    %1389 = vmatmul.bf16.gmra.mxu0 %v187
    %v1390 = vpop.f32.mrf.mxu0
    %v1391 = vadd.f32 %v1377, %v1390
    %v1392 = vpop.f32.mrf.mxu0
    %v1393 = vadd.f32 %v1379, %v1392
    %1394 = vdwg.mxu0
    %1395 = vmatpush.bf16.msra.mxu0 %v1093
    %1396 = vmatpush.bf16.msra.mxu0 %v1089
    %1397 = vmatpush.bf16.msra.mxu0 %v1085
    %1398 = vmatpush.bf16.msra.mxu0 %v1081
    %1399 = vmatpush.bf16.msra.mxu0 %v1077
    %1400 = vmatpush.bf16.msra.mxu0 %v1073
    %1401 = vmatpush.bf16.msra.mxu0 %v1069
    %1402 = vmatpush.bf16.msra.mxu0 %v1065
    %1403 = vmatmul.bf16.gmra.mxu0 %v188
    %v1404 = vpop.f32.mrf.mxu0
    %v1405 = vadd.f32 %v1391, %v1404
    %v1406 = vpop.f32.mrf.mxu0
    %v1407 = vadd.f32 %v1393, %v1406
    %1408 = vdwg.mxu0
    %1409 = vmatpush.bf16.msra.mxu0 %v1125
    %1410 = vmatpush.bf16.msra.mxu0 %v1121
    %1411 = vmatpush.bf16.msra.mxu0 %v1117
    %1412 = vmatpush.bf16.msra.mxu0 %v1113
    %1413 = vmatpush.bf16.msra.mxu0 %v1109
    %1414 = vmatpush.bf16.msra.mxu0 %v1105
    %1415 = vmatpush.bf16.msra.mxu0 %v1101
    %1416 = vmatpush.bf16.msra.mxu0 %v1097
    %1417 = vmatmul.bf16.gmra.mxu0 %v189
    %v1418 = vpop.f32.mrf.mxu0
    %v1419 = vadd.f32 %v1405, %v1418
    %v1420 = vpop.f32.mrf.mxu0
    %v1421 = vadd.f32 %v1407, %v1420
    %1422 = vdwg.mxu0
    %1423 = vmatpush.bf16.msra.mxu0 %v1157
    %1424 = vmatpush.bf16.msra.mxu0 %v1153
    %1425 = vmatpush.bf16.msra.mxu0 %v1149
    %1426 = vmatpush.bf16.msra.mxu0 %v1145
    %1427 = vmatpush.bf16.msra.mxu0 %v1141
    %1428 = vmatpush.bf16.msra.mxu0 %v1137
    %1429 = vmatpush.bf16.msra.mxu0 %v1133
    %1430 = vmatpush.bf16.msra.mxu0 %v1129
    %1431 = vmatmul.bf16.gmra.mxu0 %v190
    %v1432 = vpop.f32.mrf.mxu0
    %v1433 = vadd.f32 %v1419, %v1432
    %v1434 = vpop.f32.mrf.mxu0
    %v1435 = vadd.f32 %v1421, %v1434
    %1436 = vdwg.mxu0
    %1437 = vmatpush.bf16.msra.mxu0 %v998
    %1438 = vmatpush.bf16.msra.mxu0 %v994
    %1439 = vmatpush.bf16.msra.mxu0 %v990
    %1440 = vmatpush.bf16.msra.mxu0 %v986
    %1441 = vmatpush.bf16.msra.mxu0 %v982
    %1442 = vmatpush.bf16.msra.mxu0 %v978
    %1443 = vmatpush.bf16.msra.mxu0 %v974
    %1444 = vmatpush.bf16.msra.mxu0 %v970
    %1445 = vmatmul.bf16.gmra.mxu0 %v185
    %v1446 = vpop.f32.mrf.mxu0
    %v1447 = vadd.f32 %v386, %v1446
    %v1448 = vpop.f32.mrf.mxu0
    %v1449 = vadd.f32 %v386, %v1448
    %1450 = vdwg.mxu0
    %1451 = vmatpush.bf16.msra.mxu0 %v1030
    %1452 = vmatpush.bf16.msra.mxu0 %v1026
    %1453 = vmatpush.bf16.msra.mxu0 %v1022
    %1454 = vmatpush.bf16.msra.mxu0 %v1018
    %1455 = vmatpush.bf16.msra.mxu0 %v1014
    %1456 = vmatpush.bf16.msra.mxu0 %v1010
    %1457 = vmatpush.bf16.msra.mxu0 %v1006
    %1458 = vmatpush.bf16.msra.mxu0 %v1002
    %1459 = vmatmul.bf16.gmra.mxu0 %v186
    %v1460 = vpop.f32.mrf.mxu0
    %v1461 = vadd.f32 %v1447, %v1460
    %v1462 = vpop.f32.mrf.mxu0
    %v1463 = vadd.f32 %v1449, %v1462
    %1464 = vdwg.mxu0
    %1465 = vmatpush.bf16.msra.mxu0 %v1062
    %1466 = vmatpush.bf16.msra.mxu0 %v1058
    %1467 = vmatpush.bf16.msra.mxu0 %v1054
    %1468 = vmatpush.bf16.msra.mxu0 %v1050
    %1469 = vmatpush.bf16.msra.mxu0 %v1046
    %1470 = vmatpush.bf16.msra.mxu0 %v1042
    %1471 = vmatpush.bf16.msra.mxu0 %v1038
    %1472 = vmatpush.bf16.msra.mxu0 %v1034
    %1473 = vmatmul.bf16.gmra.mxu0 %v187
    %v1474 = vpop.f32.mrf.mxu0
    %v1475 = vadd.f32 %v1461, %v1474
    %v1476 = vpop.f32.mrf.mxu0
    %v1477 = vadd.f32 %v1463, %v1476
    %1478 = vdwg.mxu0
    %1479 = vmatpush.bf16.msra.mxu0 %v1094
    %1480 = vmatpush.bf16.msra.mxu0 %v1090
    %1481 = vmatpush.bf16.msra.mxu0 %v1086
    %1482 = vmatpush.bf16.msra.mxu0 %v1082
    %1483 = vmatpush.bf16.msra.mxu0 %v1078
    %1484 = vmatpush.bf16.msra.mxu0 %v1074
    %1485 = vmatpush.bf16.msra.mxu0 %v1070
    %1486 = vmatpush.bf16.msra.mxu0 %v1066
    %1487 = vmatmul.bf16.gmra.mxu0 %v188
    %v1488 = vpop.f32.mrf.mxu0
    %v1489 = vadd.f32 %v1475, %v1488
    %v1490 = vpop.f32.mrf.mxu0
    %v1491 = vadd.f32 %v1477, %v1490
    %1492 = vdwg.mxu0
    %1493 = vmatpush.bf16.msra.mxu0 %v1126
    %1494 = vmatpush.bf16.msra.mxu0 %v1122
    %1495 = vmatpush.bf16.msra.mxu0 %v1118
    %1496 = vmatpush.bf16.msra.mxu0 %v1114
    %1497 = vmatpush.bf16.msra.mxu0 %v1110
    %1498 = vmatpush.bf16.msra.mxu0 %v1106
    %1499 = vmatpush.bf16.msra.mxu0 %v1102
    %1500 = vmatpush.bf16.msra.mxu0 %v1098
    %1501 = vmatmul.bf16.gmra.mxu0 %v189
    %v1502 = vpop.f32.mrf.mxu0
    %v1503 = vadd.f32 %v1489, %v1502
    %v1504 = vpop.f32.mrf.mxu0
    %v1505 = vadd.f32 %v1491, %v1504
    %1506 = vdwg.mxu0
    %1507 = vmatpush.bf16.msra.mxu0 %v1158
    %1508 = vmatpush.bf16.msra.mxu0 %v1154
    %1509 = vmatpush.bf16.msra.mxu0 %v1150
    %1510 = vmatpush.bf16.msra.mxu0 %v1146
    %1511 = vmatpush.bf16.msra.mxu0 %v1142
    %1512 = vmatpush.bf16.msra.mxu0 %v1138
    %1513 = vmatpush.bf16.msra.mxu0 %v1134
    %1514 = vmatpush.bf16.msra.mxu0 %v1130
    %1515 = vmatmul.bf16.gmra.mxu0 %v190
    %v1516 = vpop.f32.mrf.mxu0
    %v1517 = vadd.f32 %v1503, %v1516
    %v1518 = vpop.f32.mrf.mxu0
    %v1519 = vadd.f32 %v1505, %v1518
    %1520 = vdwg.mxu0
    %1521 = vmatpush.bf16.msra.mxu0 %v999
    %1522 = vmatpush.bf16.msra.mxu0 %v995
    %1523 = vmatpush.bf16.msra.mxu0 %v991
    %1524 = vmatpush.bf16.msra.mxu0 %v987
    %1525 = vmatpush.bf16.msra.mxu0 %v983
    %1526 = vmatpush.bf16.msra.mxu0 %v979
    %1527 = vmatpush.bf16.msra.mxu0 %v975
    %1528 = vmatpush.bf16.msra.mxu0 %v971
    %1529 = vmatmul.bf16.gmra.mxu0 %v185
    %v1530 = vpop.f32.mrf.mxu0
    %v1531 = vadd.f32 %v387, %v1530
    %v1532 = vpop.f32.mrf.mxu0
    %v1533 = vadd.f32 %v387, %v1532
    %1534 = vdwg.mxu0
    %1535 = vmatpush.bf16.msra.mxu0 %v1031
    %1536 = vmatpush.bf16.msra.mxu0 %v1027
    %1537 = vmatpush.bf16.msra.mxu0 %v1023
    %1538 = vmatpush.bf16.msra.mxu0 %v1019
    %1539 = vmatpush.bf16.msra.mxu0 %v1015
    %1540 = vmatpush.bf16.msra.mxu0 %v1011
    %1541 = vmatpush.bf16.msra.mxu0 %v1007
    %1542 = vmatpush.bf16.msra.mxu0 %v1003
    %1543 = vmatmul.bf16.gmra.mxu0 %v186
    %v1544 = vpop.f32.mrf.mxu0
    %v1545 = vadd.f32 %v1531, %v1544
    %v1546 = vpop.f32.mrf.mxu0
    %v1547 = vadd.f32 %v1533, %v1546
    %1548 = vdwg.mxu0
    %1549 = vmatpush.bf16.msra.mxu0 %v1063
    %1550 = vmatpush.bf16.msra.mxu0 %v1059
    %1551 = vmatpush.bf16.msra.mxu0 %v1055
    %1552 = vmatpush.bf16.msra.mxu0 %v1051
    %1553 = vmatpush.bf16.msra.mxu0 %v1047
    %1554 = vmatpush.bf16.msra.mxu0 %v1043
    %1555 = vmatpush.bf16.msra.mxu0 %v1039
    %1556 = vmatpush.bf16.msra.mxu0 %v1035
    %1557 = vmatmul.bf16.gmra.mxu0 %v187
    %v1558 = vpop.f32.mrf.mxu0
    %v1559 = vadd.f32 %v1545, %v1558
    %v1560 = vpop.f32.mrf.mxu0
    %v1561 = vadd.f32 %v1547, %v1560
    %1562 = vdwg.mxu0
    %1563 = vmatpush.bf16.msra.mxu0 %v1095
    %1564 = vmatpush.bf16.msra.mxu0 %v1091
    %1565 = vmatpush.bf16.msra.mxu0 %v1087
    %1566 = vmatpush.bf16.msra.mxu0 %v1083
    %1567 = vmatpush.bf16.msra.mxu0 %v1079
    %1568 = vmatpush.bf16.msra.mxu0 %v1075
    %1569 = vmatpush.bf16.msra.mxu0 %v1071
    %1570 = vmatpush.bf16.msra.mxu0 %v1067
    %1571 = vmatmul.bf16.gmra.mxu0 %v188
    %v1572 = vpop.f32.mrf.mxu0
    %v1573 = vadd.f32 %v1559, %v1572
    %v1574 = vpop.f32.mrf.mxu0
    %v1575 = vadd.f32 %v1561, %v1574
    %1576 = vdwg.mxu0
    %1577 = vmatpush.bf16.msra.mxu0 %v1127
    %1578 = vmatpush.bf16.msra.mxu0 %v1123
    %1579 = vmatpush.bf16.msra.mxu0 %v1119
    %1580 = vmatpush.bf16.msra.mxu0 %v1115
    %1581 = vmatpush.bf16.msra.mxu0 %v1111
    %1582 = vmatpush.bf16.msra.mxu0 %v1107
    %1583 = vmatpush.bf16.msra.mxu0 %v1103
    %1584 = vmatpush.bf16.msra.mxu0 %v1099
    %1585 = vmatmul.bf16.gmra.mxu0 %v189
    %v1586 = vpop.f32.mrf.mxu0
    %v1587 = vadd.f32 %v1573, %v1586
    %v1588 = vpop.f32.mrf.mxu0
    %v1589 = vadd.f32 %v1575, %v1588
    %1590 = vdwg.mxu0
    %1591 = vmatpush.bf16.msra.mxu0 %v1159
    %1592 = vmatpush.bf16.msra.mxu0 %v1155
    %1593 = vmatpush.bf16.msra.mxu0 %v1151
    %1594 = vmatpush.bf16.msra.mxu0 %v1147
    %1595 = vmatpush.bf16.msra.mxu0 %v1143
    %1596 = vmatpush.bf16.msra.mxu0 %v1139
    %1597 = vmatpush.bf16.msra.mxu0 %v1135
    %1598 = vmatpush.bf16.msra.mxu0 %v1131
    %1599 = vmatmul.bf16.gmra.mxu0 %v190
    %v1600 = vpop.f32.mrf.mxu0
    %v1601 = vadd.f32 %v1587, %v1600
    %v1602 = vpop.f32.mrf.mxu0
    %v1603 = vadd.f32 %v1589, %v1602
    %1604 = vdwg.mxu0
    %1605 = vmatpush.bf16.msra.mxu0 %v1000
    %1606 = vmatpush.bf16.msra.mxu0 %v996
    %1607 = vmatpush.bf16.msra.mxu0 %v992
    %1608 = vmatpush.bf16.msra.mxu0 %v988
    %1609 = vmatpush.bf16.msra.mxu0 %v984
    %1610 = vmatpush.bf16.msra.mxu0 %v980
    %1611 = vmatpush.bf16.msra.mxu0 %v976
    %1612 = vmatpush.bf16.msra.mxu0 %v972
    %1613 = vmatmul.bf16.gmra.mxu0 %v185
    %v1614 = vpop.f32.mrf.mxu0
    %v1615 = vadd.f32 %v388, %v1614
    %v1616 = vpop.f32.mrf.mxu0
    %v1617 = vadd.f32 %v388, %v1616
    %1618 = vdwg.mxu0
    %1619 = vmatpush.bf16.msra.mxu0 %v1032
    %1620 = vmatpush.bf16.msra.mxu0 %v1028
    %1621 = vmatpush.bf16.msra.mxu0 %v1024
    %1622 = vmatpush.bf16.msra.mxu0 %v1020
    %1623 = vmatpush.bf16.msra.mxu0 %v1016
    %1624 = vmatpush.bf16.msra.mxu0 %v1012
    %1625 = vmatpush.bf16.msra.mxu0 %v1008
    %1626 = vmatpush.bf16.msra.mxu0 %v1004
    %1627 = vmatmul.bf16.gmra.mxu0 %v186
    %v1628 = vpop.f32.mrf.mxu0
    %v1629 = vadd.f32 %v1615, %v1628
    %v1630 = vpop.f32.mrf.mxu0
    %v1631 = vadd.f32 %v1617, %v1630
    %1632 = vdwg.mxu0
    %1633 = vmatpush.bf16.msra.mxu0 %v1064
    %1634 = vmatpush.bf16.msra.mxu0 %v1060
    %1635 = vmatpush.bf16.msra.mxu0 %v1056
    %1636 = vmatpush.bf16.msra.mxu0 %v1052
    %1637 = vmatpush.bf16.msra.mxu0 %v1048
    %1638 = vmatpush.bf16.msra.mxu0 %v1044
    %1639 = vmatpush.bf16.msra.mxu0 %v1040
    %1640 = vmatpush.bf16.msra.mxu0 %v1036
    %1641 = vmatmul.bf16.gmra.mxu0 %v187
    %v1642 = vpop.f32.mrf.mxu0
    %v1643 = vadd.f32 %v1629, %v1642
    %v1644 = vpop.f32.mrf.mxu0
    %v1645 = vadd.f32 %v1631, %v1644
    %1646 = vdwg.mxu0
    %1647 = vmatpush.bf16.msra.mxu0 %v1096
    %1648 = vmatpush.bf16.msra.mxu0 %v1092
    %1649 = vmatpush.bf16.msra.mxu0 %v1088
    %1650 = vmatpush.bf16.msra.mxu0 %v1084
    %1651 = vmatpush.bf16.msra.mxu0 %v1080
    %1652 = vmatpush.bf16.msra.mxu0 %v1076
    %1653 = vmatpush.bf16.msra.mxu0 %v1072
    %1654 = vmatpush.bf16.msra.mxu0 %v1068
    %1655 = vmatmul.bf16.gmra.mxu0 %v188
    %v1656 = vpop.f32.mrf.mxu0
    %v1657 = vadd.f32 %v1643, %v1656
    %v1658 = vpop.f32.mrf.mxu0
    %v1659 = vadd.f32 %v1645, %v1658
    %1660 = vdwg.mxu0
    %1661 = vmatpush.bf16.msra.mxu0 %v1128
    %1662 = vmatpush.bf16.msra.mxu0 %v1124
    %1663 = vmatpush.bf16.msra.mxu0 %v1120
    %1664 = vmatpush.bf16.msra.mxu0 %v1116
    %1665 = vmatpush.bf16.msra.mxu0 %v1112
    %1666 = vmatpush.bf16.msra.mxu0 %v1108
    %1667 = vmatpush.bf16.msra.mxu0 %v1104
    %1668 = vmatpush.bf16.msra.mxu0 %v1100
    %1669 = vmatmul.bf16.gmra.mxu0 %v189
    %v1670 = vpop.f32.mrf.mxu0
    %v1671 = vadd.f32 %v1657, %v1670
    %v1672 = vpop.f32.mrf.mxu0
    %v1673 = vadd.f32 %v1659, %v1672
    %1674 = vdwg.mxu0
    %1675 = vmatpush.bf16.msra.mxu0 %v1160
    %1676 = vmatpush.bf16.msra.mxu0 %v1156
    %1677 = vmatpush.bf16.msra.mxu0 %v1152
    %1678 = vmatpush.bf16.msra.mxu0 %v1148
    %1679 = vmatpush.bf16.msra.mxu0 %v1144
    %1680 = vmatpush.bf16.msra.mxu0 %v1140
    %1681 = vmatpush.bf16.msra.mxu0 %v1136
    %1682 = vmatpush.bf16.msra.mxu0 %v1132
    %1683 = vmatmul.bf16.gmra.mxu0 %v190
    %v1684 = vpop.f32.mrf.mxu0
    %v1685 = vadd.f32 %v1671, %v1684
    %v1686 = vpop.f32.mrf.mxu0
    %v1687 = vadd.f32 %v1673, %v1686
    %1688 = vdwg.mxu0
    %v1689 = vmax.f32 %v1433, 0.0
    %v1690 = vmax.f32 %v1517, 0.0
    %v1691 = vmax.f32 %v1601, 0.0
    %v1692 = vmax.f32 %v1685, 0.0
    %v1693 = vmax.f32 %v1435, 0.0
    %v1694 = vmax.f32 %v1519, 0.0
    %v1695 = vmax.f32 %v1603, 0.0
    %v1696 = vmax.f32 %v1687, 0.0
    %v1697 = vpack.c.bf16 %v1693, %v1689
    %v1698 = vpack.c.bf16 %v1694, %v1690
    %v1699 = vpack.c.bf16 %v1695, %v1691
    %v1700 = vpack.c.bf16 %v1696, %v1692
    %v1701 = vld [vmem:[#allocation8] sm:$0xff]
    %v1702 = vld [vmem:[#allocation8 + $0x8] sm:$0xff]
    %v1703 = vld [vmem:[#allocation8 + $0x10] sm:$0xff]
    %v1704 = vld [vmem:[#allocation8 + $0x18] sm:$0xff]
    %v1705 = vld [vmem:[#allocation8 + $0x20] sm:$0xff]
    %v1706 = vld [vmem:[#allocation8 + $0x28] sm:$0xff]
    %v1707 = vld [vmem:[#allocation8 + $0x30] sm:$0xff]
    %v1708 = vld [vmem:[#allocation8 + $0x38] sm:$0xff]
    %v1709 = vld [vmem:[#allocation8 + $0x40] sm:$0xff]
    %v1710 = vld [vmem:[#allocation8 + $0x48] sm:$0xff]
    %v1711 = vld [vmem:[#allocation8 + $0x50] sm:$0xff]
    %v1712 = vld [vmem:[#allocation8 + $0x58] sm:$0xff]
    %v1713 = vld [vmem:[#allocation8 + $0x60] sm:$0xff]
    %v1714 = vld [vmem:[#allocation8 + $0x68] sm:$0xff]
    %v1715 = vld [vmem:[#allocation8 + $0x70] sm:$0xff]
    %v1716 = vld [vmem:[#allocation8 + $0x78] sm:$0xff]
    %v1717 = vld [vmem:[#allocation8 + $0x80] sm:$0xff]
    %v1718 = vld [vmem:[#allocation8 + $0x88] sm:$0xff]
    %v1719 = vld [vmem:[#allocation8 + $0x90] sm:$0xff]
    %v1720 = vld [vmem:[#allocation8 + $0x98] sm:$0xff]
    %v1721 = vld [vmem:[#allocation8 + $0xa0] sm:$0xff]
    %v1722 = vld [vmem:[#allocation8 + $0xa8] sm:$0xff]
    %v1723 = vld [vmem:[#allocation8 + $0xb0] sm:$0xff]
    %v1724 = vld [vmem:[#allocation8 + $0xb8] sm:$0xff]
    %v1725 = vld [vmem:[#allocation8 + $0xc0] sm:$0xff]
    %v1726 = vld [vmem:[#allocation8 + $0xc8] sm:$0xff]
    %v1727 = vld [vmem:[#allocation8 + $0xd0] sm:$0xff]
    %v1728 = vld [vmem:[#allocation8 + $0xd8] sm:$0xff]
    %v1729 = vld [vmem:[#allocation8 + $0xe0] sm:$0xff]
    %v1730 = vld [vmem:[#allocation8 + $0xe8] sm:$0xff]
    %v1731 = vld [vmem:[#allocation8 + $0xf0] sm:$0xff]
    %v1732 = vld [vmem:[#allocation8 + $0xf8] sm:$0xff]
    %v1733 = vld [vmem:[#allocation8 + $0x100] sm:$0xff]
    %v1734 = vld [vmem:[#allocation8 + $0x108] sm:$0xff]
    %v1735 = vld [vmem:[#allocation8 + $0x110] sm:$0xff]
    %v1736 = vld [vmem:[#allocation8 + $0x118] sm:$0xff]
    %v1737 = vld [vmem:[#allocation8 + $0x120] sm:$0xff]
    %v1738 = vld [vmem:[#allocation8 + $0x128] sm:$0xff]
    %v1739 = vld [vmem:[#allocation8 + $0x130] sm:$0xff]
    %v1740 = vld [vmem:[#allocation8 + $0x138] sm:$0xff]
    %v1741 = vld [vmem:[#allocation8 + $0x140] sm:$0xff]
    %v1742 = vld [vmem:[#allocation8 + $0x148] sm:$0xff]
    %v1743 = vld [vmem:[#allocation8 + $0x150] sm:$0xff]
    %v1744 = vld [vmem:[#allocation8 + $0x158] sm:$0xff]
    %v1745 = vld [vmem:[#allocation8 + $0x160] sm:$0xff]
    %v1746 = vld [vmem:[#allocation8 + $0x168] sm:$0xff]
    %v1747 = vld [vmem:[#allocation8 + $0x170] sm:$0xff]
    %v1748 = vld [vmem:[#allocation8 + $0x178] sm:$0xff]
    %v1749 = vld [vmem:[#allocation8 + $0x180] sm:$0xff]
    %v1750 = vld [vmem:[#allocation8 + $0x188] sm:$0xff]
    %v1751 = vld [vmem:[#allocation8 + $0x190] sm:$0xff]
    %v1752 = vld [vmem:[#allocation8 + $0x198] sm:$0xff]
    %v1753 = vld [vmem:[#allocation8 + $0x1a0] sm:$0xff]
    %v1754 = vld [vmem:[#allocation8 + $0x1a8] sm:$0xff]
    %v1755 = vld [vmem:[#allocation8 + $0x1b0] sm:$0xff]
    %v1756 = vld [vmem:[#allocation8 + $0x1b8] sm:$0xff]
    %v1757 = vld [vmem:[#allocation8 + $0x1c0] sm:$0xff]
    %v1758 = vld [vmem:[#allocation8 + $0x1c8] sm:$0xff]
    %v1759 = vld [vmem:[#allocation8 + $0x1d0] sm:$0xff]
    %v1760 = vld [vmem:[#allocation8 + $0x1d8] sm:$0xff]
    %v1761 = vld [vmem:[#allocation8 + $0x1e0] sm:$0xff]
    %v1762 = vld [vmem:[#allocation8 + $0x1e8] sm:$0xff]
    %v1763 = vld [vmem:[#allocation8 + $0x1f0] sm:$0xff]
    %v1764 = vld [vmem:[#allocation8 + $0x1f8] sm:$0xff]
    %v1765 = vld [vmem:[%s4] sm:$0x3]
    %v1767 = vperm.slane %v1765, 0
    %v1768 = vperm.slane %v1765, 1
    %v1835 = vunpack.c.l.b16 %v1701
    %v1836 = vunpack.c.h.b16 %v1701
    %v1837 = vunpack.c.l.b16 %v1702
    %v1838 = vunpack.c.h.b16 %v1702
    %v1839 = vunpack.c.l.b16 %v1703
    %v1840 = vunpack.c.h.b16 %v1703
    %v1841 = vunpack.c.l.b16 %v1704
    %v1842 = vunpack.c.h.b16 %v1704
    %v1843 = vunpack.c.l.b16 %v1705
    %v1844 = vunpack.c.h.b16 %v1705
    %v1845 = vunpack.c.l.b16 %v1706
    %v1846 = vunpack.c.h.b16 %v1706
    %v1847 = vunpack.c.l.b16 %v1707
    %v1848 = vunpack.c.h.b16 %v1707
    %v1849 = vunpack.c.l.b16 %v1708
    %v1850 = vunpack.c.h.b16 %v1708
    %v1851 = vunpack.c.l.b16 %v1709
    %v1852 = vunpack.c.h.b16 %v1709
    %v1853 = vunpack.c.l.b16 %v1710
    %v1854 = vunpack.c.h.b16 %v1710
    %v1855 = vunpack.c.l.b16 %v1711
    %v1856 = vunpack.c.h.b16 %v1711
    %v1857 = vunpack.c.l.b16 %v1712
    %v1858 = vunpack.c.h.b16 %v1712
    %v1859 = vunpack.c.l.b16 %v1713
    %v1860 = vunpack.c.h.b16 %v1713
    %v1861 = vunpack.c.l.b16 %v1714
    %v1862 = vunpack.c.h.b16 %v1714
    %v1863 = vunpack.c.l.b16 %v1715
    %v1864 = vunpack.c.h.b16 %v1715
    %v1865 = vunpack.c.l.b16 %v1716
    %v1866 = vunpack.c.h.b16 %v1716
    %v1867 = vunpack.c.l.b16 %v1717
    %v1868 = vunpack.c.h.b16 %v1717
    %v1869 = vunpack.c.l.b16 %v1718
    %v1870 = vunpack.c.h.b16 %v1718
    %v1871 = vunpack.c.l.b16 %v1719
    %v1872 = vunpack.c.h.b16 %v1719
    %v1873 = vunpack.c.l.b16 %v1720
    %v1874 = vunpack.c.h.b16 %v1720
    %v1875 = vunpack.c.l.b16 %v1721
    %v1876 = vunpack.c.h.b16 %v1721
    %v1877 = vunpack.c.l.b16 %v1722
    %v1878 = vunpack.c.h.b16 %v1722
    %v1879 = vunpack.c.l.b16 %v1723
    %v1880 = vunpack.c.h.b16 %v1723
    %v1881 = vunpack.c.l.b16 %v1724
    %v1882 = vunpack.c.h.b16 %v1724
    %v1883 = vunpack.c.l.b16 %v1725
    %v1884 = vunpack.c.h.b16 %v1725
    %v1885 = vunpack.c.l.b16 %v1726
    %v1886 = vunpack.c.h.b16 %v1726
    %v1887 = vunpack.c.l.b16 %v1727
    %v1888 = vunpack.c.h.b16 %v1727
    %v1889 = vunpack.c.l.b16 %v1728
    %v1890 = vunpack.c.h.b16 %v1728
    %v1891 = vunpack.c.l.b16 %v1729
    %v1892 = vunpack.c.h.b16 %v1729
    %v1893 = vunpack.c.l.b16 %v1730
    %v1894 = vunpack.c.h.b16 %v1730
    %v1895 = vunpack.c.l.b16 %v1731
    %v1896 = vunpack.c.h.b16 %v1731
    %v1897 = vunpack.c.l.b16 %v1732
    %v1898 = vunpack.c.h.b16 %v1732
    %v1899 = vunpack.c.l.b16 %v1733
    %v1900 = vunpack.c.h.b16 %v1733
    %v1901 = vunpack.c.l.b16 %v1734
    %v1902 = vunpack.c.h.b16 %v1734
    %v1903 = vunpack.c.l.b16 %v1735
    %v1904 = vunpack.c.h.b16 %v1735
    %v1905 = vunpack.c.l.b16 %v1736
    %v1906 = vunpack.c.h.b16 %v1736
    %v1907 = vunpack.c.l.b16 %v1737
    %v1908 = vunpack.c.h.b16 %v1737
    %v1909 = vunpack.c.l.b16 %v1738
    %v1910 = vunpack.c.h.b16 %v1738
    %v1911 = vunpack.c.l.b16 %v1739
    %v1912 = vunpack.c.h.b16 %v1739
    %v1913 = vunpack.c.l.b16 %v1740
    %v1914 = vunpack.c.h.b16 %v1740
    %v1915 = vunpack.c.l.b16 %v1741
    %v1916 = vunpack.c.h.b16 %v1741
    %v1917 = vunpack.c.l.b16 %v1742
    %v1918 = vunpack.c.h.b16 %v1742
    %v1919 = vunpack.c.l.b16 %v1743
    %v1920 = vunpack.c.h.b16 %v1743
    %v1921 = vunpack.c.l.b16 %v1744
    %v1922 = vunpack.c.h.b16 %v1744
    %v1923 = vunpack.c.l.b16 %v1745
    %v1924 = vunpack.c.h.b16 %v1745
    %v1925 = vunpack.c.l.b16 %v1746
    %v1926 = vunpack.c.h.b16 %v1746
    %v1927 = vunpack.c.l.b16 %v1747
    %v1928 = vunpack.c.h.b16 %v1747
    %v1929 = vunpack.c.l.b16 %v1748
    %v1930 = vunpack.c.h.b16 %v1748
    %v1931 = vunpack.c.l.b16 %v1749
    %v1932 = vunpack.c.h.b16 %v1749
    %v1933 = vunpack.c.l.b16 %v1750
    %v1934 = vunpack.c.h.b16 %v1750
    %v1935 = vunpack.c.l.b16 %v1751
    %v1936 = vunpack.c.h.b16 %v1751
    %v1937 = vunpack.c.l.b16 %v1752
    %v1938 = vunpack.c.h.b16 %v1752
    %v1939 = vunpack.c.l.b16 %v1753
    %v1940 = vunpack.c.h.b16 %v1753
    %v1941 = vunpack.c.l.b16 %v1754
    %v1942 = vunpack.c.h.b16 %v1754
    %v1943 = vunpack.c.l.b16 %v1755
    %v1944 = vunpack.c.h.b16 %v1755
    %v1945 = vunpack.c.l.b16 %v1756
    %v1946 = vunpack.c.h.b16 %v1756
    %v1947 = vunpack.c.l.b16 %v1757
    %v1948 = vunpack.c.h.b16 %v1757
    %v1949 = vunpack.c.l.b16 %v1758
    %v1950 = vunpack.c.h.b16 %v1758
    %v1951 = vunpack.c.l.b16 %v1759
    %v1952 = vunpack.c.h.b16 %v1759
    %v1953 = vunpack.c.l.b16 %v1760
    %v1954 = vunpack.c.h.b16 %v1760
    %v1955 = vunpack.c.l.b16 %v1761
    %v1956 = vunpack.c.h.b16 %v1761
    %v1957 = vunpack.c.l.b16 %v1762
    %v1958 = vunpack.c.h.b16 %v1762
    %v1959 = vunpack.c.l.b16 %v1763
    %v1960 = vunpack.c.h.b16 %v1763
    %v1961 = vunpack.c.l.b16 %v1764
    %v1962 = vunpack.c.h.b16 %v1764
    %v1963 = vpack.c.b16 %v1837, %v1835
    %v1964 = vpack.c.b16 %v1838, %v1836
    %v1965 = vpack.c.b16 %v1841, %v1839
    %v1966 = vpack.c.b16 %v1842, %v1840
    %v1967 = vpack.c.b16 %v1845, %v1843
    %v1968 = vpack.c.b16 %v1846, %v1844
    %v1969 = vpack.c.b16 %v1849, %v1847
    %v1970 = vpack.c.b16 %v1850, %v1848
    %v1971 = vpack.c.b16 %v1853, %v1851
    %v1972 = vpack.c.b16 %v1854, %v1852
    %v1973 = vpack.c.b16 %v1857, %v1855
    %v1974 = vpack.c.b16 %v1858, %v1856
    %v1975 = vpack.c.b16 %v1861, %v1859
    %v1976 = vpack.c.b16 %v1862, %v1860
    %v1977 = vpack.c.b16 %v1865, %v1863
    %v1978 = vpack.c.b16 %v1866, %v1864
    %v1979 = vpack.c.b16 %v1869, %v1867
    %v1980 = vpack.c.b16 %v1870, %v1868
    %v1981 = vpack.c.b16 %v1873, %v1871
    %v1982 = vpack.c.b16 %v1874, %v1872
    %v1983 = vpack.c.b16 %v1877, %v1875
    %v1984 = vpack.c.b16 %v1878, %v1876
    %v1985 = vpack.c.b16 %v1881, %v1879
    %v1986 = vpack.c.b16 %v1882, %v1880
    %v1987 = vpack.c.b16 %v1885, %v1883
    %v1988 = vpack.c.b16 %v1886, %v1884
    %v1989 = vpack.c.b16 %v1889, %v1887
    %v1990 = vpack.c.b16 %v1890, %v1888
    %v1991 = vpack.c.b16 %v1893, %v1891
    %v1992 = vpack.c.b16 %v1894, %v1892
    %v1993 = vpack.c.b16 %v1897, %v1895
    %v1994 = vpack.c.b16 %v1898, %v1896
    %v1995 = vpack.c.b16 %v1901, %v1899
    %v1996 = vpack.c.b16 %v1902, %v1900
    %v1997 = vpack.c.b16 %v1905, %v1903
    %v1998 = vpack.c.b16 %v1906, %v1904
    %v1999 = vpack.c.b16 %v1909, %v1907
    %v2000 = vpack.c.b16 %v1910, %v1908
    %v2001 = vpack.c.b16 %v1913, %v1911
    %v2002 = vpack.c.b16 %v1914, %v1912
    %v2003 = vpack.c.b16 %v1917, %v1915
    %v2004 = vpack.c.b16 %v1918, %v1916
    %v2005 = vpack.c.b16 %v1921, %v1919
    %v2006 = vpack.c.b16 %v1922, %v1920
    %v2007 = vpack.c.b16 %v1925, %v1923
    %v2008 = vpack.c.b16 %v1926, %v1924
    %v2009 = vpack.c.b16 %v1929, %v1927
    %v2010 = vpack.c.b16 %v1930, %v1928
    %v2011 = vpack.c.b16 %v1933, %v1931
    %v2012 = vpack.c.b16 %v1934, %v1932
    %v2013 = vpack.c.b16 %v1937, %v1935
    %v2014 = vpack.c.b16 %v1938, %v1936
    %v2015 = vpack.c.b16 %v1941, %v1939
    %v2016 = vpack.c.b16 %v1942, %v1940
    %v2017 = vpack.c.b16 %v1945, %v1943
    %v2018 = vpack.c.b16 %v1946, %v1944
    %v2019 = vpack.c.b16 %v1949, %v1947
    %v2020 = vpack.c.b16 %v1950, %v1948
    %v2021 = vpack.c.b16 %v1953, %v1951
    %v2022 = vpack.c.b16 %v1954, %v1952
    %v2023 = vpack.c.b16 %v1957, %v1955
    %v2024 = vpack.c.b16 %v1958, %v1956
    %v2025 = vpack.c.b16 %v1961, %v1959
    %v2026 = vpack.c.b16 %v1962, %v1960
    %2091 = vmatpush.bf16.msra.mxu0 %v1977
    %2092 = vmatpush.bf16.msra.mxu0 %v1975
    %2093 = vmatpush.bf16.msra.mxu0 %v1973
    %2094 = vmatpush.bf16.msra.mxu0 %v1971
    %2095 = vmatpush.bf16.msra.mxu0 %v1969
    %2096 = vmatpush.bf16.msra.mxu0 %v1967
    %2097 = vmatpush.bf16.msra.mxu0 %v1965
    %2098 = vmatpush.bf16.msra.mxu0 %v1963
    %2099 = vmatmul.bf16.gmra.mxu0 %v1697
    %v2100 = vpop.f32.mrf.mxu0
    %v2101 = vadd.f32 %v1767, %v2100
    %v2102 = vpop.f32.mrf.mxu0
    %v2103 = vadd.f32 %v1767, %v2102
    %2104 = vdwg.mxu0
    %2105 = vmatpush.bf16.msra.mxu0 %v1993
    %2106 = vmatpush.bf16.msra.mxu0 %v1991
    %2107 = vmatpush.bf16.msra.mxu0 %v1989
    %2108 = vmatpush.bf16.msra.mxu0 %v1987
    %2109 = vmatpush.bf16.msra.mxu0 %v1985
    %2110 = vmatpush.bf16.msra.mxu0 %v1983
    %2111 = vmatpush.bf16.msra.mxu0 %v1981
    %2112 = vmatpush.bf16.msra.mxu0 %v1979
    %2113 = vmatmul.bf16.gmra.mxu0 %v1698
    %v2114 = vpop.f32.mrf.mxu0
    %v2115 = vadd.f32 %v2101, %v2114
    %v2116 = vpop.f32.mrf.mxu0
    %v2117 = vadd.f32 %v2103, %v2116
    %2118 = vdwg.mxu0
    %2119 = vmatpush.bf16.msra.mxu0 %v2009
    %2120 = vmatpush.bf16.msra.mxu0 %v2007
    %2121 = vmatpush.bf16.msra.mxu0 %v2005
    %2122 = vmatpush.bf16.msra.mxu0 %v2003
    %2123 = vmatpush.bf16.msra.mxu0 %v2001
    %2124 = vmatpush.bf16.msra.mxu0 %v1999
    %2125 = vmatpush.bf16.msra.mxu0 %v1997
    %2126 = vmatpush.bf16.msra.mxu0 %v1995
    %2127 = vmatmul.bf16.gmra.mxu0 %v1699
    %v2128 = vpop.f32.mrf.mxu0
    %v2129 = vadd.f32 %v2115, %v2128
    %v2130 = vpop.f32.mrf.mxu0
    %v2131 = vadd.f32 %v2117, %v2130
    %2132 = vdwg.mxu0
    %2133 = vmatpush.bf16.msra.mxu0 %v2025
    %2134 = vmatpush.bf16.msra.mxu0 %v2023
    %2135 = vmatpush.bf16.msra.mxu0 %v2021
    %2136 = vmatpush.bf16.msra.mxu0 %v2019
    %2137 = vmatpush.bf16.msra.mxu0 %v2017
    %2138 = vmatpush.bf16.msra.mxu0 %v2015
    %2139 = vmatpush.bf16.msra.mxu0 %v2013
    %2140 = vmatpush.bf16.msra.mxu0 %v2011
    %2141 = vmatmul.bf16.gmra.mxu0 %v1700
    %v2142 = vpop.f32.mrf.mxu0
    %v2143 = vadd.f32 %v2129, %v2142
    %v2144 = vpop.f32.mrf.mxu0
    %v2145 = vadd.f32 %v2131, %v2144
    %2146 = vdwg.mxu0
    %2147 = vmatpush.bf16.msra.mxu0 %v1978
    %2148 = vmatpush.bf16.msra.mxu0 %v1976
    %2149 = vmatpush.bf16.msra.mxu0 %v1974
    %2150 = vmatpush.bf16.msra.mxu0 %v1972
    %2151 = vmatpush.bf16.msra.mxu0 %v1970
    %2152 = vmatpush.bf16.msra.mxu0 %v1968
    %2153 = vmatpush.bf16.msra.mxu0 %v1966
    %2154 = vmatpush.bf16.msra.mxu0 %v1964
    %2155 = vmatmul.bf16.gmra.mxu0 %v1697
    %v2156 = vpop.f32.mrf.mxu0
    %v2157 = vadd.f32 %v1768, %v2156
    %v2158 = vpop.f32.mrf.mxu0
    %v2159 = vadd.f32 %v1768, %v2158
    %2160 = vdwg.mxu0
    %2161 = vmatpush.bf16.msra.mxu0 %v1994
    %2162 = vmatpush.bf16.msra.mxu0 %v1992
    %2163 = vmatpush.bf16.msra.mxu0 %v1990
    %2164 = vmatpush.bf16.msra.mxu0 %v1988
    %2165 = vmatpush.bf16.msra.mxu0 %v1986
    %2166 = vmatpush.bf16.msra.mxu0 %v1984
    %2167 = vmatpush.bf16.msra.mxu0 %v1982
    %2168 = vmatpush.bf16.msra.mxu0 %v1980
    %2169 = vmatmul.bf16.gmra.mxu0 %v1698
    %v2170 = vpop.f32.mrf.mxu0
    %v2171 = vadd.f32 %v2157, %v2170
    %v2172 = vpop.f32.mrf.mxu0
    %v2173 = vadd.f32 %v2159, %v2172
    %2174 = vdwg.mxu0
    %2175 = vmatpush.bf16.msra.mxu0 %v2010
    %2176 = vmatpush.bf16.msra.mxu0 %v2008
    %2177 = vmatpush.bf16.msra.mxu0 %v2006
    %2178 = vmatpush.bf16.msra.mxu0 %v2004
    %2179 = vmatpush.bf16.msra.mxu0 %v2002
    %2180 = vmatpush.bf16.msra.mxu0 %v2000
    %2181 = vmatpush.bf16.msra.mxu0 %v1998
    %2182 = vmatpush.bf16.msra.mxu0 %v1996
    %2183 = vmatmul.bf16.gmra.mxu0 %v1699
    %v2184 = vpop.f32.mrf.mxu0
    %v2185 = vadd.f32 %v2171, %v2184
    %v2186 = vpop.f32.mrf.mxu0
    %v2187 = vadd.f32 %v2173, %v2186
    %2188 = vdwg.mxu0
    %2189 = vmatpush.bf16.msra.mxu0 %v2026
    %2190 = vmatpush.bf16.msra.mxu0 %v2024
    %2191 = vmatpush.bf16.msra.mxu0 %v2022
    %2192 = vmatpush.bf16.msra.mxu0 %v2020
    %2193 = vmatpush.bf16.msra.mxu0 %v2018
    %2194 = vmatpush.bf16.msra.mxu0 %v2016
    %2195 = vmatpush.bf16.msra.mxu0 %v2014
    %2196 = vmatpush.bf16.msra.mxu0 %v2012
    %2197 = vmatmul.bf16.gmra.mxu0 %v1700
    %v2198 = vpop.f32.mrf.mxu0
    %v2199 = vadd.f32 %v2185, %v2198
    %v2200 = vpop.f32.mrf.mxu0
    %v2201 = vadd.f32 %v2187, %v2200
    %2202 = vdwg.mxu0
    %v2203 = vmax.f32 %v2143, 0.0
    %v2204 = vmax.f32 %v2199, 0.0
    %v2205 = vmax.f32 %v2145, 0.0
    %v2206 = vmax.f32 %v2201, 0.0
    %v2207 = vpack.c.bf16 %v2205, %v2203
    %v2208 = vpack.c.bf16 %v2206, %v2204
    %v2209 = vld [vmem:[#allocation10] sm:$0xff]
    %v2210 = vld [vmem:[#allocation10 + $0x8] sm:$0xff]
    %v2211 = vld [vmem:[#allocation10 + $0x10] sm:$0xff]
    %v2212 = vld [vmem:[#allocation10 + $0x18] sm:$0xff]
    %v2213 = vld [vmem:[#allocation10 + $0x20] sm:$0xff]
    %v2214 = vld [vmem:[#allocation10 + $0x28] sm:$0xff]
    %v2215 = vld [vmem:[#allocation10 + $0x30] sm:$0xff]
    %v2216 = vld [vmem:[#allocation10 + $0x38] sm:$0xff]
    %v2217 = vld [vmem:[#allocation10 + $0x40] sm:$0xff]
    %v2218 = vld [vmem:[#allocation10 + $0x48] sm:$0xff]
    %v2219 = vld [vmem:[#allocation10 + $0x50] sm:$0xff]
    %v2220 = vld [vmem:[#allocation10 + $0x58] sm:$0xff]
    %v2221 = vld [vmem:[#allocation10 + $0x60] sm:$0xff]
    %v2222 = vld [vmem:[#allocation10 + $0x68] sm:$0xff]
    %v2223 = vld [vmem:[#allocation10 + $0x70] sm:$0xff]
    %v2224 = vld [vmem:[#allocation10 + $0x78] sm:$0xff]
    %v2225 = vld [vmem:[#allocation10 + $0x80] sm:$0xff]
    %v2226 = vld [vmem:[#allocation10 + $0x88] sm:$0xff]
    %v2227 = vld [vmem:[#allocation10 + $0x90] sm:$0xff]
    %v2228 = vld [vmem:[#allocation10 + $0x98] sm:$0xff]
    %v2229 = vld [vmem:[#allocation10 + $0xa0] sm:$0xff]
    %v2230 = vld [vmem:[#allocation10 + $0xa8] sm:$0xff]
    %v2231 = vld [vmem:[#allocation10 + $0xb0] sm:$0xff]
    %v2232 = vld [vmem:[#allocation10 + $0xb8] sm:$0xff]
    %v2233 = vld [vmem:[#allocation10 + $0xc0] sm:$0xff]
    %v2234 = vld [vmem:[#allocation10 + $0xc8] sm:$0xff]
    %v2235 = vld [vmem:[#allocation10 + $0xd0] sm:$0xff]
    %v2236 = vld [vmem:[#allocation10 + $0xd8] sm:$0xff]
    %v2237 = vld [vmem:[#allocation10 + $0xe0] sm:$0xff]
    %v2238 = vld [vmem:[#allocation10 + $0xe8] sm:$0xff]
    %v2239 = vld [vmem:[#allocation10 + $0xf0] sm:$0xff]
    %v2240 = vld [vmem:[#allocation10 + $0xf8] sm:$0xff]
    %v2241 = vld [vmem:[#allocation11] sm:$0x3]
    %v2243 = vperm.slane %v2241, 0
    %v2244 = vperm.slane %v2241, 1
    %v2279 = vunpack.c.l.b16 %v2209
    %v2280 = vunpack.c.h.b16 %v2209
    %v2281 = vunpack.c.l.b16 %v2210
    %v2282 = vunpack.c.h.b16 %v2210
    %v2283 = vunpack.c.l.b16 %v2211
    %v2284 = vunpack.c.h.b16 %v2211
    %v2285 = vunpack.c.l.b16 %v2212
    %v2286 = vunpack.c.h.b16 %v2212
    %v2287 = vunpack.c.l.b16 %v2213
    %v2288 = vunpack.c.h.b16 %v2213
    %v2289 = vunpack.c.l.b16 %v2214
    %v2290 = vunpack.c.h.b16 %v2214
    %v2291 = vunpack.c.l.b16 %v2215
    %v2292 = vunpack.c.h.b16 %v2215
    %v2293 = vunpack.c.l.b16 %v2216
    %v2294 = vunpack.c.h.b16 %v2216
    %v2295 = vunpack.c.l.b16 %v2217
    %v2296 = vunpack.c.h.b16 %v2217
    %v2297 = vunpack.c.l.b16 %v2218
    %v2298 = vunpack.c.h.b16 %v2218
    %v2299 = vunpack.c.l.b16 %v2219
    %v2300 = vunpack.c.h.b16 %v2219
    %v2301 = vunpack.c.l.b16 %v2220
    %v2302 = vunpack.c.h.b16 %v2220
    %v2303 = vunpack.c.l.b16 %v2221
    %v2304 = vunpack.c.h.b16 %v2221
    %v2305 = vunpack.c.l.b16 %v2222
    %v2306 = vunpack.c.h.b16 %v2222
    %v2307 = vunpack.c.l.b16 %v2223
    %v2308 = vunpack.c.h.b16 %v2223
    %v2309 = vunpack.c.l.b16 %v2224
    %v2310 = vunpack.c.h.b16 %v2224
    %v2311 = vunpack.c.l.b16 %v2225
    %v2312 = vunpack.c.h.b16 %v2225
    %v2313 = vunpack.c.l.b16 %v2226
    %v2314 = vunpack.c.h.b16 %v2226
    %v2315 = vunpack.c.l.b16 %v2227
    %v2316 = vunpack.c.h.b16 %v2227
    %v2317 = vunpack.c.l.b16 %v2228
    %v2318 = vunpack.c.h.b16 %v2228
    %v2319 = vunpack.c.l.b16 %v2229
    %v2320 = vunpack.c.h.b16 %v2229
    %v2321 = vunpack.c.l.b16 %v2230
    %v2322 = vunpack.c.h.b16 %v2230
    %v2323 = vunpack.c.l.b16 %v2231
    %v2324 = vunpack.c.h.b16 %v2231
    %v2325 = vunpack.c.l.b16 %v2232
    %v2326 = vunpack.c.h.b16 %v2232
    %v2327 = vunpack.c.l.b16 %v2233
    %v2328 = vunpack.c.h.b16 %v2233
    %v2329 = vunpack.c.l.b16 %v2234
    %v2330 = vunpack.c.h.b16 %v2234
    %v2331 = vunpack.c.l.b16 %v2235
    %v2332 = vunpack.c.h.b16 %v2235
    %v2333 = vunpack.c.l.b16 %v2236
    %v2334 = vunpack.c.h.b16 %v2236
    %v2335 = vunpack.c.l.b16 %v2237
    %v2336 = vunpack.c.h.b16 %v2237
    %v2337 = vunpack.c.l.b16 %v2238
    %v2338 = vunpack.c.h.b16 %v2238
    %v2339 = vunpack.c.l.b16 %v2239
    %v2340 = vunpack.c.h.b16 %v2239
    %v2341 = vunpack.c.l.b16 %v2240
    %v2342 = vunpack.c.h.b16 %v2240
    %v2343 = vpack.c.b16 %v2281, %v2279
    %v2344 = vpack.c.b16 %v2282, %v2280
    %v2345 = vpack.c.b16 %v2285, %v2283
    %v2346 = vpack.c.b16 %v2286, %v2284
    %v2347 = vpack.c.b16 %v2289, %v2287
    %v2348 = vpack.c.b16 %v2290, %v2288
    %v2349 = vpack.c.b16 %v2293, %v2291
    %v2350 = vpack.c.b16 %v2294, %v2292
    %v2351 = vpack.c.b16 %v2297, %v2295
    %v2352 = vpack.c.b16 %v2298, %v2296
    %v2353 = vpack.c.b16 %v2301, %v2299
    %v2354 = vpack.c.b16 %v2302, %v2300
    %v2355 = vpack.c.b16 %v2305, %v2303
    %v2356 = vpack.c.b16 %v2306, %v2304
    %v2357 = vpack.c.b16 %v2309, %v2307
    %v2358 = vpack.c.b16 %v2310, %v2308
    %v2359 = vpack.c.b16 %v2313, %v2311
    %v2360 = vpack.c.b16 %v2314, %v2312
    %v2361 = vpack.c.b16 %v2317, %v2315
    %v2362 = vpack.c.b16 %v2318, %v2316
    %v2363 = vpack.c.b16 %v2321, %v2319
    %v2364 = vpack.c.b16 %v2322, %v2320
    %v2365 = vpack.c.b16 %v2325, %v2323
    %v2366 = vpack.c.b16 %v2326, %v2324
    %v2367 = vpack.c.b16 %v2329, %v2327
    %v2368 = vpack.c.b16 %v2330, %v2328
    %v2369 = vpack.c.b16 %v2333, %v2331
    %v2370 = vpack.c.b16 %v2334, %v2332
    %v2371 = vpack.c.b16 %v2337, %v2335
    %v2372 = vpack.c.b16 %v2338, %v2336
    %v2373 = vpack.c.b16 %v2341, %v2339
    %v2374 = vpack.c.b16 %v2342, %v2340
    %2407 = vmatpush.bf16.msra.mxu0 %v2357
    %2408 = vmatpush.bf16.msra.mxu0 %v2355
    %2409 = vmatpush.bf16.msra.mxu0 %v2353
    %2410 = vmatpush.bf16.msra.mxu0 %v2351
    %2411 = vmatpush.bf16.msra.mxu0 %v2349
    %2412 = vmatpush.bf16.msra.mxu0 %v2347
    %2413 = vmatpush.bf16.msra.mxu0 %v2345
    %2414 = vmatpush.bf16.msra.mxu0 %v2343
    %2415 = vmatmul.bf16.gmra.mxu0 %v2207
    %v2416 = vpop.f32.mrf.mxu0
    %v2417 = vadd.f32 %v2243, %v2416
    %v2418 = vpop.f32.mrf.mxu0
    %v2419 = vadd.f32 %v2243, %v2418
    %2420 = vdwg.mxu0
    %2421 = vmatpush.bf16.msra.mxu0 %v2373
    %2422 = vmatpush.bf16.msra.mxu0 %v2371
    %2423 = vmatpush.bf16.msra.mxu0 %v2369
    %2424 = vmatpush.bf16.msra.mxu0 %v2367
    %2425 = vmatpush.bf16.msra.mxu0 %v2365
    %2426 = vmatpush.bf16.msra.mxu0 %v2363
    %2427 = vmatpush.bf16.msra.mxu0 %v2361
    %2428 = vmatpush.bf16.msra.mxu0 %v2359
    %2429 = vmatmul.bf16.gmra.mxu0 %v2208
    %v2430 = vpop.f32.mrf.mxu0
    %v2431 = vadd.f32 %v2417, %v2430
    %v2432 = vpop.f32.mrf.mxu0
    %v2433 = vadd.f32 %v2419, %v2432
    %2434 = vdwg.mxu0
    %2435 = vmatpush.bf16.msra.mxu0 %v2358
    %2436 = vmatpush.bf16.msra.mxu0 %v2356
    %2437 = vmatpush.bf16.msra.mxu0 %v2354
    %2438 = vmatpush.bf16.msra.mxu0 %v2352
    %2439 = vmatpush.bf16.msra.mxu0 %v2350
    %2440 = vmatpush.bf16.msra.mxu0 %v2348
    %2441 = vmatpush.bf16.msra.mxu0 %v2346
    %2442 = vmatpush.bf16.msra.mxu0 %v2344
    %2443 = vmatmul.bf16.gmra.mxu0 %v2207
    %v2444 = vpop.f32.mrf.mxu0
    %v2445 = vadd.f32 %v2244, %v2444
    %v2446 = vpop.f32.mrf.mxu0
    %v2447 = vadd.f32 %v2244, %v2446
    %2448 = vdwg.mxu0
    %2449 = vmatpush.bf16.msra.mxu0 %v2374
    %2450 = vmatpush.bf16.msra.mxu0 %v2372
    %2451 = vmatpush.bf16.msra.mxu0 %v2370
    %2452 = vmatpush.bf16.msra.mxu0 %v2368
    %2453 = vmatpush.bf16.msra.mxu0 %v2366
    %2454 = vmatpush.bf16.msra.mxu0 %v2364
    %2455 = vmatpush.bf16.msra.mxu0 %v2362
    %2456 = vmatpush.bf16.msra.mxu0 %v2360
    %2457 = vmatmul.bf16.gmra.mxu0 %v2208
    %v2458 = vpop.f32.mrf.mxu0
    %v2459 = vadd.f32 %v2445, %v2458
    %v2460 = vpop.f32.mrf.mxu0
    %v2461 = vadd.f32 %v2447, %v2460
    %2462 = vdwg.mxu0
    %v2463 = vmax.f32 %v2431, 0.0
    %v2464 = vmax.f32 %v2459, 0.0
    %v2465 = vmax.f32 %v2433, 0.0
    %v2466 = vmax.f32 %v2461, 0.0
    %v2467 = vpack.c.bf16 %v2465, %v2463
    %v2468 = vpack.c.bf16 %v2466, %v2464
    %v2469 = vld [vmem:[#allocation13] sm:$0xff]
    %v2470 = vld [vmem:[#allocation13 + $0x8] sm:$0xff]
    %v2471 = vld [vmem:[#allocation13 + $0x10] sm:$0xff]
    %v2472 = vld [vmem:[#allocation13 + $0x18] sm:$0xff]
    %v2473 = vld [vmem:[#allocation13 + $0x20] sm:$0xff]
    %v2474 = vld [vmem:[#allocation13 + $0x28] sm:$0xff]
    %v2475 = vld [vmem:[#allocation13 + $0x30] sm:$0xff]
    %v2476 = vld [vmem:[#allocation13 + $0x38] sm:$0xff]
    %v2477 = vld [vmem:[#allocation13 + $0x40] sm:$0xff]
    %v2478 = vld [vmem:[#allocation13 + $0x48] sm:$0xff]
    %v2479 = vld [vmem:[#allocation13 + $0x50] sm:$0xff]
    %v2480 = vld [vmem:[#allocation13 + $0x58] sm:$0xff]
    %v2481 = vld [vmem:[#allocation13 + $0x60] sm:$0xff]
    %v2482 = vld [vmem:[#allocation13 + $0x68] sm:$0xff]
    %v2483 = vld [vmem:[#allocation13 + $0x70] sm:$0xff]
    %v2484 = vld [vmem:[#allocation13 + $0x78] sm:$0xff]
    %v2485 = vld [vmem:[#allocation13 + $0x80] sm:$0xff]
    %v2486 = vld [vmem:[#allocation13 + $0x88] sm:$0xff]
    %v2487 = vld [vmem:[#allocation13 + $0x90] sm:$0xff]
    %v2488 = vld [vmem:[#allocation13 + $0x98] sm:$0xff]
    %v2489 = vld [vmem:[#allocation13 + $0xa0] sm:$0xff]
    %v2490 = vld [vmem:[#allocation13 + $0xa8] sm:$0xff]
    %v2491 = vld [vmem:[#allocation13 + $0xb0] sm:$0xff]
    %v2492 = vld [vmem:[#allocation13 + $0xb8] sm:$0xff]
    %v2493 = vld [vmem:[#allocation13 + $0xc0] sm:$0xff]
    %v2494 = vld [vmem:[#allocation13 + $0xc8] sm:$0xff]
    %v2495 = vld [vmem:[#allocation13 + $0xd0] sm:$0xff]
    %v2496 = vld [vmem:[#allocation13 + $0xd8] sm:$0xff]
    %v2497 = vld [vmem:[#allocation13 + $0xe0] sm:$0xff]
    %v2498 = vld [vmem:[#allocation13 + $0xe8] sm:$0xff]
    %v2499 = vld [vmem:[#allocation13 + $0xf0] sm:$0xff]
    %v2500 = vld [vmem:[#allocation13 + $0xf8] sm:$0xff]
    %v2501 = vld [vmem:[#allocation13 + $0x100] sm:$0xff]
    %v2502 = vld [vmem:[#allocation13 + $0x108] sm:$0xff]
    %v2503 = vld [vmem:[#allocation13 + $0x110] sm:$0xff]
    %v2504 = vld [vmem:[#allocation13 + $0x118] sm:$0xff]
    %v2505 = vld [vmem:[#allocation13 + $0x120] sm:$0xff]
    %v2506 = vld [vmem:[#allocation13 + $0x128] sm:$0xff]
    %v2507 = vld [vmem:[#allocation13 + $0x130] sm:$0xff]
    %v2508 = vld [vmem:[#allocation13 + $0x138] sm:$0xff]
    %v2509 = vld [vmem:[#allocation13 + $0x140] sm:$0xff]
    %v2510 = vld [vmem:[#allocation13 + $0x148] sm:$0xff]
    %v2511 = vld [vmem:[#allocation13 + $0x150] sm:$0xff]
    %v2512 = vld [vmem:[#allocation13 + $0x158] sm:$0xff]
    %v2513 = vld [vmem:[#allocation13 + $0x160] sm:$0xff]
    %v2514 = vld [vmem:[#allocation13 + $0x168] sm:$0xff]
    %v2515 = vld [vmem:[#allocation13 + $0x170] sm:$0xff]
    %v2516 = vld [vmem:[#allocation13 + $0x178] sm:$0xff]
    %v2517 = vld [vmem:[#allocation13 + $0x180] sm:$0xff]
    %v2518 = vld [vmem:[#allocation13 + $0x188] sm:$0xff]
    %v2519 = vld [vmem:[#allocation13 + $0x190] sm:$0xff]
    %v2520 = vld [vmem:[#allocation13 + $0x198] sm:$0xff]
    %v2521 = vld [vmem:[#allocation13 + $0x1a0] sm:$0xff]
    %v2522 = vld [vmem:[#allocation13 + $0x1a8] sm:$0xff]
    %v2523 = vld [vmem:[#allocation13 + $0x1b0] sm:$0xff]
    %v2524 = vld [vmem:[#allocation13 + $0x1b8] sm:$0xff]
    %v2525 = vld [vmem:[#allocation13 + $0x1c0] sm:$0xff]
    %v2526 = vld [vmem:[#allocation13 + $0x1c8] sm:$0xff]
    %v2527 = vld [vmem:[#allocation13 + $0x1d0] sm:$0xff]
    %v2528 = vld [vmem:[#allocation13 + $0x1d8] sm:$0xff]
    %v2529 = vld [vmem:[#allocation13 + $0x1e0] sm:$0xff]
    %v2530 = vld [vmem:[#allocation13 + $0x1e8] sm:$0xff]
    %v2531 = vld [vmem:[#allocation13 + $0x1f0] sm:$0xff]
    %v2532 = vld [vmem:[#allocation13 + $0x1f8] sm:$0xff]
    %v2533 = vld [vmem:[#allocation14] sm:$0xf]
    %v2535 = vperm.slane %v2533, 0
    %v2536 = vperm.slane %v2533, 1
    %v2537 = vperm.slane %v2533, 2
    %v2538 = vperm.slane %v2533, 3
    %v2607 = vunpack.c.l.b16 %v2469
    %v2608 = vunpack.c.h.b16 %v2469
    %v2609 = vunpack.c.l.b16 %v2470
    %v2610 = vunpack.c.h.b16 %v2470
    %v2611 = vunpack.c.l.b16 %v2471
    %v2612 = vunpack.c.h.b16 %v2471
    %v2613 = vunpack.c.l.b16 %v2472
    %v2614 = vunpack.c.h.b16 %v2472
    %v2615 = vunpack.c.l.b16 %v2473
    %v2616 = vunpack.c.h.b16 %v2473
    %v2617 = vunpack.c.l.b16 %v2474
    %v2618 = vunpack.c.h.b16 %v2474
    %v2619 = vunpack.c.l.b16 %v2475
    %v2620 = vunpack.c.h.b16 %v2475
    %v2621 = vunpack.c.l.b16 %v2476
    %v2622 = vunpack.c.h.b16 %v2476
    %v2623 = vunpack.c.l.b16 %v2477
    %v2624 = vunpack.c.h.b16 %v2477
    %v2625 = vunpack.c.l.b16 %v2478
    %v2626 = vunpack.c.h.b16 %v2478
    %v2627 = vunpack.c.l.b16 %v2479
    %v2628 = vunpack.c.h.b16 %v2479
    %v2629 = vunpack.c.l.b16 %v2480
    %v2630 = vunpack.c.h.b16 %v2480
    %v2631 = vunpack.c.l.b16 %v2481
    %v2632 = vunpack.c.h.b16 %v2481
    %v2633 = vunpack.c.l.b16 %v2482
    %v2634 = vunpack.c.h.b16 %v2482
    %v2635 = vunpack.c.l.b16 %v2483
    %v2636 = vunpack.c.h.b16 %v2483
    %v2637 = vunpack.c.l.b16 %v2484
    %v2638 = vunpack.c.h.b16 %v2484
    %v2639 = vunpack.c.l.b16 %v2485
    %v2640 = vunpack.c.h.b16 %v2485
    %v2641 = vunpack.c.l.b16 %v2486
    %v2642 = vunpack.c.h.b16 %v2486
    %v2643 = vunpack.c.l.b16 %v2487
    %v2644 = vunpack.c.h.b16 %v2487
    %v2645 = vunpack.c.l.b16 %v2488
    %v2646 = vunpack.c.h.b16 %v2488
    %v2647 = vunpack.c.l.b16 %v2489
    %v2648 = vunpack.c.h.b16 %v2489
    %v2649 = vunpack.c.l.b16 %v2490
    %v2650 = vunpack.c.h.b16 %v2490
    %v2651 = vunpack.c.l.b16 %v2491
    %v2652 = vunpack.c.h.b16 %v2491
    %v2653 = vunpack.c.l.b16 %v2492
    %v2654 = vunpack.c.h.b16 %v2492
    %v2655 = vunpack.c.l.b16 %v2493
    %v2656 = vunpack.c.h.b16 %v2493
    %v2657 = vunpack.c.l.b16 %v2494
    %v2658 = vunpack.c.h.b16 %v2494
    %v2659 = vunpack.c.l.b16 %v2495
    %v2660 = vunpack.c.h.b16 %v2495
    %v2661 = vunpack.c.l.b16 %v2496
    %v2662 = vunpack.c.h.b16 %v2496
    %v2663 = vunpack.c.l.b16 %v2497
    %v2664 = vunpack.c.h.b16 %v2497
    %v2665 = vunpack.c.l.b16 %v2498
    %v2666 = vunpack.c.h.b16 %v2498
    %v2667 = vunpack.c.l.b16 %v2499
    %v2668 = vunpack.c.h.b16 %v2499
    %v2669 = vunpack.c.l.b16 %v2500
    %v2670 = vunpack.c.h.b16 %v2500
    %v2671 = vunpack.c.l.b16 %v2501
    %v2672 = vunpack.c.h.b16 %v2501
    %v2673 = vunpack.c.l.b16 %v2502
    %v2674 = vunpack.c.h.b16 %v2502
    %v2675 = vunpack.c.l.b16 %v2503
    %v2676 = vunpack.c.h.b16 %v2503
    %v2677 = vunpack.c.l.b16 %v2504
    %v2678 = vunpack.c.h.b16 %v2504
    %v2679 = vunpack.c.l.b16 %v2505
    %v2680 = vunpack.c.h.b16 %v2505
    %v2681 = vunpack.c.l.b16 %v2506
    %v2682 = vunpack.c.h.b16 %v2506
    %v2683 = vunpack.c.l.b16 %v2507
    %v2684 = vunpack.c.h.b16 %v2507
    %v2685 = vunpack.c.l.b16 %v2508
    %v2686 = vunpack.c.h.b16 %v2508
    %v2687 = vunpack.c.l.b16 %v2509
    %v2688 = vunpack.c.h.b16 %v2509
    %v2689 = vunpack.c.l.b16 %v2510
    %v2690 = vunpack.c.h.b16 %v2510
    %v2691 = vunpack.c.l.b16 %v2511
    %v2692 = vunpack.c.h.b16 %v2511
    %v2693 = vunpack.c.l.b16 %v2512
    %v2694 = vunpack.c.h.b16 %v2512
    %v2695 = vunpack.c.l.b16 %v2513
    %v2696 = vunpack.c.h.b16 %v2513
    %v2697 = vunpack.c.l.b16 %v2514
    %v2698 = vunpack.c.h.b16 %v2514
    %v2699 = vunpack.c.l.b16 %v2515
    %v2700 = vunpack.c.h.b16 %v2515
    %v2701 = vunpack.c.l.b16 %v2516
    %v2702 = vunpack.c.h.b16 %v2516
    %v2703 = vunpack.c.l.b16 %v2517
    %v2704 = vunpack.c.h.b16 %v2517
    %v2705 = vunpack.c.l.b16 %v2518
    %v2706 = vunpack.c.h.b16 %v2518
    %v2707 = vunpack.c.l.b16 %v2519
    %v2708 = vunpack.c.h.b16 %v2519
    %v2709 = vunpack.c.l.b16 %v2520
    %v2710 = vunpack.c.h.b16 %v2520
    %v2711 = vunpack.c.l.b16 %v2521
    %v2712 = vunpack.c.h.b16 %v2521
    %v2713 = vunpack.c.l.b16 %v2522
    %v2714 = vunpack.c.h.b16 %v2522
    %v2715 = vunpack.c.l.b16 %v2523
    %v2716 = vunpack.c.h.b16 %v2523
    %v2717 = vunpack.c.l.b16 %v2524
    %v2718 = vunpack.c.h.b16 %v2524
    %v2719 = vunpack.c.l.b16 %v2525
    %v2720 = vunpack.c.h.b16 %v2525
    %v2721 = vunpack.c.l.b16 %v2526
    %v2722 = vunpack.c.h.b16 %v2526
    %v2723 = vunpack.c.l.b16 %v2527
    %v2724 = vunpack.c.h.b16 %v2527
    %v2725 = vunpack.c.l.b16 %v2528
    %v2726 = vunpack.c.h.b16 %v2528
    %v2727 = vunpack.c.l.b16 %v2529
    %v2728 = vunpack.c.h.b16 %v2529
    %v2729 = vunpack.c.l.b16 %v2530
    %v2730 = vunpack.c.h.b16 %v2530
    %v2731 = vunpack.c.l.b16 %v2531
    %v2732 = vunpack.c.h.b16 %v2531
    %v2733 = vunpack.c.l.b16 %v2532
    %v2734 = vunpack.c.h.b16 %v2532
    %v2735 = vpack.c.b16 %v2611, %v2607
    %v2736 = vpack.c.b16 %v2612, %v2608
    %v2737 = vpack.c.b16 %v2613, %v2609
    %v2738 = vpack.c.b16 %v2614, %v2610
    %v2739 = vpack.c.b16 %v2619, %v2615
    %v2740 = vpack.c.b16 %v2620, %v2616
    %v2741 = vpack.c.b16 %v2621, %v2617
    %v2742 = vpack.c.b16 %v2622, %v2618
    %v2743 = vpack.c.b16 %v2627, %v2623
    %v2744 = vpack.c.b16 %v2628, %v2624
    %v2745 = vpack.c.b16 %v2629, %v2625
    %v2746 = vpack.c.b16 %v2630, %v2626
    %v2747 = vpack.c.b16 %v2635, %v2631
    %v2748 = vpack.c.b16 %v2636, %v2632
    %v2749 = vpack.c.b16 %v2637, %v2633
    %v2750 = vpack.c.b16 %v2638, %v2634
    %v2751 = vpack.c.b16 %v2643, %v2639
    %v2752 = vpack.c.b16 %v2644, %v2640
    %v2753 = vpack.c.b16 %v2645, %v2641
    %v2754 = vpack.c.b16 %v2646, %v2642
    %v2755 = vpack.c.b16 %v2651, %v2647
    %v2756 = vpack.c.b16 %v2652, %v2648
    %v2757 = vpack.c.b16 %v2653, %v2649
    %v2758 = vpack.c.b16 %v2654, %v2650
    %v2759 = vpack.c.b16 %v2659, %v2655
    %v2760 = vpack.c.b16 %v2660, %v2656
    %v2761 = vpack.c.b16 %v2661, %v2657
    %v2762 = vpack.c.b16 %v2662, %v2658
    %v2763 = vpack.c.b16 %v2667, %v2663
    %v2764 = vpack.c.b16 %v2668, %v2664
    %v2765 = vpack.c.b16 %v2669, %v2665
    %v2766 = vpack.c.b16 %v2670, %v2666
    %v2767 = vpack.c.b16 %v2675, %v2671
    %v2768 = vpack.c.b16 %v2676, %v2672
    %v2769 = vpack.c.b16 %v2677, %v2673
    %v2770 = vpack.c.b16 %v2678, %v2674
    %v2771 = vpack.c.b16 %v2683, %v2679
    %v2772 = vpack.c.b16 %v2684, %v2680
    %v2773 = vpack.c.b16 %v2685, %v2681
    %v2774 = vpack.c.b16 %v2686, %v2682
    %v2775 = vpack.c.b16 %v2691, %v2687
    %v2776 = vpack.c.b16 %v2692, %v2688
    %v2777 = vpack.c.b16 %v2693, %v2689
    %v2778 = vpack.c.b16 %v2694, %v2690
    %v2779 = vpack.c.b16 %v2699, %v2695
    %v2780 = vpack.c.b16 %v2700, %v2696
    %v2781 = vpack.c.b16 %v2701, %v2697
    %v2782 = vpack.c.b16 %v2702, %v2698
    %v2783 = vpack.c.b16 %v2707, %v2703
    %v2784 = vpack.c.b16 %v2708, %v2704
    %v2785 = vpack.c.b16 %v2709, %v2705
    %v2786 = vpack.c.b16 %v2710, %v2706
    %v2787 = vpack.c.b16 %v2715, %v2711
    %v2788 = vpack.c.b16 %v2716, %v2712
    %v2789 = vpack.c.b16 %v2717, %v2713
    %v2790 = vpack.c.b16 %v2718, %v2714
    %v2791 = vpack.c.b16 %v2723, %v2719
    %v2792 = vpack.c.b16 %v2724, %v2720
    %v2793 = vpack.c.b16 %v2725, %v2721
    %v2794 = vpack.c.b16 %v2726, %v2722
    %v2795 = vpack.c.b16 %v2731, %v2727
    %v2796 = vpack.c.b16 %v2732, %v2728
    %v2797 = vpack.c.b16 %v2733, %v2729
    %v2798 = vpack.c.b16 %v2734, %v2730
    %2863 = vmatpush.bf16.msra.mxu0 %v2763
    %2864 = vmatpush.bf16.msra.mxu0 %v2759
    %2865 = vmatpush.bf16.msra.mxu0 %v2755
    %2866 = vmatpush.bf16.msra.mxu0 %v2751
    %2867 = vmatpush.bf16.msra.mxu0 %v2747
    %2868 = vmatpush.bf16.msra.mxu0 %v2743
    %2869 = vmatpush.bf16.msra.mxu0 %v2739
    %2870 = vmatpush.bf16.msra.mxu0 %v2735
    %2871 = vmatmul.bf16.gmra.mxu0 %v2467
    %v2872 = vpop.f32.mrf.mxu0
    %v2873 = vadd.f32 %v2535, %v2872
    %v2874 = vpop.f32.mrf.mxu0
    %v2875 = vadd.f32 %v2535, %v2874
    %2876 = vdwg.mxu0
    %2877 = vmatpush.bf16.msra.mxu0 %v2795
    %2878 = vmatpush.bf16.msra.mxu0 %v2791
    %2879 = vmatpush.bf16.msra.mxu0 %v2787
    %2880 = vmatpush.bf16.msra.mxu0 %v2783
    %2881 = vmatpush.bf16.msra.mxu0 %v2779
    %2882 = vmatpush.bf16.msra.mxu0 %v2775
    %2883 = vmatpush.bf16.msra.mxu0 %v2771
    %2884 = vmatpush.bf16.msra.mxu0 %v2767
    %2885 = vmatmul.bf16.gmra.mxu0 %v2468
    %v2886 = vpop.f32.mrf.mxu0
    %v2887 = vadd.f32 %v2873, %v2886
    %v2888 = vpop.f32.mrf.mxu0
    %v2889 = vadd.f32 %v2875, %v2888
    %2890 = vdwg.mxu0
    %2891 = vmatpush.bf16.msra.mxu0 %v2764
    %2892 = vmatpush.bf16.msra.mxu0 %v2760
    %2893 = vmatpush.bf16.msra.mxu0 %v2756
    %2894 = vmatpush.bf16.msra.mxu0 %v2752
    %2895 = vmatpush.bf16.msra.mxu0 %v2748
    %2896 = vmatpush.bf16.msra.mxu0 %v2744
    %2897 = vmatpush.bf16.msra.mxu0 %v2740
    %2898 = vmatpush.bf16.msra.mxu0 %v2736
    %2899 = vmatmul.bf16.gmra.mxu0 %v2467
    %v2900 = vpop.f32.mrf.mxu0
    %v2901 = vadd.f32 %v2536, %v2900
    %v2902 = vpop.f32.mrf.mxu0
    %v2903 = vadd.f32 %v2536, %v2902
    %2904 = vdwg.mxu0
    %2905 = vmatpush.bf16.msra.mxu0 %v2796
    %2906 = vmatpush.bf16.msra.mxu0 %v2792
    %2907 = vmatpush.bf16.msra.mxu0 %v2788
    %2908 = vmatpush.bf16.msra.mxu0 %v2784
    %2909 = vmatpush.bf16.msra.mxu0 %v2780
    %2910 = vmatpush.bf16.msra.mxu0 %v2776
    %2911 = vmatpush.bf16.msra.mxu0 %v2772
    %2912 = vmatpush.bf16.msra.mxu0 %v2768
    %2913 = vmatmul.bf16.gmra.mxu0 %v2468
    %v2914 = vpop.f32.mrf.mxu0
    %v2915 = vadd.f32 %v2901, %v2914
    %v2916 = vpop.f32.mrf.mxu0
    %v2917 = vadd.f32 %v2903, %v2916
    %2918 = vdwg.mxu0
    %2919 = vmatpush.bf16.msra.mxu0 %v2765
    %2920 = vmatpush.bf16.msra.mxu0 %v2761
    %2921 = vmatpush.bf16.msra.mxu0 %v2757
    %2922 = vmatpush.bf16.msra.mxu0 %v2753
    %2923 = vmatpush.bf16.msra.mxu0 %v2749
    %2924 = vmatpush.bf16.msra.mxu0 %v2745
    %2925 = vmatpush.bf16.msra.mxu0 %v2741
    %2926 = vmatpush.bf16.msra.mxu0 %v2737
    %2927 = vmatmul.bf16.gmra.mxu0 %v2467
    %v2928 = vpop.f32.mrf.mxu0
    %v2929 = vadd.f32 %v2537, %v2928
    %v2930 = vpop.f32.mrf.mxu0
    %v2931 = vadd.f32 %v2537, %v2930
    %2932 = vdwg.mxu0
    %2933 = vmatpush.bf16.msra.mxu0 %v2797
    %2934 = vmatpush.bf16.msra.mxu0 %v2793
    %2935 = vmatpush.bf16.msra.mxu0 %v2789
    %2936 = vmatpush.bf16.msra.mxu0 %v2785
    %2937 = vmatpush.bf16.msra.mxu0 %v2781
    %2938 = vmatpush.bf16.msra.mxu0 %v2777
    %2939 = vmatpush.bf16.msra.mxu0 %v2773
    %2940 = vmatpush.bf16.msra.mxu0 %v2769
    %2941 = vmatmul.bf16.gmra.mxu0 %v2468
    %v2942 = vpop.f32.mrf.mxu0
    %v2943 = vadd.f32 %v2929, %v2942
    %v2944 = vpop.f32.mrf.mxu0
    %v2945 = vadd.f32 %v2931, %v2944
    %2946 = vdwg.mxu0
    %2947 = vmatpush.bf16.msra.mxu0 %v2766
    %2948 = vmatpush.bf16.msra.mxu0 %v2762
    %2949 = vmatpush.bf16.msra.mxu0 %v2758
    %2950 = vmatpush.bf16.msra.mxu0 %v2754
    %2951 = vmatpush.bf16.msra.mxu0 %v2750
    %2952 = vmatpush.bf16.msra.mxu0 %v2746
    %2953 = vmatpush.bf16.msra.mxu0 %v2742
    %2954 = vmatpush.bf16.msra.mxu0 %v2738
    %2955 = vmatmul.bf16.gmra.mxu0 %v2467
    %v2956 = vpop.f32.mrf.mxu0
    %v2957 = vadd.f32 %v2538, %v2956
    %v2958 = vpop.f32.mrf.mxu0
    %v2959 = vadd.f32 %v2538, %v2958
    %2960 = vdwg.mxu0
    %2961 = vmatpush.bf16.msra.mxu0 %v2798
    %2962 = vmatpush.bf16.msra.mxu0 %v2794
    %2963 = vmatpush.bf16.msra.mxu0 %v2790
    %2964 = vmatpush.bf16.msra.mxu0 %v2786
    %2965 = vmatpush.bf16.msra.mxu0 %v2782
    %2966 = vmatpush.bf16.msra.mxu0 %v2778
    %2967 = vmatpush.bf16.msra.mxu0 %v2774
    %2968 = vmatpush.bf16.msra.mxu0 %v2770
    %2969 = vmatmul.bf16.gmra.mxu0 %v2468
    %v2970 = vpop.f32.mrf.mxu0
    %v2971 = vadd.f32 %v2957, %v2970
    %v2972 = vpop.f32.mrf.mxu0
    %v2973 = vadd.f32 %v2959, %v2972
    %2974 = vdwg.mxu0
    %v2975 = vmax.f32 %v2887, 0.0
    %v2976 = vmax.f32 %v2915, 0.0
    %v2977 = vmax.f32 %v2943, 0.0
    %v2978 = vmax.f32 %v2971, 0.0
    %v2979 = vmax.f32 %v2889, 0.0
    %v2980 = vmax.f32 %v2917, 0.0
    %v2981 = vmax.f32 %v2945, 0.0
    %v2982 = vmax.f32 %v2973, 0.0
    %v2983 = vpack.c.bf16 %v2979, %v2975
    %v2984 = vpack.c.bf16 %v2980, %v2976
    %v2985 = vpack.c.bf16 %v2981, %v2977
    %v2986 = vpack.c.bf16 %v2982, %v2978
    %v2987 = vld [vmem:[#allocation16] sm:$0xff]
    %v2988 = vld [vmem:[#allocation16 + $0x8] sm:$0xff]
    %v2989 = vld [vmem:[#allocation16 + $0x10] sm:$0xff]
    %v2990 = vld [vmem:[#allocation16 + $0x18] sm:$0xff]
    %v2991 = vld [vmem:[#allocation16 + $0x20] sm:$0xff]
    %v2992 = vld [vmem:[#allocation16 + $0x28] sm:$0xff]
    %v2993 = vld [vmem:[#allocation16 + $0x30] sm:$0xff]
    %v2994 = vld [vmem:[#allocation16 + $0x38] sm:$0xff]
    %v2995 = vld [vmem:[#allocation16 + $0x40] sm:$0xff]
    %v2996 = vld [vmem:[#allocation16 + $0x48] sm:$0xff]
    %v2997 = vld [vmem:[#allocation16 + $0x50] sm:$0xff]
    %v2998 = vld [vmem:[#allocation16 + $0x58] sm:$0xff]
    %v2999 = vld [vmem:[#allocation16 + $0x60] sm:$0xff]
    %v3000 = vld [vmem:[#allocation16 + $0x68] sm:$0xff]
    %v3001 = vld [vmem:[#allocation16 + $0x70] sm:$0xff]
    %v3002 = vld [vmem:[#allocation16 + $0x78] sm:$0xff]
    %v3003 = vld [vmem:[#allocation16 + $0x80] sm:$0xff]
    %v3004 = vld [vmem:[#allocation16 + $0x88] sm:$0xff]
    %v3005 = vld [vmem:[#allocation16 + $0x90] sm:$0xff]
    %v3006 = vld [vmem:[#allocation16 + $0x98] sm:$0xff]
    %v3007 = vld [vmem:[#allocation16 + $0xa0] sm:$0xff]
    %v3008 = vld [vmem:[#allocation16 + $0xa8] sm:$0xff]
    %v3009 = vld [vmem:[#allocation16 + $0xb0] sm:$0xff]
    %v3010 = vld [vmem:[#allocation16 + $0xb8] sm:$0xff]
    %v3011 = vld [vmem:[#allocation16 + $0xc0] sm:$0xff]
    %v3012 = vld [vmem:[#allocation16 + $0xc8] sm:$0xff]
    %v3013 = vld [vmem:[#allocation16 + $0xd0] sm:$0xff]
    %v3014 = vld [vmem:[#allocation16 + $0xd8] sm:$0xff]
    %v3015 = vld [vmem:[#allocation16 + $0xe0] sm:$0xff]
    %v3016 = vld [vmem:[#allocation16 + $0xe8] sm:$0xff]
    %v3017 = vld [vmem:[#allocation16 + $0xf0] sm:$0xff]
    %v3018 = vld [vmem:[#allocation16 + $0xf8] sm:$0xff]
    %v3019 = vld [vmem:[#allocation16 + $0x100] sm:$0xff]
    %v3020 = vld [vmem:[#allocation16 + $0x108] sm:$0xff]
    %v3021 = vld [vmem:[#allocation16 + $0x110] sm:$0xff]
    %v3022 = vld [vmem:[#allocation16 + $0x118] sm:$0xff]
    %v3023 = vld [vmem:[#allocation16 + $0x120] sm:$0xff]
    %v3024 = vld [vmem:[#allocation16 + $0x128] sm:$0xff]
    %v3025 = vld [vmem:[#allocation16 + $0x130] sm:$0xff]
    %v3026 = vld [vmem:[#allocation16 + $0x138] sm:$0xff]
    %v3027 = vld [vmem:[#allocation16 + $0x140] sm:$0xff]
    %v3028 = vld [vmem:[#allocation16 + $0x148] sm:$0xff]
    %v3029 = vld [vmem:[#allocation16 + $0x150] sm:$0xff]
    %v3030 = vld [vmem:[#allocation16 + $0x158] sm:$0xff]
    %v3031 = vld [vmem:[#allocation16 + $0x160] sm:$0xff]
    %v3032 = vld [vmem:[#allocation16 + $0x168] sm:$0xff]
    %v3033 = vld [vmem:[#allocation16 + $0x170] sm:$0xff]
    %v3034 = vld [vmem:[#allocation16 + $0x178] sm:$0xff]
    %v3035 = vld [vmem:[#allocation16 + $0x180] sm:$0xff]
    %v3036 = vld [vmem:[#allocation16 + $0x188] sm:$0xff]
    %v3037 = vld [vmem:[#allocation16 + $0x190] sm:$0xff]
    %v3038 = vld [vmem:[#allocation16 + $0x198] sm:$0xff]
    %v3039 = vld [vmem:[#allocation16 + $0x1a0] sm:$0xff]
    %v3040 = vld [vmem:[#allocation16 + $0x1a8] sm:$0xff]
    %v3041 = vld [vmem:[#allocation16 + $0x1b0] sm:$0xff]
    %v3042 = vld [vmem:[#allocation16 + $0x1b8] sm:$0xff]
    %v3043 = vld [vmem:[#allocation16 + $0x1c0] sm:$0xff]
    %v3044 = vld [vmem:[#allocation16 + $0x1c8] sm:$0xff]
    %v3045 = vld [vmem:[#allocation16 + $0x1d0] sm:$0xff]
    %v3046 = vld [vmem:[#allocation16 + $0x1d8] sm:$0xff]
    %v3047 = vld [vmem:[#allocation16 + $0x1e0] sm:$0xff]
    %v3048 = vld [vmem:[#allocation16 + $0x1e8] sm:$0xff]
    %v3049 = vld [vmem:[#allocation16 + $0x1f0] sm:$0xff]
    %v3050 = vld [vmem:[#allocation16 + $0x1f8] sm:$0xff]
    %v3051 = vld [vmem:[#allocation16 + $0x200] sm:$0xff]
    %v3052 = vld [vmem:[#allocation16 + $0x208] sm:$0xff]
    %v3053 = vld [vmem:[#allocation16 + $0x210] sm:$0xff]
    %v3054 = vld [vmem:[#allocation16 + $0x218] sm:$0xff]
    %v3055 = vld [vmem:[#allocation16 + $0x220] sm:$0xff]
    %v3056 = vld [vmem:[#allocation16 + $0x228] sm:$0xff]
    %v3057 = vld [vmem:[#allocation16 + $0x230] sm:$0xff]
    %v3058 = vld [vmem:[#allocation16 + $0x238] sm:$0xff]
    %v3059 = vld [vmem:[#allocation16 + $0x240] sm:$0xff]
    %v3060 = vld [vmem:[#allocation16 + $0x248] sm:$0xff]
    %v3061 = vld [vmem:[#allocation16 + $0x250] sm:$0xff]
    %v3062 = vld [vmem:[#allocation16 + $0x258] sm:$0xff]
    %v3063 = vld [vmem:[#allocation16 + $0x260] sm:$0xff]
    %v3064 = vld [vmem:[#allocation16 + $0x268] sm:$0xff]
    %v3065 = vld [vmem:[#allocation16 + $0x270] sm:$0xff]
    %v3066 = vld [vmem:[#allocation16 + $0x278] sm:$0xff]
    %v3067 = vld [vmem:[#allocation16 + $0x280] sm:$0xff]
    %v3068 = vld [vmem:[#allocation16 + $0x288] sm:$0xff]
    %v3069 = vld [vmem:[#allocation16 + $0x290] sm:$0xff]
    %v3070 = vld [vmem:[#allocation16 + $0x298] sm:$0xff]
    %v3071 = vld [vmem:[#allocation16 + $0x2a0] sm:$0xff]
    %v3072 = vld [vmem:[#allocation16 + $0x2a8] sm:$0xff]
    %v3073 = vld [vmem:[#allocation16 + $0x2b0] sm:$0xff]
    %v3074 = vld [vmem:[#allocation16 + $0x2b8] sm:$0xff]
    %v3075 = vld [vmem:[#allocation16 + $0x2c0] sm:$0xff]
    %v3076 = vld [vmem:[#allocation16 + $0x2c8] sm:$0xff]
    %v3077 = vld [vmem:[#allocation16 + $0x2d0] sm:$0xff]
    %v3078 = vld [vmem:[#allocation16 + $0x2d8] sm:$0xff]
    %v3079 = vld [vmem:[#allocation16 + $0x2e0] sm:$0xff]
    %v3080 = vld [vmem:[#allocation16 + $0x2e8] sm:$0xff]
    %v3081 = vld [vmem:[#allocation16 + $0x2f0] sm:$0xff]
    %v3082 = vld [vmem:[#allocation16 + $0x2f8] sm:$0xff]
    %v3083 = vld [vmem:[#allocation16 + $0x300] sm:$0xff]
    %v3084 = vld [vmem:[#allocation16 + $0x308] sm:$0xff]
    %v3085 = vld [vmem:[#allocation16 + $0x310] sm:$0xff]
    %v3086 = vld [vmem:[#allocation16 + $0x318] sm:$0xff]
    %v3087 = vld [vmem:[#allocation16 + $0x320] sm:$0xff]
    %v3088 = vld [vmem:[#allocation16 + $0x328] sm:$0xff]
    %v3089 = vld [vmem:[#allocation16 + $0x330] sm:$0xff]
    %v3090 = vld [vmem:[#allocation16 + $0x338] sm:$0xff]
    %v3091 = vld [vmem:[#allocation16 + $0x340] sm:$0xff]
    %v3092 = vld [vmem:[#allocation16 + $0x348] sm:$0xff]
    %v3093 = vld [vmem:[#allocation16 + $0x350] sm:$0xff]
    %v3094 = vld [vmem:[#allocation16 + $0x358] sm:$0xff]
    %v3095 = vld [vmem:[#allocation16 + $0x360] sm:$0xff]
    %v3096 = vld [vmem:[#allocation16 + $0x368] sm:$0xff]
    %v3097 = vld [vmem:[#allocation16 + $0x370] sm:$0xff]
    %v3098 = vld [vmem:[#allocation16 + $0x378] sm:$0xff]
    %v3099 = vld [vmem:[#allocation16 + $0x380] sm:$0xff]
    %v3100 = vld [vmem:[#allocation16 + $0x388] sm:$0xff]
    %v3101 = vld [vmem:[#allocation16 + $0x390] sm:$0xff]
    %v3102 = vld [vmem:[#allocation16 + $0x398] sm:$0xff]
    %v3103 = vld [vmem:[#allocation16 + $0x3a0] sm:$0xff]
    %v3104 = vld [vmem:[#allocation16 + $0x3a8] sm:$0xff]
    %v3105 = vld [vmem:[#allocation16 + $0x3b0] sm:$0xff]
    %v3106 = vld [vmem:[#allocation16 + $0x3b8] sm:$0xff]
    %v3107 = vld [vmem:[#allocation16 + $0x3c0] sm:$0xff]
    %v3108 = vld [vmem:[#allocation16 + $0x3c8] sm:$0xff]
    %v3109 = vld [vmem:[#allocation16 + $0x3d0] sm:$0xff]
    %v3110 = vld [vmem:[#allocation16 + $0x3d8] sm:$0xff]
    %v3111 = vld [vmem:[#allocation16 + $0x3e0] sm:$0xff]
    %v3112 = vld [vmem:[#allocation16 + $0x3e8] sm:$0xff]
    %v3113 = vld [vmem:[#allocation16 + $0x3f0] sm:$0xff]
    %v3114 = vld [vmem:[#allocation16 + $0x3f8] sm:$0xff]
    %v3115 = vld [vmem:[#allocation16 + $0x400] sm:$0xff]
    %v3116 = vld [vmem:[#allocation16 + $0x408] sm:$0xff]
    %v3117 = vld [vmem:[#allocation16 + $0x410] sm:$0xff]
    %v3118 = vld [vmem:[#allocation16 + $0x418] sm:$0xff]
    %v3119 = vld [vmem:[#allocation16 + $0x420] sm:$0xff]
    %v3120 = vld [vmem:[#allocation16 + $0x428] sm:$0xff]
    %v3121 = vld [vmem:[#allocation16 + $0x430] sm:$0xff]
    %v3122 = vld [vmem:[#allocation16 + $0x438] sm:$0xff]
    %v3123 = vld [vmem:[#allocation16 + $0x440] sm:$0xff]
    %v3124 = vld [vmem:[#allocation16 + $0x448] sm:$0xff]
    %v3125 = vld [vmem:[#allocation16 + $0x450] sm:$0xff]
    %v3126 = vld [vmem:[#allocation16 + $0x458] sm:$0xff]
    %v3127 = vld [vmem:[#allocation16 + $0x460] sm:$0xff]
    %v3128 = vld [vmem:[#allocation16 + $0x468] sm:$0xff]
    %v3129 = vld [vmem:[#allocation16 + $0x470] sm:$0xff]
    %v3130 = vld [vmem:[#allocation16 + $0x478] sm:$0xff]
    %v3131 = vld [vmem:[#allocation16 + $0x480] sm:$0xff]
    %v3132 = vld [vmem:[#allocation16 + $0x488] sm:$0xff]
    %v3133 = vld [vmem:[#allocation16 + $0x490] sm:$0xff]
    %v3134 = vld [vmem:[#allocation16 + $0x498] sm:$0xff]
    %v3135 = vld [vmem:[#allocation16 + $0x4a0] sm:$0xff]
    %v3136 = vld [vmem:[#allocation16 + $0x4a8] sm:$0xff]
    %v3137 = vld [vmem:[#allocation16 + $0x4b0] sm:$0xff]
    %v3138 = vld [vmem:[#allocation16 + $0x4b8] sm:$0xff]
    %v3139 = vld [vmem:[#allocation16 + $0x4c0] sm:$0xff]
    %v3140 = vld [vmem:[#allocation16 + $0x4c8] sm:$0xff]
    %v3141 = vld [vmem:[#allocation16 + $0x4d0] sm:$0xff]
    %v3142 = vld [vmem:[#allocation16 + $0x4d8] sm:$0xff]
    %v3143 = vld [vmem:[#allocation16 + $0x4e0] sm:$0xff]
    %v3144 = vld [vmem:[#allocation16 + $0x4e8] sm:$0xff]
    %v3145 = vld [vmem:[#allocation16 + $0x4f0] sm:$0xff]
    %v3146 = vld [vmem:[#allocation16 + $0x4f8] sm:$0xff]
    %v3147 = vld [vmem:[#allocation16 + $0x500] sm:$0xff]
    %v3148 = vld [vmem:[#allocation16 + $0x508] sm:$0xff]
    %v3149 = vld [vmem:[#allocation16 + $0x510] sm:$0xff]
    %v3150 = vld [vmem:[#allocation16 + $0x518] sm:$0xff]
    %v3151 = vld [vmem:[#allocation16 + $0x520] sm:$0xff]
    %v3152 = vld [vmem:[#allocation16 + $0x528] sm:$0xff]
    %v3153 = vld [vmem:[#allocation16 + $0x530] sm:$0xff]
    %v3154 = vld [vmem:[#allocation16 + $0x538] sm:$0xff]
    %v3155 = vld [vmem:[#allocation16 + $0x540] sm:$0xff]
    %v3156 = vld [vmem:[#allocation16 + $0x548] sm:$0xff]
    %v3157 = vld [vmem:[#allocation16 + $0x550] sm:$0xff]
    %v3158 = vld [vmem:[#allocation16 + $0x558] sm:$0xff]
    %v3159 = vld [vmem:[#allocation16 + $0x560] sm:$0xff]
    %v3160 = vld [vmem:[#allocation16 + $0x568] sm:$0xff]
    %v3161 = vld [vmem:[#allocation16 + $0x570] sm:$0xff]
    %v3162 = vld [vmem:[#allocation16 + $0x578] sm:$0xff]
    %v3163 = vld [vmem:[#allocation16 + $0x580] sm:$0xff]
    %v3164 = vld [vmem:[#allocation16 + $0x588] sm:$0xff]
    %v3165 = vld [vmem:[#allocation16 + $0x590] sm:$0xff]
    %v3166 = vld [vmem:[#allocation16 + $0x598] sm:$0xff]
    %v3167 = vld [vmem:[#allocation16 + $0x5a0] sm:$0xff]
    %v3168 = vld [vmem:[#allocation16 + $0x5a8] sm:$0xff]
    %v3169 = vld [vmem:[#allocation16 + $0x5b0] sm:$0xff]
    %v3170 = vld [vmem:[#allocation16 + $0x5b8] sm:$0xff]
    %v3171 = vld [vmem:[#allocation16 + $0x5c0] sm:$0xff]
    %v3172 = vld [vmem:[#allocation16 + $0x5c8] sm:$0xff]
    %v3173 = vld [vmem:[#allocation16 + $0x5d0] sm:$0xff]
    %v3174 = vld [vmem:[#allocation16 + $0x5d8] sm:$0xff]
    %v3175 = vld [vmem:[#allocation16 + $0x5e0] sm:$0xff]
    %v3176 = vld [vmem:[#allocation16 + $0x5e8] sm:$0xff]
    %v3177 = vld [vmem:[#allocation16 + $0x5f0] sm:$0xff]
    %v3178 = vld [vmem:[#allocation16 + $0x5f8] sm:$0xff]
    %v3179 = vld [vmem:[%s10] sm:$0x3f]
    %v3181 = vperm.slane %v3179, 0
    %v3182 = vperm.slane %v3179, 1
    %v3183 = vperm.slane %v3179, 2
    %v3184 = vperm.slane %v3179, 3
    %v3185 = vperm.slane %v3179, 4
    %v3186 = vperm.slane %v3179, 5
    %v3385 = vunpack.c.l.b16 %v2987
    %v3386 = vunpack.c.h.b16 %v2987
    %v3387 = vunpack.c.l.b16 %v2988
    %v3388 = vunpack.c.h.b16 %v2988
    %v3389 = vunpack.c.l.b16 %v2989
    %v3390 = vunpack.c.h.b16 %v2989
    %v3391 = vunpack.c.l.b16 %v2990
    %v3392 = vunpack.c.h.b16 %v2990
    %v3393 = vunpack.c.l.b16 %v2991
    %v3394 = vunpack.c.h.b16 %v2991
    %v3395 = vunpack.c.l.b16 %v2992
    %v3396 = vunpack.c.h.b16 %v2992
    %v3397 = vunpack.c.l.b16 %v2993
    %v3398 = vunpack.c.h.b16 %v2993
    %v3399 = vunpack.c.l.b16 %v2994
    %v3400 = vunpack.c.h.b16 %v2994
    %v3401 = vunpack.c.l.b16 %v2995
    %v3402 = vunpack.c.h.b16 %v2995
    %v3403 = vunpack.c.l.b16 %v2996
    %v3404 = vunpack.c.h.b16 %v2996
    %v3405 = vunpack.c.l.b16 %v2997
    %v3406 = vunpack.c.h.b16 %v2997
    %v3407 = vunpack.c.l.b16 %v2998
    %v3408 = vunpack.c.h.b16 %v2998
    %v3409 = vunpack.c.l.b16 %v2999
    %v3410 = vunpack.c.h.b16 %v2999
    %v3411 = vunpack.c.l.b16 %v3000
    %v3412 = vunpack.c.h.b16 %v3000
    %v3413 = vunpack.c.l.b16 %v3001
    %v3414 = vunpack.c.h.b16 %v3001
    %v3415 = vunpack.c.l.b16 %v3002
    %v3416 = vunpack.c.h.b16 %v3002
    %v3417 = vunpack.c.l.b16 %v3003
    %v3418 = vunpack.c.h.b16 %v3003
    %v3419 = vunpack.c.l.b16 %v3004
    %v3420 = vunpack.c.h.b16 %v3004
    %v3421 = vunpack.c.l.b16 %v3005
    %v3422 = vunpack.c.h.b16 %v3005
    %v3423 = vunpack.c.l.b16 %v3006
    %v3424 = vunpack.c.h.b16 %v3006
    %v3425 = vunpack.c.l.b16 %v3007
    %v3426 = vunpack.c.h.b16 %v3007
    %v3427 = vunpack.c.l.b16 %v3008
    %v3428 = vunpack.c.h.b16 %v3008
    %v3429 = vunpack.c.l.b16 %v3009
    %v3430 = vunpack.c.h.b16 %v3009
    %v3431 = vunpack.c.l.b16 %v3010
    %v3432 = vunpack.c.h.b16 %v3010
    %v3433 = vunpack.c.l.b16 %v3011
    %v3434 = vunpack.c.h.b16 %v3011
    %v3435 = vunpack.c.l.b16 %v3012
    %v3436 = vunpack.c.h.b16 %v3012
    %v3437 = vunpack.c.l.b16 %v3013
    %v3438 = vunpack.c.h.b16 %v3013
    %v3439 = vunpack.c.l.b16 %v3014
    %v3440 = vunpack.c.h.b16 %v3014
    %v3441 = vunpack.c.l.b16 %v3015
    %v3442 = vunpack.c.h.b16 %v3015
    %v3443 = vunpack.c.l.b16 %v3016
    %v3444 = vunpack.c.h.b16 %v3016
    %v3445 = vunpack.c.l.b16 %v3017
    %v3446 = vunpack.c.h.b16 %v3017
    %v3447 = vunpack.c.l.b16 %v3018
    %v3448 = vunpack.c.h.b16 %v3018
    %v3449 = vunpack.c.l.b16 %v3019
    %v3450 = vunpack.c.h.b16 %v3019
    %v3451 = vunpack.c.l.b16 %v3020
    %v3452 = vunpack.c.h.b16 %v3020
    %v3453 = vunpack.c.l.b16 %v3021
    %v3454 = vunpack.c.h.b16 %v3021
    %v3455 = vunpack.c.l.b16 %v3022
    %v3456 = vunpack.c.h.b16 %v3022
    %v3457 = vunpack.c.l.b16 %v3023
    %v3458 = vunpack.c.h.b16 %v3023
    %v3459 = vunpack.c.l.b16 %v3024
    %v3460 = vunpack.c.h.b16 %v3024
    %v3461 = vunpack.c.l.b16 %v3025
    %v3462 = vunpack.c.h.b16 %v3025
    %v3463 = vunpack.c.l.b16 %v3026
    %v3464 = vunpack.c.h.b16 %v3026
    %v3465 = vunpack.c.l.b16 %v3027
    %v3466 = vunpack.c.h.b16 %v3027
    %v3467 = vunpack.c.l.b16 %v3028
    %v3468 = vunpack.c.h.b16 %v3028
    %v3469 = vunpack.c.l.b16 %v3029
    %v3470 = vunpack.c.h.b16 %v3029
    %v3471 = vunpack.c.l.b16 %v3030
    %v3472 = vunpack.c.h.b16 %v3030
    %v3473 = vunpack.c.l.b16 %v3031
    %v3474 = vunpack.c.h.b16 %v3031
    %v3475 = vunpack.c.l.b16 %v3032
    %v3476 = vunpack.c.h.b16 %v3032
    %v3477 = vunpack.c.l.b16 %v3033
    %v3478 = vunpack.c.h.b16 %v3033
    %v3479 = vunpack.c.l.b16 %v3034
    %v3480 = vunpack.c.h.b16 %v3034
    %v3481 = vunpack.c.l.b16 %v3035
    %v3482 = vunpack.c.h.b16 %v3035
    %v3483 = vunpack.c.l.b16 %v3036
    %v3484 = vunpack.c.h.b16 %v3036
    %v3485 = vunpack.c.l.b16 %v3037
    %v3486 = vunpack.c.h.b16 %v3037
    %v3487 = vunpack.c.l.b16 %v3038
    %v3488 = vunpack.c.h.b16 %v3038
    %v3489 = vunpack.c.l.b16 %v3039
    %v3490 = vunpack.c.h.b16 %v3039
    %v3491 = vunpack.c.l.b16 %v3040
    %v3492 = vunpack.c.h.b16 %v3040
    %v3493 = vunpack.c.l.b16 %v3041
    %v3494 = vunpack.c.h.b16 %v3041
    %v3495 = vunpack.c.l.b16 %v3042
    %v3496 = vunpack.c.h.b16 %v3042
    %v3497 = vunpack.c.l.b16 %v3043
    %v3498 = vunpack.c.h.b16 %v3043
    %v3499 = vunpack.c.l.b16 %v3044
    %v3500 = vunpack.c.h.b16 %v3044
    %v3501 = vunpack.c.l.b16 %v3045
    %v3502 = vunpack.c.h.b16 %v3045
    %v3503 = vunpack.c.l.b16 %v3046
    %v3504 = vunpack.c.h.b16 %v3046
    %v3505 = vunpack.c.l.b16 %v3047
    %v3506 = vunpack.c.h.b16 %v3047
    %v3507 = vunpack.c.l.b16 %v3048
    %v3508 = vunpack.c.h.b16 %v3048
    %v3509 = vunpack.c.l.b16 %v3049
    %v3510 = vunpack.c.h.b16 %v3049
    %v3511 = vunpack.c.l.b16 %v3050
    %v3512 = vunpack.c.h.b16 %v3050
    %v3513 = vunpack.c.l.b16 %v3051
    %v3514 = vunpack.c.h.b16 %v3051
    %v3515 = vunpack.c.l.b16 %v3052
    %v3516 = vunpack.c.h.b16 %v3052
    %v3517 = vunpack.c.l.b16 %v3053
    %v3518 = vunpack.c.h.b16 %v3053
    %v3519 = vunpack.c.l.b16 %v3054
    %v3520 = vunpack.c.h.b16 %v3054
    %v3521 = vunpack.c.l.b16 %v3055
    %v3522 = vunpack.c.h.b16 %v3055
    %v3523 = vunpack.c.l.b16 %v3056
    %v3524 = vunpack.c.h.b16 %v3056
    %v3525 = vunpack.c.l.b16 %v3057
    %v3526 = vunpack.c.h.b16 %v3057
    %v3527 = vunpack.c.l.b16 %v3058
    %v3528 = vunpack.c.h.b16 %v3058
    %v3529 = vunpack.c.l.b16 %v3059
    %v3530 = vunpack.c.h.b16 %v3059
    %v3531 = vunpack.c.l.b16 %v3060
    %v3532 = vunpack.c.h.b16 %v3060
    %v3533 = vunpack.c.l.b16 %v3061
    %v3534 = vunpack.c.h.b16 %v3061
    %v3535 = vunpack.c.l.b16 %v3062
    %v3536 = vunpack.c.h.b16 %v3062
    %v3537 = vunpack.c.l.b16 %v3063
    %v3538 = vunpack.c.h.b16 %v3063
    %v3539 = vunpack.c.l.b16 %v3064
    %v3540 = vunpack.c.h.b16 %v3064
    %v3541 = vunpack.c.l.b16 %v3065
    %v3542 = vunpack.c.h.b16 %v3065
    %v3543 = vunpack.c.l.b16 %v3066
    %v3544 = vunpack.c.h.b16 %v3066
    %v3545 = vunpack.c.l.b16 %v3067
    %v3546 = vunpack.c.h.b16 %v3067
    %v3547 = vunpack.c.l.b16 %v3068
    %v3548 = vunpack.c.h.b16 %v3068
    %v3549 = vunpack.c.l.b16 %v3069
    %v3550 = vunpack.c.h.b16 %v3069
    %v3551 = vunpack.c.l.b16 %v3070
    %v3552 = vunpack.c.h.b16 %v3070
    %v3553 = vunpack.c.l.b16 %v3071
    %v3554 = vunpack.c.h.b16 %v3071
    %v3555 = vunpack.c.l.b16 %v3072
    %v3556 = vunpack.c.h.b16 %v3072
    %v3557 = vunpack.c.l.b16 %v3073
    %v3558 = vunpack.c.h.b16 %v3073
    %v3559 = vunpack.c.l.b16 %v3074
    %v3560 = vunpack.c.h.b16 %v3074
    %v3561 = vunpack.c.l.b16 %v3075
    %v3562 = vunpack.c.h.b16 %v3075
    %v3563 = vunpack.c.l.b16 %v3076
    %v3564 = vunpack.c.h.b16 %v3076
    %v3565 = vunpack.c.l.b16 %v3077
    %v3566 = vunpack.c.h.b16 %v3077
    %v3567 = vunpack.c.l.b16 %v3078
    %v3568 = vunpack.c.h.b16 %v3078
    %v3569 = vunpack.c.l.b16 %v3079
    %v3570 = vunpack.c.h.b16 %v3079
    %v3571 = vunpack.c.l.b16 %v3080
    %v3572 = vunpack.c.h.b16 %v3080
    %v3573 = vunpack.c.l.b16 %v3081
    %v3574 = vunpack.c.h.b16 %v3081
    %v3575 = vunpack.c.l.b16 %v3082
    %v3576 = vunpack.c.h.b16 %v3082
    %v3577 = vunpack.c.l.b16 %v3083
    %v3578 = vunpack.c.h.b16 %v3083
    %v3579 = vunpack.c.l.b16 %v3084
    %v3580 = vunpack.c.h.b16 %v3084
    %v3581 = vunpack.c.l.b16 %v3085
    %v3582 = vunpack.c.h.b16 %v3085
    %v3583 = vunpack.c.l.b16 %v3086
    %v3584 = vunpack.c.h.b16 %v3086
    %v3585 = vunpack.c.l.b16 %v3087
    %v3586 = vunpack.c.h.b16 %v3087
    %v3587 = vunpack.c.l.b16 %v3088
    %v3588 = vunpack.c.h.b16 %v3088
    %v3589 = vunpack.c.l.b16 %v3089
    %v3590 = vunpack.c.h.b16 %v3089
    %v3591 = vunpack.c.l.b16 %v3090
    %v3592 = vunpack.c.h.b16 %v3090
    %v3593 = vunpack.c.l.b16 %v3091
    %v3594 = vunpack.c.h.b16 %v3091
    %v3595 = vunpack.c.l.b16 %v3092
    %v3596 = vunpack.c.h.b16 %v3092
    %v3597 = vunpack.c.l.b16 %v3093
    %v3598 = vunpack.c.h.b16 %v3093
    %v3599 = vunpack.c.l.b16 %v3094
    %v3600 = vunpack.c.h.b16 %v3094
    %v3601 = vunpack.c.l.b16 %v3095
    %v3602 = vunpack.c.h.b16 %v3095
    %v3603 = vunpack.c.l.b16 %v3096
    %v3604 = vunpack.c.h.b16 %v3096
    %v3605 = vunpack.c.l.b16 %v3097
    %v3606 = vunpack.c.h.b16 %v3097
    %v3607 = vunpack.c.l.b16 %v3098
    %v3608 = vunpack.c.h.b16 %v3098
    %v3609 = vunpack.c.l.b16 %v3099
    %v3610 = vunpack.c.h.b16 %v3099
    %v3611 = vunpack.c.l.b16 %v3100
    %v3612 = vunpack.c.h.b16 %v3100
    %v3613 = vunpack.c.l.b16 %v3101
    %v3614 = vunpack.c.h.b16 %v3101
    %v3615 = vunpack.c.l.b16 %v3102
    %v3616 = vunpack.c.h.b16 %v3102
    %v3617 = vunpack.c.l.b16 %v3103
    %v3618 = vunpack.c.h.b16 %v3103
    %v3619 = vunpack.c.l.b16 %v3104
    %v3620 = vunpack.c.h.b16 %v3104
    %v3621 = vunpack.c.l.b16 %v3105
    %v3622 = vunpack.c.h.b16 %v3105
    %v3623 = vunpack.c.l.b16 %v3106
    %v3624 = vunpack.c.h.b16 %v3106
    %v3625 = vunpack.c.l.b16 %v3107
    %v3626 = vunpack.c.h.b16 %v3107
    %v3627 = vunpack.c.l.b16 %v3108
    %v3628 = vunpack.c.h.b16 %v3108
    %v3629 = vunpack.c.l.b16 %v3109
    %v3630 = vunpack.c.h.b16 %v3109
    %v3631 = vunpack.c.l.b16 %v3110
    %v3632 = vunpack.c.h.b16 %v3110
    %v3633 = vunpack.c.l.b16 %v3111
    %v3634 = vunpack.c.h.b16 %v3111
    %v3635 = vunpack.c.l.b16 %v3112
    %v3636 = vunpack.c.h.b16 %v3112
    %v3637 = vunpack.c.l.b16 %v3113
    %v3638 = vunpack.c.h.b16 %v3113
    %v3639 = vunpack.c.l.b16 %v3114
    %v3640 = vunpack.c.h.b16 %v3114
    %v3641 = vunpack.c.l.b16 %v3115
    %v3642 = vunpack.c.h.b16 %v3115
    %v3643 = vunpack.c.l.b16 %v3116
    %v3644 = vunpack.c.h.b16 %v3116
    %v3645 = vunpack.c.l.b16 %v3117
    %v3646 = vunpack.c.h.b16 %v3117
    %v3647 = vunpack.c.l.b16 %v3118
    %v3648 = vunpack.c.h.b16 %v3118
    %v3649 = vunpack.c.l.b16 %v3119
    %v3650 = vunpack.c.h.b16 %v3119
    %v3651 = vunpack.c.l.b16 %v3120
    %v3652 = vunpack.c.h.b16 %v3120
    %v3653 = vunpack.c.l.b16 %v3121
    %v3654 = vunpack.c.h.b16 %v3121
    %v3655 = vunpack.c.l.b16 %v3122
    %v3656 = vunpack.c.h.b16 %v3122
    %v3657 = vunpack.c.l.b16 %v3123
    %v3658 = vunpack.c.h.b16 %v3123
    %v3659 = vunpack.c.l.b16 %v3124
    %v3660 = vunpack.c.h.b16 %v3124
    %v3661 = vunpack.c.l.b16 %v3125
    %v3662 = vunpack.c.h.b16 %v3125
    %v3663 = vunpack.c.l.b16 %v3126
    %v3664 = vunpack.c.h.b16 %v3126
    %v3665 = vunpack.c.l.b16 %v3127
    %v3666 = vunpack.c.h.b16 %v3127
    %v3667 = vunpack.c.l.b16 %v3128
    %v3668 = vunpack.c.h.b16 %v3128
    %v3669 = vunpack.c.l.b16 %v3129
    %v3670 = vunpack.c.h.b16 %v3129
    %v3671 = vunpack.c.l.b16 %v3130
    %v3672 = vunpack.c.h.b16 %v3130
    %v3673 = vunpack.c.l.b16 %v3131
    %v3674 = vunpack.c.h.b16 %v3131
    %v3675 = vunpack.c.l.b16 %v3132
    %v3676 = vunpack.c.h.b16 %v3132
    %v3677 = vunpack.c.l.b16 %v3133
    %v3678 = vunpack.c.h.b16 %v3133
    %v3679 = vunpack.c.l.b16 %v3134
    %v3680 = vunpack.c.h.b16 %v3134
    %v3681 = vunpack.c.l.b16 %v3135
    %v3682 = vunpack.c.h.b16 %v3135
    %v3683 = vunpack.c.l.b16 %v3136
    %v3684 = vunpack.c.h.b16 %v3136
    %v3685 = vunpack.c.l.b16 %v3137
    %v3686 = vunpack.c.h.b16 %v3137
    %v3687 = vunpack.c.l.b16 %v3138
    %v3688 = vunpack.c.h.b16 %v3138
    %v3689 = vunpack.c.l.b16 %v3139
    %v3690 = vunpack.c.h.b16 %v3139
    %v3691 = vunpack.c.l.b16 %v3140
    %v3692 = vunpack.c.h.b16 %v3140
    %v3693 = vunpack.c.l.b16 %v3141
    %v3694 = vunpack.c.h.b16 %v3141
    %v3695 = vunpack.c.l.b16 %v3142
    %v3696 = vunpack.c.h.b16 %v3142
    %v3697 = vunpack.c.l.b16 %v3143
    %v3698 = vunpack.c.h.b16 %v3143
    %v3699 = vunpack.c.l.b16 %v3144
    %v3700 = vunpack.c.h.b16 %v3144
    %v3701 = vunpack.c.l.b16 %v3145
    %v3702 = vunpack.c.h.b16 %v3145
    %v3703 = vunpack.c.l.b16 %v3146
    %v3704 = vunpack.c.h.b16 %v3146
    %v3705 = vunpack.c.l.b16 %v3147
    %v3706 = vunpack.c.h.b16 %v3147
    %v3707 = vunpack.c.l.b16 %v3148
    %v3708 = vunpack.c.h.b16 %v3148
    %v3709 = vunpack.c.l.b16 %v3149
    %v3710 = vunpack.c.h.b16 %v3149
    %v3711 = vunpack.c.l.b16 %v3150
    %v3712 = vunpack.c.h.b16 %v3150
    %v3713 = vunpack.c.l.b16 %v3151
    %v3714 = vunpack.c.h.b16 %v3151
    %v3715 = vunpack.c.l.b16 %v3152
    %v3716 = vunpack.c.h.b16 %v3152
    %v3717 = vunpack.c.l.b16 %v3153
    %v3718 = vunpack.c.h.b16 %v3153
    %v3719 = vunpack.c.l.b16 %v3154
    %v3720 = vunpack.c.h.b16 %v3154
    %v3721 = vunpack.c.l.b16 %v3155
    %v3722 = vunpack.c.h.b16 %v3155
    %v3723 = vunpack.c.l.b16 %v3156
    %v3724 = vunpack.c.h.b16 %v3156
    %v3725 = vunpack.c.l.b16 %v3157
    %v3726 = vunpack.c.h.b16 %v3157
    %v3727 = vunpack.c.l.b16 %v3158
    %v3728 = vunpack.c.h.b16 %v3158
    %v3729 = vunpack.c.l.b16 %v3159
    %v3730 = vunpack.c.h.b16 %v3159
    %v3731 = vunpack.c.l.b16 %v3160
    %v3732 = vunpack.c.h.b16 %v3160
    %v3733 = vunpack.c.l.b16 %v3161
    %v3734 = vunpack.c.h.b16 %v3161
    %v3735 = vunpack.c.l.b16 %v3162
    %v3736 = vunpack.c.h.b16 %v3162
    %v3737 = vunpack.c.l.b16 %v3163
    %v3738 = vunpack.c.h.b16 %v3163
    %v3739 = vunpack.c.l.b16 %v3164
    %v3740 = vunpack.c.h.b16 %v3164
    %v3741 = vunpack.c.l.b16 %v3165
    %v3742 = vunpack.c.h.b16 %v3165
    %v3743 = vunpack.c.l.b16 %v3166
    %v3744 = vunpack.c.h.b16 %v3166
    %v3745 = vunpack.c.l.b16 %v3167
    %v3746 = vunpack.c.h.b16 %v3167
    %v3747 = vunpack.c.l.b16 %v3168
    %v3748 = vunpack.c.h.b16 %v3168
    %v3749 = vunpack.c.l.b16 %v3169
    %v3750 = vunpack.c.h.b16 %v3169
    %v3751 = vunpack.c.l.b16 %v3170
    %v3752 = vunpack.c.h.b16 %v3170
    %v3753 = vunpack.c.l.b16 %v3171
    %v3754 = vunpack.c.h.b16 %v3171
    %v3755 = vunpack.c.l.b16 %v3172
    %v3756 = vunpack.c.h.b16 %v3172
    %v3757 = vunpack.c.l.b16 %v3173
    %v3758 = vunpack.c.h.b16 %v3173
    %v3759 = vunpack.c.l.b16 %v3174
    %v3760 = vunpack.c.h.b16 %v3174
    %v3761 = vunpack.c.l.b16 %v3175
    %v3762 = vunpack.c.h.b16 %v3175
    %v3763 = vunpack.c.l.b16 %v3176
    %v3764 = vunpack.c.h.b16 %v3176
    %v3765 = vunpack.c.l.b16 %v3177
    %v3766 = vunpack.c.h.b16 %v3177
    %v3767 = vunpack.c.l.b16 %v3178
    %v3768 = vunpack.c.h.b16 %v3178
    %v3769 = vpack.c.b16 %v3391, %v3385
    %v3770 = vpack.c.b16 %v3392, %v3386
    %v3771 = vpack.c.b16 %v3393, %v3387
    %v3772 = vpack.c.b16 %v3394, %v3388
    %v3773 = vpack.c.b16 %v3395, %v3389
    %v3774 = vpack.c.b16 %v3396, %v3390
    %v3775 = vpack.c.b16 %v3403, %v3397
    %v3776 = vpack.c.b16 %v3404, %v3398
    %v3777 = vpack.c.b16 %v3405, %v3399
    %v3778 = vpack.c.b16 %v3406, %v3400
    %v3779 = vpack.c.b16 %v3407, %v3401
    %v3780 = vpack.c.b16 %v3408, %v3402
    %v3781 = vpack.c.b16 %v3415, %v3409
    %v3782 = vpack.c.b16 %v3416, %v3410
    %v3783 = vpack.c.b16 %v3417, %v3411
    %v3784 = vpack.c.b16 %v3418, %v3412
    %v3785 = vpack.c.b16 %v3419, %v3413
    %v3786 = vpack.c.b16 %v3420, %v3414
    %v3787 = vpack.c.b16 %v3427, %v3421
    %v3788 = vpack.c.b16 %v3428, %v3422
    %v3789 = vpack.c.b16 %v3429, %v3423
    %v3790 = vpack.c.b16 %v3430, %v3424
    %v3791 = vpack.c.b16 %v3431, %v3425
    %v3792 = vpack.c.b16 %v3432, %v3426
    %v3793 = vpack.c.b16 %v3439, %v3433
    %v3794 = vpack.c.b16 %v3440, %v3434
    %v3795 = vpack.c.b16 %v3441, %v3435
    %v3796 = vpack.c.b16 %v3442, %v3436
    %v3797 = vpack.c.b16 %v3443, %v3437
    %v3798 = vpack.c.b16 %v3444, %v3438
    %v3799 = vpack.c.b16 %v3451, %v3445
    %v3800 = vpack.c.b16 %v3452, %v3446
    %v3801 = vpack.c.b16 %v3453, %v3447
    %v3802 = vpack.c.b16 %v3454, %v3448
    %v3803 = vpack.c.b16 %v3455, %v3449
    %v3804 = vpack.c.b16 %v3456, %v3450
    %v3805 = vpack.c.b16 %v3463, %v3457
    %v3806 = vpack.c.b16 %v3464, %v3458
    %v3807 = vpack.c.b16 %v3465, %v3459
    %v3808 = vpack.c.b16 %v3466, %v3460
    %v3809 = vpack.c.b16 %v3467, %v3461
    %v3810 = vpack.c.b16 %v3468, %v3462
    %v3811 = vpack.c.b16 %v3475, %v3469
    %v3812 = vpack.c.b16 %v3476, %v3470
    %v3813 = vpack.c.b16 %v3477, %v3471
    %v3814 = vpack.c.b16 %v3478, %v3472
    %v3815 = vpack.c.b16 %v3479, %v3473
    %v3816 = vpack.c.b16 %v3480, %v3474
    %v3817 = vpack.c.b16 %v3487, %v3481
    %v3818 = vpack.c.b16 %v3488, %v3482
    %v3819 = vpack.c.b16 %v3489, %v3483
    %v3820 = vpack.c.b16 %v3490, %v3484
    %v3821 = vpack.c.b16 %v3491, %v3485
    %v3822 = vpack.c.b16 %v3492, %v3486
    %v3823 = vpack.c.b16 %v3499, %v3493
    %v3824 = vpack.c.b16 %v3500, %v3494
    %v3825 = vpack.c.b16 %v3501, %v3495
    %v3826 = vpack.c.b16 %v3502, %v3496
    %v3827 = vpack.c.b16 %v3503, %v3497
    %v3828 = vpack.c.b16 %v3504, %v3498
    %v3829 = vpack.c.b16 %v3511, %v3505
    %v3830 = vpack.c.b16 %v3512, %v3506
    %v3831 = vpack.c.b16 %v3513, %v3507
    %v3832 = vpack.c.b16 %v3514, %v3508
    %v3833 = vpack.c.b16 %v3515, %v3509
    %v3834 = vpack.c.b16 %v3516, %v3510
    %v3835 = vpack.c.b16 %v3523, %v3517
    %v3836 = vpack.c.b16 %v3524, %v3518
    %v3837 = vpack.c.b16 %v3525, %v3519
    %v3838 = vpack.c.b16 %v3526, %v3520
    %v3839 = vpack.c.b16 %v3527, %v3521
    %v3840 = vpack.c.b16 %v3528, %v3522
    %v3841 = vpack.c.b16 %v3535, %v3529
    %v3842 = vpack.c.b16 %v3536, %v3530
    %v3843 = vpack.c.b16 %v3537, %v3531
    %v3844 = vpack.c.b16 %v3538, %v3532
    %v3845 = vpack.c.b16 %v3539, %v3533
    %v3846 = vpack.c.b16 %v3540, %v3534
    %v3847 = vpack.c.b16 %v3547, %v3541
    %v3848 = vpack.c.b16 %v3548, %v3542
    %v3849 = vpack.c.b16 %v3549, %v3543
    %v3850 = vpack.c.b16 %v3550, %v3544
    %v3851 = vpack.c.b16 %v3551, %v3545
    %v3852 = vpack.c.b16 %v3552, %v3546
    %v3853 = vpack.c.b16 %v3559, %v3553
    %v3854 = vpack.c.b16 %v3560, %v3554
    %v3855 = vpack.c.b16 %v3561, %v3555
    %v3856 = vpack.c.b16 %v3562, %v3556
    %v3857 = vpack.c.b16 %v3563, %v3557
    %v3858 = vpack.c.b16 %v3564, %v3558
    %v3859 = vpack.c.b16 %v3571, %v3565
    %v3860 = vpack.c.b16 %v3572, %v3566
    %v3861 = vpack.c.b16 %v3573, %v3567
    %v3862 = vpack.c.b16 %v3574, %v3568
    %v3863 = vpack.c.b16 %v3575, %v3569
    %v3864 = vpack.c.b16 %v3576, %v3570
    %v3865 = vpack.c.b16 %v3583, %v3577
    %v3866 = vpack.c.b16 %v3584, %v3578
    %v3867 = vpack.c.b16 %v3585, %v3579
    %v3868 = vpack.c.b16 %v3586, %v3580
    %v3869 = vpack.c.b16 %v3587, %v3581
    %v3870 = vpack.c.b16 %v3588, %v3582
    %v3871 = vpack.c.b16 %v3595, %v3589
    %v3872 = vpack.c.b16 %v3596, %v3590
    %v3873 = vpack.c.b16 %v3597, %v3591
    %v3874 = vpack.c.b16 %v3598, %v3592
    %v3875 = vpack.c.b16 %v3599, %v3593
    %v3876 = vpack.c.b16 %v3600, %v3594
    %v3877 = vpack.c.b16 %v3607, %v3601
    %v3878 = vpack.c.b16 %v3608, %v3602
    %v3879 = vpack.c.b16 %v3609, %v3603
    %v3880 = vpack.c.b16 %v3610, %v3604
    %v3881 = vpack.c.b16 %v3611, %v3605
    %v3882 = vpack.c.b16 %v3612, %v3606
    %v3883 = vpack.c.b16 %v3619, %v3613
    %v3884 = vpack.c.b16 %v3620, %v3614
    %v3885 = vpack.c.b16 %v3621, %v3615
    %v3886 = vpack.c.b16 %v3622, %v3616
    %v3887 = vpack.c.b16 %v3623, %v3617
    %v3888 = vpack.c.b16 %v3624, %v3618
    %v3889 = vpack.c.b16 %v3631, %v3625
    %v3890 = vpack.c.b16 %v3632, %v3626
    %v3891 = vpack.c.b16 %v3633, %v3627
    %v3892 = vpack.c.b16 %v3634, %v3628
    %v3893 = vpack.c.b16 %v3635, %v3629
    %v3894 = vpack.c.b16 %v3636, %v3630
    %v3895 = vpack.c.b16 %v3643, %v3637
    %v3896 = vpack.c.b16 %v3644, %v3638
    %v3897 = vpack.c.b16 %v3645, %v3639
    %v3898 = vpack.c.b16 %v3646, %v3640
    %v3899 = vpack.c.b16 %v3647, %v3641
    %v3900 = vpack.c.b16 %v3648, %v3642
    %v3901 = vpack.c.b16 %v3655, %v3649
    %v3902 = vpack.c.b16 %v3656, %v3650
    %v3903 = vpack.c.b16 %v3657, %v3651
    %v3904 = vpack.c.b16 %v3658, %v3652
    %v3905 = vpack.c.b16 %v3659, %v3653
    %v3906 = vpack.c.b16 %v3660, %v3654
    %v3907 = vpack.c.b16 %v3667, %v3661
    %v3908 = vpack.c.b16 %v3668, %v3662
    %v3909 = vpack.c.b16 %v3669, %v3663
    %v3910 = vpack.c.b16 %v3670, %v3664
    %v3911 = vpack.c.b16 %v3671, %v3665
    %v3912 = vpack.c.b16 %v3672, %v3666
    %v3913 = vpack.c.b16 %v3679, %v3673
    %v3914 = vpack.c.b16 %v3680, %v3674
    %v3915 = vpack.c.b16 %v3681, %v3675
    %v3916 = vpack.c.b16 %v3682, %v3676
    %v3917 = vpack.c.b16 %v3683, %v3677
    %v3918 = vpack.c.b16 %v3684, %v3678
    %v3919 = vpack.c.b16 %v3691, %v3685
    %v3920 = vpack.c.b16 %v3692, %v3686
    %v3921 = vpack.c.b16 %v3693, %v3687
    %v3922 = vpack.c.b16 %v3694, %v3688
    %v3923 = vpack.c.b16 %v3695, %v3689
    %v3924 = vpack.c.b16 %v3696, %v3690
    %v3925 = vpack.c.b16 %v3703, %v3697
    %v3926 = vpack.c.b16 %v3704, %v3698
    %v3927 = vpack.c.b16 %v3705, %v3699
    %v3928 = vpack.c.b16 %v3706, %v3700
    %v3929 = vpack.c.b16 %v3707, %v3701
    %v3930 = vpack.c.b16 %v3708, %v3702
    %v3931 = vpack.c.b16 %v3715, %v3709
    %v3932 = vpack.c.b16 %v3716, %v3710
    %v3933 = vpack.c.b16 %v3717, %v3711
    %v3934 = vpack.c.b16 %v3718, %v3712
    %v3935 = vpack.c.b16 %v3719, %v3713
    %v3936 = vpack.c.b16 %v3720, %v3714
    %v3937 = vpack.c.b16 %v3727, %v3721
    %v3938 = vpack.c.b16 %v3728, %v3722
    %v3939 = vpack.c.b16 %v3729, %v3723
    %v3940 = vpack.c.b16 %v3730, %v3724
    %v3941 = vpack.c.b16 %v3731, %v3725
    %v3942 = vpack.c.b16 %v3732, %v3726
    %v3943 = vpack.c.b16 %v3739, %v3733
    %v3944 = vpack.c.b16 %v3740, %v3734
    %v3945 = vpack.c.b16 %v3741, %v3735
    %v3946 = vpack.c.b16 %v3742, %v3736
    %v3947 = vpack.c.b16 %v3743, %v3737
    %v3948 = vpack.c.b16 %v3744, %v3738
    %v3949 = vpack.c.b16 %v3751, %v3745
    %v3950 = vpack.c.b16 %v3752, %v3746
    %v3951 = vpack.c.b16 %v3753, %v3747
    %v3952 = vpack.c.b16 %v3754, %v3748
    %v3953 = vpack.c.b16 %v3755, %v3749
    %v3954 = vpack.c.b16 %v3756, %v3750
    %v3955 = vpack.c.b16 %v3763, %v3757
    %v3956 = vpack.c.b16 %v3764, %v3758
    %v3957 = vpack.c.b16 %v3765, %v3759
    %v3958 = vpack.c.b16 %v3766, %v3760
    %v3959 = vpack.c.b16 %v3767, %v3761
    %v3960 = vpack.c.b16 %v3768, %v3762
    %4153 = vmatpush.bf16.msra.mxu0 %v3811
    %4154 = vmatpush.bf16.msra.mxu0 %v3805
    %4155 = vmatpush.bf16.msra.mxu0 %v3799
    %4156 = vmatpush.bf16.msra.mxu0 %v3793
    %4157 = vmatpush.bf16.msra.mxu0 %v3787
    %4158 = vmatpush.bf16.msra.mxu0 %v3781
    %4159 = vmatpush.bf16.msra.mxu0 %v3775
    %4160 = vmatpush.bf16.msra.mxu0 %v3769
    %4161 = vmatmul.bf16.gmra.mxu0 %v2983
    %v4162 = vpop.f32.mrf.mxu0
    %v4163 = vadd.f32 %v3181, %v4162
    %v4164 = vpop.f32.mrf.mxu0
    %v4165 = vadd.f32 %v3181, %v4164
    %4166 = vdwg.mxu0
    %4167 = vmatpush.bf16.msra.mxu0 %v3859
    %4168 = vmatpush.bf16.msra.mxu0 %v3853
    %4169 = vmatpush.bf16.msra.mxu0 %v3847
    %4170 = vmatpush.bf16.msra.mxu0 %v3841
    %4171 = vmatpush.bf16.msra.mxu0 %v3835
    %4172 = vmatpush.bf16.msra.mxu0 %v3829
    %4173 = vmatpush.bf16.msra.mxu0 %v3823
    %4174 = vmatpush.bf16.msra.mxu0 %v3817
    %4175 = vmatmul.bf16.gmra.mxu0 %v2984
    %v4176 = vpop.f32.mrf.mxu0
    %v4177 = vadd.f32 %v4163, %v4176
    %v4178 = vpop.f32.mrf.mxu0
    %v4179 = vadd.f32 %v4165, %v4178
    %4180 = vdwg.mxu0
    %4181 = vmatpush.bf16.msra.mxu0 %v3907
    %4182 = vmatpush.bf16.msra.mxu0 %v3901
    %4183 = vmatpush.bf16.msra.mxu0 %v3895
    %4184 = vmatpush.bf16.msra.mxu0 %v3889
    %4185 = vmatpush.bf16.msra.mxu0 %v3883
    %4186 = vmatpush.bf16.msra.mxu0 %v3877
    %4187 = vmatpush.bf16.msra.mxu0 %v3871
    %4188 = vmatpush.bf16.msra.mxu0 %v3865
    %4189 = vmatmul.bf16.gmra.mxu0 %v2985
    %v4190 = vpop.f32.mrf.mxu0
    %v4191 = vadd.f32 %v4177, %v4190
    %v4192 = vpop.f32.mrf.mxu0
    %v4193 = vadd.f32 %v4179, %v4192
    %4194 = vdwg.mxu0
    %4195 = vmatpush.bf16.msra.mxu0 %v3955
    %4196 = vmatpush.bf16.msra.mxu0 %v3949
    %4197 = vmatpush.bf16.msra.mxu0 %v3943
    %4198 = vmatpush.bf16.msra.mxu0 %v3937
    %4199 = vmatpush.bf16.msra.mxu0 %v3931
    %4200 = vmatpush.bf16.msra.mxu0 %v3925
    %4201 = vmatpush.bf16.msra.mxu0 %v3919
    %4202 = vmatpush.bf16.msra.mxu0 %v3913
    %4203 = vmatmul.bf16.gmra.mxu0 %v2986
    %v4204 = vpop.f32.mrf.mxu0
    %v4205 = vadd.f32 %v4191, %v4204
    %v4206 = vpop.f32.mrf.mxu0
    %v4207 = vadd.f32 %v4193, %v4206
    %4208 = vdwg.mxu0
    %4209 = vmatpush.bf16.msra.mxu0 %v3812
    %4210 = vmatpush.bf16.msra.mxu0 %v3806
    %4211 = vmatpush.bf16.msra.mxu0 %v3800
    %4212 = vmatpush.bf16.msra.mxu0 %v3794
    %4213 = vmatpush.bf16.msra.mxu0 %v3788
    %4214 = vmatpush.bf16.msra.mxu0 %v3782
    %4215 = vmatpush.bf16.msra.mxu0 %v3776
    %4216 = vmatpush.bf16.msra.mxu0 %v3770
    %4217 = vmatmul.bf16.gmra.mxu0 %v2983
    %v4218 = vpop.f32.mrf.mxu0
    %v4219 = vadd.f32 %v3182, %v4218
    %v4220 = vpop.f32.mrf.mxu0
    %v4221 = vadd.f32 %v3182, %v4220
    %4222 = vdwg.mxu0
    %4223 = vmatpush.bf16.msra.mxu0 %v3860
    %4224 = vmatpush.bf16.msra.mxu0 %v3854
    %4225 = vmatpush.bf16.msra.mxu0 %v3848
    %4226 = vmatpush.bf16.msra.mxu0 %v3842
    %4227 = vmatpush.bf16.msra.mxu0 %v3836
    %4228 = vmatpush.bf16.msra.mxu0 %v3830
    %4229 = vmatpush.bf16.msra.mxu0 %v3824
    %4230 = vmatpush.bf16.msra.mxu0 %v3818
    %4231 = vmatmul.bf16.gmra.mxu0 %v2984
    %v4232 = vpop.f32.mrf.mxu0
    %v4233 = vadd.f32 %v4219, %v4232
    %v4234 = vpop.f32.mrf.mxu0
    %v4235 = vadd.f32 %v4221, %v4234
    %4236 = vdwg.mxu0
    %4237 = vmatpush.bf16.msra.mxu0 %v3908
    %4238 = vmatpush.bf16.msra.mxu0 %v3902
    %4239 = vmatpush.bf16.msra.mxu0 %v3896
    %4240 = vmatpush.bf16.msra.mxu0 %v3890
    %4241 = vmatpush.bf16.msra.mxu0 %v3884
    %4242 = vmatpush.bf16.msra.mxu0 %v3878
    %4243 = vmatpush.bf16.msra.mxu0 %v3872
    %4244 = vmatpush.bf16.msra.mxu0 %v3866
    %4245 = vmatmul.bf16.gmra.mxu0 %v2985
    %v4246 = vpop.f32.mrf.mxu0
    %v4247 = vadd.f32 %v4233, %v4246
    %v4248 = vpop.f32.mrf.mxu0
    %v4249 = vadd.f32 %v4235, %v4248
    %4250 = vdwg.mxu0
    %4251 = vmatpush.bf16.msra.mxu0 %v3956
    %4252 = vmatpush.bf16.msra.mxu0 %v3950
    %4253 = vmatpush.bf16.msra.mxu0 %v3944
    %4254 = vmatpush.bf16.msra.mxu0 %v3938
    %4255 = vmatpush.bf16.msra.mxu0 %v3932
    %4256 = vmatpush.bf16.msra.mxu0 %v3926
    %4257 = vmatpush.bf16.msra.mxu0 %v3920
    %4258 = vmatpush.bf16.msra.mxu0 %v3914
    %4259 = vmatmul.bf16.gmra.mxu0 %v2986
    %v4260 = vpop.f32.mrf.mxu0
    %v4261 = vadd.f32 %v4247, %v4260
    %v4262 = vpop.f32.mrf.mxu0
    %v4263 = vadd.f32 %v4249, %v4262
    %4264 = vdwg.mxu0
    %4265 = vmatpush.bf16.msra.mxu0 %v3813
    %4266 = vmatpush.bf16.msra.mxu0 %v3807
    %4267 = vmatpush.bf16.msra.mxu0 %v3801
    %4268 = vmatpush.bf16.msra.mxu0 %v3795
    %4269 = vmatpush.bf16.msra.mxu0 %v3789
    %4270 = vmatpush.bf16.msra.mxu0 %v3783
    %4271 = vmatpush.bf16.msra.mxu0 %v3777
    %4272 = vmatpush.bf16.msra.mxu0 %v3771
    %4273 = vmatmul.bf16.gmra.mxu0 %v2983
    %v4274 = vpop.f32.mrf.mxu0
    %v4275 = vadd.f32 %v3183, %v4274
    %v4276 = vpop.f32.mrf.mxu0
    %v4277 = vadd.f32 %v3183, %v4276
    %4278 = vdwg.mxu0
    %4279 = vmatpush.bf16.msra.mxu0 %v3861
    %4280 = vmatpush.bf16.msra.mxu0 %v3855
    %4281 = vmatpush.bf16.msra.mxu0 %v3849
    %4282 = vmatpush.bf16.msra.mxu0 %v3843
    %4283 = vmatpush.bf16.msra.mxu0 %v3837
    %4284 = vmatpush.bf16.msra.mxu0 %v3831
    %4285 = vmatpush.bf16.msra.mxu0 %v3825
    %4286 = vmatpush.bf16.msra.mxu0 %v3819
    %4287 = vmatmul.bf16.gmra.mxu0 %v2984
    %v4288 = vpop.f32.mrf.mxu0
    %v4289 = vadd.f32 %v4275, %v4288
    %v4290 = vpop.f32.mrf.mxu0
    %v4291 = vadd.f32 %v4277, %v4290
    %4292 = vdwg.mxu0
    %4293 = vmatpush.bf16.msra.mxu0 %v3909
    %4294 = vmatpush.bf16.msra.mxu0 %v3903
    %4295 = vmatpush.bf16.msra.mxu0 %v3897
    %4296 = vmatpush.bf16.msra.mxu0 %v3891
    %4297 = vmatpush.bf16.msra.mxu0 %v3885
    %4298 = vmatpush.bf16.msra.mxu0 %v3879
    %4299 = vmatpush.bf16.msra.mxu0 %v3873
    %4300 = vmatpush.bf16.msra.mxu0 %v3867
    %4301 = vmatmul.bf16.gmra.mxu0 %v2985
    %v4302 = vpop.f32.mrf.mxu0
    %v4303 = vadd.f32 %v4289, %v4302
    %v4304 = vpop.f32.mrf.mxu0
    %v4305 = vadd.f32 %v4291, %v4304
    %4306 = vdwg.mxu0
    %4307 = vmatpush.bf16.msra.mxu0 %v3957
    %4308 = vmatpush.bf16.msra.mxu0 %v3951
    %4309 = vmatpush.bf16.msra.mxu0 %v3945
    %4310 = vmatpush.bf16.msra.mxu0 %v3939
    %4311 = vmatpush.bf16.msra.mxu0 %v3933
    %4312 = vmatpush.bf16.msra.mxu0 %v3927
    %4313 = vmatpush.bf16.msra.mxu0 %v3921
    %4314 = vmatpush.bf16.msra.mxu0 %v3915
    %4315 = vmatmul.bf16.gmra.mxu0 %v2986
    %v4316 = vpop.f32.mrf.mxu0
    %v4317 = vadd.f32 %v4303, %v4316
    %v4318 = vpop.f32.mrf.mxu0
    %v4319 = vadd.f32 %v4305, %v4318
    %4320 = vdwg.mxu0
    %4321 = vmatpush.bf16.msra.mxu0 %v3814
    %4322 = vmatpush.bf16.msra.mxu0 %v3808
    %4323 = vmatpush.bf16.msra.mxu0 %v3802
    %4324 = vmatpush.bf16.msra.mxu0 %v3796
    %4325 = vmatpush.bf16.msra.mxu0 %v3790
    %4326 = vmatpush.bf16.msra.mxu0 %v3784
    %4327 = vmatpush.bf16.msra.mxu0 %v3778
    %4328 = vmatpush.bf16.msra.mxu0 %v3772
    %4329 = vmatmul.bf16.gmra.mxu0 %v2983
    %v4330 = vpop.f32.mrf.mxu0
    %v4331 = vadd.f32 %v3184, %v4330
    %v4332 = vpop.f32.mrf.mxu0
    %v4333 = vadd.f32 %v3184, %v4332
    %4334 = vdwg.mxu0
    %4335 = vmatpush.bf16.msra.mxu0 %v3862
    %4336 = vmatpush.bf16.msra.mxu0 %v3856
    %4337 = vmatpush.bf16.msra.mxu0 %v3850
    %4338 = vmatpush.bf16.msra.mxu0 %v3844
    %4339 = vmatpush.bf16.msra.mxu0 %v3838
    %4340 = vmatpush.bf16.msra.mxu0 %v3832
    %4341 = vmatpush.bf16.msra.mxu0 %v3826
    %4342 = vmatpush.bf16.msra.mxu0 %v3820
    %4343 = vmatmul.bf16.gmra.mxu0 %v2984
    %v4344 = vpop.f32.mrf.mxu0
    %v4345 = vadd.f32 %v4331, %v4344
    %v4346 = vpop.f32.mrf.mxu0
    %v4347 = vadd.f32 %v4333, %v4346
    %4348 = vdwg.mxu0
    %4349 = vmatpush.bf16.msra.mxu0 %v3910
    %4350 = vmatpush.bf16.msra.mxu0 %v3904
    %4351 = vmatpush.bf16.msra.mxu0 %v3898
    %4352 = vmatpush.bf16.msra.mxu0 %v3892
    %4353 = vmatpush.bf16.msra.mxu0 %v3886
    %4354 = vmatpush.bf16.msra.mxu0 %v3880
    %4355 = vmatpush.bf16.msra.mxu0 %v3874
    %4356 = vmatpush.bf16.msra.mxu0 %v3868
    %4357 = vmatmul.bf16.gmra.mxu0 %v2985
    %v4358 = vpop.f32.mrf.mxu0
    %v4359 = vadd.f32 %v4345, %v4358
    %v4360 = vpop.f32.mrf.mxu0
    %v4361 = vadd.f32 %v4347, %v4360
    %4362 = vdwg.mxu0
    %4363 = vmatpush.bf16.msra.mxu0 %v3958
    %4364 = vmatpush.bf16.msra.mxu0 %v3952
    %4365 = vmatpush.bf16.msra.mxu0 %v3946
    %4366 = vmatpush.bf16.msra.mxu0 %v3940
    %4367 = vmatpush.bf16.msra.mxu0 %v3934
    %4368 = vmatpush.bf16.msra.mxu0 %v3928
    %4369 = vmatpush.bf16.msra.mxu0 %v3922
    %4370 = vmatpush.bf16.msra.mxu0 %v3916
    %4371 = vmatmul.bf16.gmra.mxu0 %v2986
    %v4372 = vpop.f32.mrf.mxu0
    %v4373 = vadd.f32 %v4359, %v4372
    %v4374 = vpop.f32.mrf.mxu0
    %v4375 = vadd.f32 %v4361, %v4374
    %4376 = vdwg.mxu0
    %4377 = vmatpush.bf16.msra.mxu0 %v3815
    %4378 = vmatpush.bf16.msra.mxu0 %v3809
    %4379 = vmatpush.bf16.msra.mxu0 %v3803
    %4380 = vmatpush.bf16.msra.mxu0 %v3797
    %4381 = vmatpush.bf16.msra.mxu0 %v3791
    %4382 = vmatpush.bf16.msra.mxu0 %v3785
    %4383 = vmatpush.bf16.msra.mxu0 %v3779
    %4384 = vmatpush.bf16.msra.mxu0 %v3773
    %4385 = vmatmul.bf16.gmra.mxu0 %v2983
    %v4386 = vpop.f32.mrf.mxu0
    %v4387 = vadd.f32 %v3185, %v4386
    %v4388 = vpop.f32.mrf.mxu0
    %v4389 = vadd.f32 %v3185, %v4388
    %4390 = vdwg.mxu0
    %4391 = vmatpush.bf16.msra.mxu0 %v3863
    %4392 = vmatpush.bf16.msra.mxu0 %v3857
    %4393 = vmatpush.bf16.msra.mxu0 %v3851
    %4394 = vmatpush.bf16.msra.mxu0 %v3845
    %4395 = vmatpush.bf16.msra.mxu0 %v3839
    %4396 = vmatpush.bf16.msra.mxu0 %v3833
    %4397 = vmatpush.bf16.msra.mxu0 %v3827
    %4398 = vmatpush.bf16.msra.mxu0 %v3821
    %4399 = vmatmul.bf16.gmra.mxu0 %v2984
    %v4400 = vpop.f32.mrf.mxu0
    %v4401 = vadd.f32 %v4387, %v4400
    %v4402 = vpop.f32.mrf.mxu0
    %v4403 = vadd.f32 %v4389, %v4402
    %4404 = vdwg.mxu0
    %4405 = vmatpush.bf16.msra.mxu0 %v3911
    %4406 = vmatpush.bf16.msra.mxu0 %v3905
    %4407 = vmatpush.bf16.msra.mxu0 %v3899
    %4408 = vmatpush.bf16.msra.mxu0 %v3893
    %4409 = vmatpush.bf16.msra.mxu0 %v3887
    %4410 = vmatpush.bf16.msra.mxu0 %v3881
    %4411 = vmatpush.bf16.msra.mxu0 %v3875
    %4412 = vmatpush.bf16.msra.mxu0 %v3869
    %4413 = vmatmul.bf16.gmra.mxu0 %v2985
    %v4414 = vpop.f32.mrf.mxu0
    %v4415 = vadd.f32 %v4401, %v4414
    %v4416 = vpop.f32.mrf.mxu0
    %v4417 = vadd.f32 %v4403, %v4416
    %4418 = vdwg.mxu0
    %4419 = vmatpush.bf16.msra.mxu0 %v3959
    %4420 = vmatpush.bf16.msra.mxu0 %v3953
    %4421 = vmatpush.bf16.msra.mxu0 %v3947
    %4422 = vmatpush.bf16.msra.mxu0 %v3941
    %4423 = vmatpush.bf16.msra.mxu0 %v3935
    %4424 = vmatpush.bf16.msra.mxu0 %v3929
    %4425 = vmatpush.bf16.msra.mxu0 %v3923
    %4426 = vmatpush.bf16.msra.mxu0 %v3917
    %4427 = vmatmul.bf16.gmra.mxu0 %v2986
    %v4428 = vpop.f32.mrf.mxu0
    %v4429 = vadd.f32 %v4415, %v4428
    %v4430 = vpop.f32.mrf.mxu0
    %v4431 = vadd.f32 %v4417, %v4430
    %4432 = vdwg.mxu0
    %4433 = vmatpush.bf16.msra.mxu0 %v3816
    %4434 = vmatpush.bf16.msra.mxu0 %v3810
    %4435 = vmatpush.bf16.msra.mxu0 %v3804
    %4436 = vmatpush.bf16.msra.mxu0 %v3798
    %4437 = vmatpush.bf16.msra.mxu0 %v3792
    %4438 = vmatpush.bf16.msra.mxu0 %v3786
    %4439 = vmatpush.bf16.msra.mxu0 %v3780
    %4440 = vmatpush.bf16.msra.mxu0 %v3774
    %4441 = vmatmul.bf16.gmra.mxu0 %v2983
    %v4442 = vpop.f32.mrf.mxu0
    %v4443 = vadd.f32 %v3186, %v4442
    %v4444 = vpop.f32.mrf.mxu0
    %v4445 = vadd.f32 %v3186, %v4444
    %4446 = vdwg.mxu0
    %4447 = vmatpush.bf16.msra.mxu0 %v3864
    %4448 = vmatpush.bf16.msra.mxu0 %v3858
    %4449 = vmatpush.bf16.msra.mxu0 %v3852
    %4450 = vmatpush.bf16.msra.mxu0 %v3846
    %4451 = vmatpush.bf16.msra.mxu0 %v3840
    %4452 = vmatpush.bf16.msra.mxu0 %v3834
    %4453 = vmatpush.bf16.msra.mxu0 %v3828
    %4454 = vmatpush.bf16.msra.mxu0 %v3822
    %4455 = vmatmul.bf16.gmra.mxu0 %v2984
    %v4456 = vpop.f32.mrf.mxu0
    %v4457 = vadd.f32 %v4443, %v4456
    %v4458 = vpop.f32.mrf.mxu0
    %v4459 = vadd.f32 %v4445, %v4458
    %4460 = vdwg.mxu0
    %4461 = vmatpush.bf16.msra.mxu0 %v3912
    %4462 = vmatpush.bf16.msra.mxu0 %v3906
    %4463 = vmatpush.bf16.msra.mxu0 %v3900
    %4464 = vmatpush.bf16.msra.mxu0 %v3894
    %4465 = vmatpush.bf16.msra.mxu0 %v3888
    %4466 = vmatpush.bf16.msra.mxu0 %v3882
    %4467 = vmatpush.bf16.msra.mxu0 %v3876
    %4468 = vmatpush.bf16.msra.mxu0 %v3870
    %4469 = vmatmul.bf16.gmra.mxu0 %v2985
    %v4470 = vpop.f32.mrf.mxu0
    %v4471 = vadd.f32 %v4457, %v4470
    %v4472 = vpop.f32.mrf.mxu0
    %v4473 = vadd.f32 %v4459, %v4472
    %4474 = vdwg.mxu0
    %4475 = vmatpush.bf16.msra.mxu0 %v3960
    %4476 = vmatpush.bf16.msra.mxu0 %v3954
    %4477 = vmatpush.bf16.msra.mxu0 %v3948
    %4478 = vmatpush.bf16.msra.mxu0 %v3942
    %4479 = vmatpush.bf16.msra.mxu0 %v3936
    %4480 = vmatpush.bf16.msra.mxu0 %v3930
    %4481 = vmatpush.bf16.msra.mxu0 %v3924
    %4482 = vmatpush.bf16.msra.mxu0 %v3918
    %4483 = vmatmul.bf16.gmra.mxu0 %v2986
    %v4484 = vpop.f32.mrf.mxu0
    %v4485 = vadd.f32 %v4471, %v4484
    %v4486 = vpop.f32.mrf.mxu0
    %v4487 = vadd.f32 %v4473, %v4486
    %4488 = vdwg.mxu0
    %4489 = vst [vmem:[#allocation17] sm:$0xff] %v4205
    %4490 = vst [vmem:[#allocation17 + $0x8] sm:$0xff] %v4261
    %4491 = vst [vmem:[#allocation17 + $0x10] sm:$0xff] %v4317
    %4492 = vst [vmem:[#allocation17 + $0x18] sm:$0xff] %v4373
    %4493 = vst [vmem:[#allocation17 + $0x20] sm:$0xff] %v4429
    %4494 = vst [vmem:[#allocation17 + $0x28] sm:$0xff] %v4485
    %4495 = vst [vmem:[#allocation17 + $0x30] sm:$0xff] %v4207
    %4496 = vst [vmem:[#allocation17 + $0x38] sm:$0xff] %v4263
    %4497 = vst [vmem:[#allocation17 + $0x40] sm:$0xff] %v4319
    %4498 = vst [vmem:[#allocation17 + $0x48] sm:$0xff] %v4375
    %4499 = vst [vmem:[#allocation17 + $0x50] sm:$0xff] %v4431
    %4500 = vst [vmem:[#allocation17 + $0x58] sm:$0xff] %v4487
    // Predicated region
    $region82: #{tpu_custom_call.1} parent=1 // pred_check
      _
    $region83: #{tpu_custom_call.1} parent=1 // pred_check_branch
      %4502 = sbr.rel (0) target = $region85
    $region84: #{tpu_custom_call.1} parent=1 // pred_region
      %4504 = vsyncadd [#allocation4], 0
      %s4505 = sshll.u32 [#allocation17], 4
      %s4506 = int_to_ptr.vmem [resolvable:$true] %s4505
      %s4507 = sshll.u32 %s11, 4
      %s4508 = int_to_ptr.hbm [resolvable:$true] %s4507
      %4513 = dma.vmem_to_hbm [thread:$0]  %s4506, 1536, %s4508, [#allocation4], 768, 768, 48
    $region85: #{tpu_custom_call.1} parent=1 // pred_fallthru
      _
    // Predicated region
    $region86: #{tpu_custom_call.1} parent=1 // pred_check
      _
    $region87: #{tpu_custom_call.1} parent=1 // pred_check_branch
      %4515 = sbr.rel (0) target = $region89
    $region88: #{tpu_custom_call.1} parent=1 // pred_region
      %4517 = dma.done [#allocation4], 1536
    $region89: #{tpu_custom_call.1} parent=1 // pred_fallthru
      _
    %4518 = vsyncpa [#allocation3], 1
    %4519 = vsyncpa [#allocation6], 1
    %4520 = vsyncpa [#allocation9], 1
    %4521 = vsyncpa [#allocation12], 1
    %4522 = vsyncpa [#allocation15], 1
    %4523 = vsyncpa [#allocation4], 1

// kernel: tpu_custom_call.1
$region0: #{tpu_custom_call.1}
  #allocation0 [shape = 'u32[]', space=smem, size = 0x4, offset = 0x4, fixed_abs, tag = 'smem constant byte address 0x4 - core index']
  #allocation1 [shape = 'u32[72,128]{1,0:T(1,128)}', space=vmem, size = 0x9000, scoped, tag = 'internal scratch']
  %s0 = inlined_call_operand.hbm [shape: f32[16,768], index: 0, kind: input, shape index: {}]
  %s1 = inlined_call_operand.hbm [shape: bf16[768,512], index: 1, kind: input, shape index: {}]
  %s2 = inlined_call_operand.hbm [shape: f32[1,512], index: 2, kind: input, shape index: {}]
  %s3 = inlined_call_operand.hbm [shape: bf16[512,256], index: 3, kind: input, shape index: {}]
  %s4 = inlined_call_operand.vmem [shape: f32[1,256], index: 4, kind: input, shape index: {}]
  %s5 = inlined_call_operand.hbm [shape: bf16[256,256], index: 5, kind: input, shape index: {}]
  %s6 = inlined_call_operand.hbm [shape: f32[1,256], index: 6, kind: input, shape index: {}]
  %s7 = inlined_call_operand.hbm [shape: bf16[256,512], index: 7, kind: input, shape index: {}]
  %s8 = inlined_call_operand.hbm [shape: f32[1,512], index: 8, kind: input, shape index: {}]
  %s9 = inlined_call_operand.hbm [shape: bf16[512,768], index: 9, kind: input, shape index: {}]
  %s10 = inlined_call_operand.vmem [shape: f32[1,768], index: 10, kind: input, shape index: {}]
  %s11 = inlined_call_operand.hbm [shape: f32[16,768], index: 11, kind: output, shape index: {}]
  %s12 = sld [smem:[#allocation0]]
  $region90: #{tpu_custom_call.1} parent=0
    _
  %s14 = ssub.s32 1, %s12
  %s15 = scalar_select 0, %s14, %s12
  $region1: #{tpu_custom_call.1} parent=0
    #allocation2 [shape = 'u8[49152]{0}', space=vmem, size = 0xc000, scoped, tag = 'input window, operand 0, single buffered']
    #allocation3 [shape = 's32[1]{0}', space=sflag, size = 0x4, scoped, tag = 'scoped memory for tpu_custom_call.1']
    #allocation4 [shape = 's32[1]{0}', space=sflag, size = 0x4, scoped, tag = 'scoped memory for tpu_custom_call.1']
    #allocation5 [shape = 'u8[786432]{0}', space=vmem, size = 0xc0000, scoped, tag = 'input window, operand 1, single buffered']
    #allocation6 [shape = 's32[1]{0}', space=sflag, size = 0x4, scoped, tag = 'scoped memory for tpu_custom_call.1']
    #allocation7 [shape = 'u8[2048]{0}', space=vmem, size = 0x800, scoped, tag = 'input window, operand 2, single buffered']
    #allocation8 [shape = 'u8[262144]{0}', space=vmem, size = 0x40000, scoped, tag = 'input window, operand 3, single buffered']
    #allocation9 [shape = 's32[1]{0}', space=sflag, size = 0x4, scoped, tag = 'scoped memory for tpu_custom_call.1']
    #allocation10 [shape = 'u8[131072]{0}', space=vmem, size = 0x20000, scoped, tag = 'input window, operand 5, single buffered']
    #allocation11 [shape = 'u8[1024]{0}', space=vmem, size = 0x400, scoped, tag = 'input window, operand 6, single buffered']
    #allocation12 [shape = 's32[1]{0}', space=sflag, size = 0x4, scoped, tag = 'scoped memory for tpu_custom_call.1']
    #allocation13 [shape = 'u8[262144]{0}', space=vmem, size = 0x40000, scoped, tag = 'input window, operand 7, single buffered']
    #allocation14 [shape = 'u8[2048]{0}', space=vmem, size = 0x800, scoped, tag = 'input window, operand 8, single buffered']
    #allocation15 [shape = 's32[1]{0}', space=sflag, size = 0x4, scoped, tag = 'scoped memory for tpu_custom_call.1']
    #allocation16 [shape = 'u8[786432]{0}', space=vmem, size = 0xc0000, scoped, tag = 'input window, operand 9, single buffered']
    #allocation17 [shape = 'u8[49152]{0}', space=vmem, size = 0xc000, scoped, tag = 'output window, operand 0, single buffered']
    %16 = vsyncpa [#allocation3], 0
    %17 = vsyncpa [#allocation6], 0
    %18 = vsyncpa [#allocation9], 0
    %19 = vsyncpa [#allocation12], 0
    %20 = vsyncpa [#allocation15], 0
    %21 = vsyncpa [#allocation4], 0
    // Predicated region
    $region2: #{tpu_custom_call.1} parent=1 // pred_check
      _
    $region3: #{tpu_custom_call.1} parent=1 // pred_check_branch
      %23 = sbr.rel (0) target = $region5
    $region4: #{tpu_custom_call.1} parent=1 // pred_region
      %25 = vsyncadd [#allocation3], 0
      %s26 = sshll.u32 %s0, 4
      %s27 = int_to_ptr.hbm [resolvable:$true] %s26
      %s28 = sshll.u32 [#allocation2], 4
      %s29 = int_to_ptr.vmem [resolvable:$true] %s28
      %34 = dma.hbm_to_vmem [thread:$0]  %s27, 1536, %s29, [#allocation3], 768, 768, 48
    $region5: #{tpu_custom_call.1} parent=1 // pred_fallthru
      _
    // Predicated region
    $region6: #{tpu_custom_call.1} parent=1 // pred_check
      _
    $region7: #{tpu_custom_call.1} parent=1 // pred_check_branch
      %36 = sbr.rel (0) target = $region9
    $region8: #{tpu_custom_call.1} parent=1 // pred_region
      %38 = vsyncadd [#allocation6], 0
      %s39 = sshll.u32 %s1, 4
      %s40 = int_to_ptr.hbm [resolvable:$true] %s39
      %s41 = sshll.u32 [#allocation5], 4
      %s42 = int_to_ptr.vmem [resolvable:$true] %s41
      %47 = dma.hbm_to_vmem [thread:$0]  %s40, 24576, %s42, [#allocation6], 256, 256, 16
    $region9: #{tpu_custom_call.1} parent=1 // pred_fallthru
      _
    // Predicated region
    $region10: #{tpu_custom_call.1} parent=1 // pred_check
      _
    $region11: #{tpu_custom_call.1} parent=1 // pred_check_branch
      %49 = sbr.rel (0) target = $region13
    $region12: #{tpu_custom_call.1} parent=1 // pred_region
      %51 = vsyncadd [#allocation6], 0
      %s53 = sshll.u32 %s2, 4
      %s54 = int_to_ptr.hbm [resolvable:$true] %s53
      %s55 = sshll.u32 [#allocation7], 4
      %s56 = int_to_ptr.vmem [resolvable:$true] %s55
      %58 = dma.hbm_to_vmem [thread:$0]  %s54, 64, %s56, [#allocation6]
    $region13: #{tpu_custom_call.1} parent=1 // pred_fallthru
      _
    // Predicated region
    $region14: #{tpu_custom_call.1} parent=1 // pred_check
      _
    $region15: #{tpu_custom_call.1} parent=1 // pred_check_branch
      %60 = sbr.rel (0) target = $region17
    $region16: #{tpu_custom_call.1} parent=1 // pred_region
      %62 = vsyncadd [#allocation9], 0
      %s63 = sshll.u32 %s3, 4
      %s64 = int_to_ptr.hbm [resolvable:$true] %s63
      %s65 = sshll.u32 [#allocation8], 4
      %s66 = int_to_ptr.vmem [resolvable:$true] %s65
      %71 = dma.hbm_to_vmem [thread:$0]  %s64, 8192, %s66, [#allocation9], 128, 128, 8
    $region17: #{tpu_custom_call.1} parent=1 // pred_fallthru
      _
    // Predicated region
    $region18: #{tpu_custom_call.1} parent=1 // pred_check
      _
    $region19: #{tpu_custom_call.1} parent=1 // pred_check_branch
      %73 = sbr.rel (0) target = $region21
    $region20: #{tpu_custom_call.1} parent=1 // pred_region
      _
    $region21: #{tpu_custom_call.1} parent=1 // pred_fallthru
      _
    // Predicated region
    $region22: #{tpu_custom_call.1} parent=1 // pred_check
      _
    $region23: #{tpu_custom_call.1} parent=1 // pred_check_branch
      %75 = sbr.rel (0) target = $region25
    $region24: #{tpu_custom_call.1} parent=1 // pred_region
      %77 = vsyncadd [#allocation9], 0
      %s78 = sshll.u32 %s5, 4
      %s79 = int_to_ptr.hbm [resolvable:$true] %s78
      %s80 = sshll.u32 [#allocation10], 4
      %s81 = int_to_ptr.vmem [resolvable:$true] %s80
      %86 = dma.hbm_to_vmem [thread:$0]  %s79, 4096, %s81, [#allocation9], 128, 128, 8
    $region25: #{tpu_custom_call.1} parent=1 // pred_fallthru
      _
    // Predicated region
    $region26: #{tpu_custom_call.1} parent=1 // pred_check
      _
    $region27: #{tpu_custom_call.1} parent=1 // pred_check_branch
      %88 = sbr.rel (0) target = $region29
    $region28: #{tpu_custom_call.1} parent=1 // pred_region
      %90 = vsyncadd [#allocation12], 0
      %s92 = sshll.u32 %s6, 4
      %s93 = int_to_ptr.hbm [resolvable:$true] %s92
      %s94 = sshll.u32 [#allocation11], 4
      %s95 = int_to_ptr.vmem [resolvable:$true] %s94
      %97 = dma.hbm_to_vmem [thread:$0]  %s93, 32, %s95, [#allocation12]
    $region29: #{tpu_custom_call.1} parent=1 // pred_fallthru
      _
    // Predicated region
    $region30: #{tpu_custom_call.1} parent=1 // pred_check
      _
    $region31: #{tpu_custom_call.1} parent=1 // pred_check_branch
      %99 = sbr.rel (0) target = $region33
    $region32: #{tpu_custom_call.1} parent=1 // pred_region
      %101 = vsyncadd [#allocation12], 0
      %s102 = sshll.u32 %s7, 4
      %s103 = int_to_ptr.hbm [resolvable:$true] %s102
      %s104 = sshll.u32 [#allocation13], 4
      %s105 = int_to_ptr.vmem [resolvable:$true] %s104
      %110 = dma.hbm_to_vmem [thread:$0]  %s103, 8192, %s105, [#allocation12], 256, 256, 16
    $region33: #{tpu_custom_call.1} parent=1 // pred_fallthru
      _
    // Predicated region
    $region34: #{tpu_custom_call.1} parent=1 // pred_check
      _
    $region35: #{tpu_custom_call.1} parent=1 // pred_check_branch
      %112 = sbr.rel (0) target = $region37
    $region36: #{tpu_custom_call.1} parent=1 // pred_region
      %114 = vsyncadd [#allocation15], 0
      %s116 = sshll.u32 %s8, 4
      %s117 = int_to_ptr.hbm [resolvable:$true] %s116
      %s118 = sshll.u32 [#allocation14], 4
      %s119 = int_to_ptr.vmem [resolvable:$true] %s118
      %121 = dma.hbm_to_vmem [thread:$0]  %s117, 64, %s119, [#allocation15]
    $region37: #{tpu_custom_call.1} parent=1 // pred_fallthru
      _
    // Predicated region
    $region38: #{tpu_custom_call.1} parent=1 // pred_check
      _
    $region39: #{tpu_custom_call.1} parent=1 // pred_check_branch
      %123 = sbr.rel (0) target = $region41
    $region40: #{tpu_custom_call.1} parent=1 // pred_region
      %125 = vsyncadd [#allocation15], 0
      %s126 = sshll.u32 %s9, 4
      %s127 = int_to_ptr.hbm [resolvable:$true] %s126
      %s128 = sshll.u32 [#allocation16], 4
      %s129 = int_to_ptr.vmem [resolvable:$true] %s128
      %134 = dma.hbm_to_vmem [thread:$0]  %s127, 24576, %s129, [#allocation15], 384, 384, 24
    $region41: #{tpu_custom_call.1} parent=1 // pred_fallthru
      _
    // Predicated region
    $region42: #{tpu_custom_call.1} parent=1 // pred_check
      _
    $region43: #{tpu_custom_call.1} parent=1 // pred_check_branch
      %136 = sbr.rel (0) target = $region45
    $region44: #{tpu_custom_call.1} parent=1 // pred_region
      _
    $region45: #{tpu_custom_call.1} parent=1 // pred_fallthru
      _
    // Predicated region
    $region46: #{tpu_custom_call.1} parent=1 // pred_check
      _
    $region47: #{tpu_custom_call.1} parent=1 // pred_check_branch
      %138 = sbr.rel (0) target = $region49
    $region48: #{tpu_custom_call.1} parent=1 // pred_region
      %140 = dma.done [#allocation3], 1536
    $region49: #{tpu_custom_call.1} parent=1 // pred_fallthru
      _
    // Predicated region
    $region50: #{tpu_custom_call.1} parent=1 // pred_check
      _
    $region51: #{tpu_custom_call.1} parent=1 // pred_check_branch
      %142 = sbr.rel (0) target = $region53
    $region52: #{tpu_custom_call.1} parent=1 // pred_region
      %144 = dma.done [#allocation6], 24576
    $region53: #{tpu_custom_call.1} parent=1 // pred_fallthru
      _
    // Predicated region
    $region54: #{tpu_custom_call.1} parent=1 // pred_check
      _
    $region55: #{tpu_custom_call.1} parent=1 // pred_check_branch
      %146 = sbr.rel (0) target = $region57
    $region56: #{tpu_custom_call.1} parent=1 // pred_region
      %148 = dma.done [#allocation6], 64
    $region57: #{tpu_custom_call.1} parent=1 // pred_fallthru
      _
    // Predicated region
    $region58: #{tpu_custom_call.1} parent=1 // pred_check
      _
    $region59: #{tpu_custom_call.1} parent=1 // pred_check_branch
      %150 = sbr.rel (0) target = $region61
    $region60: #{tpu_custom_call.1} parent=1 // pred_region
      %152 = dma.done [#allocation9], 8192
    $region61: #{tpu_custom_call.1} parent=1 // pred_fallthru
      _
    // Predicated region
    $region62: #{tpu_custom_call.1} parent=1 // pred_check
      _
    $region63: #{tpu_custom_call.1} parent=1 // pred_check_branch
      %154 = sbr.rel (0) target = $region65
    $region64: #{tpu_custom_call.1} parent=1 // pred_region
      %156 = dma.done [#allocation9], 4096
    $region65: #{tpu_custom_call.1} parent=1 // pred_fallthru
      _
    // Predicated region
    $region66: #{tpu_custom_call.1} parent=1 // pred_check
      _
    $region67: #{tpu_custom_call.1} parent=1 // pred_check_branch
      %158 = sbr.rel (0) target = $region69
    $region68: #{tpu_custom_call.1} parent=1 // pred_region
      %160 = dma.done [#allocation12], 32
    $region69: #{tpu_custom_call.1} parent=1 // pred_fallthru
      _
    // Predicated region
    $region70: #{tpu_custom_call.1} parent=1 // pred_check
      _
    $region71: #{tpu_custom_call.1} parent=1 // pred_check_branch
      %162 = sbr.rel (0) target = $region73
    $region72: #{tpu_custom_call.1} parent=1 // pred_region
      %164 = dma.done [#allocation12], 8192
    $region73: #{tpu_custom_call.1} parent=1 // pred_fallthru
      _
    // Predicated region
    $region74: #{tpu_custom_call.1} parent=1 // pred_check
      _
    $region75: #{tpu_custom_call.1} parent=1 // pred_check_branch
      %166 = sbr.rel (0) target = $region77
    $region76: #{tpu_custom_call.1} parent=1 // pred_region
      %168 = dma.done [#allocation15], 64
    $region77: #{tpu_custom_call.1} parent=1 // pred_fallthru
      _
    // Predicated region
    $region78: #{tpu_custom_call.1} parent=1 // pred_check
      _
    $region79: #{tpu_custom_call.1} parent=1 // pred_check_branch
      %170 = sbr.rel (0) target = $region81
    $region80: #{tpu_custom_call.1} parent=1 // pred_region
      %172 = dma.done [#allocation15], 24576
    $region81: #{tpu_custom_call.1} parent=1 // pred_fallthru
      _
    %v173 = vld [vmem:[#allocation2] sm:$0xff]
    %v174 = vld [vmem:[#allocation2 + $0x8] sm:$0xff]
    %v175 = vld [vmem:[#allocation2 + $0x10] sm:$0xff]
    %v176 = vld [vmem:[#allocation2 + $0x18] sm:$0xff]
    %v177 = vld [vmem:[#allocation2 + $0x20] sm:$0xff]
    %v178 = vld [vmem:[#allocation2 + $0x28] sm:$0xff]
    %v179 = vld [vmem:[#allocation2 + $0x30] sm:$0xff]
    %v180 = vld [vmem:[#allocation2 + $0x38] sm:$0xff]
    %v181 = vld [vmem:[#allocation2 + $0x40] sm:$0xff]
    %v182 = vld [vmem:[#allocation2 + $0x48] sm:$0xff]
    %v183 = vld [vmem:[#allocation2 + $0x50] sm:$0xff]
    %v184 = vld [vmem:[#allocation2 + $0x58] sm:$0xff]
    %v185 = vpack.c.bf16 %v179, %v173
    %v186 = vpack.c.bf16 %v180, %v174
    %v187 = vpack.c.bf16 %v181, %v175
    %v188 = vpack.c.bf16 %v182, %v176
    %v189 = vpack.c.bf16 %v183, %v177
    %v190 = vpack.c.bf16 %v184, %v178
    %v191 = vld [vmem:[#allocation5] sm:$0xff]
    %v192 = vld [vmem:[#allocation5 + $0x8] sm:$0xff]
    %v193 = vld [vmem:[#allocation5 + $0x10] sm:$0xff]
    %v194 = vld [vmem:[#allocation5 + $0x18] sm:$0xff]
    %v195 = vld [vmem:[#allocation5 + $0x20] sm:$0xff]
    %v196 = vld [vmem:[#allocation5 + $0x28] sm:$0xff]
    %v197 = vld [vmem:[#allocation5 + $0x30] sm:$0xff]
    %v198 = vld [vmem:[#allocation5 + $0x38] sm:$0xff]
    %v199 = vld [vmem:[#allocation5 + $0x40] sm:$0xff]
    %v200 = vld [vmem:[#allocation5 + $0x48] sm:$0xff]
    %v201 = vld [vmem:[#allocation5 + $0x50] sm:$0xff]
    %v202 = vld [vmem:[#allocation5 + $0x58] sm:$0xff]
    %v203 = vld [vmem:[#allocation5 + $0x60] sm:$0xff]
    %v204 = vld [vmem:[#allocation5 + $0x68] sm:$0xff]
    %v205 = vld [vmem:[#allocation5 + $0x70] sm:$0xff]
    %v206 = vld [vmem:[#allocation5 + $0x78] sm:$0xff]
    %v207 = vld [vmem:[#allocation5 + $0x80] sm:$0xff]
    %v208 = vld [vmem:[#allocation5 + $0x88] sm:$0xff]
    %v209 = vld [vmem:[#allocation5 + $0x90] sm:$0xff]
    %v210 = vld [vmem:[#allocation5 + $0x98] sm:$0xff]
    %v211 = vld [vmem:[#allocation5 + $0xa0] sm:$0xff]
    %v212 = vld [vmem:[#allocation5 + $0xa8] sm:$0xff]
    %v213 = vld [vmem:[#allocation5 + $0xb0] sm:$0xff]
    %v214 = vld [vmem:[#allocation5 + $0xb8] sm:$0xff]
    %v215 = vld [vmem:[#allocation5 + $0xc0] sm:$0xff]
    %v216 = vld [vmem:[#allocation5 + $0xc8] sm:$0xff]
    %v217 = vld [vmem:[#allocation5 + $0xd0] sm:$0xff]
    %v218 = vld [vmem:[#allocation5 + $0xd8] sm:$0xff]
    %v219 = vld [vmem:[#allocation5 + $0xe0] sm:$0xff]
    %v220 = vld [vmem:[#allocation5 + $0xe8] sm:$0xff]
    %v221 = vld [vmem:[#allocation5 + $0xf0] sm:$0xff]
    %v222 = vld [vmem:[#allocation5 + $0xf8] sm:$0xff]
    %v223 = vld [vmem:[#allocation5 + $0x100] sm:$0xff]
    %v224 = vld [vmem:[#allocation5 + $0x108] sm:$0xff]
    %v225 = vld [vmem:[#allocation5 + $0x110] sm:$0xff]
    %v226 = vld [vmem:[#allocation5 + $0x118] sm:$0xff]
    %v227 = vld [vmem:[#allocation5 + $0x120] sm:$0xff]
    %v228 = vld [vmem:[#allocation5 + $0x128] sm:$0xff]
    %v229 = vld [vmem:[#allocation5 + $0x130] sm:$0xff]
    %v230 = vld [vmem:[#allocation5 + $0x138] sm:$0xff]
    %v231 = vld [vmem:[#allocation5 + $0x140] sm:$0xff]
    %v232 = vld [vmem:[#allocation5 + $0x148] sm:$0xff]
    %v233 = vld [vmem:[#allocation5 + $0x150] sm:$0xff]
    %v234 = vld [vmem:[#allocation5 + $0x158] sm:$0xff]
    %v235 = vld [vmem:[#allocation5 + $0x160] sm:$0xff]
    %v236 = vld [vmem:[#allocation5 + $0x168] sm:$0xff]
    %v237 = vld [vmem:[#allocation5 + $0x170] sm:$0xff]
    %v238 = vld [vmem:[#allocation5 + $0x178] sm:$0xff]
    %v239 = vld [vmem:[#allocation5 + $0x180] sm:$0xff]
    %v240 = vld [vmem:[#allocation5 + $0x188] sm:$0xff]
    %v241 = vld [vmem:[#allocation5 + $0x190] sm:$0xff]
    %v242 = vld [vmem:[#allocation5 + $0x198] sm:$0xff]
    %v243 = vld [vmem:[#allocation5 + $0x1a0] sm:$0xff]
    %v244 = vld [vmem:[#allocation5 + $0x1a8] sm:$0xff]
    %v245 = vld [vmem:[#allocation5 + $0x1b0] sm:$0xff]
    %v246 = vld [vmem:[#allocation5 + $0x1b8] sm:$0xff]
    %v247 = vld [vmem:[#allocation5 + $0x1c0] sm:$0xff]
    %v248 = vld [vmem:[#allocation5 + $0x1c8] sm:$0xff]
    %v249 = vld [vmem:[#allocation5 + $0x1d0] sm:$0xff]
    %v250 = vld [vmem:[#allocation5 + $0x1d8] sm:$0xff]
    %v251 = vld [vmem:[#allocation5 + $0x1e0] sm:$0xff]
    %v252 = vld [vmem:[#allocation5 + $0x1e8] sm:$0xff]
    %v253 = vld [vmem:[#allocation5 + $0x1f0] sm:$0xff]
    %v254 = vld [vmem:[#allocation5 + $0x1f8] sm:$0xff]
    %v255 = vld [vmem:[#allocation5 + $0x200] sm:$0xff]
    %v256 = vld [vmem:[#allocation5 + $0x208] sm:$0xff]
    %v257 = vld [vmem:[#allocation5 + $0x210] sm:$0xff]
    %v258 = vld [vmem:[#allocation5 + $0x218] sm:$0xff]
    %v259 = vld [vmem:[#allocation5 + $0x220] sm:$0xff]
    %v260 = vld [vmem:[#allocation5 + $0x228] sm:$0xff]
    %v261 = vld [vmem:[#allocation5 + $0x230] sm:$0xff]
    %v262 = vld [vmem:[#allocation5 + $0x238] sm:$0xff]
    %v263 = vld [vmem:[#allocation5 + $0x240] sm:$0xff]
    %v264 = vld [vmem:[#allocation5 + $0x248] sm:$0xff]
    %v265 = vld [vmem:[#allocation5 + $0x250] sm:$0xff]
    %v266 = vld [vmem:[#allocation5 + $0x258] sm:$0xff]
    %v267 = vld [vmem:[#allocation5 + $0x260] sm:$0xff]
    %v268 = vld [vmem:[#allocation5 + $0x268] sm:$0xff]
    %v269 = vld [vmem:[#allocation5 + $0x270] sm:$0xff]
    %v270 = vld [vmem:[#allocation5 + $0x278] sm:$0xff]
    %v271 = vld [vmem:[#allocation5 + $0x280] sm:$0xff]
    %v272 = vld [vmem:[#allocation5 + $0x288] sm:$0xff]
    %v273 = vld [vmem:[#allocation5 + $0x290] sm:$0xff]
    %v274 = vld [vmem:[#allocation5 + $0x298] sm:$0xff]
    %v275 = vld [vmem:[#allocation5 + $0x2a0] sm:$0xff]
    %v276 = vld [vmem:[#allocation5 + $0x2a8] sm:$0xff]
    %v277 = vld [vmem:[#allocation5 + $0x2b0] sm:$0xff]
    %v278 = vld [vmem:[#allocation5 + $0x2b8] sm:$0xff]
    %v279 = vld [vmem:[#allocation5 + $0x2c0] sm:$0xff]
    %v280 = vld [vmem:[#allocation5 + $0x2c8] sm:$0xff]
    %v281 = vld [vmem:[#allocation5 + $0x2d0] sm:$0xff]
    %v282 = vld [vmem:[#allocation5 + $0x2d8] sm:$0xff]
    %v283 = vld [vmem:[#allocation5 + $0x2e0] sm:$0xff]
    %v284 = vld [vmem:[#allocation5 + $0x2e8] sm:$0xff]
    %v285 = vld [vmem:[#allocation5 + $0x2f0] sm:$0xff]
    %v286 = vld [vmem:[#allocation5 + $0x2f8] sm:$0xff]
    %v287 = vld [vmem:[#allocation5 + $0x300] sm:$0xff]
    %v288 = vld [vmem:[#allocation5 + $0x308] sm:$0xff]
    %v289 = vld [vmem:[#allocation5 + $0x310] sm:$0xff]
    %v290 = vld [vmem:[#allocation5 + $0x318] sm:$0xff]
    %v291 = vld [vmem:[#allocation5 + $0x320] sm:$0xff]
    %v292 = vld [vmem:[#allocation5 + $0x328] sm:$0xff]
    %v293 = vld [vmem:[#allocation5 + $0x330] sm:$0xff]
    %v294 = vld [vmem:[#allocation5 + $0x338] sm:$0xff]
    %v295 = vld [vmem:[#allocation5 + $0x340] sm:$0xff]
    %v296 = vld [vmem:[#allocation5 + $0x348] sm:$0xff]
    %v297 = vld [vmem:[#allocation5 + $0x350] sm:$0xff]
    %v298 = vld [vmem:[#allocation5 + $0x358] sm:$0xff]
    %v299 = vld [vmem:[#allocation5 + $0x360] sm:$0xff]
    %v300 = vld [vmem:[#allocation5 + $0x368] sm:$0xff]
    %v301 = vld [vmem:[#allocation5 + $0x370] sm:$0xff]
    %v302 = vld [vmem:[#allocation5 + $0x378] sm:$0xff]
    %v303 = vld [vmem:[#allocation5 + $0x380] sm:$0xff]
    %v304 = vld [vmem:[#allocation5 + $0x388] sm:$0xff]
    %v305 = vld [vmem:[#allocation5 + $0x390] sm:$0xff]
    %v306 = vld [vmem:[#allocation5 + $0x398] sm:$0xff]
    %v307 = vld [vmem:[#allocation5 + $0x3a0] sm:$0xff]
    %v308 = vld [vmem:[#allocation5 + $0x3a8] sm:$0xff]
    %v309 = vld [vmem:[#allocation5 + $0x3b0] sm:$0xff]
    %v310 = vld [vmem:[#allocation5 + $0x3b8] sm:$0xff]
    %v311 = vld [vmem:[#allocation5 + $0x3c0] sm:$0xff]
    %v312 = vld [vmem:[#allocation5 + $0x3c8] sm:$0xff]
    %v313 = vld [vmem:[#allocation5 + $0x3d0] sm:$0xff]
    %v314 = vld [vmem:[#allocation5 + $0x3d8] sm:$0xff]
    %v315 = vld [vmem:[#allocation5 + $0x3e0] sm:$0xff]
    %v316 = vld [vmem:[#allocation5 + $0x3e8] sm:$0xff]
    %v317 = vld [vmem:[#allocation5 + $0x3f0] sm:$0xff]
    %v318 = vld [vmem:[#allocation5 + $0x3f8] sm:$0xff]
    %v319 = vld [vmem:[#allocation5 + $0x400] sm:$0xff]
    %v320 = vld [vmem:[#allocation5 + $0x408] sm:$0xff]
    %v321 = vld [vmem:[#allocation5 + $0x410] sm:$0xff]
    %v322 = vld [vmem:[#allocation5 + $0x418] sm:$0xff]
    %v323 = vld [vmem:[#allocation5 + $0x420] sm:$0xff]
    %v324 = vld [vmem:[#allocation5 + $0x428] sm:$0xff]
    %v325 = vld [vmem:[#allocation5 + $0x430] sm:$0xff]
    %v326 = vld [vmem:[#allocation5 + $0x438] sm:$0xff]
    %v327 = vld [vmem:[#allocation5 + $0x440] sm:$0xff]
    %v328 = vld [vmem:[#allocation5 + $0x448] sm:$0xff]
    %v329 = vld [vmem:[#allocation5 + $0x450] sm:$0xff]
    %v330 = vld [vmem:[#allocation5 + $0x458] sm:$0xff]
    %v331 = vld [vmem:[#allocation5 + $0x460] sm:$0xff]
    %v332 = vld [vmem:[#allocation5 + $0x468] sm:$0xff]
    %v333 = vld [vmem:[#allocation5 + $0x470] sm:$0xff]
    %v334 = vld [vmem:[#allocation5 + $0x478] sm:$0xff]
    %v335 = vld [vmem:[#allocation5 + $0x480] sm:$0xff]
    %v336 = vld [vmem:[#allocation5 + $0x488] sm:$0xff]
    %v337 = vld [vmem:[#allocation5 + $0x490] sm:$0xff]
    %v338 = vld [vmem:[#allocation5 + $0x498] sm:$0xff]
    %v339 = vld [vmem:[#allocation5 + $0x4a0] sm:$0xff]
    %v340 = vld [vmem:[#allocation5 + $0x4a8] sm:$0xff]
    %v341 = vld [vmem:[#allocation5 + $0x4b0] sm:$0xff]
    %v342 = vld [vmem:[#allocation5 + $0x4b8] sm:$0xff]
    %v343 = vld [vmem:[#allocation5 + $0x4c0] sm:$0xff]
    %v344 = vld [vmem:[#allocation5 + $0x4c8] sm:$0xff]
    %v345 = vld [vmem:[#allocation5 + $0x4d0] sm:$0xff]
    %v346 = vld [vmem:[#allocation5 + $0x4d8] sm:$0xff]
    %v347 = vld [vmem:[#allocation5 + $0x4e0] sm:$0xff]
    %v348 = vld [vmem:[#allocation5 + $0x4e8] sm:$0xff]
    %v349 = vld [vmem:[#allocation5 + $0x4f0] sm:$0xff]
    %v350 = vld [vmem:[#allocation5 + $0x4f8] sm:$0xff]
    %v351 = vld [vmem:[#allocation5 + $0x500] sm:$0xff]
    %v352 = vld [vmem:[#allocation5 + $0x508] sm:$0xff]
    %v353 = vld [vmem:[#allocation5 + $0x510] sm:$0xff]
    %v354 = vld [vmem:[#allocation5 + $0x518] sm:$0xff]
    %v355 = vld [vmem:[#allocation5 + $0x520] sm:$0xff]
    %v356 = vld [vmem:[#allocation5 + $0x528] sm:$0xff]
    %v357 = vld [vmem:[#allocation5 + $0x530] sm:$0xff]
    %v358 = vld [vmem:[#allocation5 + $0x538] sm:$0xff]
    %v359 = vld [vmem:[#allocation5 + $0x540] sm:$0xff]
    %v360 = vld [vmem:[#allocation5 + $0x548] sm:$0xff]
    %v361 = vld [vmem:[#allocation5 + $0x550] sm:$0xff]
    %v362 = vld [vmem:[#allocation5 + $0x558] sm:$0xff]
    %v363 = vld [vmem:[#allocation5 + $0x560] sm:$0xff]
    %v364 = vld [vmem:[#allocation5 + $0x568] sm:$0xff]
    %v365 = vld [vmem:[#allocation5 + $0x570] sm:$0xff]
    %v366 = vld [vmem:[#allocation5 + $0x578] sm:$0xff]
    %v367 = vld [vmem:[#allocation5 + $0x580] sm:$0xff]
    %v368 = vld [vmem:[#allocation5 + $0x588] sm:$0xff]
    %v369 = vld [vmem:[#allocation5 + $0x590] sm:$0xff]
    %v370 = vld [vmem:[#allocation5 + $0x598] sm:$0xff]
    %v371 = vld [vmem:[#allocation5 + $0x5a0] sm:$0xff]
    %v372 = vld [vmem:[#allocation5 + $0x5a8] sm:$0xff]
    %v373 = vld [vmem:[#allocation5 + $0x5b0] sm:$0xff]
    %v374 = vld [vmem:[#allocation5 + $0x5b8] sm:$0xff]
    %v375 = vld [vmem:[#allocation5 + $0x5c0] sm:$0xff]
    %v376 = vld [vmem:[#allocation5 + $0x5c8] sm:$0xff]
    %v377 = vld [vmem:[#allocation5 + $0x5d0] sm:$0xff]
    %v378 = vld [vmem:[#allocation5 + $0x5d8] sm:$0xff]
    %v379 = vld [vmem:[#allocation5 + $0x5e0] sm:$0xff]
    %v380 = vld [vmem:[#allocation5 + $0x5e8] sm:$0xff]
    %v381 = vld [vmem:[#allocation5 + $0x5f0] sm:$0xff]
    %v382 = vld [vmem:[#allocation5 + $0x5f8] sm:$0xff]
    %v383 = vld [vmem:[#allocation7] sm:$0xf]
    %v385 = vperm.slane %v383, 0
    %v386 = vperm.slane %v383, 1
    %v387 = vperm.slane %v383, 2
    %v388 = vperm.slane %v383, 3
    %v585 = vunpack.c.l.b16 %v191
    %v586 = vunpack.c.h.b16 %v191
    %v587 = vunpack.c.l.b16 %v192
    %v588 = vunpack.c.h.b16 %v192
    %v589 = vunpack.c.l.b16 %v193
    %v590 = vunpack.c.h.b16 %v193
    %v591 = vunpack.c.l.b16 %v194
    %v592 = vunpack.c.h.b16 %v194
    %v593 = vunpack.c.l.b16 %v195
    %v594 = vunpack.c.h.b16 %v195
    %v595 = vunpack.c.l.b16 %v196
    %v596 = vunpack.c.h.b16 %v196
    %v597 = vunpack.c.l.b16 %v197
    %v598 = vunpack.c.h.b16 %v197
    %v599 = vunpack.c.l.b16 %v198
    %v600 = vunpack.c.h.b16 %v198
    %v601 = vunpack.c.l.b16 %v199
    %v602 = vunpack.c.h.b16 %v199
    %v603 = vunpack.c.l.b16 %v200
    %v604 = vunpack.c.h.b16 %v200
    %v605 = vunpack.c.l.b16 %v201
    %v606 = vunpack.c.h.b16 %v201
    %v607 = vunpack.c.l.b16 %v202
    %v608 = vunpack.c.h.b16 %v202
    %v609 = vunpack.c.l.b16 %v203
    %v610 = vunpack.c.h.b16 %v203
    %v611 = vunpack.c.l.b16 %v204
    %v612 = vunpack.c.h.b16 %v204
    %v613 = vunpack.c.l.b16 %v205
    %v614 = vunpack.c.h.b16 %v205
    %v615 = vunpack.c.l.b16 %v206
    %v616 = vunpack.c.h.b16 %v206
    %v617 = vunpack.c.l.b16 %v207
    %v618 = vunpack.c.h.b16 %v207
    %v619 = vunpack.c.l.b16 %v208
    %v620 = vunpack.c.h.b16 %v208
    %v621 = vunpack.c.l.b16 %v209
    %v622 = vunpack.c.h.b16 %v209
    %v623 = vunpack.c.l.b16 %v210
    %v624 = vunpack.c.h.b16 %v210
    %v625 = vunpack.c.l.b16 %v211
    %v626 = vunpack.c.h.b16 %v211
    %v627 = vunpack.c.l.b16 %v212
    %v628 = vunpack.c.h.b16 %v212
    %v629 = vunpack.c.l.b16 %v213
    %v630 = vunpack.c.h.b16 %v213
    %v631 = vunpack.c.l.b16 %v214
    %v632 = vunpack.c.h.b16 %v214
    %v633 = vunpack.c.l.b16 %v215
    %v634 = vunpack.c.h.b16 %v215
    %v635 = vunpack.c.l.b16 %v216
    %v636 = vunpack.c.h.b16 %v216
    %v637 = vunpack.c.l.b16 %v217
    %v638 = vunpack.c.h.b16 %v217
    %v639 = vunpack.c.l.b16 %v218
    %v640 = vunpack.c.h.b16 %v218
    %v641 = vunpack.c.l.b16 %v219
    %v642 = vunpack.c.h.b16 %v219
    %v643 = vunpack.c.l.b16 %v220
    %v644 = vunpack.c.h.b16 %v220
    %v645 = vunpack.c.l.b16 %v221
    %v646 = vunpack.c.h.b16 %v221
    %v647 = vunpack.c.l.b16 %v222
    %v648 = vunpack.c.h.b16 %v222
    %v649 = vunpack.c.l.b16 %v223
    %v650 = vunpack.c.h.b16 %v223
    %v651 = vunpack.c.l.b16 %v224
    %v652 = vunpack.c.h.b16 %v224
    %v653 = vunpack.c.l.b16 %v225
    %v654 = vunpack.c.h.b16 %v225
    %v655 = vunpack.c.l.b16 %v226
    %v656 = vunpack.c.h.b16 %v226
    %v657 = vunpack.c.l.b16 %v227
    %v658 = vunpack.c.h.b16 %v227
    %v659 = vunpack.c.l.b16 %v228
    %v660 = vunpack.c.h.b16 %v228
    %v661 = vunpack.c.l.b16 %v229
    %v662 = vunpack.c.h.b16 %v229
    %v663 = vunpack.c.l.b16 %v230
    %v664 = vunpack.c.h.b16 %v230
    %v665 = vunpack.c.l.b16 %v231
    %v666 = vunpack.c.h.b16 %v231
    %v667 = vunpack.c.l.b16 %v232
    %v668 = vunpack.c.h.b16 %v232
    %v669 = vunpack.c.l.b16 %v233
    %v670 = vunpack.c.h.b16 %v233
    %v671 = vunpack.c.l.b16 %v234
    %v672 = vunpack.c.h.b16 %v234
    %v673 = vunpack.c.l.b16 %v235
    %v674 = vunpack.c.h.b16 %v235
    %v675 = vunpack.c.l.b16 %v236
    %v676 = vunpack.c.h.b16 %v236
    %v677 = vunpack.c.l.b16 %v237
    %v678 = vunpack.c.h.b16 %v237
    %v679 = vunpack.c.l.b16 %v238
    %v680 = vunpack.c.h.b16 %v238
    %v681 = vunpack.c.l.b16 %v239
    %v682 = vunpack.c.h.b16 %v239
    %v683 = vunpack.c.l.b16 %v240
    %v684 = vunpack.c.h.b16 %v240
    %v685 = vunpack.c.l.b16 %v241
    %v686 = vunpack.c.h.b16 %v241
    %v687 = vunpack.c.l.b16 %v242
    %v688 = vunpack.c.h.b16 %v242
    %v689 = vunpack.c.l.b16 %v243
    %v690 = vunpack.c.h.b16 %v243
    %v691 = vunpack.c.l.b16 %v244
    %v692 = vunpack.c.h.b16 %v244
    %v693 = vunpack.c.l.b16 %v245
    %v694 = vunpack.c.h.b16 %v245
    %v695 = vunpack.c.l.b16 %v246
    %v696 = vunpack.c.h.b16 %v246
    %v697 = vunpack.c.l.b16 %v247
    %v698 = vunpack.c.h.b16 %v247
    %v699 = vunpack.c.l.b16 %v248
    %v700 = vunpack.c.h.b16 %v248
    %v701 = vunpack.c.l.b16 %v249
    %v702 = vunpack.c.h.b16 %v249
    %v703 = vunpack.c.l.b16 %v250
    %v704 = vunpack.c.h.b16 %v250
    %v705 = vunpack.c.l.b16 %v251
    %v706 = vunpack.c.h.b16 %v251
    %v707 = vunpack.c.l.b16 %v252
    %v708 = vunpack.c.h.b16 %v252
    %v709 = vunpack.c.l.b16 %v253
    %v710 = vunpack.c.h.b16 %v253
    %v711 = vunpack.c.l.b16 %v254
    %v712 = vunpack.c.h.b16 %v254
    %v713 = vunpack.c.l.b16 %v255
    %v714 = vunpack.c.h.b16 %v255
    %v715 = vunpack.c.l.b16 %v256
    %v716 = vunpack.c.h.b16 %v256
    %v717 = vunpack.c.l.b16 %v257
    %v718 = vunpack.c.h.b16 %v257
    %v719 = vunpack.c.l.b16 %v258
    %v720 = vunpack.c.h.b16 %v258
    %v721 = vunpack.c.l.b16 %v259
    %v722 = vunpack.c.h.b16 %v259
    %v723 = vunpack.c.l.b16 %v260
    %v724 = vunpack.c.h.b16 %v260
    %v725 = vunpack.c.l.b16 %v261
    %v726 = vunpack.c.h.b16 %v261
    %v727 = vunpack.c.l.b16 %v262
    %v728 = vunpack.c.h.b16 %v262
    %v729 = vunpack.c.l.b16 %v263
    %v730 = vunpack.c.h.b16 %v263
    %v731 = vunpack.c.l.b16 %v264
    %v732 = vunpack.c.h.b16 %v264
    %v733 = vunpack.c.l.b16 %v265
    %v734 = vunpack.c.h.b16 %v265
    %v735 = vunpack.c.l.b16 %v266
    %v736 = vunpack.c.h.b16 %v266
    %v737 = vunpack.c.l.b16 %v267
    %v738 = vunpack.c.h.b16 %v267
    %v739 = vunpack.c.l.b16 %v268
    %v740 = vunpack.c.h.b16 %v268
    %v741 = vunpack.c.l.b16 %v269
    %v742 = vunpack.c.h.b16 %v269
    %v743 = vunpack.c.l.b16 %v270
    %v744 = vunpack.c.h.b16 %v270
    %v745 = vunpack.c.l.b16 %v271
    %v746 = vunpack.c.h.b16 %v271
    %v747 = vunpack.c.l.b16 %v272
    %v748 = vunpack.c.h.b16 %v272
    %v749 = vunpack.c.l.b16 %v273
    %v750 = vunpack.c.h.b16 %v273
    %v751 = vunpack.c.l.b16 %v274
    %v752 = vunpack.c.h.b16 %v274
    %v753 = vunpack.c.l.b16 %v275
    %v754 = vunpack.c.h.b16 %v275
    %v755 = vunpack.c.l.b16 %v276
    %v756 = vunpack.c.h.b16 %v276
    %v757 = vunpack.c.l.b16 %v277
    %v758 = vunpack.c.h.b16 %v277
    %v759 = vunpack.c.l.b16 %v278
    %v760 = vunpack.c.h.b16 %v278
    %v761 = vunpack.c.l.b16 %v279
    %v762 = vunpack.c.h.b16 %v279
    %v763 = vunpack.c.l.b16 %v280
    %v764 = vunpack.c.h.b16 %v280
    %v765 = vunpack.c.l.b16 %v281
    %v766 = vunpack.c.h.b16 %v281
    %v767 = vunpack.c.l.b16 %v282
    %v768 = vunpack.c.h.b16 %v282
    %v769 = vunpack.c.l.b16 %v283
    %v770 = vunpack.c.h.b16 %v283
    %v771 = vunpack.c.l.b16 %v284
    %v772 = vunpack.c.h.b16 %v284
    %v773 = vunpack.c.l.b16 %v285
    %v774 = vunpack.c.h.b16 %v285
    %v775 = vunpack.c.l.b16 %v286
    %v776 = vunpack.c.h.b16 %v286
    %v777 = vunpack.c.l.b16 %v287
    %v778 = vunpack.c.h.b16 %v287
    %v779 = vunpack.c.l.b16 %v288
    %v780 = vunpack.c.h.b16 %v288
    %v781 = vunpack.c.l.b16 %v289
    %v782 = vunpack.c.h.b16 %v289
    %v783 = vunpack.c.l.b16 %v290
    %v784 = vunpack.c.h.b16 %v290
    %v785 = vunpack.c.l.b16 %v291
    %v786 = vunpack.c.h.b16 %v291
    %v787 = vunpack.c.l.b16 %v292
    %v788 = vunpack.c.h.b16 %v292
    %v789 = vunpack.c.l.b16 %v293
    %v790 = vunpack.c.h.b16 %v293
    %v791 = vunpack.c.l.b16 %v294
    %v792 = vunpack.c.h.b16 %v294
    %v793 = vunpack.c.l.b16 %v295
    %v794 = vunpack.c.h.b16 %v295
    %v795 = vunpack.c.l.b16 %v296
    %v796 = vunpack.c.h.b16 %v296
    %v797 = vunpack.c.l.b16 %v297
    %v798 = vunpack.c.h.b16 %v297
    %v799 = vunpack.c.l.b16 %v298
    %v800 = vunpack.c.h.b16 %v298
    %v801 = vunpack.c.l.b16 %v299
    %v802 = vunpack.c.h.b16 %v299
    %v803 = vunpack.c.l.b16 %v300
    %v804 = vunpack.c.h.b16 %v300
    %v805 = vunpack.c.l.b16 %v301
    %v806 = vunpack.c.h.b16 %v301
    %v807 = vunpack.c.l.b16 %v302
    %v808 = vunpack.c.h.b16 %v302
    %v809 = vunpack.c.l.b16 %v303
    %v810 = vunpack.c.h.b16 %v303
    %v811 = vunpack.c.l.b16 %v304
    %v812 = vunpack.c.h.b16 %v304
    %v813 = vunpack.c.l.b16 %v305
    %v814 = vunpack.c.h.b16 %v305
    %v815 = vunpack.c.l.b16 %v306
    %v816 = vunpack.c.h.b16 %v306
    %v817 = vunpack.c.l.b16 %v307
    %v818 = vunpack.c.h.b16 %v307
    %v819 = vunpack.c.l.b16 %v308
    %v820 = vunpack.c.h.b16 %v308
    %v821 = vunpack.c.l.b16 %v309
    %v822 = vunpack.c.h.b16 %v309
    %v823 = vunpack.c.l.b16 %v310
    %v824 = vunpack.c.h.b16 %v310
    %v825 = vunpack.c.l.b16 %v311
    %v826 = vunpack.c.h.b16 %v311
    %v827 = vunpack.c.l.b16 %v312
    %v828 = vunpack.c.h.b16 %v312
    %v829 = vunpack.c.l.b16 %v313
    %v830 = vunpack.c.h.b16 %v313
    %v831 = vunpack.c.l.b16 %v314
    %v832 = vunpack.c.h.b16 %v314
    %v833 = vunpack.c.l.b16 %v315
    %v834 = vunpack.c.h.b16 %v315
    %v835 = vunpack.c.l.b16 %v316
    %v836 = vunpack.c.h.b16 %v316
    %v837 = vunpack.c.l.b16 %v317
    %v838 = vunpack.c.h.b16 %v317
    %v839 = vunpack.c.l.b16 %v318
    %v840 = vunpack.c.h.b16 %v318
    %v841 = vunpack.c.l.b16 %v319
    %v842 = vunpack.c.h.b16 %v319
    %v843 = vunpack.c.l.b16 %v320
    %v844 = vunpack.c.h.b16 %v320
    %v845 = vunpack.c.l.b16 %v321
    %v846 = vunpack.c.h.b16 %v321
    %v847 = vunpack.c.l.b16 %v322
    %v848 = vunpack.c.h.b16 %v322
    %v849 = vunpack.c.l.b16 %v323
    %v850 = vunpack.c.h.b16 %v323
    %v851 = vunpack.c.l.b16 %v324
    %v852 = vunpack.c.h.b16 %v324
    %v853 = vunpack.c.l.b16 %v325
    %v854 = vunpack.c.h.b16 %v325
    %v855 = vunpack.c.l.b16 %v326
    %v856 = vunpack.c.h.b16 %v326
    %v857 = vunpack.c.l.b16 %v327
    %v858 = vunpack.c.h.b16 %v327
    %v859 = vunpack.c.l.b16 %v328
    %v860 = vunpack.c.h.b16 %v328
    %v861 = vunpack.c.l.b16 %v329
    %v862 = vunpack.c.h.b16 %v329
    %v863 = vunpack.c.l.b16 %v330
    %v864 = vunpack.c.h.b16 %v330
    %v865 = vunpack.c.l.b16 %v331
    %v866 = vunpack.c.h.b16 %v331
    %v867 = vunpack.c.l.b16 %v332
    %v868 = vunpack.c.h.b16 %v332
    %v869 = vunpack.c.l.b16 %v333
    %v870 = vunpack.c.h.b16 %v333
    %v871 = vunpack.c.l.b16 %v334
    %v872 = vunpack.c.h.b16 %v334
    %v873 = vunpack.c.l.b16 %v335
    %v874 = vunpack.c.h.b16 %v335
    %v875 = vunpack.c.l.b16 %v336
    %v876 = vunpack.c.h.b16 %v336
    %v877 = vunpack.c.l.b16 %v337
    %v878 = vunpack.c.h.b16 %v337
    %v879 = vunpack.c.l.b16 %v338
    %v880 = vunpack.c.h.b16 %v338
    %v881 = vunpack.c.l.b16 %v339
    %v882 = vunpack.c.h.b16 %v339
    %v883 = vunpack.c.l.b16 %v340
    %v884 = vunpack.c.h.b16 %v340
    %v885 = vunpack.c.l.b16 %v341
    %v886 = vunpack.c.h.b16 %v341
    %v887 = vunpack.c.l.b16 %v342
    %v888 = vunpack.c.h.b16 %v342
    %v889 = vunpack.c.l.b16 %v343
    %v890 = vunpack.c.h.b16 %v343
    %v891 = vunpack.c.l.b16 %v344
    %v892 = vunpack.c.h.b16 %v344
    %v893 = vunpack.c.l.b16 %v345
    %v894 = vunpack.c.h.b16 %v345
    %v895 = vunpack.c.l.b16 %v346
    %v896 = vunpack.c.h.b16 %v346
    %v897 = vunpack.c.l.b16 %v347
    %v898 = vunpack.c.h.b16 %v347
    %v899 = vunpack.c.l.b16 %v348
    %v900 = vunpack.c.h.b16 %v348
    %v901 = vunpack.c.l.b16 %v349
    %v902 = vunpack.c.h.b16 %v349
    %v903 = vunpack.c.l.b16 %v350
    %v904 = vunpack.c.h.b16 %v350
    %v905 = vunpack.c.l.b16 %v351
    %v906 = vunpack.c.h.b16 %v351
    %v907 = vunpack.c.l.b16 %v352
    %v908 = vunpack.c.h.b16 %v352
    %v909 = vunpack.c.l.b16 %v353
    %v910 = vunpack.c.h.b16 %v353
    %v911 = vunpack.c.l.b16 %v354
    %v912 = vunpack.c.h.b16 %v354
    %v913 = vunpack.c.l.b16 %v355
    %v914 = vunpack.c.h.b16 %v355
    %v915 = vunpack.c.l.b16 %v356
    %v916 = vunpack.c.h.b16 %v356
    %v917 = vunpack.c.l.b16 %v357
    %v918 = vunpack.c.h.b16 %v357
    %v919 = vunpack.c.l.b16 %v358
    %v920 = vunpack.c.h.b16 %v358
    %v921 = vunpack.c.l.b16 %v359
    %v922 = vunpack.c.h.b16 %v359
    %v923 = vunpack.c.l.b16 %v360
    %v924 = vunpack.c.h.b16 %v360
    %v925 = vunpack.c.l.b16 %v361
    %v926 = vunpack.c.h.b16 %v361
    %v927 = vunpack.c.l.b16 %v362
    %v928 = vunpack.c.h.b16 %v362
    %v929 = vunpack.c.l.b16 %v363
    %v930 = vunpack.c.h.b16 %v363
    %v931 = vunpack.c.l.b16 %v364
    %v932 = vunpack.c.h.b16 %v364
    %v933 = vunpack.c.l.b16 %v365
    %v934 = vunpack.c.h.b16 %v365
    %v935 = vunpack.c.l.b16 %v366
    %v936 = vunpack.c.h.b16 %v366
    %v937 = vunpack.c.l.b16 %v367
    %v938 = vunpack.c.h.b16 %v367
    %v939 = vunpack.c.l.b16 %v368
    %v940 = vunpack.c.h.b16 %v368
    %v941 = vunpack.c.l.b16 %v369
    %v942 = vunpack.c.h.b16 %v369
    %v943 = vunpack.c.l.b16 %v370
    %v944 = vunpack.c.h.b16 %v370
    %v945 = vunpack.c.l.b16 %v371
    %v946 = vunpack.c.h.b16 %v371
    %v947 = vunpack.c.l.b16 %v372
    %v948 = vunpack.c.h.b16 %v372
    %v949 = vunpack.c.l.b16 %v373
    %v950 = vunpack.c.h.b16 %v373
    %v951 = vunpack.c.l.b16 %v374
    %v952 = vunpack.c.h.b16 %v374
    %v953 = vunpack.c.l.b16 %v375
    %v954 = vunpack.c.h.b16 %v375
    %v955 = vunpack.c.l.b16 %v376
    %v956 = vunpack.c.h.b16 %v376
    %v957 = vunpack.c.l.b16 %v377
    %v958 = vunpack.c.h.b16 %v377
    %v959 = vunpack.c.l.b16 %v378
    %v960 = vunpack.c.h.b16 %v378
    %v961 = vunpack.c.l.b16 %v379
    %v962 = vunpack.c.h.b16 %v379
    %v963 = vunpack.c.l.b16 %v380
    %v964 = vunpack.c.h.b16 %v380
    %v965 = vunpack.c.l.b16 %v381
    %v966 = vunpack.c.h.b16 %v381
    %v967 = vunpack.c.l.b16 %v382
    %v968 = vunpack.c.h.b16 %v382
    %v969 = vpack.c.b16 %v589, %v585
    %v970 = vpack.c.b16 %v590, %v586
    %v971 = vpack.c.b16 %v591, %v587
    %v972 = vpack.c.b16 %v592, %v588
    %v973 = vpack.c.b16 %v597, %v593
    %v974 = vpack.c.b16 %v598, %v594
    %v975 = vpack.c.b16 %v599, %v595
    %v976 = vpack.c.b16 %v600, %v596
    %v977 = vpack.c.b16 %v605, %v601
    %v978 = vpack.c.b16 %v606, %v602
    %v979 = vpack.c.b16 %v607, %v603
    %v980 = vpack.c.b16 %v608, %v604
    %v981 = vpack.c.b16 %v613, %v609
    %v982 = vpack.c.b16 %v614, %v610
    %v983 = vpack.c.b16 %v615, %v611
    %v984 = vpack.c.b16 %v616, %v612
    %v985 = vpack.c.b16 %v621, %v617
    %v986 = vpack.c.b16 %v622, %v618
    %v987 = vpack.c.b16 %v623, %v619
    %v988 = vpack.c.b16 %v624, %v620
    %v989 = vpack.c.b16 %v629, %v625
    %v990 = vpack.c.b16 %v630, %v626
    %v991 = vpack.c.b16 %v631, %v627
    %v992 = vpack.c.b16 %v632, %v628
    %v993 = vpack.c.b16 %v637, %v633
    %v994 = vpack.c.b16 %v638, %v634
    %v995 = vpack.c.b16 %v639, %v635
    %v996 = vpack.c.b16 %v640, %v636
    %v997 = vpack.c.b16 %v645, %v641
    %v998 = vpack.c.b16 %v646, %v642
    %v999 = vpack.c.b16 %v647, %v643
    %v1000 = vpack.c.b16 %v648, %v644
    %v1001 = vpack.c.b16 %v653, %v649
    %v1002 = vpack.c.b16 %v654, %v650
    %v1003 = vpack.c.b16 %v655, %v651
    %v1004 = vpack.c.b16 %v656, %v652
    %v1005 = vpack.c.b16 %v661, %v657
    %v1006 = vpack.c.b16 %v662, %v658
    %v1007 = vpack.c.b16 %v663, %v659
    %v1008 = vpack.c.b16 %v664, %v660
    %v1009 = vpack.c.b16 %v669, %v665
    %v1010 = vpack.c.b16 %v670, %v666
    %v1011 = vpack.c.b16 %v671, %v667
    %v1012 = vpack.c.b16 %v672, %v668
    %v1013 = vpack.c.b16 %v677, %v673
    %v1014 = vpack.c.b16 %v678, %v674
    %v1015 = vpack.c.b16 %v679, %v675
    %v1016 = vpack.c.b16 %v680, %v676
    %v1017 = vpack.c.b16 %v685, %v681
    %v1018 = vpack.c.b16 %v686, %v682
    %v1019 = vpack.c.b16 %v687, %v683
    %v1020 = vpack.c.b16 %v688, %v684
    %v1021 = vpack.c.b16 %v693, %v689
    %v1022 = vpack.c.b16 %v694, %v690
    %v1023 = vpack.c.b16 %v695, %v691
    %v1024 = vpack.c.b16 %v696, %v692
    %v1025 = vpack.c.b16 %v701, %v697
    %v1026 = vpack.c.b16 %v702, %v698
    %v1027 = vpack.c.b16 %v703, %v699
    %v1028 = vpack.c.b16 %v704, %v700
    %v1029 = vpack.c.b16 %v709, %v705
    %v1030 = vpack.c.b16 %v710, %v706
    %v1031 = vpack.c.b16 %v711, %v707
    %v1032 = vpack.c.b16 %v712, %v708
    %v1033 = vpack.c.b16 %v717, %v713
    %v1034 = vpack.c.b16 %v718, %v714
    %v1035 = vpack.c.b16 %v719, %v715
    %v1036 = vpack.c.b16 %v720, %v716
    %v1037 = vpack.c.b16 %v725, %v721
    %v1038 = vpack.c.b16 %v726, %v722
    %v1039 = vpack.c.b16 %v727, %v723
    %v1040 = vpack.c.b16 %v728, %v724
    %v1041 = vpack.c.b16 %v733, %v729
    %v1042 = vpack.c.b16 %v734, %v730
    %v1043 = vpack.c.b16 %v735, %v731
    %v1044 = vpack.c.b16 %v736, %v732
    %v1045 = vpack.c.b16 %v741, %v737
    %v1046 = vpack.c.b16 %v742, %v738
    %v1047 = vpack.c.b16 %v743, %v739
    %v1048 = vpack.c.b16 %v744, %v740
    %v1049 = vpack.c.b16 %v749, %v745
    %v1050 = vpack.c.b16 %v750, %v746
    %v1051 = vpack.c.b16 %v751, %v747
    %v1052 = vpack.c.b16 %v752, %v748
    %v1053 = vpack.c.b16 %v757, %v753
    %v1054 = vpack.c.b16 %v758, %v754
    %v1055 = vpack.c.b16 %v759, %v755
    %v1056 = vpack.c.b16 %v760, %v756
    %v1057 = vpack.c.b16 %v765, %v761
    %v1058 = vpack.c.b16 %v766, %v762
    %v1059 = vpack.c.b16 %v767, %v763
    %v1060 = vpack.c.b16 %v768, %v764
    %v1061 = vpack.c.b16 %v773, %v769
    %v1062 = vpack.c.b16 %v774, %v770
    %v1063 = vpack.c.b16 %v775, %v771
    %v1064 = vpack.c.b16 %v776, %v772
    %v1065 = vpack.c.b16 %v781, %v777
    %v1066 = vpack.c.b16 %v782, %v778
    %v1067 = vpack.c.b16 %v783, %v779
    %v1068 = vpack.c.b16 %v784, %v780
    %v1069 = vpack.c.b16 %v789, %v785
    %v1070 = vpack.c.b16 %v790, %v786
    %v1071 = vpack.c.b16 %v791, %v787
    %v1072 = vpack.c.b16 %v792, %v788
    %v1073 = vpack.c.b16 %v797, %v793
    %v1074 = vpack.c.b16 %v798, %v794
    %v1075 = vpack.c.b16 %v799, %v795
    %v1076 = vpack.c.b16 %v800, %v796
    %v1077 = vpack.c.b16 %v805, %v801
    %v1078 = vpack.c.b16 %v806, %v802
    %v1079 = vpack.c.b16 %v807, %v803
    %v1080 = vpack.c.b16 %v808, %v804
    %v1081 = vpack.c.b16 %v813, %v809
    %v1082 = vpack.c.b16 %v814, %v810
    %v1083 = vpack.c.b16 %v815, %v811
    %v1084 = vpack.c.b16 %v816, %v812
    %v1085 = vpack.c.b16 %v821, %v817
    %v1086 = vpack.c.b16 %v822, %v818
    %v1087 = vpack.c.b16 %v823, %v819
    %v1088 = vpack.c.b16 %v824, %v820
    %v1089 = vpack.c.b16 %v829, %v825
    %v1090 = vpack.c.b16 %v830, %v826
    %v1091 = vpack.c.b16 %v831, %v827
    %v1092 = vpack.c.b16 %v832, %v828
    %v1093 = vpack.c.b16 %v837, %v833
    %v1094 = vpack.c.b16 %v838, %v834
    %v1095 = vpack.c.b16 %v839, %v835
    %v1096 = vpack.c.b16 %v840, %v836
    %v1097 = vpack.c.b16 %v845, %v841
    %v1098 = vpack.c.b16 %v846, %v842
    %v1099 = vpack.c.b16 %v847, %v843
    %v1100 = vpack.c.b16 %v848, %v844
    %v1101 = vpack.c.b16 %v853, %v849
    %v1102 = vpack.c.b16 %v854, %v850
    %v1103 = vpack.c.b16 %v855, %v851
    %v1104 = vpack.c.b16 %v856, %v852
    %v1105 = vpack.c.b16 %v861, %v857
    %v1106 = vpack.c.b16 %v862, %v858
    %v1107 = vpack.c.b16 %v863, %v859
    %v1108 = vpack.c.b16 %v864, %v860
    %v1109 = vpack.c.b16 %v869, %v865
    %v1110 = vpack.c.b16 %v870, %v866
    %v1111 = vpack.c.b16 %v871, %v867
    %v1112 = vpack.c.b16 %v872, %v868
    %v1113 = vpack.c.b16 %v877, %v873
    %v1114 = vpack.c.b16 %v878, %v874
    %v1115 = vpack.c.b16 %v879, %v875
    %v1116 = vpack.c.b16 %v880, %v876
    %v1117 = vpack.c.b16 %v885, %v881
    %v1118 = vpack.c.b16 %v886, %v882
    %v1119 = vpack.c.b16 %v887, %v883
    %v1120 = vpack.c.b16 %v888, %v884
    %v1121 = vpack.c.b16 %v893, %v889
    %v1122 = vpack.c.b16 %v894, %v890
    %v1123 = vpack.c.b16 %v895, %v891
    %v1124 = vpack.c.b16 %v896, %v892
    %v1125 = vpack.c.b16 %v901, %v897
    %v1126 = vpack.c.b16 %v902, %v898
    %v1127 = vpack.c.b16 %v903, %v899
    %v1128 = vpack.c.b16 %v904, %v900
    %v1129 = vpack.c.b16 %v909, %v905
    %v1130 = vpack.c.b16 %v910, %v906
    %v1131 = vpack.c.b16 %v911, %v907
    %v1132 = vpack.c.b16 %v912, %v908
    %v1133 = vpack.c.b16 %v917, %v913
    %v1134 = vpack.c.b16 %v918, %v914
    %v1135 = vpack.c.b16 %v919, %v915
    %v1136 = vpack.c.b16 %v920, %v916
    %v1137 = vpack.c.b16 %v925, %v921
    %v1138 = vpack.c.b16 %v926, %v922
    %v1139 = vpack.c.b16 %v927, %v923
    %v1140 = vpack.c.b16 %v928, %v924
    %v1141 = vpack.c.b16 %v933, %v929
    %v1142 = vpack.c.b16 %v934, %v930
    %v1143 = vpack.c.b16 %v935, %v931
    %v1144 = vpack.c.b16 %v936, %v932
    %v1145 = vpack.c.b16 %v941, %v937
    %v1146 = vpack.c.b16 %v942, %v938
    %v1147 = vpack.c.b16 %v943, %v939
    %v1148 = vpack.c.b16 %v944, %v940
    %v1149 = vpack.c.b16 %v949, %v945
    %v1150 = vpack.c.b16 %v950, %v946
    %v1151 = vpack.c.b16 %v951, %v947
    %v1152 = vpack.c.b16 %v952, %v948
    %v1153 = vpack.c.b16 %v957, %v953
    %v1154 = vpack.c.b16 %v958, %v954
    %v1155 = vpack.c.b16 %v959, %v955
    %v1156 = vpack.c.b16 %v960, %v956
    %v1157 = vpack.c.b16 %v965, %v961
    %v1158 = vpack.c.b16 %v966, %v962
    %v1159 = vpack.c.b16 %v967, %v963
    %v1160 = vpack.c.b16 %v968, %v964
    %1353 = vmatpush.bf16.msra.mxu0 %v997
    %1354 = vmatpush.bf16.msra.mxu0 %v993
    %1355 = vmatpush.bf16.msra.mxu0 %v989
    %1356 = vmatpush.bf16.msra.mxu0 %v985
    %1357 = vmatpush.bf16.msra.mxu0 %v981
    %1358 = vmatpush.bf16.msra.mxu0 %v977
    %1359 = vmatpush.bf16.msra.mxu0 %v973
    %1360 = vmatpush.bf16.msra.mxu0 %v969
    %1361 = vmatmul.bf16.gmra.mxu0 %v185
    %v1362 = vpop.f32.mrf.mxu0
    %v1363 = vadd.f32 %v385, %v1362
    %v1364 = vpop.f32.mrf.mxu0
    %v1365 = vadd.f32 %v385, %v1364
    %1366 = vdwg.mxu0
    %1367 = vmatpush.bf16.msra.mxu0 %v1029
    %1368 = vmatpush.bf16.msra.mxu0 %v1025
    %1369 = vmatpush.bf16.msra.mxu0 %v1021
    %1370 = vmatpush.bf16.msra.mxu0 %v1017
    %1371 = vmatpush.bf16.msra.mxu0 %v1013
    %1372 = vmatpush.bf16.msra.mxu0 %v1009
    %1373 = vmatpush.bf16.msra.mxu0 %v1005
    %1374 = vmatpush.bf16.msra.mxu0 %v1001
    %1375 = vmatmul.bf16.gmra.mxu0 %v186
    %v1376 = vpop.f32.mrf.mxu0
    %v1377 = vadd.f32 %v1363, %v1376
    %v1378 = vpop.f32.mrf.mxu0
    %v1379 = vadd.f32 %v1365, %v1378
    %1380 = vdwg.mxu0
    %1381 = vmatpush.bf16.msra.mxu0 %v1061
    %1382 = vmatpush.bf16.msra.mxu0 %v1057
    %1383 = vmatpush.bf16.msra.mxu0 %v1053
    %1384 = vmatpush.bf16.msra.mxu0 %v1049
    %1385 = vmatpush.bf16.msra.mxu0 %v1045
    %1386 = vmatpush.bf16.msra.mxu0 %v1041
    %1387 = vmatpush.bf16.msra.mxu0 %v1037
    %1388 = vmatpush.bf16.msra.mxu0 %v1033
    %1389 = vmatmul.bf16.gmra.mxu0 %v187
    %v1390 = vpop.f32.mrf.mxu0
    %v1391 = vadd.f32 %v1377, %v1390
    %v1392 = vpop.f32.mrf.mxu0
    %v1393 = vadd.f32 %v1379, %v1392
    %1394 = vdwg.mxu0
    %1395 = vmatpush.bf16.msra.mxu0 %v1093
    %1396 = vmatpush.bf16.msra.mxu0 %v1089
    %1397 = vmatpush.bf16.msra.mxu0 %v1085
    %1398 = vmatpush.bf16.msra.mxu0 %v1081
    %1399 = vmatpush.bf16.msra.mxu0 %v1077
    %1400 = vmatpush.bf16.msra.mxu0 %v1073
    %1401 = vmatpush.bf16.msra.mxu0 %v1069
    %1402 = vmatpush.bf16.msra.mxu0 %v1065
    %1403 = vmatmul.bf16.gmra.mxu0 %v188
    %v1404 = vpop.f32.mrf.mxu0
    %v1405 = vadd.f32 %v1391, %v1404
    %v1406 = vpop.f32.mrf.mxu0
    %v1407 = vadd.f32 %v1393, %v1406
    %1408 = vdwg.mxu0
    %1409 = vmatpush.bf16.msra.mxu0 %v1125
    %1410 = vmatpush.bf16.msra.mxu0 %v1121
    %1411 = vmatpush.bf16.msra.mxu0 %v1117
    %1412 = vmatpush.bf16.msra.mxu0 %v1113
    %1413 = vmatpush.bf16.msra.mxu0 %v1109
    %1414 = vmatpush.bf16.msra.mxu0 %v1105
    %1415 = vmatpush.bf16.msra.mxu0 %v1101
    %1416 = vmatpush.bf16.msra.mxu0 %v1097
    %1417 = vmatmul.bf16.gmra.mxu0 %v189
    %v1418 = vpop.f32.mrf.mxu0
    %v1419 = vadd.f32 %v1405, %v1418
    %v1420 = vpop.f32.mrf.mxu0
    %v1421 = vadd.f32 %v1407, %v1420
    %1422 = vdwg.mxu0
    %1423 = vmatpush.bf16.msra.mxu0 %v1157
    %1424 = vmatpush.bf16.msra.mxu0 %v1153
    %1425 = vmatpush.bf16.msra.mxu0 %v1149
    %1426 = vmatpush.bf16.msra.mxu0 %v1145
    %1427 = vmatpush.bf16.msra.mxu0 %v1141
    %1428 = vmatpush.bf16.msra.mxu0 %v1137
    %1429 = vmatpush.bf16.msra.mxu0 %v1133
    %1430 = vmatpush.bf16.msra.mxu0 %v1129
    %1431 = vmatmul.bf16.gmra.mxu0 %v190
    %v1432 = vpop.f32.mrf.mxu0
    %v1433 = vadd.f32 %v1419, %v1432
    %v1434 = vpop.f32.mrf.mxu0
    %v1435 = vadd.f32 %v1421, %v1434
    %1436 = vdwg.mxu0
    %1437 = vmatpush.bf16.msra.mxu0 %v998
    %1438 = vmatpush.bf16.msra.mxu0 %v994
    %1439 = vmatpush.bf16.msra.mxu0 %v990
    %1440 = vmatpush.bf16.msra.mxu0 %v986
    %1441 = vmatpush.bf16.msra.mxu0 %v982
    %1442 = vmatpush.bf16.msra.mxu0 %v978
    %1443 = vmatpush.bf16.msra.mxu0 %v974
    %1444 = vmatpush.bf16.msra.mxu0 %v970
    %1445 = vmatmul.bf16.gmra.mxu0 %v185
    %v1446 = vpop.f32.mrf.mxu0
    %v1447 = vadd.f32 %v386, %v1446
    %v1448 = vpop.f32.mrf.mxu0
    %v1449 = vadd.f32 %v386, %v1448
    %1450 = vdwg.mxu0
    %1451 = vmatpush.bf16.msra.mxu0 %v1030
    %1452 = vmatpush.bf16.msra.mxu0 %v1026
    %1453 = vmatpush.bf16.msra.mxu0 %v1022
    %1454 = vmatpush.bf16.msra.mxu0 %v1018
    %1455 = vmatpush.bf16.msra.mxu0 %v1014
    %1456 = vmatpush.bf16.msra.mxu0 %v1010
    %1457 = vmatpush.bf16.msra.mxu0 %v1006
    %1458 = vmatpush.bf16.msra.mxu0 %v1002
    %1459 = vmatmul.bf16.gmra.mxu0 %v186
    %v1460 = vpop.f32.mrf.mxu0
    %v1461 = vadd.f32 %v1447, %v1460
    %v1462 = vpop.f32.mrf.mxu0
    %v1463 = vadd.f32 %v1449, %v1462
    %1464 = vdwg.mxu0
    %1465 = vmatpush.bf16.msra.mxu0 %v1062
    %1466 = vmatpush.bf16.msra.mxu0 %v1058
    %1467 = vmatpush.bf16.msra.mxu0 %v1054
    %1468 = vmatpush.bf16.msra.mxu0 %v1050
    %1469 = vmatpush.bf16.msra.mxu0 %v1046
    %1470 = vmatpush.bf16.msra.mxu0 %v1042
    %1471 = vmatpush.bf16.msra.mxu0 %v1038
    %1472 = vmatpush.bf16.msra.mxu0 %v1034
    %1473 = vmatmul.bf16.gmra.mxu0 %v187
    %v1474 = vpop.f32.mrf.mxu0
    %v1475 = vadd.f32 %v1461, %v1474
    %v1476 = vpop.f32.mrf.mxu0
    %v1477 = vadd.f32 %v1463, %v1476
    %1478 = vdwg.mxu0
    %1479 = vmatpush.bf16.msra.mxu0 %v1094
    %1480 = vmatpush.bf16.msra.mxu0 %v1090
    %1481 = vmatpush.bf16.msra.mxu0 %v1086
    %1482 = vmatpush.bf16.msra.mxu0 %v1082
    %1483 = vmatpush.bf16.msra.mxu0 %v1078
    %1484 = vmatpush.bf16.msra.mxu0 %v1074
    %1485 = vmatpush.bf16.msra.mxu0 %v1070
    %1486 = vmatpush.bf16.msra.mxu0 %v1066
    %1487 = vmatmul.bf16.gmra.mxu0 %v188
    %v1488 = vpop.f32.mrf.mxu0
    %v1489 = vadd.f32 %v1475, %v1488
    %v1490 = vpop.f32.mrf.mxu0
    %v1491 = vadd.f32 %v1477, %v1490
    %1492 = vdwg.mxu0
    %1493 = vmatpush.bf16.msra.mxu0 %v1126
    %1494 = vmatpush.bf16.msra.mxu0 %v1122
    %1495 = vmatpush.bf16.msra.mxu0 %v1118
    %1496 = vmatpush.bf16.msra.mxu0 %v1114
    %1497 = vmatpush.bf16.msra.mxu0 %v1110
    %1498 = vmatpush.bf16.msra.mxu0 %v1106
    %1499 = vmatpush.bf16.msra.mxu0 %v1102
    %1500 = vmatpush.bf16.msra.mxu0 %v1098
    %1501 = vmatmul.bf16.gmra.mxu0 %v189
    %v1502 = vpop.f32.mrf.mxu0
    %v1503 = vadd.f32 %v1489, %v1502
    %v1504 = vpop.f32.mrf.mxu0
    %v1505 = vadd.f32 %v1491, %v1504
    %1506 = vdwg.mxu0
    %1507 = vmatpush.bf16.msra.mxu0 %v1158
    %1508 = vmatpush.bf16.msra.mxu0 %v1154
    %1509 = vmatpush.bf16.msra.mxu0 %v1150
    %1510 = vmatpush.bf16.msra.mxu0 %v1146
    %1511 = vmatpush.bf16.msra.mxu0 %v1142
    %1512 = vmatpush.bf16.msra.mxu0 %v1138
    %1513 = vmatpush.bf16.msra.mxu0 %v1134
    %1514 = vmatpush.bf16.msra.mxu0 %v1130
    %1515 = vmatmul.bf16.gmra.mxu0 %v190
    %v1516 = vpop.f32.mrf.mxu0
    %v1517 = vadd.f32 %v1503, %v1516
    %v1518 = vpop.f32.mrf.mxu0
    %v1519 = vadd.f32 %v1505, %v1518
    %1520 = vdwg.mxu0
    %1521 = vmatpush.bf16.msra.mxu0 %v999
    %1522 = vmatpush.bf16.msra.mxu0 %v995
    %1523 = vmatpush.bf16.msra.mxu0 %v991
    %1524 = vmatpush.bf16.msra.mxu0 %v987
    %1525 = vmatpush.bf16.msra.mxu0 %v983
    %1526 = vmatpush.bf16.msra.mxu0 %v979
    %1527 = vmatpush.bf16.msra.mxu0 %v975
    %1528 = vmatpush.bf16.msra.mxu0 %v971
    %1529 = vmatmul.bf16.gmra.mxu0 %v185
    %v1530 = vpop.f32.mrf.mxu0
    %v1531 = vadd.f32 %v387, %v1530
    %v1532 = vpop.f32.mrf.mxu0
    %v1533 = vadd.f32 %v387, %v1532
    %1534 = vdwg.mxu0
    %1535 = vmatpush.bf16.msra.mxu0 %v1031
    %1536 = vmatpush.bf16.msra.mxu0 %v1027
    %1537 = vmatpush.bf16.msra.mxu0 %v1023
    %1538 = vmatpush.bf16.msra.mxu0 %v1019
    %1539 = vmatpush.bf16.msra.mxu0 %v1015
    %1540 = vmatpush.bf16.msra.mxu0 %v1011
    %1541 = vmatpush.bf16.msra.mxu0 %v1007
    %1542 = vmatpush.bf16.msra.mxu0 %v1003
    %1543 = vmatmul.bf16.gmra.mxu0 %v186
    %v1544 = vpop.f32.mrf.mxu0
    %v1545 = vadd.f32 %v1531, %v1544
    %v1546 = vpop.f32.mrf.mxu0
    %v1547 = vadd.f32 %v1533, %v1546
    %1548 = vdwg.mxu0
    %1549 = vmatpush.bf16.msra.mxu0 %v1063
    %1550 = vmatpush.bf16.msra.mxu0 %v1059
    %1551 = vmatpush.bf16.msra.mxu0 %v1055
    %1552 = vmatpush.bf16.msra.mxu0 %v1051
    %1553 = vmatpush.bf16.msra.mxu0 %v1047
    %1554 = vmatpush.bf16.msra.mxu0 %v1043
    %1555 = vmatpush.bf16.msra.mxu0 %v1039
    %1556 = vmatpush.bf16.msra.mxu0 %v1035
    %1557 = vmatmul.bf16.gmra.mxu0 %v187
    %v1558 = vpop.f32.mrf.mxu0
    %v1559 = vadd.f32 %v1545, %v1558
    %v1560 = vpop.f32.mrf.mxu0
    %v1561 = vadd.f32 %v1547, %v1560
    %1562 = vdwg.mxu0
    %1563 = vmatpush.bf16.msra.mxu0 %v1095
    %1564 = vmatpush.bf16.msra.mxu0 %v1091
    %1565 = vmatpush.bf16.msra.mxu0 %v1087
    %1566 = vmatpush.bf16.msra.mxu0 %v1083
    %1567 = vmatpush.bf16.msra.mxu0 %v1079
    %1568 = vmatpush.bf16.msra.mxu0 %v1075
    %1569 = vmatpush.bf16.msra.mxu0 %v1071
    %1570 = vmatpush.bf16.msra.mxu0 %v1067
    %1571 = vmatmul.bf16.gmra.mxu0 %v188
    %v1572 = vpop.f32.mrf.mxu0
    %v1573 = vadd.f32 %v1559, %v1572
    %v1574 = vpop.f32.mrf.mxu0
    %v1575 = vadd.f32 %v1561, %v1574
    %1576 = vdwg.mxu0
    %1577 = vmatpush.bf16.msra.mxu0 %v1127
    %1578 = vmatpush.bf16.msra.mxu0 %v1123
    %1579 = vmatpush.bf16.msra.mxu0 %v1119
    %1580 = vmatpush.bf16.msra.mxu0 %v1115
    %1581 = vmatpush.bf16.msra.mxu0 %v1111
    %1582 = vmatpush.bf16.msra.mxu0 %v1107
    %1583 = vmatpush.bf16.msra.mxu0 %v1103
    %1584 = vmatpush.bf16.msra.mxu0 %v1099
    %1585 = vmatmul.bf16.gmra.mxu0 %v189
    %v1586 = vpop.f32.mrf.mxu0
    %v1587 = vadd.f32 %v1573, %v1586
    %v1588 = vpop.f32.mrf.mxu0
    %v1589 = vadd.f32 %v1575, %v1588
    %1590 = vdwg.mxu0
    %1591 = vmatpush.bf16.msra.mxu0 %v1159
    %1592 = vmatpush.bf16.msra.mxu0 %v1155
    %1593 = vmatpush.bf16.msra.mxu0 %v1151
    %1594 = vmatpush.bf16.msra.mxu0 %v1147
    %1595 = vmatpush.bf16.msra.mxu0 %v1143
    %1596 = vmatpush.bf16.msra.mxu0 %v1139
    %1597 = vmatpush.bf16.msra.mxu0 %v1135
    %1598 = vmatpush.bf16.msra.mxu0 %v1131
    %1599 = vmatmul.bf16.gmra.mxu0 %v190
    %v1600 = vpop.f32.mrf.mxu0
    %v1601 = vadd.f32 %v1587, %v1600
    %v1602 = vpop.f32.mrf.mxu0
    %v1603 = vadd.f32 %v1589, %v1602
    %1604 = vdwg.mxu0
    %1605 = vmatpush.bf16.msra.mxu0 %v1000
    %1606 = vmatpush.bf16.msra.mxu0 %v996
    %1607 = vmatpush.bf16.msra.mxu0 %v992
    %1608 = vmatpush.bf16.msra.mxu0 %v988
    %1609 = vmatpush.bf16.msra.mxu0 %v984
    %1610 = vmatpush.bf16.msra.mxu0 %v980
    %1611 = vmatpush.bf16.msra.mxu0 %v976
    %1612 = vmatpush.bf16.msra.mxu0 %v972
    %1613 = vmatmul.bf16.gmra.mxu0 %v185
    %v1614 = vpop.f32.mrf.mxu0
    %v1615 = vadd.f32 %v388, %v1614
    %v1616 = vpop.f32.mrf.mxu0
    %v1617 = vadd.f32 %v388, %v1616
    %1618 = vdwg.mxu0
    %1619 = vmatpush.bf16.msra.mxu0 %v1032
    %1620 = vmatpush.bf16.msra.mxu0 %v1028
    %1621 = vmatpush.bf16.msra.mxu0 %v1024
    %1622 = vmatpush.bf16.msra.mxu0 %v1020
    %1623 = vmatpush.bf16.msra.mxu0 %v1016
    %1624 = vmatpush.bf16.msra.mxu0 %v1012
    %1625 = vmatpush.bf16.msra.mxu0 %v1008
    %1626 = vmatpush.bf16.msra.mxu0 %v1004
    %1627 = vmatmul.bf16.gmra.mxu0 %v186
    %v1628 = vpop.f32.mrf.mxu0
    %v1629 = vadd.f32 %v1615, %v1628
    %v1630 = vpop.f32.mrf.mxu0
    %v1631 = vadd.f32 %v1617, %v1630
    %1632 = vdwg.mxu0
    %1633 = vmatpush.bf16.msra.mxu0 %v1064
    %1634 = vmatpush.bf16.msra.mxu0 %v1060
    %1635 = vmatpush.bf16.msra.mxu0 %v1056
    %1636 = vmatpush.bf16.msra.mxu0 %v1052
    %1637 = vmatpush.bf16.msra.mxu0 %v1048
    %1638 = vmatpush.bf16.msra.mxu0 %v1044
    %1639 = vmatpush.bf16.msra.mxu0 %v1040
    %1640 = vmatpush.bf16.msra.mxu0 %v1036
    %1641 = vmatmul.bf16.gmra.mxu0 %v187
    %v1642 = vpop.f32.mrf.mxu0
    %v1643 = vadd.f32 %v1629, %v1642
    %v1644 = vpop.f32.mrf.mxu0
    %v1645 = vadd.f32 %v1631, %v1644
    %1646 = vdwg.mxu0
    %1647 = vmatpush.bf16.msra.mxu0 %v1096
    %1648 = vmatpush.bf16.msra.mxu0 %v1092
    %1649 = vmatpush.bf16.msra.mxu0 %v1088
    %1650 = vmatpush.bf16.msra.mxu0 %v1084
    %1651 = vmatpush.bf16.msra.mxu0 %v1080
    %1652 = vmatpush.bf16.msra.mxu0 %v1076
    %1653 = vmatpush.bf16.msra.mxu0 %v1072
    %1654 = vmatpush.bf16.msra.mxu0 %v1068
    %1655 = vmatmul.bf16.gmra.mxu0 %v188
    %v1656 = vpop.f32.mrf.mxu0
    %v1657 = vadd.f32 %v1643, %v1656
    %v1658 = vpop.f32.mrf.mxu0
    %v1659 = vadd.f32 %v1645, %v1658
    %1660 = vdwg.mxu0
    %1661 = vmatpush.bf16.msra.mxu0 %v1128
    %1662 = vmatpush.bf16.msra.mxu0 %v1124
    %1663 = vmatpush.bf16.msra.mxu0 %v1120
    %1664 = vmatpush.bf16.msra.mxu0 %v1116
    %1665 = vmatpush.bf16.msra.mxu0 %v1112
    %1666 = vmatpush.bf16.msra.mxu0 %v1108
    %1667 = vmatpush.bf16.msra.mxu0 %v1104
    %1668 = vmatpush.bf16.msra.mxu0 %v1100
    %1669 = vmatmul.bf16.gmra.mxu0 %v189
    %v1670 = vpop.f32.mrf.mxu0
    %v1671 = vadd.f32 %v1657, %v1670
    %v1672 = vpop.f32.mrf.mxu0
    %v1673 = vadd.f32 %v1659, %v1672
    %1674 = vdwg.mxu0
    %1675 = vmatpush.bf16.msra.mxu0 %v1160
    %1676 = vmatpush.bf16.msra.mxu0 %v1156
    %1677 = vmatpush.bf16.msra.mxu0 %v1152
    %1678 = vmatpush.bf16.msra.mxu0 %v1148
    %1679 = vmatpush.bf16.msra.mxu0 %v1144
    %1680 = vmatpush.bf16.msra.mxu0 %v1140
    %1681 = vmatpush.bf16.msra.mxu0 %v1136
    %1682 = vmatpush.bf16.msra.mxu0 %v1132
    %1683 = vmatmul.bf16.gmra.mxu0 %v190
    %v1684 = vpop.f32.mrf.mxu0
    %v1685 = vadd.f32 %v1671, %v1684
    %v1686 = vpop.f32.mrf.mxu0
    %v1687 = vadd.f32 %v1673, %v1686
    %1688 = vdwg.mxu0
    %v1689 = vmax.f32 %v1433, 0.0
    %v1690 = vmax.f32 %v1517, 0.0
    %v1691 = vmax.f32 %v1601, 0.0
    %v1692 = vmax.f32 %v1685, 0.0
    %v1693 = vmax.f32 %v1435, 0.0
    %v1694 = vmax.f32 %v1519, 0.0
    %v1695 = vmax.f32 %v1603, 0.0
    %v1696 = vmax.f32 %v1687, 0.0
    %v1697 = vpack.c.bf16 %v1693, %v1689
    %v1698 = vpack.c.bf16 %v1694, %v1690
    %v1699 = vpack.c.bf16 %v1695, %v1691
    %v1700 = vpack.c.bf16 %v1696, %v1692
    %v1701 = vld [vmem:[#allocation8] sm:$0xff]
    %v1702 = vld [vmem:[#allocation8 + $0x8] sm:$0xff]
    %v1703 = vld [vmem:[#allocation8 + $0x10] sm:$0xff]
    %v1704 = vld [vmem:[#allocation8 + $0x18] sm:$0xff]
    %v1705 = vld [vmem:[#allocation8 + $0x20] sm:$0xff]
    %v1706 = vld [vmem:[#allocation8 + $0x28] sm:$0xff]
    %v1707 = vld [vmem:[#allocation8 + $0x30] sm:$0xff]
    %v1708 = vld [vmem:[#allocation8 + $0x38] sm:$0xff]
    %v1709 = vld [vmem:[#allocation8 + $0x40] sm:$0xff]
    %v1710 = vld [vmem:[#allocation8 + $0x48] sm:$0xff]
    %v1711 = vld [vmem:[#allocation8 + $0x50] sm:$0xff]
    %v1712 = vld [vmem:[#allocation8 + $0x58] sm:$0xff]
    %v1713 = vld [vmem:[#allocation8 + $0x60] sm:$0xff]
    %v1714 = vld [vmem:[#allocation8 + $0x68] sm:$0xff]
    %v1715 = vld [vmem:[#allocation8 + $0x70] sm:$0xff]
    %v1716 = vld [vmem:[#allocation8 + $0x78] sm:$0xff]
    %v1717 = vld [vmem:[#allocation8 + $0x80] sm:$0xff]
    %v1718 = vld [vmem:[#allocation8 + $0x88] sm:$0xff]
    %v1719 = vld [vmem:[#allocation8 + $0x90] sm:$0xff]
    %v1720 = vld [vmem:[#allocation8 + $0x98] sm:$0xff]
    %v1721 = vld [vmem:[#allocation8 + $0xa0] sm:$0xff]
    %v1722 = vld [vmem:[#allocation8 + $0xa8] sm:$0xff]
    %v1723 = vld [vmem:[#allocation8 + $0xb0] sm:$0xff]
    %v1724 = vld [vmem:[#allocation8 + $0xb8] sm:$0xff]
    %v1725 = vld [vmem:[#allocation8 + $0xc0] sm:$0xff]
    %v1726 = vld [vmem:[#allocation8 + $0xc8] sm:$0xff]
    %v1727 = vld [vmem:[#allocation8 + $0xd0] sm:$0xff]
    %v1728 = vld [vmem:[#allocation8 + $0xd8] sm:$0xff]
    %v1729 = vld [vmem:[#allocation8 + $0xe0] sm:$0xff]
    %v1730 = vld [vmem:[#allocation8 + $0xe8] sm:$0xff]
    %v1731 = vld [vmem:[#allocation8 + $0xf0] sm:$0xff]
    %v1732 = vld [vmem:[#allocation8 + $0xf8] sm:$0xff]
    %v1733 = vld [vmem:[#allocation8 + $0x100] sm:$0xff]
    %v1734 = vld [vmem:[#allocation8 + $0x108] sm:$0xff]
    %v1735 = vld [vmem:[#allocation8 + $0x110] sm:$0xff]
    %v1736 = vld [vmem:[#allocation8 + $0x118] sm:$0xff]
    %v1737 = vld [vmem:[#allocation8 + $0x120] sm:$0xff]
    %v1738 = vld [vmem:[#allocation8 + $0x128] sm:$0xff]
    %v1739 = vld [vmem:[#allocation8 + $0x130] sm:$0xff]
    %v1740 = vld [vmem:[#allocation8 + $0x138] sm:$0xff]
    %v1741 = vld [vmem:[#allocation8 + $0x140] sm:$0xff]
    %v1742 = vld [vmem:[#allocation8 + $0x148] sm:$0xff]
    %v1743 = vld [vmem:[#allocation8 + $0x150] sm:$0xff]
    %v1744 = vld [vmem:[#allocation8 + $0x158] sm:$0xff]
    %v1745 = vld [vmem:[#allocation8 + $0x160] sm:$0xff]
    %v1746 = vld [vmem:[#allocation8 + $0x168] sm:$0xff]
    %v1747 = vld [vmem:[#allocation8 + $0x170] sm:$0xff]
    %v1748 = vld [vmem:[#allocation8 + $0x178] sm:$0xff]
    %v1749 = vld [vmem:[#allocation8 + $0x180] sm:$0xff]
    %v1750 = vld [vmem:[#allocation8 + $0x188] sm:$0xff]
    %v1751 = vld [vmem:[#allocation8 + $0x190] sm:$0xff]
    %v1752 = vld [vmem:[#allocation8 + $0x198] sm:$0xff]
    %v1753 = vld [vmem:[#allocation8 + $0x1a0] sm:$0xff]
    %v1754 = vld [vmem:[#allocation8 + $0x1a8] sm:$0xff]
    %v1755 = vld [vmem:[#allocation8 + $0x1b0] sm:$0xff]
    %v1756 = vld [vmem:[#allocation8 + $0x1b8] sm:$0xff]
    %v1757 = vld [vmem:[#allocation8 + $0x1c0] sm:$0xff]
    %v1758 = vld [vmem:[#allocation8 + $0x1c8] sm:$0xff]
    %v1759 = vld [vmem:[#allocation8 + $0x1d0] sm:$0xff]
    %v1760 = vld [vmem:[#allocation8 + $0x1d8] sm:$0xff]
    %v1761 = vld [vmem:[#allocation8 + $0x1e0] sm:$0xff]
    %v1762 = vld [vmem:[#allocation8 + $0x1e8] sm:$0xff]
    %v1763 = vld [vmem:[#allocation8 + $0x1f0] sm:$0xff]
    %v1764 = vld [vmem:[#allocation8 + $0x1f8] sm:$0xff]
    %v1765 = vld [vmem:[%s4] sm:$0x3]
    %v1767 = vperm.slane %v1765, 0
    %v1768 = vperm.slane %v1765, 1
    %v1835 = vunpack.c.l.b16 %v1701
    %v1836 = vunpack.c.h.b16 %v1701
    %v1837 = vunpack.c.l.b16 %v1702
    %v1838 = vunpack.c.h.b16 %v1702
    %v1839 = vunpack.c.l.b16 %v1703
    %v1840 = vunpack.c.h.b16 %v1703
    %v1841 = vunpack.c.l.b16 %v1704
    %v1842 = vunpack.c.h.b16 %v1704
    %v1843 = vunpack.c.l.b16 %v1705
    %v1844 = vunpack.c.h.b16 %v1705
    %v1845 = vunpack.c.l.b16 %v1706
    %v1846 = vunpack.c.h.b16 %v1706
    %v1847 = vunpack.c.l.b16 %v1707
    %v1848 = vunpack.c.h.b16 %v1707
    %v1849 = vunpack.c.l.b16 %v1708
    %v1850 = vunpack.c.h.b16 %v1708
    %v1851 = vunpack.c.l.b16 %v1709
    %v1852 = vunpack.c.h.b16 %v1709
    %v1853 = vunpack.c.l.b16 %v1710
    %v1854 = vunpack.c.h.b16 %v1710
    %v1855 = vunpack.c.l.b16 %v1711
    %v1856 = vunpack.c.h.b16 %v1711
    %v1857 = vunpack.c.l.b16 %v1712
    %v1858 = vunpack.c.h.b16 %v1712
    %v1859 = vunpack.c.l.b16 %v1713
    %v1860 = vunpack.c.h.b16 %v1713
    %v1861 = vunpack.c.l.b16 %v1714
    %v1862 = vunpack.c.h.b16 %v1714
    %v1863 = vunpack.c.l.b16 %v1715
    %v1864 = vunpack.c.h.b16 %v1715
    %v1865 = vunpack.c.l.b16 %v1716
    %v1866 = vunpack.c.h.b16 %v1716
    %v1867 = vunpack.c.l.b16 %v1717
    %v1868 = vunpack.c.h.b16 %v1717
    %v1869 = vunpack.c.l.b16 %v1718
    %v1870 = vunpack.c.h.b16 %v1718
    %v1871 = vunpack.c.l.b16 %v1719
    %v1872 = vunpack.c.h.b16 %v1719
    %v1873 = vunpack.c.l.b16 %v1720
    %v1874 = vunpack.c.h.b16 %v1720
    %v1875 = vunpack.c.l.b16 %v1721
    %v1876 = vunpack.c.h.b16 %v1721
    %v1877 = vunpack.c.l.b16 %v1722
    %v1878 = vunpack.c.h.b16 %v1722
    %v1879 = vunpack.c.l.b16 %v1723
    %v1880 = vunpack.c.h.b16 %v1723
    %v1881 = vunpack.c.l.b16 %v1724
    %v1882 = vunpack.c.h.b16 %v1724
    %v1883 = vunpack.c.l.b16 %v1725
    %v1884 = vunpack.c.h.b16 %v1725
    %v1885 = vunpack.c.l.b16 %v1726
    %v1886 = vunpack.c.h.b16 %v1726
    %v1887 = vunpack.c.l.b16 %v1727
    %v1888 = vunpack.c.h.b16 %v1727
    %v1889 = vunpack.c.l.b16 %v1728
    %v1890 = vunpack.c.h.b16 %v1728
    %v1891 = vunpack.c.l.b16 %v1729
    %v1892 = vunpack.c.h.b16 %v1729
    %v1893 = vunpack.c.l.b16 %v1730
    %v1894 = vunpack.c.h.b16 %v1730
    %v1895 = vunpack.c.l.b16 %v1731
    %v1896 = vunpack.c.h.b16 %v1731
    %v1897 = vunpack.c.l.b16 %v1732
    %v1898 = vunpack.c.h.b16 %v1732
    %v1899 = vunpack.c.l.b16 %v1733
    %v1900 = vunpack.c.h.b16 %v1733
    %v1901 = vunpack.c.l.b16 %v1734
    %v1902 = vunpack.c.h.b16 %v1734
    %v1903 = vunpack.c.l.b16 %v1735
    %v1904 = vunpack.c.h.b16 %v1735
    %v1905 = vunpack.c.l.b16 %v1736
    %v1906 = vunpack.c.h.b16 %v1736
    %v1907 = vunpack.c.l.b16 %v1737
    %v1908 = vunpack.c.h.b16 %v1737
    %v1909 = vunpack.c.l.b16 %v1738
    %v1910 = vunpack.c.h.b16 %v1738
    %v1911 = vunpack.c.l.b16 %v1739
    %v1912 = vunpack.c.h.b16 %v1739
    %v1913 = vunpack.c.l.b16 %v1740
    %v1914 = vunpack.c.h.b16 %v1740
    %v1915 = vunpack.c.l.b16 %v1741
    %v1916 = vunpack.c.h.b16 %v1741
    %v1917 = vunpack.c.l.b16 %v1742
    %v1918 = vunpack.c.h.b16 %v1742
    %v1919 = vunpack.c.l.b16 %v1743
    %v1920 = vunpack.c.h.b16 %v1743
    %v1921 = vunpack.c.l.b16 %v1744
    %v1922 = vunpack.c.h.b16 %v1744
    %v1923 = vunpack.c.l.b16 %v1745
    %v1924 = vunpack.c.h.b16 %v1745
    %v1925 = vunpack.c.l.b16 %v1746
    %v1926 = vunpack.c.h.b16 %v1746
    %v1927 = vunpack.c.l.b16 %v1747
    %v1928 = vunpack.c.h.b16 %v1747
    %v1929 = vunpack.c.l.b16 %v1748
    %v1930 = vunpack.c.h.b16 %v1748
    %v1931 = vunpack.c.l.b16 %v1749
    %v1932 = vunpack.c.h.b16 %v1749
    %v1933 = vunpack.c.l.b16 %v1750
    %v1934 = vunpack.c.h.b16 %v1750
    %v1935 = vunpack.c.l.b16 %v1751
    %v1936 = vunpack.c.h.b16 %v1751
    %v1937 = vunpack.c.l.b16 %v1752
    %v1938 = vunpack.c.h.b16 %v1752
    %v1939 = vunpack.c.l.b16 %v1753
    %v1940 = vunpack.c.h.b16 %v1753
    %v1941 = vunpack.c.l.b16 %v1754
    %v1942 = vunpack.c.h.b16 %v1754
    %v1943 = vunpack.c.l.b16 %v1755
    %v1944 = vunpack.c.h.b16 %v1755
    %v1945 = vunpack.c.l.b16 %v1756
    %v1946 = vunpack.c.h.b16 %v1756
    %v1947 = vunpack.c.l.b16 %v1757
    %v1948 = vunpack.c.h.b16 %v1757
    %v1949 = vunpack.c.l.b16 %v1758
    %v1950 = vunpack.c.h.b16 %v1758
    %v1951 = vunpack.c.l.b16 %v1759
    %v1952 = vunpack.c.h.b16 %v1759
    %v1953 = vunpack.c.l.b16 %v1760
    %v1954 = vunpack.c.h.b16 %v1760
    %v1955 = vunpack.c.l.b16 %v1761
    %v1956 = vunpack.c.h.b16 %v1761
    %v1957 = vunpack.c.l.b16 %v1762
    %v1958 = vunpack.c.h.b16 %v1762
    %v1959 = vunpack.c.l.b16 %v1763
    %v1960 = vunpack.c.h.b16 %v1763
    %v1961 = vunpack.c.l.b16 %v1764
    %v1962 = vunpack.c.h.b16 %v1764
    %v1963 = vpack.c.b16 %v1837, %v1835
    %v1964 = vpack.c.b16 %v1838, %v1836
    %v1965 = vpack.c.b16 %v1841, %v1839
    %v1966 = vpack.c.b16 %v1842, %v1840
    %v1967 = vpack.c.b16 %v1845, %v1843
    %v1968 = vpack.c.b16 %v1846, %v1844
    %v1969 = vpack.c.b16 %v1849, %v1847
    %v1970 = vpack.c.b16 %v1850, %v1848
    %v1971 = vpack.c.b16 %v1853, %v1851
    %v1972 = vpack.c.b16 %v1854, %v1852
    %v1973 = vpack.c.b16 %v1857, %v1855
    %v1974 = vpack.c.b16 %v1858, %v1856
    %v1975 = vpack.c.b16 %v1861, %v1859
    %v1976 = vpack.c.b16 %v1862, %v1860
    %v1977 = vpack.c.b16 %v1865, %v1863
    %v1978 = vpack.c.b16 %v1866, %v1864
    %v1979 = vpack.c.b16 %v1869, %v1867
    %v1980 = vpack.c.b16 %v1870, %v1868
    %v1981 = vpack.c.b16 %v1873, %v1871
    %v1982 = vpack.c.b16 %v1874, %v1872
    %v1983 = vpack.c.b16 %v1877, %v1875
    %v1984 = vpack.c.b16 %v1878, %v1876
    %v1985 = vpack.c.b16 %v1881, %v1879
    %v1986 = vpack.c.b16 %v1882, %v1880
    %v1987 = vpack.c.b16 %v1885, %v1883
    %v1988 = vpack.c.b16 %v1886, %v1884
    %v1989 = vpack.c.b16 %v1889, %v1887
    %v1990 = vpack.c.b16 %v1890, %v1888
    %v1991 = vpack.c.b16 %v1893, %v1891
    %v1992 = vpack.c.b16 %v1894, %v1892
    %v1993 = vpack.c.b16 %v1897, %v1895
    %v1994 = vpack.c.b16 %v1898, %v1896
    %v1995 = vpack.c.b16 %v1901, %v1899
    %v1996 = vpack.c.b16 %v1902, %v1900
    %v1997 = vpack.c.b16 %v1905, %v1903
    %v1998 = vpack.c.b16 %v1906, %v1904
    %v1999 = vpack.c.b16 %v1909, %v1907
    %v2000 = vpack.c.b16 %v1910, %v1908
    %v2001 = vpack.c.b16 %v1913, %v1911
    %v2002 = vpack.c.b16 %v1914, %v1912
    %v2003 = vpack.c.b16 %v1917, %v1915
    %v2004 = vpack.c.b16 %v1918, %v1916
    %v2005 = vpack.c.b16 %v1921, %v1919
    %v2006 = vpack.c.b16 %v1922, %v1920
    %v2007 = vpack.c.b16 %v1925, %v1923
    %v2008 = vpack.c.b16 %v1926, %v1924
    %v2009 = vpack.c.b16 %v1929, %v1927
    %v2010 = vpack.c.b16 %v1930, %v1928
    %v2011 = vpack.c.b16 %v1933, %v1931
    %v2012 = vpack.c.b16 %v1934, %v1932
    %v2013 = vpack.c.b16 %v1937, %v1935
    %v2014 = vpack.c.b16 %v1938, %v1936
    %v2015 = vpack.c.b16 %v1941, %v1939
    %v2016 = vpack.c.b16 %v1942, %v1940
    %v2017 = vpack.c.b16 %v1945, %v1943
    %v2018 = vpack.c.b16 %v1946, %v1944
    %v2019 = vpack.c.b16 %v1949, %v1947
    %v2020 = vpack.c.b16 %v1950, %v1948
    %v2021 = vpack.c.b16 %v1953, %v1951
    %v2022 = vpack.c.b16 %v1954, %v1952
    %v2023 = vpack.c.b16 %v1957, %v1955
    %v2024 = vpack.c.b16 %v1958, %v1956
    %v2025 = vpack.c.b16 %v1961, %v1959
    %v2026 = vpack.c.b16 %v1962, %v1960
    %2091 = vmatpush.bf16.msra.mxu0 %v1977
    %2092 = vmatpush.bf16.msra.mxu0 %v1975
    %2093 = vmatpush.bf16.msra.mxu0 %v1973
    %2094 = vmatpush.bf16.msra.mxu0 %v1971
    %2095 = vmatpush.bf16.msra.mxu0 %v1969
    %2096 = vmatpush.bf16.msra.mxu0 %v1967
    %2097 = vmatpush.bf16.msra.mxu0 %v1965
    %2098 = vmatpush.bf16.msra.mxu0 %v1963
    %2099 = vmatmul.bf16.gmra.mxu0 %v1697
    %v2100 = vpop.f32.mrf.mxu0
    %v2101 = vadd.f32 %v1767, %v2100
    %v2102 = vpop.f32.mrf.mxu0
    %v2103 = vadd.f32 %v1767, %v2102
    %2104 = vdwg.mxu0
    %2105 = vmatpush.bf16.msra.mxu0 %v1993
    %2106 = vmatpush.bf16.msra.mxu0 %v1991
    %2107 = vmatpush.bf16.msra.mxu0 %v1989
    %2108 = vmatpush.bf16.msra.mxu0 %v1987
    %2109 = vmatpush.bf16.msra.mxu0 %v1985
    %2110 = vmatpush.bf16.msra.mxu0 %v1983
    %2111 = vmatpush.bf16.msra.mxu0 %v1981
    %2112 = vmatpush.bf16.msra.mxu0 %v1979
    %2113 = vmatmul.bf16.gmra.mxu0 %v1698
    %v2114 = vpop.f32.mrf.mxu0
    %v2115 = vadd.f32 %v2101, %v2114
    %v2116 = vpop.f32.mrf.mxu0
    %v2117 = vadd.f32 %v2103, %v2116
    %2118 = vdwg.mxu0
    %2119 = vmatpush.bf16.msra.mxu0 %v2009
    %2120 = vmatpush.bf16.msra.mxu0 %v2007
    %2121 = vmatpush.bf16.msra.mxu0 %v2005
    %2122 = vmatpush.bf16.msra.mxu0 %v2003
    %2123 = vmatpush.bf16.msra.mxu0 %v2001
    %2124 = vmatpush.bf16.msra.mxu0 %v1999
    %2125 = vmatpush.bf16.msra.mxu0 %v1997
    %2126 = vmatpush.bf16.msra.mxu0 %v1995
    %2127 = vmatmul.bf16.gmra.mxu0 %v1699
    %v2128 = vpop.f32.mrf.mxu0
    %v2129 = vadd.f32 %v2115, %v2128
    %v2130 = vpop.f32.mrf.mxu0
    %v2131 = vadd.f32 %v2117, %v2130
    %2132 = vdwg.mxu0
    %2133 = vmatpush.bf16.msra.mxu0 %v2025
    %2134 = vmatpush.bf16.msra.mxu0 %v2023
    %2135 = vmatpush.bf16.msra.mxu0 %v2021
    %2136 = vmatpush.bf16.msra.mxu0 %v2019
    %2137 = vmatpush.bf16.msra.mxu0 %v2017
    %2138 = vmatpush.bf16.msra.mxu0 %v2015
    %2139 = vmatpush.bf16.msra.mxu0 %v2013
    %2140 = vmatpush.bf16.msra.mxu0 %v2011
    %2141 = vmatmul.bf16.gmra.mxu0 %v1700
    %v2142 = vpop.f32.mrf.mxu0
    %v2143 = vadd.f32 %v2129, %v2142
    %v2144 = vpop.f32.mrf.mxu0
    %v2145 = vadd.f32 %v2131, %v2144
    %2146 = vdwg.mxu0
    %2147 = vmatpush.bf16.msra.mxu0 %v1978
    %2148 = vmatpush.bf16.msra.mxu0 %v1976
    %2149 = vmatpush.bf16.msra.mxu0 %v1974
    %2150 = vmatpush.bf16.msra.mxu0 %v1972
    %2151 = vmatpush.bf16.msra.mxu0 %v1970
    %2152 = vmatpush.bf16.msra.mxu0 %v1968
    %2153 = vmatpush.bf16.msra.mxu0 %v1966
    %2154 = vmatpush.bf16.msra.mxu0 %v1964
    %2155 = vmatmul.bf16.gmra.mxu0 %v1697
    %v2156 = vpop.f32.mrf.mxu0
    %v2157 = vadd.f32 %v1768, %v2156
    %v2158 = vpop.f32.mrf.mxu0
    %v2159 = vadd.f32 %v1768, %v2158
    %2160 = vdwg.mxu0
    %2161 = vmatpush.bf16.msra.mxu0 %v1994
    %2162 = vmatpush.bf16.msra.mxu0 %v1992
    %2163 = vmatpush.bf16.msra.mxu0 %v1990
    %2164 = vmatpush.bf16.msra.mxu0 %v1988
    %2165 = vmatpush.bf16.msra.mxu0 %v1986
    %2166 = vmatpush.bf16.msra.mxu0 %v1984
    %2167 = vmatpush.bf16.msra.mxu0 %v1982
    %2168 = vmatpush.bf16.msra.mxu0 %v1980
    %2169 = vmatmul.bf16.gmra.mxu0 %v1698
    %v2170 = vpop.f32.mrf.mxu0
    %v2171 = vadd.f32 %v2157, %v2170
    %v2172 = vpop.f32.mrf.mxu0
    %v2173 = vadd.f32 %v2159, %v2172
    %2174 = vdwg.mxu0
    %2175 = vmatpush.bf16.msra.mxu0 %v2010
    %2176 = vmatpush.bf16.msra.mxu0 %v2008
    %2177 = vmatpush.bf16.msra.mxu0 %v2006
    %2178 = vmatpush.bf16.msra.mxu0 %v2004
    %2179 = vmatpush.bf16.msra.mxu0 %v2002
    %2180 = vmatpush.bf16.msra.mxu0 %v2000
    %2181 = vmatpush.bf16.msra.mxu0 %v1998
    %2182 = vmatpush.bf16.msra.mxu0 %v1996
    %2183 = vmatmul.bf16.gmra.mxu0 %v1699
    %v2184 = vpop.f32.mrf.mxu0
    %v2185 = vadd.f32 %v2171, %v2184
    %v2186 = vpop.f32.mrf.mxu0
    %v2187 = vadd.f32 %v2173, %v2186
    %2188 = vdwg.mxu0
    %2189 = vmatpush.bf16.msra.mxu0 %v2026
    %2190 = vmatpush.bf16.msra.mxu0 %v2024
    %2191 = vmatpush.bf16.msra.mxu0 %v2022
    %2192 = vmatpush.bf16.msra.mxu0 %v2020
    %2193 = vmatpush.bf16.msra.mxu0 %v2018
    %2194 = vmatpush.bf16.msra.mxu0 %v2016
    %2195 = vmatpush.bf16.msra.mxu0 %v2014
    %2196 = vmatpush.bf16.msra.mxu0 %v2012
    %2197 = vmatmul.bf16.gmra.mxu0 %v1700
    %v2198 = vpop.f32.mrf.mxu0
    %v2199 = vadd.f32 %v2185, %v2198
    %v2200 = vpop.f32.mrf.mxu0
    %v2201 = vadd.f32 %v2187, %v2200
    %2202 = vdwg.mxu0
    %v2203 = vmax.f32 %v2143, 0.0
    %v2204 = vmax.f32 %v2199, 0.0
    %v2205 = vmax.f32 %v2145, 0.0
    %v2206 = vmax.f32 %v2201, 0.0
    %v2207 = vpack.c.bf16 %v2205, %v2203
    %v2208 = vpack.c.bf16 %v2206, %v2204
    %v2209 = vld [vmem:[#allocation10] sm:$0xff]
    %v2210 = vld [vmem:[#allocation10 + $0x8] sm:$0xff]
    %v2211 = vld [vmem:[#allocation10 + $0x10] sm:$0xff]
    %v2212 = vld [vmem:[#allocation10 + $0x18] sm:$0xff]
    %v2213 = vld [vmem:[#allocation10 + $0x20] sm:$0xff]
    %v2214 = vld [vmem:[#allocation10 + $0x28] sm:$0xff]
    %v2215 = vld [vmem:[#allocation10 + $0x30] sm:$0xff]
    %v2216 = vld [vmem:[#allocation10 + $0x38] sm:$0xff]
    %v2217 = vld [vmem:[#allocation10 + $0x40] sm:$0xff]
    %v2218 = vld [vmem:[#allocation10 + $0x48] sm:$0xff]
    %v2219 = vld [vmem:[#allocation10 + $0x50] sm:$0xff]
    %v2220 = vld [vmem:[#allocation10 + $0x58] sm:$0xff]
    %v2221 = vld [vmem:[#allocation10 + $0x60] sm:$0xff]
    %v2222 = vld [vmem:[#allocation10 + $0x68] sm:$0xff]
    %v2223 = vld [vmem:[#allocation10 + $0x70] sm:$0xff]
    %v2224 = vld [vmem:[#allocation10 + $0x78] sm:$0xff]
    %v2225 = vld [vmem:[#allocation10 + $0x80] sm:$0xff]
    %v2226 = vld [vmem:[#allocation10 + $0x88] sm:$0xff]
    %v2227 = vld [vmem:[#allocation10 + $0x90] sm:$0xff]
    %v2228 = vld [vmem:[#allocation10 + $0x98] sm:$0xff]
    %v2229 = vld [vmem:[#allocation10 + $0xa0] sm:$0xff]
    %v2230 = vld [vmem:[#allocation10 + $0xa8] sm:$0xff]
    %v2231 = vld [vmem:[#allocation10 + $0xb0] sm:$0xff]
    %v2232 = vld [vmem:[#allocation10 + $0xb8] sm:$0xff]
    %v2233 = vld [vmem:[#allocation10 + $0xc0] sm:$0xff]
    %v2234 = vld [vmem:[#allocation10 + $0xc8] sm:$0xff]
    %v2235 = vld [vmem:[#allocation10 + $0xd0] sm:$0xff]
    %v2236 = vld [vmem:[#allocation10 + $0xd8] sm:$0xff]
    %v2237 = vld [vmem:[#allocation10 + $0xe0] sm:$0xff]
    %v2238 = vld [vmem:[#allocation10 + $0xe8] sm:$0xff]
    %v2239 = vld [vmem:[#allocation10 + $0xf0] sm:$0xff]
    %v2240 = vld [vmem:[#allocation10 + $0xf8] sm:$0xff]
    %v2241 = vld [vmem:[#allocation11] sm:$0x3]
    %v2243 = vperm.slane %v2241, 0
    %v2244 = vperm.slane %v2241, 1
    %v2279 = vunpack.c.l.b16 %v2209
    %v2280 = vunpack.c.h.b16 %v2209
    %v2281 = vunpack.c.l.b16 %v2210
    %v2282 = vunpack.c.h.b16 %v2210
    %v2283 = vunpack.c.l.b16 %v2211
    %v2284 = vunpack.c.h.b16 %v2211
    %v2285 = vunpack.c.l.b16 %v2212
    %v2286 = vunpack.c.h.b16 %v2212
    %v2287 = vunpack.c.l.b16 %v2213
    %v2288 = vunpack.c.h.b16 %v2213
    %v2289 = vunpack.c.l.b16 %v2214
    %v2290 = vunpack.c.h.b16 %v2214
    %v2291 = vunpack.c.l.b16 %v2215
    %v2292 = vunpack.c.h.b16 %v2215
    %v2293 = vunpack.c.l.b16 %v2216
    %v2294 = vunpack.c.h.b16 %v2216
    %v2295 = vunpack.c.l.b16 %v2217
    %v2296 = vunpack.c.h.b16 %v2217
    %v2297 = vunpack.c.l.b16 %v2218
    %v2298 = vunpack.c.h.b16 %v2218
    %v2299 = vunpack.c.l.b16 %v2219
    %v2300 = vunpack.c.h.b16 %v2219
    %v2301 = vunpack.c.l.b16 %v2220
    %v2302 = vunpack.c.h.b16 %v2220
    %v2303 = vunpack.c.l.b16 %v2221
    %v2304 = vunpack.c.h.b16 %v2221
    %v2305 = vunpack.c.l.b16 %v2222
    %v2306 = vunpack.c.h.b16 %v2222
    %v2307 = vunpack.c.l.b16 %v2223
    %v2308 = vunpack.c.h.b16 %v2223
    %v2309 = vunpack.c.l.b16 %v2224
    %v2310 = vunpack.c.h.b16 %v2224
    %v2311 = vunpack.c.l.b16 %v2225
    %v2312 = vunpack.c.h.b16 %v2225
    %v2313 = vunpack.c.l.b16 %v2226
    %v2314 = vunpack.c.h.b16 %v2226
    %v2315 = vunpack.c.l.b16 %v2227
    %v2316 = vunpack.c.h.b16 %v2227
    %v2317 = vunpack.c.l.b16 %v2228
    %v2318 = vunpack.c.h.b16 %v2228
    %v2319 = vunpack.c.l.b16 %v2229
    %v2320 = vunpack.c.h.b16 %v2229
    %v2321 = vunpack.c.l.b16 %v2230
    %v2322 = vunpack.c.h.b16 %v2230
    %v2323 = vunpack.c.l.b16 %v2231
    %v2324 = vunpack.c.h.b16 %v2231
    %v2325 = vunpack.c.l.b16 %v2232
    %v2326 = vunpack.c.h.b16 %v2232
    %v2327 = vunpack.c.l.b16 %v2233
    %v2328 = vunpack.c.h.b16 %v2233
    %v2329 = vunpack.c.l.b16 %v2234
    %v2330 = vunpack.c.h.b16 %v2234
    %v2331 = vunpack.c.l.b16 %v2235
    %v2332 = vunpack.c.h.b16 %v2235
    %v2333 = vunpack.c.l.b16 %v2236
    %v2334 = vunpack.c.h.b16 %v2236
    %v2335 = vunpack.c.l.b16 %v2237
    %v2336 = vunpack.c.h.b16 %v2237
    %v2337 = vunpack.c.l.b16 %v2238
    %v2338 = vunpack.c.h.b16 %v2238
    %v2339 = vunpack.c.l.b16 %v2239
    %v2340 = vunpack.c.h.b16 %v2239
    %v2341 = vunpack.c.l.b16 %v2240
    %v2342 = vunpack.c.h.b16 %v2240
    %v2343 = vpack.c.b16 %v2281, %v2279
    %v2344 = vpack.c.b16 %v2282, %v2280
    %v2345 = vpack.c.b16 %v2285, %v2283
    %v2346 = vpack.c.b16 %v2286, %v2284
    %v2347 = vpack.c.b16 %v2289, %v2287
    %v2348 = vpack.c.b16 %v2290, %v2288
    %v2349 = vpack.c.b16 %v2293, %v2291
    %v2350 = vpack.c.b16 %v2294, %v2292
    %v2351 = vpack.c.b16 %v2297, %v2295
    %v2352 = vpack.c.b16 %v2298, %v2296
    %v2353 = vpack.c.b16 %v2301, %v2299
    %v2354 = vpack.c.b16 %v2302, %v2300
    %v2355 = vpack.c.b16 %v2305, %v2303
    %v2356 = vpack.c.b16 %v2306, %v2304
    %v2357 = vpack.c.b16 %v2309, %v2307
    %v2358 = vpack.c.b16 %v2310, %v2308
    %v2359 = vpack.c.b16 %v2313, %v2311
    %v2360 = vpack.c.b16 %v2314, %v2312
    %v2361 = vpack.c.b16 %v2317, %v2315
    %v2362 = vpack.c.b16 %v2318, %v2316
    %v2363 = vpack.c.b16 %v2321, %v2319
    %v2364 = vpack.c.b16 %v2322, %v2320
    %v2365 = vpack.c.b16 %v2325, %v2323
    %v2366 = vpack.c.b16 %v2326, %v2324
    %v2367 = vpack.c.b16 %v2329, %v2327
    %v2368 = vpack.c.b16 %v2330, %v2328
    %v2369 = vpack.c.b16 %v2333, %v2331
    %v2370 = vpack.c.b16 %v2334, %v2332
    %v2371 = vpack.c.b16 %v2337, %v2335
    %v2372 = vpack.c.b16 %v2338, %v2336
    %v2373 = vpack.c.b16 %v2341, %v2339
    %v2374 = vpack.c.b16 %v2342, %v2340
    %2407 = vmatpush.bf16.msra.mxu0 %v2357
    %2408 = vmatpush.bf16.msra.mxu0 %v2355
    %2409 = vmatpush.bf16.msra.mxu0 %v2353
    %2410 = vmatpush.bf16.msra.mxu0 %v2351
    %2411 = vmatpush.bf16.msra.mxu0 %v2349
    %2412 = vmatpush.bf16.msra.mxu0 %v2347
    %2413 = vmatpush.bf16.msra.mxu0 %v2345
    %2414 = vmatpush.bf16.msra.mxu0 %v2343
    %2415 = vmatmul.bf16.gmra.mxu0 %v2207
    %v2416 = vpop.f32.mrf.mxu0
    %v2417 = vadd.f32 %v2243, %v2416
    %v2418 = vpop.f32.mrf.mxu0
    %v2419 = vadd.f32 %v2243, %v2418
    %2420 = vdwg.mxu0
    %2421 = vmatpush.bf16.msra.mxu0 %v2373
    %2422 = vmatpush.bf16.msra.mxu0 %v2371
    %2423 = vmatpush.bf16.msra.mxu0 %v2369
    %2424 = vmatpush.bf16.msra.mxu0 %v2367
    %2425 = vmatpush.bf16.msra.mxu0 %v2365
    %2426 = vmatpush.bf16.msra.mxu0 %v2363
    %2427 = vmatpush.bf16.msra.mxu0 %v2361
    %2428 = vmatpush.bf16.msra.mxu0 %v2359
    %2429 = vmatmul.bf16.gmra.mxu0 %v2208
    %v2430 = vpop.f32.mrf.mxu0
    %v2431 = vadd.f32 %v2417, %v2430
    %v2432 = vpop.f32.mrf.mxu0
    %v2433 = vadd.f32 %v2419, %v2432
    %2434 = vdwg.mxu0
    %2435 = vmatpush.bf16.msra.mxu0 %v2358
    %2436 = vmatpush.bf16.msra.mxu0 %v2356
    %2437 = vmatpush.bf16.msra.mxu0 %v2354
    %2438 = vmatpush.bf16.msra.mxu0 %v2352
    %2439 = vmatpush.bf16.msra.mxu0 %v2350
    %2440 = vmatpush.bf16.msra.mxu0 %v2348
    %2441 = vmatpush.bf16.msra.mxu0 %v2346
    %2442 = vmatpush.bf16.msra.mxu0 %v2344
    %2443 = vmatmul.bf16.gmra.mxu0 %v2207
    %v2444 = vpop.f32.mrf.mxu0
    %v2445 = vadd.f32 %v2244, %v2444
    %v2446 = vpop.f32.mrf.mxu0
    %v2447 = vadd.f32 %v2244, %v2446
    %2448 = vdwg.mxu0
    %2449 = vmatpush.bf16.msra.mxu0 %v2374
    %2450 = vmatpush.bf16.msra.mxu0 %v2372
    %2451 = vmatpush.bf16.msra.mxu0 %v2370
    %2452 = vmatpush.bf16.msra.mxu0 %v2368
    %2453 = vmatpush.bf16.msra.mxu0 %v2366
    %2454 = vmatpush.bf16.msra.mxu0 %v2364
    %2455 = vmatpush.bf16.msra.mxu0 %v2362
    %2456 = vmatpush.bf16.msra.mxu0 %v2360
    %2457 = vmatmul.bf16.gmra.mxu0 %v2208
    %v2458 = vpop.f32.mrf.mxu0
    %v2459 = vadd.f32 %v2445, %v2458
    %v2460 = vpop.f32.mrf.mxu0
    %v2461 = vadd.f32 %v2447, %v2460
    %2462 = vdwg.mxu0
    %v2463 = vmax.f32 %v2431, 0.0
    %v2464 = vmax.f32 %v2459, 0.0
    %v2465 = vmax.f32 %v2433, 0.0
    %v2466 = vmax.f32 %v2461, 0.0
    %v2467 = vpack.c.bf16 %v2465, %v2463
    %v2468 = vpack.c.bf16 %v2466, %v2464
    %v2469 = vld [vmem:[#allocation13] sm:$0xff]
    %v2470 = vld [vmem:[#allocation13 + $0x8] sm:$0xff]
    %v2471 = vld [vmem:[#allocation13 + $0x10] sm:$0xff]
    %v2472 = vld [vmem:[#allocation13 + $0x18] sm:$0xff]
    %v2473 = vld [vmem:[#allocation13 + $0x20] sm:$0xff]
    %v2474 = vld [vmem:[#allocation13 + $0x28] sm:$0xff]
    %v2475 = vld [vmem:[#allocation13 + $0x30] sm:$0xff]
    %v2476 = vld [vmem:[#allocation13 + $0x38] sm:$0xff]
    %v2477 = vld [vmem:[#allocation13 + $0x40] sm:$0xff]
    %v2478 = vld [vmem:[#allocation13 + $0x48] sm:$0xff]
    %v2479 = vld [vmem:[#allocation13 + $0x50] sm:$0xff]
    %v2480 = vld [vmem:[#allocation13 + $0x58] sm:$0xff]
    %v2481 = vld [vmem:[#allocation13 + $0x60] sm:$0xff]
    %v2482 = vld [vmem:[#allocation13 + $0x68] sm:$0xff]
    %v2483 = vld [vmem:[#allocation13 + $0x70] sm:$0xff]
    %v2484 = vld [vmem:[#allocation13 + $0x78] sm:$0xff]
    %v2485 = vld [vmem:[#allocation13 + $0x80] sm:$0xff]
    %v2486 = vld [vmem:[#allocation13 + $0x88] sm:$0xff]
    %v2487 = vld [vmem:[#allocation13 + $0x90] sm:$0xff]
    %v2488 = vld [vmem:[#allocation13 + $0x98] sm:$0xff]
    %v2489 = vld [vmem:[#allocation13 + $0xa0] sm:$0xff]
    %v2490 = vld [vmem:[#allocation13 + $0xa8] sm:$0xff]
    %v2491 = vld [vmem:[#allocation13 + $0xb0] sm:$0xff]
    %v2492 = vld [vmem:[#allocation13 + $0xb8] sm:$0xff]
    %v2493 = vld [vmem:[#allocation13 + $0xc0] sm:$0xff]
    %v2494 = vld [vmem:[#allocation13 + $0xc8] sm:$0xff]
    %v2495 = vld [vmem:[#allocation13 + $0xd0] sm:$0xff]
    %v2496 = vld [vmem:[#allocation13 + $0xd8] sm:$0xff]
    %v2497 = vld [vmem:[#allocation13 + $0xe0] sm:$0xff]
    %v2498 = vld [vmem:[#allocation13 + $0xe8] sm:$0xff]
    %v2499 = vld [vmem:[#allocation13 + $0xf0] sm:$0xff]
    %v2500 = vld [vmem:[#allocation13 + $0xf8] sm:$0xff]
    %v2501 = vld [vmem:[#allocation13 + $0x100] sm:$0xff]
    %v2502 = vld [vmem:[#allocation13 + $0x108] sm:$0xff]
    %v2503 = vld [vmem:[#allocation13 + $0x110] sm:$0xff]
    %v2504 = vld [vmem:[#allocation13 + $0x118] sm:$0xff]
    %v2505 = vld [vmem:[#allocation13 + $0x120] sm:$0xff]
    %v2506 = vld [vmem:[#allocation13 + $0x128] sm:$0xff]
    %v2507 = vld [vmem:[#allocation13 + $0x130] sm:$0xff]
    %v2508 = vld [vmem:[#allocation13 + $0x138] sm:$0xff]
    %v2509 = vld [vmem:[#allocation13 + $0x140] sm:$0xff]
    %v2510 = vld [vmem:[#allocation13 + $0x148] sm:$0xff]
    %v2511 = vld [vmem:[#allocation13 + $0x150] sm:$0xff]
    %v2512 = vld [vmem:[#allocation13 + $0x158] sm:$0xff]
    %v2513 = vld [vmem:[#allocation13 + $0x160] sm:$0xff]
    %v2514 = vld [vmem:[#allocation13 + $0x168] sm:$0xff]
    %v2515 = vld [vmem:[#allocation13 + $0x170] sm:$0xff]
    %v2516 = vld [vmem:[#allocation13 + $0x178] sm:$0xff]
    %v2517 = vld [vmem:[#allocation13 + $0x180] sm:$0xff]
    %v2518 = vld [vmem:[#allocation13 + $0x188] sm:$0xff]
    %v2519 = vld [vmem:[#allocation13 + $0x190] sm:$0xff]
    %v2520 = vld [vmem:[#allocation13 + $0x198] sm:$0xff]
    %v2521 = vld [vmem:[#allocation13 + $0x1a0] sm:$0xff]
    %v2522 = vld [vmem:[#allocation13 + $0x1a8] sm:$0xff]
    %v2523 = vld [vmem:[#allocation13 + $0x1b0] sm:$0xff]
    %v2524 = vld [vmem:[#allocation13 + $0x1b8] sm:$0xff]
    %v2525 = vld [vmem:[#allocation13 + $0x1c0] sm:$0xff]
    %v2526 = vld [vmem:[#allocation13 + $0x1c8] sm:$0xff]
    %v2527 = vld [vmem:[#allocation13 + $0x1d0] sm:$0xff]
    %v2528 = vld [vmem:[#allocation13 + $0x1d8] sm:$0xff]
    %v2529 = vld [vmem:[#allocation13 + $0x1e0] sm:$0xff]
    %v2530 = vld [vmem:[#allocation13 + $0x1e8] sm:$0xff]
    %v2531 = vld [vmem:[#allocation13 + $0x1f0] sm:$0xff]
    %v2532 = vld [vmem:[#allocation13 + $0x1f8] sm:$0xff]
    %v2533 = vld [vmem:[#allocation14] sm:$0xf]
    %v2535 = vperm.slane %v2533, 0
    %v2536 = vperm.slane %v2533, 1
    %v2537 = vperm.slane %v2533, 2
    %v2538 = vperm.slane %v2533, 3
    %v2607 = vunpack.c.l.b16 %v2469
    %v2608 = vunpack.c.h.b16 %v2469
    %v2609 = vunpack.c.l.b16 %v2470
    %v2610 = vunpack.c.h.b16 %v2470
    %v2611 = vunpack.c.l.b16 %v2471
    %v2612 = vunpack.c.h.b16 %v2471
    %v2613 = vunpack.c.l.b16 %v2472
    %v2614 = vunpack.c.h.b16 %v2472
    %v2615 = vunpack.c.l.b16 %v2473
    %v2616 = vunpack.c.h.b16 %v2473
    %v2617 = vunpack.c.l.b16 %v2474
    %v2618 = vunpack.c.h.b16 %v2474
    %v2619 = vunpack.c.l.b16 %v2475
    %v2620 = vunpack.c.h.b16 %v2475
    %v2621 = vunpack.c.l.b16 %v2476
    %v2622 = vunpack.c.h.b16 %v2476
    %v2623 = vunpack.c.l.b16 %v2477
    %v2624 = vunpack.c.h.b16 %v2477
    %v2625 = vunpack.c.l.b16 %v2478
    %v2626 = vunpack.c.h.b16 %v2478
    %v2627 = vunpack.c.l.b16 %v2479
    %v2628 = vunpack.c.h.b16 %v2479
    %v2629 = vunpack.c.l.b16 %v2480
    %v2630 = vunpack.c.h.b16 %v2480
    %v2631 = vunpack.c.l.b16 %v2481
    %v2632 = vunpack.c.h.b16 %v2481
    %v2633 = vunpack.c.l.b16 %v2482
    %v2634 = vunpack.c.h.b16 %v2482
    %v2635 = vunpack.c.l.b16 %v2483
    %v2636 = vunpack.c.h.b16 %v2483
    %v2637 = vunpack.c.l.b16 %v2484
    %v2638 = vunpack.c.h.b16 %v2484
    %v2639 = vunpack.c.l.b16 %v2485
    %v2640 = vunpack.c.h.b16 %v2485
    %v2641 = vunpack.c.l.b16 %v2486
    %v2642 = vunpack.c.h.b16 %v2486
    %v2643 = vunpack.c.l.b16 %v2487
    %v2644 = vunpack.c.h.b16 %v2487
    %v2645 = vunpack.c.l.b16 %v2488
    %v2646 = vunpack.c.h.b16 %v2488
    %v2647 = vunpack.c.l.b16 %v2489
    %v2648 = vunpack.c.h.b16 %v2489
    %v2649 = vunpack.c.l.b16 %v2490
    %v2650 = vunpack.c.h.b16 %v2490
    %v2651 = vunpack.c.l.b16 %v2491
    %v2652 = vunpack.c.h.b16 %v2491
    %v2653 = vunpack.c.l.b16 %v2492
    %v2654 = vunpack.c.h.b16 %v2492
    %v2655 = vunpack.c.l.b16 %v2493
    %v2656 = vunpack.c.h.b16 %v2493
    %v2657 = vunpack.c.l.b16 %v2494
    %v2658 = vunpack.c.h.b16 %v2494
    %v2659 = vunpack.c.l.b16 %v2495
    %v2660 = vunpack.c.h.b16 %v2495
    %v2661 = vunpack.c.l.b16 %v2496
    %v2662 = vunpack.c.h.b16 %v2496
    %v2663 = vunpack.c.l.b16 %v2497
    %v2664 = vunpack.c.h.b16 %v2497
    %v2665 = vunpack.c.l.b16 %v2498
    %v2666 = vunpack.c.h.b16 %v2498
    %v2667 = vunpack.c.l.b16 %v2499
    %v2668 = vunpack.c.h.b16 %v2499
    %v2669 = vunpack.c.l.b16 %v2500
    %v2670 = vunpack.c.h.b16 %v2500
    %v2671 = vunpack.c.l.b16 %v2501
    %v2672 = vunpack.c.h.b16 %v2501
    %v2673 = vunpack.c.l.b16 %v2502
    %v2674 = vunpack.c.h.b16 %v2502
    %v2675 = vunpack.c.l.b16 %v2503
    %v2676 = vunpack.c.h.b16 %v2503
    %v2677 = vunpack.c.l.b16 %v2504
    %v2678 = vunpack.c.h.b16 %v2504
    %v2679 = vunpack.c.l.b16 %v2505
    %v2680 = vunpack.c.h.b16 %v2505
    %v2681 = vunpack.c.l.b16 %v2506
    %v2682 = vunpack.c.h.b16 %v2506
    %v2683 = vunpack.c.l.b16 %v2507
    %v2684 = vunpack.c.h.b16 %v2507
    %v2685 = vunpack.c.l.b16 %v2508
    %v2686 = vunpack.c.h.b16 %v2508
    %v2687 = vunpack.c.l.b16 %v2509
    %v2688 = vunpack.c.h.b16 %v2509
    %v2689 = vunpack.c.l.b16 %v2510
    %v2690 = vunpack.c.h.b16 %v2510
    %v2691 = vunpack.c.l.b16 %v2511
    %v2692 = vunpack.c.h.b16 %v2511
    %v2693 = vunpack.c.l.b16 %v2512
    %v2694 = vunpack.c.h.b16 %v2512
    %v2695 = vunpack.c.l.b16 %v2513
    %v2696 = vunpack.c.h.b16 %v2513
    %v2697 = vunpack.c.l.b16 %v2514
    %v2698 = vunpack.c.h.b16 %v2514
    %v2699 = vunpack.c.l.b16 %v2515
    %v2700 = vunpack.c.h.b16 %v2515
    %v2701 = vunpack.c.l.b16 %v2516
    %v2702 = vunpack.c.h.b16 %v2516
    %v2703 = vunpack.c.l.b16 %v2517
    %v2704 = vunpack.c.h.b16 %v2517
    %v2705 = vunpack.c.l.b16 %v2518
    %v2706 = vunpack.c.h.b16 %v2518
    %v2707 = vunpack.c.l.b16 %v2519
    %v2708 = vunpack.c.h.b16 %v2519
    %v2709 = vunpack.c.l.b16 %v2520
    %v2710 = vunpack.c.h.b16 %v2520
    %v2711 = vunpack.c.l.b16 %v2521
    %v2712 = vunpack.c.h.b16 %v2521
    %v2713 = vunpack.c.l.b16 %v2522
    %v2714 = vunpack.c.h.b16 %v2522
    %v2715 = vunpack.c.l.b16 %v2523
    %v2716 = vunpack.c.h.b16 %v2523
    %v2717 = vunpack.c.l.b16 %v2524
    %v2718 = vunpack.c.h.b16 %v2524
    %v2719 = vunpack.c.l.b16 %v2525
    %v2720 = vunpack.c.h.b16 %v2525
    %v2721 = vunpack.c.l.b16 %v2526
    %v2722 = vunpack.c.h.b16 %v2526
    %v2723 = vunpack.c.l.b16 %v2527
    %v2724 = vunpack.c.h.b16 %v2527
    %v2725 = vunpack.c.l.b16 %v2528
    %v2726 = vunpack.c.h.b16 %v2528
    %v2727 = vunpack.c.l.b16 %v2529
    %v2728 = vunpack.c.h.b16 %v2529
    %v2729 = vunpack.c.l.b16 %v2530
    %v2730 = vunpack.c.h.b16 %v2530
    %v2731 = vunpack.c.l.b16 %v2531
    %v2732 = vunpack.c.h.b16 %v2531
    %v2733 = vunpack.c.l.b16 %v2532
    %v2734 = vunpack.c.h.b16 %v2532
    %v2735 = vpack.c.b16 %v2611, %v2607
    %v2736 = vpack.c.b16 %v2612, %v2608
    %v2737 = vpack.c.b16 %v2613, %v2609
    %v2738 = vpack.c.b16 %v2614, %v2610
    %v2739 = vpack.c.b16 %v2619, %v2615
    %v2740 = vpack.c.b16 %v2620, %v2616
    %v2741 = vpack.c.b16 %v2621, %v2617
    %v2742 = vpack.c.b16 %v2622, %v2618
    %v2743 = vpack.c.b16 %v2627, %v2623
    %v2744 = vpack.c.b16 %v2628, %v2624
    %v2745 = vpack.c.b16 %v2629, %v2625
    %v2746 = vpack.c.b16 %v2630, %v2626
    %v2747 = vpack.c.b16 %v2635, %v2631
    %v2748 = vpack.c.b16 %v2636, %v2632
    %v2749 = vpack.c.b16 %v2637, %v2633
    %v2750 = vpack.c.b16 %v2638, %v2634
    %v2751 = vpack.c.b16 %v2643, %v2639
    %v2752 = vpack.c.b16 %v2644, %v2640
    %v2753 = vpack.c.b16 %v2645, %v2641
    %v2754 = vpack.c.b16 %v2646, %v2642
    %v2755 = vpack.c.b16 %v2651, %v2647
    %v2756 = vpack.c.b16 %v2652, %v2648
    %v2757 = vpack.c.b16 %v2653, %v2649
    %v2758 = vpack.c.b16 %v2654, %v2650
    %v2759 = vpack.c.b16 %v2659, %v2655
    %v2760 = vpack.c.b16 %v2660, %v2656
    %v2761 = vpack.c.b16 %v2661, %v2657
    %v2762 = vpack.c.b16 %v2662, %v2658
    %v2763 = vpack.c.b16 %v2667, %v2663
    %v2764 = vpack.c.b16 %v2668, %v2664
    %v2765 = vpack.c.b16 %v2669, %v2665
    %v2766 = vpack.c.b16 %v2670, %v2666
    %v2767 = vpack.c.b16 %v2675, %v2671
    %v2768 = vpack.c.b16 %v2676, %v2672
    %v2769 = vpack.c.b16 %v2677, %v2673
    %v2770 = vpack.c.b16 %v2678, %v2674
    %v2771 = vpack.c.b16 %v2683, %v2679
    %v2772 = vpack.c.b16 %v2684, %v2680
    %v2773 = vpack.c.b16 %v2685, %v2681
    %v2774 = vpack.c.b16 %v2686, %v2682
    %v2775 = vpack.c.b16 %v2691, %v2687
    %v2776 = vpack.c.b16 %v2692, %v2688
    %v2777 = vpack.c.b16 %v2693, %v2689
    %v2778 = vpack.c.b16 %v2694, %v2690
    %v2779 = vpack.c.b16 %v2699, %v2695
    %v2780 = vpack.c.b16 %v2700, %v2696
    %v2781 = vpack.c.b16 %v2701, %v2697
    %v2782 = vpack.c.b16 %v2702, %v2698
    %v2783 = vpack.c.b16 %v2707, %v2703
    %v2784 = vpack.c.b16 %v2708, %v2704
    %v2785 = vpack.c.b16 %v2709, %v2705
    %v2786 = vpack.c.b16 %v2710, %v2706
    %v2787 = vpack.c.b16 %v2715, %v2711
    %v2788 = vpack.c.b16 %v2716, %v2712
    %v2789 = vpack.c.b16 %v2717, %v2713
    %v2790 = vpack.c.b16 %v2718, %v2714
    %v2791 = vpack.c.b16 %v2723, %v2719
    %v2792 = vpack.c.b16 %v2724, %v2720
    %v2793 = vpack.c.b16 %v2725, %v2721
    %v2794 = vpack.c.b16 %v2726, %v2722
    %v2795 = vpack.c.b16 %v2731, %v2727
    %v2796 = vpack.c.b16 %v2732, %v2728
    %v2797 = vpack.c.b16 %v2733, %v2729
    %v2798 = vpack.c.b16 %v2734, %v2730
    %2863 = vmatpush.bf16.msra.mxu0 %v2763
    %2864 = vmatpush.bf16.msra.mxu0 %v2759
    %2865 = vmatpush.bf16.msra.mxu0 %v2755
    %2866 = vmatpush.bf16.msra.mxu0 %v2751
    %2867 = vmatpush.bf16.msra.mxu0 %v2747
    %2868 = vmatpush.bf16.msra.mxu0 %v2743
    %2869 = vmatpush.bf16.msra.mxu0 %v2739
    %2870 = vmatpush.bf16.msra.mxu0 %v2735
    %2871 = vmatmul.bf16.gmra.mxu0 %v2467
    %v2872 = vpop.f32.mrf.mxu0
    %v2873 = vadd.f32 %v2535, %v2872
    %v2874 = vpop.f32.mrf.mxu0
    %v2875 = vadd.f32 %v2535, %v2874
    %2876 = vdwg.mxu0
    %2877 = vmatpush.bf16.msra.mxu0 %v2795
    %2878 = vmatpush.bf16.msra.mxu0 %v2791
    %2879 = vmatpush.bf16.msra.mxu0 %v2787
    %2880 = vmatpush.bf16.msra.mxu0 %v2783
    %2881 = vmatpush.bf16.msra.mxu0 %v2779
    %2882 = vmatpush.bf16.msra.mxu0 %v2775
    %2883 = vmatpush.bf16.msra.mxu0 %v2771
    %2884 = vmatpush.bf16.msra.mxu0 %v2767
    %2885 = vmatmul.bf16.gmra.mxu0 %v2468
    %v2886 = vpop.f32.mrf.mxu0
    %v2887 = vadd.f32 %v2873, %v2886
    %v2888 = vpop.f32.mrf.mxu0
    %v2889 = vadd.f32 %v2875, %v2888
    %2890 = vdwg.mxu0
    %2891 = vmatpush.bf16.msra.mxu0 %v2764
    %2892 = vmatpush.bf16.msra.mxu0 %v2760
    %2893 = vmatpush.bf16.msra.mxu0 %v2756
    %2894 = vmatpush.bf16.msra.mxu0 %v2752
    %2895 = vmatpush.bf16.msra.mxu0 %v2748
    %2896 = vmatpush.bf16.msra.mxu0 %v2744
    %2897 = vmatpush.bf16.msra.mxu0 %v2740
    %2898 = vmatpush.bf16.msra.mxu0 %v2736
    %2899 = vmatmul.bf16.gmra.mxu0 %v2467
    %v2900 = vpop.f32.mrf.mxu0
    %v2901 = vadd.f32 %v2536, %v2900
    %v2902 = vpop.f32.mrf.mxu0
    %v2903 = vadd.f32 %v2536, %v2902
    %2904 = vdwg.mxu0
    %2905 = vmatpush.bf16.msra.mxu0 %v2796
    %2906 = vmatpush.bf16.msra.mxu0 %v2792
    %2907 = vmatpush.bf16.msra.mxu0 %v2788
    %2908 = vmatpush.bf16.msra.mxu0 %v2784
    %2909 = vmatpush.bf16.msra.mxu0 %v2780
    %2910 = vmatpush.bf16.msra.mxu0 %v2776
    %2911 = vmatpush.bf16.msra.mxu0 %v2772
    %2912 = vmatpush.bf16.msra.mxu0 %v2768
    %2913 = vmatmul.bf16.gmra.mxu0 %v2468
    %v2914 = vpop.f32.mrf.mxu0
    %v2915 = vadd.f32 %v2901, %v2914
    %v2916 = vpop.f32.mrf.mxu0
    %v2917 = vadd.f32 %v2903, %v2916
    %2918 = vdwg.mxu0
    %2919 = vmatpush.bf16.msra.mxu0 %v2765
    %2920 = vmatpush.bf16.msra.mxu0 %v2761
    %2921 = vmatpush.bf16.msra.mxu0 %v2757
    %2922 = vmatpush.bf16.msra.mxu0 %v2753
    %2923 = vmatpush.bf16.msra.mxu0 %v2749
    %2924 = vmatpush.bf16.msra.mxu0 %v2745
    %2925 = vmatpush.bf16.msra.mxu0 %v2741
    %2926 = vmatpush.bf16.msra.mxu0 %v2737
    %2927 = vmatmul.bf16.gmra.mxu0 %v2467
    %v2928 = vpop.f32.mrf.mxu0
    %v2929 = vadd.f32 %v2537, %v2928
    %v2930 = vpop.f32.mrf.mxu0
    %v2931 = vadd.f32 %v2537, %v2930
    %2932 = vdwg.mxu0
    %2933 = vmatpush.bf16.msra.mxu0 %v2797
    %2934 = vmatpush.bf16.msra.mxu0 %v2793
    %2935 = vmatpush.bf16.msra.mxu0 %v2789
    %2936 = vmatpush.bf16.msra.mxu0 %v2785
    %2937 = vmatpush.bf16.msra.mxu0 %v2781
    %2938 = vmatpush.bf16.msra.mxu0 %v2777
    %2939 = vmatpush.bf16.msra.mxu0 %v2773
    %2940 = vmatpush.bf16.msra.mxu0 %v2769
    %2941 = vmatmul.bf16.gmra.mxu0 %v2468
    %v2942 = vpop.f32.mrf.mxu0
    %v2943 = vadd.f32 %v2929, %v2942
    %v2944 = vpop.f32.mrf.mxu0
    %v2945 = vadd.f32 %v2931, %v2944
    %2946 = vdwg.mxu0
    %2947 = vmatpush.bf16.msra.mxu0 %v2766
    %2948 = vmatpush.bf16.msra.mxu0 %v2762
    %2949 = vmatpush.bf16.msra.mxu0 %v2758
    %2950 = vmatpush.bf16.msra.mxu0 %v2754
    %2951 = vmatpush.bf16.msra.mxu0 %v2750
    %2952 = vmatpush.bf16.msra.mxu0 %v2746
    %2953 = vmatpush.bf16.msra.mxu0 %v2742
    %2954 = vmatpush.bf16.msra.mxu0 %v2738
    %2955 = vmatmul.bf16.gmra.mxu0 %v2467
    %v2956 = vpop.f32.mrf.mxu0
    %v2957 = vadd.f32 %v2538, %v2956
    %v2958 = vpop.f32.mrf.mxu0
    %v2959 = vadd.f32 %v2538, %v2958
    %2960 = vdwg.mxu0
    %2961 = vmatpush.bf16.msra.mxu0 %v2798
    %2962 = vmatpush.bf16.msra.mxu0 %v2794
    %2963 = vmatpush.bf16.msra.mxu0 %v2790
    %2964 = vmatpush.bf16.msra.mxu0 %v2786
    %2965 = vmatpush.bf16.msra.mxu0 %v2782
    %2966 = vmatpush.bf16.msra.mxu0 %v2778
    %2967 = vmatpush.bf16.msra.mxu0 %v2774
    %2968 = vmatpush.bf16.msra.mxu0 %v2770
    %2969 = vmatmul.bf16.gmra.mxu0 %v2468
    %v2970 = vpop.f32.mrf.mxu0
    %v2971 = vadd.f32 %v2957, %v2970
    %v2972 = vpop.f32.mrf.mxu0
    %v2973 = vadd.f32 %v2959, %v2972
    %2974 = vdwg.mxu0
    %v2975 = vmax.f32 %v2887, 0.0
    %v2976 = vmax.f32 %v2915, 0.0
    %v2977 = vmax.f32 %v2943, 0.0
    %v2978 = vmax.f32 %v2971, 0.0
    %v2979 = vmax.f32 %v2889, 0.0
    %v2980 = vmax.f32 %v2917, 0.0
    %v2981 = vmax.f32 %v2945, 0.0
    %v2982 = vmax.f32 %v2973, 0.0
    %v2983 = vpack.c.bf16 %v2979, %v2975
    %v2984 = vpack.c.bf16 %v2980, %v2976
    %v2985 = vpack.c.bf16 %v2981, %v2977
    %v2986 = vpack.c.bf16 %v2982, %v2978
    %v2987 = vld [vmem:[#allocation16] sm:$0xff]
    %v2988 = vld [vmem:[#allocation16 + $0x8] sm:$0xff]
    %v2989 = vld [vmem:[#allocation16 + $0x10] sm:$0xff]
    %v2990 = vld [vmem:[#allocation16 + $0x18] sm:$0xff]
    %v2991 = vld [vmem:[#allocation16 + $0x20] sm:$0xff]
    %v2992 = vld [vmem:[#allocation16 + $0x28] sm:$0xff]
    %v2993 = vld [vmem:[#allocation16 + $0x30] sm:$0xff]
    %v2994 = vld [vmem:[#allocation16 + $0x38] sm:$0xff]
    %v2995 = vld [vmem:[#allocation16 + $0x40] sm:$0xff]
    %v2996 = vld [vmem:[#allocation16 + $0x48] sm:$0xff]
    %v2997 = vld [vmem:[#allocation16 + $0x50] sm:$0xff]
    %v2998 = vld [vmem:[#allocation16 + $0x58] sm:$0xff]
    %v2999 = vld [vmem:[#allocation16 + $0x60] sm:$0xff]
    %v3000 = vld [vmem:[#allocation16 + $0x68] sm:$0xff]
    %v3001 = vld [vmem:[#allocation16 + $0x70] sm:$0xff]
    %v3002 = vld [vmem:[#allocation16 + $0x78] sm:$0xff]
    %v3003 = vld [vmem:[#allocation16 + $0x80] sm:$0xff]
    %v3004 = vld [vmem:[#allocation16 + $0x88] sm:$0xff]
    %v3005 = vld [vmem:[#allocation16 + $0x90] sm:$0xff]
    %v3006 = vld [vmem:[#allocation16 + $0x98] sm:$0xff]
    %v3007 = vld [vmem:[#allocation16 + $0xa0] sm:$0xff]
    %v3008 = vld [vmem:[#allocation16 + $0xa8] sm:$0xff]
    %v3009 = vld [vmem:[#allocation16 + $0xb0] sm:$0xff]
    %v3010 = vld [vmem:[#allocation16 + $0xb8] sm:$0xff]
    %v3011 = vld [vmem:[#allocation16 + $0xc0] sm:$0xff]
    %v3012 = vld [vmem:[#allocation16 + $0xc8] sm:$0xff]
    %v3013 = vld [vmem:[#allocation16 + $0xd0] sm:$0xff]
    %v3014 = vld [vmem:[#allocation16 + $0xd8] sm:$0xff]
    %v3015 = vld [vmem:[#allocation16 + $0xe0] sm:$0xff]
    %v3016 = vld [vmem:[#allocation16 + $0xe8] sm:$0xff]
    %v3017 = vld [vmem:[#allocation16 + $0xf0] sm:$0xff]
    %v3018 = vld [vmem:[#allocation16 + $0xf8] sm:$0xff]
    %v3019 = vld [vmem:[#allocation16 + $0x100] sm:$0xff]
    %v3020 = vld [vmem:[#allocation16 + $0x108] sm:$0xff]
    %v3021 = vld [vmem:[#allocation16 + $0x110] sm:$0xff]
    %v3022 = vld [vmem:[#allocation16 + $0x118] sm:$0xff]
    %v3023 = vld [vmem:[#allocation16 + $0x120] sm:$0xff]
    %v3024 = vld [vmem:[#allocation16 + $0x128] sm:$0xff]
    %v3025 = vld [vmem:[#allocation16 + $0x130] sm:$0xff]
    %v3026 = vld [vmem:[#allocation16 + $0x138] sm:$0xff]
    %v3027 = vld [vmem:[#allocation16 + $0x140] sm:$0xff]
    %v3028 = vld [vmem:[#allocation16 + $0x148] sm:$0xff]
    %v3029 = vld [vmem:[#allocation16 + $0x150] sm:$0xff]
    %v3030 = vld [vmem:[#allocation16 + $0x158] sm:$0xff]
    %v3031 = vld [vmem:[#allocation16 + $0x160] sm:$0xff]
    %v3032 = vld [vmem:[#allocation16 + $0x168] sm:$0xff]
    %v3033 = vld [vmem:[#allocation16 + $0x170] sm:$0xff]
    %v3034 = vld [vmem:[#allocation16 + $0x178] sm:$0xff]
    %v3035 = vld [vmem:[#allocation16 + $0x180] sm:$0xff]
    %v3036 = vld [vmem:[#allocation16 + $0x188] sm:$0xff]
    %v3037 = vld [vmem:[#allocation16 + $0x190] sm:$0xff]
    %v3038 = vld [vmem:[#allocation16 + $0x198] sm:$0xff]
    %v3039 = vld [vmem:[#allocation16 + $0x1a0] sm:$0xff]
    %v3040 = vld [vmem:[#allocation16 + $0x1a8] sm:$0xff]
    %v3041 = vld [vmem:[#allocation16 + $0x1b0] sm:$0xff]
    %v3042 = vld [vmem:[#allocation16 + $0x1b8] sm:$0xff]
    %v3043 = vld [vmem:[#allocation16 + $0x1c0] sm:$0xff]
    %v3044 = vld [vmem:[#allocation16 + $0x1c8] sm:$0xff]
    %v3045 = vld [vmem:[#allocation16 + $0x1d0] sm:$0xff]
    %v3046 = vld [vmem:[#allocation16 + $0x1d8] sm:$0xff]
    %v3047 = vld [vmem:[#allocation16 + $0x1e0] sm:$0xff]
    %v3048 = vld [vmem:[#allocation16 + $0x1e8] sm:$0xff]
    %v3049 = vld [vmem:[#allocation16 + $0x1f0] sm:$0xff]
    %v3050 = vld [vmem:[#allocation16 + $0x1f8] sm:$0xff]
    %v3051 = vld [vmem:[#allocation16 + $0x200] sm:$0xff]
    %v3052 = vld [vmem:[#allocation16 + $0x208] sm:$0xff]
    %v3053 = vld [vmem:[#allocation16 + $0x210] sm:$0xff]
    %v3054 = vld [vmem:[#allocation16 + $0x218] sm:$0xff]
    %v3055 = vld [vmem:[#allocation16 + $0x220] sm:$0xff]
    %v3056 = vld [vmem:[#allocation16 + $0x228] sm:$0xff]
    %v3057 = vld [vmem:[#allocation16 + $0x230] sm:$0xff]
    %v3058 = vld [vmem:[#allocation16 + $0x238] sm:$0xff]
    %v3059 = vld [vmem:[#allocation16 + $0x240] sm:$0xff]
    %v3060 = vld [vmem:[#allocation16 + $0x248] sm:$0xff]
    %v3061 = vld [vmem:[#allocation16 + $0x250] sm:$0xff]
    %v3062 = vld [vmem:[#allocation16 + $0x258] sm:$0xff]
    %v3063 = vld [vmem:[#allocation16 + $0x260] sm:$0xff]
    %v3064 = vld [vmem:[#allocation16 + $0x268] sm:$0xff]
    %v3065 = vld [vmem:[#allocation16 + $0x270] sm:$0xff]
    %v3066 = vld [vmem:[#allocation16 + $0x278] sm:$0xff]
    %v3067 = vld [vmem:[#allocation16 + $0x280] sm:$0xff]
    %v3068 = vld [vmem:[#allocation16 + $0x288] sm:$0xff]
    %v3069 = vld [vmem:[#allocation16 + $0x290] sm:$0xff]
    %v3070 = vld [vmem:[#allocation16 + $0x298] sm:$0xff]
    %v3071 = vld [vmem:[#allocation16 + $0x2a0] sm:$0xff]
    %v3072 = vld [vmem:[#allocation16 + $0x2a8] sm:$0xff]
    %v3073 = vld [vmem:[#allocation16 + $0x2b0] sm:$0xff]
    %v3074 = vld [vmem:[#allocation16 + $0x2b8] sm:$0xff]
    %v3075 = vld [vmem:[#allocation16 + $0x2c0] sm:$0xff]
    %v3076 = vld [vmem:[#allocation16 + $0x2c8] sm:$0xff]
    %v3077 = vld [vmem:[#allocation16 + $0x2d0] sm:$0xff]
    %v3078 = vld [vmem:[#allocation16 + $0x2d8] sm:$0xff]
    %v3079 = vld [vmem:[#allocation16 + $0x2e0] sm:$0xff]
    %v3080 = vld [vmem:[#allocation16 + $0x2e8] sm:$0xff]
    %v3081 = vld [vmem:[#allocation16 + $0x2f0] sm:$0xff]
    %v3082 = vld [vmem:[#allocation16 + $0x2f8] sm:$0xff]
    %v3083 = vld [vmem:[#allocation16 + $0x300] sm:$0xff]
    %v3084 = vld [vmem:[#allocation16 + $0x308] sm:$0xff]
    %v3085 = vld [vmem:[#allocation16 + $0x310] sm:$0xff]
    %v3086 = vld [vmem:[#allocation16 + $0x318] sm:$0xff]
    %v3087 = vld [vmem:[#allocation16 + $0x320] sm:$0xff]
    %v3088 = vld [vmem:[#allocation16 + $0x328] sm:$0xff]
    %v3089 = vld [vmem:[#allocation16 + $0x330] sm:$0xff]
    %v3090 = vld [vmem:[#allocation16 + $0x338] sm:$0xff]
    %v3091 = vld [vmem:[#allocation16 + $0x340] sm:$0xff]
    %v3092 = vld [vmem:[#allocation16 + $0x348] sm:$0xff]
    %v3093 = vld [vmem:[#allocation16 + $0x350] sm:$0xff]
    %v3094 = vld [vmem:[#allocation16 + $0x358] sm:$0xff]
    %v3095 = vld [vmem:[#allocation16 + $0x360] sm:$0xff]
    %v3096 = vld [vmem:[#allocation16 + $0x368] sm:$0xff]
    %v3097 = vld [vmem:[#allocation16 + $0x370] sm:$0xff]
    %v3098 = vld [vmem:[#allocation16 + $0x378] sm:$0xff]
    %v3099 = vld [vmem:[#allocation16 + $0x380] sm:$0xff]
    %v3100 = vld [vmem:[#allocation16 + $0x388] sm:$0xff]
    %v3101 = vld [vmem:[#allocation16 + $0x390] sm:$0xff]
    %v3102 = vld [vmem:[#allocation16 + $0x398] sm:$0xff]
    %v3103 = vld [vmem:[#allocation16 + $0x3a0] sm:$0xff]
    %v3104 = vld [vmem:[#allocation16 + $0x3a8] sm:$0xff]
    %v3105 = vld [vmem:[#allocation16 + $0x3b0] sm:$0xff]
    %v3106 = vld [vmem:[#allocation16 + $0x3b8] sm:$0xff]
    %v3107 = vld [vmem:[#allocation16 + $0x3c0] sm:$0xff]
    %v3108 = vld [vmem:[#allocation16 + $0x3c8] sm:$0xff]
    %v3109 = vld [vmem:[#allocation16 + $0x3d0] sm:$0xff]
    %v3110 = vld [vmem:[#allocation16 + $0x3d8] sm:$0xff]
    %v3111 = vld [vmem:[#allocation16 + $0x3e0] sm:$0xff]
    %v3112 = vld [vmem:[#allocation16 + $0x3e8] sm:$0xff]
    %v3113 = vld [vmem:[#allocation16 + $0x3f0] sm:$0xff]
    %v3114 = vld [vmem:[#allocation16 + $0x3f8] sm:$0xff]
    %v3115 = vld [vmem:[#allocation16 + $0x400] sm:$0xff]
    %v3116 = vld [vmem:[#allocation16 + $0x408] sm:$0xff]
    %v3117 = vld [vmem:[#allocation16 + $0x410] sm:$0xff]
    %v3118 = vld [vmem:[#allocation16 + $0x418] sm:$0xff]
    %v3119 = vld [vmem:[#allocation16 + $0x420] sm:$0xff]
    %v3120 = vld [vmem:[#allocation16 + $0x428] sm:$0xff]
    %v3121 = vld [vmem:[#allocation16 + $0x430] sm:$0xff]
    %v3122 = vld [vmem:[#allocation16 + $0x438] sm:$0xff]
    %v3123 = vld [vmem:[#allocation16 + $0x440] sm:$0xff]
    %v3124 = vld [vmem:[#allocation16 + $0x448] sm:$0xff]
    %v3125 = vld [vmem:[#allocation16 + $0x450] sm:$0xff]
    %v3126 = vld [vmem:[#allocation16 + $0x458] sm:$0xff]
    %v3127 = vld [vmem:[#allocation16 + $0x460] sm:$0xff]
    %v3128 = vld [vmem:[#allocation16 + $0x468] sm:$0xff]
    %v3129 = vld [vmem:[#allocation16 + $0x470] sm:$0xff]
    %v3130 = vld [vmem:[#allocation16 + $0x478] sm:$0xff]
    %v3131 = vld [vmem:[#allocation16 + $0x480] sm:$0xff]
    %v3132 = vld [vmem:[#allocation16 + $0x488] sm:$0xff]
    %v3133 = vld [vmem:[#allocation16 + $0x490] sm:$0xff]
    %v3134 = vld [vmem:[#allocation16 + $0x498] sm:$0xff]
    %v3135 = vld [vmem:[#allocation16 + $0x4a0] sm:$0xff]
    %v3136 = vld [vmem:[#allocation16 + $0x4a8] sm:$0xff]
    %v3137 = vld [vmem:[#allocation16 + $0x4b0] sm:$0xff]
    %v3138 = vld [vmem:[#allocation16 + $0x4b8] sm:$0xff]
    %v3139 = vld [vmem:[#allocation16 + $0x4c0] sm:$0xff]
    %v3140 = vld [vmem:[#allocation16 + $0x4c8] sm:$0xff]
    %v3141 = vld [vmem:[#allocation16 + $0x4d0] sm:$0xff]
    %v3142 = vld [vmem:[#allocation16 + $0x4d8] sm:$0xff]
    %v3143 = vld [vmem:[#allocation16 + $0x4e0] sm:$0xff]
    %v3144 = vld [vmem:[#allocation16 + $0x4e8] sm:$0xff]
    %v3145 = vld [vmem:[#allocation16 + $0x4f0] sm:$0xff]
    %v3146 = vld [vmem:[#allocation16 + $0x4f8] sm:$0xff]
    %v3147 = vld [vmem:[#allocation16 + $0x500] sm:$0xff]
    %v3148 = vld [vmem:[#allocation16 + $0x508] sm:$0xff]
    %v3149 = vld [vmem:[#allocation16 + $0x510] sm:$0xff]
    %v3150 = vld [vmem:[#allocation16 + $0x518] sm:$0xff]
    %v3151 = vld [vmem:[#allocation16 + $0x520] sm:$0xff]
    %v3152 = vld [vmem:[#allocation16 + $0x528] sm:$0xff]
    %v3153 = vld [vmem:[#allocation16 + $0x530] sm:$0xff]
    %v3154 = vld [vmem:[#allocation16 + $0x538] sm:$0xff]
    %v3155 = vld [vmem:[#allocation16 + $0x540] sm:$0xff]
    %v3156 = vld [vmem:[#allocation16 + $0x548] sm:$0xff]
    %v3157 = vld [vmem:[#allocation16 + $0x550] sm:$0xff]
    %v3158 = vld [vmem:[#allocation16 + $0x558] sm:$0xff]
    %v3159 = vld [vmem:[#allocation16 + $0x560] sm:$0xff]
    %v3160 = vld [vmem:[#allocation16 + $0x568] sm:$0xff]
    %v3161 = vld [vmem:[#allocation16 + $0x570] sm:$0xff]
    %v3162 = vld [vmem:[#allocation16 + $0x578] sm:$0xff]
    %v3163 = vld [vmem:[#allocation16 + $0x580] sm:$0xff]
    %v3164 = vld [vmem:[#allocation16 + $0x588] sm:$0xff]
    %v3165 = vld [vmem:[#allocation16 + $0x590] sm:$0xff]
    %v3166 = vld [vmem:[#allocation16 + $0x598] sm:$0xff]
    %v3167 = vld [vmem:[#allocation16 + $0x5a0] sm:$0xff]
    %v3168 = vld [vmem:[#allocation16 + $0x5a8] sm:$0xff]
    %v3169 = vld [vmem:[#allocation16 + $0x5b0] sm:$0xff]
    %v3170 = vld [vmem:[#allocation16 + $0x5b8] sm:$0xff]
    %v3171 = vld [vmem:[#allocation16 + $0x5c0] sm:$0xff]
    %v3172 = vld [vmem:[#allocation16 + $0x5c8] sm:$0xff]
    %v3173 = vld [vmem:[#allocation16 + $0x5d0] sm:$0xff]
    %v3174 = vld [vmem:[#allocation16 + $0x5d8] sm:$0xff]
    %v3175 = vld [vmem:[#allocation16 + $0x5e0] sm:$0xff]
    %v3176 = vld [vmem:[#allocation16 + $0x5e8] sm:$0xff]
    %v3177 = vld [vmem:[#allocation16 + $0x5f0] sm:$0xff]
    %v3178 = vld [vmem:[#allocation16 + $0x5f8] sm:$0xff]
    %v3179 = vld [vmem:[%s10] sm:$0x3f]
    %v3181 = vperm.slane %v3179, 0
    %v3182 = vperm.slane %v3179, 1
    %v3183 = vperm.slane %v3179, 2
    %v3184 = vperm.slane %v3179, 3
    %v3185 = vperm.slane %v3179, 4
    %v3186 = vperm.slane %v3179, 5
    %v3385 = vunpack.c.l.b16 %v2987
    %v3386 = vunpack.c.h.b16 %v2987
    %v3387 = vunpack.c.l.b16 %v2988
    %v3388 = vunpack.c.h.b16 %v2988
    %v3389 = vunpack.c.l.b16 %v2989
    %v3390 = vunpack.c.h.b16 %v2989
    %v3391 = vunpack.c.l.b16 %v2990
    %v3392 = vunpack.c.h.b16 %v2990
    %v3393 = vunpack.c.l.b16 %v2991
    %v3394 = vunpack.c.h.b16 %v2991
    %v3395 = vunpack.c.l.b16 %v2992
    %v3396 = vunpack.c.h.b16 %v2992
    %v3397 = vunpack.c.l.b16 %v2993
    %v3398 = vunpack.c.h.b16 %v2993
    %v3399 = vunpack.c.l.b16 %v2994
    %v3400 = vunpack.c.h.b16 %v2994
    %v3401 = vunpack.c.l.b16 %v2995
    %v3402 = vunpack.c.h.b16 %v2995
    %v3403 = vunpack.c.l.b16 %v2996
    %v3404 = vunpack.c.h.b16 %v2996
    %v3405 = vunpack.c.l.b16 %v2997
    %v3406 = vunpack.c.h.b16 %v2997
    %v3407 = vunpack.c.l.b16 %v2998
    %v3408 = vunpack.c.h.b16 %v2998
    %v3409 = vunpack.c.l.b16 %v2999
    %v3410 = vunpack.c.h.b16 %v2999
    %v3411 = vunpack.c.l.b16 %v3000
    %v3412 = vunpack.c.h.b16 %v3000
    %v3413 = vunpack.c.l.b16 %v3001
    %v3414 = vunpack.c.h.b16 %v3001
    %v3415 = vunpack.c.l.b16 %v3002
    %v3416 = vunpack.c.h.b16 %v3002
    %v3417 = vunpack.c.l.b16 %v3003
    %v3418 = vunpack.c.h.b16 %v3003
    %v3419 = vunpack.c.l.b16 %v3004
    %v3420 = vunpack.c.h.b16 %v3004
    %v3421 = vunpack.c.l.b16 %v3005
    %v3422 = vunpack.c.h.b16 %v3005
    %v3423 = vunpack.c.l.b16 %v3006
    %v3424 = vunpack.c.h.b16 %v3006
    %v3425 = vunpack.c.l.b16 %v3007
    %v3426 = vunpack.c.h.b16 %v3007
    %v3427 = vunpack.c.l.b16 %v3008
    %v3428 = vunpack.c.h.b16 %v3008
    %v3429 = vunpack.c.l.b16 %v3009
    %v3430 = vunpack.c.h.b16 %v3009
    %v3431 = vunpack.c.l.b16 %v3010
    %v3432 = vunpack.c.h.b16 %v3010
    %v3433 = vunpack.c.l.b16 %v3011
    %v3434 = vunpack.c.h.b16 %v3011
    %v3435 = vunpack.c.l.b16 %v3012
    %v3436 = vunpack.c.h.b16 %v3012
    %v3437 = vunpack.c.l.b16 %v3013
    %v3438 = vunpack.c.h.b16 %v3013
    %v3439 = vunpack.c.l.b16 %v3014
    %v3440 = vunpack.c.h.b16 %v3014
    %v3441 = vunpack.c.l.b16 %v3015
    %v3442 = vunpack.c.h.b16 %v3015
    %v3443 = vunpack.c.l.b16 %v3016
    %v3444 = vunpack.c.h.b16 %v3016
    %v3445 = vunpack.c.l.b16 %v3017
    %v3446 = vunpack.c.h.b16 %v3017
    %v3447 = vunpack.c.l.b16 %v3018
    %v3448 = vunpack.c.h.b16 %v3018
    %v3449 = vunpack.c.l.b16 %v3019
    %v3450 = vunpack.c.h.b16 %v3019
    %v3451 = vunpack.c.l.b16 %v3020
    %v3452 = vunpack.c.h.b16 %v3020
    %v3453 = vunpack.c.l.b16 %v3021
    %v3454 = vunpack.c.h.b16 %v3021
    %v3455 = vunpack.c.l.b16 %v3022
    %v3456 = vunpack.c.h.b16 %v3022
    %v3457 = vunpack.c.l.b16 %v3023
    %v3458 = vunpack.c.h.b16 %v3023
    %v3459 = vunpack.c.l.b16 %v3024
    %v3460 = vunpack.c.h.b16 %v3024
    %v3461 = vunpack.c.l.b16 %v3025
    %v3462 = vunpack.c.h.b16 %v3025
    %v3463 = vunpack.c.l.b16 %v3026
    %v3464 = vunpack.c.h.b16 %v3026
    %v3465 = vunpack.c.l.b16 %v3027
    %v3466 = vunpack.c.h.b16 %v3027
    %v3467 = vunpack.c.l.b16 %v3028
    %v3468 = vunpack.c.h.b16 %v3028
    %v3469 = vunpack.c.l.b16 %v3029
    %v3470 = vunpack.c.h.b16 %v3029
    %v3471 = vunpack.c.l.b16 %v3030
    %v3472 = vunpack.c.h.b16 %v3030
    %v3473 = vunpack.c.l.b16 %v3031
    %v3474 = vunpack.c.h.b16 %v3031
    %v3475 = vunpack.c.l.b16 %v3032
    %v3476 = vunpack.c.h.b16 %v3032
    %v3477 = vunpack.c.l.b16 %v3033
    %v3478 = vunpack.c.h.b16 %v3033
    %v3479 = vunpack.c.l.b16 %v3034
    %v3480 = vunpack.c.h.b16 %v3034
    %v3481 = vunpack.c.l.b16 %v3035
    %v3482 = vunpack.c.h.b16 %v3035
    %v3483 = vunpack.c.l.b16 %v3036
    %v3484 = vunpack.c.h.b16 %v3036
    %v3485 = vunpack.c.l.b16 %v3037
    %v3486 = vunpack.c.h.b16 %v3037
    %v3487 = vunpack.c.l.b16 %v3038
    %v3488 = vunpack.c.h.b16 %v3038
    %v3489 = vunpack.c.l.b16 %v3039
    %v3490 = vunpack.c.h.b16 %v3039
    %v3491 = vunpack.c.l.b16 %v3040
    %v3492 = vunpack.c.h.b16 %v3040
    %v3493 = vunpack.c.l.b16 %v3041
    %v3494 = vunpack.c.h.b16 %v3041
    %v3495 = vunpack.c.l.b16 %v3042
    %v3496 = vunpack.c.h.b16 %v3042
    %v3497 = vunpack.c.l.b16 %v3043
    %v3498 = vunpack.c.h.b16 %v3043
    %v3499 = vunpack.c.l.b16 %v3044
    %v3500 = vunpack.c.h.b16 %v3044
    %v3501 = vunpack.c.l.b16 %v3045
    %v3502 = vunpack.c.h.b16 %v3045
    %v3503 = vunpack.c.l.b16 %v3046
    %v3504 = vunpack.c.h.b16 %v3046
    %v3505 = vunpack.c.l.b16 %v3047
    %v3506 = vunpack.c.h.b16 %v3047
    %v3507 = vunpack.c.l.b16 %v3048
    %v3508 = vunpack.c.h.b16 %v3048
    %v3509 = vunpack.c.l.b16 %v3049
    %v3510 = vunpack.c.h.b16 %v3049
    %v3511 = vunpack.c.l.b16 %v3050
    %v3512 = vunpack.c.h.b16 %v3050
    %v3513 = vunpack.c.l.b16 %v3051
    %v3514 = vunpack.c.h.b16 %v3051
    %v3515 = vunpack.c.l.b16 %v3052
    %v3516 = vunpack.c.h.b16 %v3052
    %v3517 = vunpack.c.l.b16 %v3053
    %v3518 = vunpack.c.h.b16 %v3053
    %v3519 = vunpack.c.l.b16 %v3054
    %v3520 = vunpack.c.h.b16 %v3054
    %v3521 = vunpack.c.l.b16 %v3055
    %v3522 = vunpack.c.h.b16 %v3055
    %v3523 = vunpack.c.l.b16 %v3056
    %v3524 = vunpack.c.h.b16 %v3056
    %v3525 = vunpack.c.l.b16 %v3057
    %v3526 = vunpack.c.h.b16 %v3057
    %v3527 = vunpack.c.l.b16 %v3058
    %v3528 = vunpack.c.h.b16 %v3058
    %v3529 = vunpack.c.l.b16 %v3059
    %v3530 = vunpack.c.h.b16 %v3059
    %v3531 = vunpack.c.l.b16 %v3060
    %v3532 = vunpack.c.h.b16 %v3060
    %v3533 = vunpack.c.l.b16 %v3061
    %v3534 = vunpack.c.h.b16 %v3061
    %v3535 = vunpack.c.l.b16 %v3062
    %v3536 = vunpack.c.h.b16 %v3062
    %v3537 = vunpack.c.l.b16 %v3063
    %v3538 = vunpack.c.h.b16 %v3063
    %v3539 = vunpack.c.l.b16 %v3064
    %v3540 = vunpack.c.h.b16 %v3064
    %v3541 = vunpack.c.l.b16 %v3065
    %v3542 = vunpack.c.h.b16 %v3065
    %v3543 = vunpack.c.l.b16 %v3066
    %v3544 = vunpack.c.h.b16 %v3066
    %v3545 = vunpack.c.l.b16 %v3067
    %v3546 = vunpack.c.h.b16 %v3067
    %v3547 = vunpack.c.l.b16 %v3068
    %v3548 = vunpack.c.h.b16 %v3068
    %v3549 = vunpack.c.l.b16 %v3069
    %v3550 = vunpack.c.h.b16 %v3069
    %v3551 = vunpack.c.l.b16 %v3070
    %v3552 = vunpack.c.h.b16 %v3070
    %v3553 = vunpack.c.l.b16 %v3071
    %v3554 = vunpack.c.h.b16 %v3071
    %v3555 = vunpack.c.l.b16 %v3072
    %v3556 = vunpack.c.h.b16 %v3072
    %v3557 = vunpack.c.l.b16 %v3073
    %v3558 = vunpack.c.h.b16 %v3073
    %v3559 = vunpack.c.l.b16 %v3074
    %v3560 = vunpack.c.h.b16 %v3074
    %v3561 = vunpack.c.l.b16 %v3075
    %v3562 = vunpack.c.h.b16 %v3075
    %v3563 = vunpack.c.l.b16 %v3076
    %v3564 = vunpack.c.h.b16 %v3076
    %v3565 = vunpack.c.l.b16 %v3077
    %v3566 = vunpack.c.h.b16 %v3077
    %v3567 = vunpack.c.l.b16 %v3078
    %v3568 = vunpack.c.h.b16 %v3078
    %v3569 = vunpack.c.l.b16 %v3079
    %v3570 = vunpack.c.h.b16 %v3079
    %v3571 = vunpack.c.l.b16 %v3080
    %v3572 = vunpack.c.h.b16 %v3080
    %v3573 = vunpack.c.l.b16 %v3081
    %v3574 = vunpack.c.h.b16 %v3081
    %v3575 = vunpack.c.l.b16 %v3082
    %v3576 = vunpack.c.h.b16 %v3082
    %v3577 = vunpack.c.l.b16 %v3083
    %v3578 = vunpack.c.h.b16 %v3083
    %v3579 = vunpack.c.l.b16 %v3084
    %v3580 = vunpack.c.h.b16 %v3084
    %v3581 = vunpack.c.l.b16 %v3085
    %v3582 = vunpack.c.h.b16 %v3085
    %v3583 = vunpack.c.l.b16 %v3086
    %v3584 = vunpack.c.h.b16 %v3086
    %v3585 = vunpack.c.l.b16 %v3087
    %v3586 = vunpack.c.h.b16 %v3087
    %v3587 = vunpack.c.l.b16 %v3088
    %v3588 = vunpack.c.h.b16 %v3088
    %v3589 = vunpack.c.l.b16 %v3089
    %v3590 = vunpack.c.h.b16 %v3089
    %v3591 = vunpack.c.l.b16 %v3090
    %v3592 = vunpack.c.h.b16 %v3090
    %v3593 = vunpack.c.l.b16 %v3091
    %v3594 = vunpack.c.h.b16 %v3091
    %v3595 = vunpack.c.l.b16 %v3092
    %v3596 = vunpack.c.h.b16 %v3092
    %v3597 = vunpack.c.l.b16 %v3093
    %v3598 = vunpack.c.h.b16 %v3093
    %v3599 = vunpack.c.l.b16 %v3094
    %v3600 = vunpack.c.h.b16 %v3094
    %v3601 = vunpack.c.l.b16 %v3095
    %v3602 = vunpack.c.h.b16 %v3095
    %v3603 = vunpack.c.l.b16 %v3096
    %v3604 = vunpack.c.h.b16 %v3096
    %v3605 = vunpack.c.l.b16 %v3097
    %v3606 = vunpack.c.h.b16 %v3097
    %v3607 = vunpack.c.l.b16 %v3098
    %v3608 = vunpack.c.h.b16 %v3098
    %v3609 = vunpack.c.l.b16 %v3099
    %v3610 = vunpack.c.h.b16 %v3099
    %v3611 = vunpack.c.l.b16 %v3100
    %v3612 = vunpack.c.h.b16 %v3100
    %v3613 = vunpack.c.l.b16 %v3101
    %v3614 = vunpack.c.h.b16 %v3101
    %v3615 = vunpack.c.l.b16 %v3102
    %v3616 = vunpack.c.h.b16 %v3102
    %v3617 = vunpack.c.l.b16 %v3103
    %v3618 = vunpack.c.h.b16 %v3103
    %v3619 = vunpack.c.l.b16 %v3104
    %v3620 = vunpack.c.h.b16 %v3104
    %v3621 = vunpack.c.l.b16 %v3105
    %v3622 = vunpack.c.h.b16 %v3105
    %v3623 = vunpack.c.l.b16 %v3106
    %v3624 = vunpack.c.h.b16 %v3106
    %v3625 = vunpack.c.l.b16 %v3107
    %v3626 = vunpack.c.h.b16 %v3107
    %v3627 = vunpack.c.l.b16 %v3108
    %v3628 = vunpack.c.h.b16 %v3108
    %v3629 = vunpack.c.l.b16 %v3109
    %v3630 = vunpack.c.h.b16 %v3109
    %v3631 = vunpack.c.l.b16 %v3110
    %v3632 = vunpack.c.h.b16 %v3110
    %v3633 = vunpack.c.l.b16 %v3111
    %v3634 = vunpack.c.h.b16 %v3111
    %v3635 = vunpack.c.l.b16 %v3112
    %v3636 = vunpack.c.h.b16 %v3112
    %v3637 = vunpack.c.l.b16 %v3113
    %v3638 = vunpack.c.h.b16 %v3113
    %v3639 = vunpack.c.l.b16 %v3114
    %v3640 = vunpack.c.h.b16 %v3114
    %v3641 = vunpack.c.l.b16 %v3115
    %v3642 = vunpack.c.h.b16 %v3115
    %v3643 = vunpack.c.l.b16 %v3116
    %v3644 = vunpack.c.h.b16 %v3116
    %v3645 = vunpack.c.l.b16 %v3117
    %v3646 = vunpack.c.h.b16 %v3117
    %v3647 = vunpack.c.l.b16 %v3118
    %v3648 = vunpack.c.h.b16 %v3118
    %v3649 = vunpack.c.l.b16 %v3119
    %v3650 = vunpack.c.h.b16 %v3119
    %v3651 = vunpack.c.l.b16 %v3120
    %v3652 = vunpack.c.h.b16 %v3120
    %v3653 = vunpack.c.l.b16 %v3121
    %v3654 = vunpack.c.h.b16 %v3121
    %v3655 = vunpack.c.l.b16 %v3122
    %v3656 = vunpack.c.h.b16 %v3122
    %v3657 = vunpack.c.l.b16 %v3123
    %v3658 = vunpack.c.h.b16 %v3123
    %v3659 = vunpack.c.l.b16 %v3124
    %v3660 = vunpack.c.h.b16 %v3124
    %v3661 = vunpack.c.l.b16 %v3125
    %v3662 = vunpack.c.h.b16 %v3125
    %v3663 = vunpack.c.l.b16 %v3126
    %v3664 = vunpack.c.h.b16 %v3126
    %v3665 = vunpack.c.l.b16 %v3127
    %v3666 = vunpack.c.h.b16 %v3127
    %v3667 = vunpack.c.l.b16 %v3128
    %v3668 = vunpack.c.h.b16 %v3128
    %v3669 = vunpack.c.l.b16 %v3129
    %v3670 = vunpack.c.h.b16 %v3129
    %v3671 = vunpack.c.l.b16 %v3130
    %v3672 = vunpack.c.h.b16 %v3130
    %v3673 = vunpack.c.l.b16 %v3131
    %v3674 = vunpack.c.h.b16 %v3131
    %v3675 = vunpack.c.l.b16 %v3132
    %v3676 = vunpack.c.h.b16 %v3132
    %v3677 = vunpack.c.l.b16 %v3133
    %v3678 = vunpack.c.h.b16 %v3133
    %v3679 = vunpack.c.l.b16 %v3134
    %v3680 = vunpack.c.h.b16 %v3134
    %v3681 = vunpack.c.l.b16 %v3135
    %v3682 = vunpack.c.h.b16 %v3135
    %v3683 = vunpack.c.l.b16 %v3136
    %v3684 = vunpack.c.h.b16 %v3136
    %v3685 = vunpack.c.l.b16 %v3137
    %v3686 = vunpack.c.h.b16 %v3137
    %v3687 = vunpack.c.l.b16 %v3138
    %v3688 = vunpack.c.h.b16 %v3138
    %v3689 = vunpack.c.l.b16 %v3139
    %v3690 = vunpack.c.h.b16 %v3139
    %v3691 = vunpack.c.l.b16 %v3140
    %v3692 = vunpack.c.h.b16 %v3140
    %v3693 = vunpack.c.l.b16 %v3141
    %v3694 = vunpack.c.h.b16 %v3141
    %v3695 = vunpack.c.l.b16 %v3142
    %v3696 = vunpack.c.h.b16 %v3142
    %v3697 = vunpack.c.l.b16 %v3143
    %v3698 = vunpack.c.h.b16 %v3143
    %v3699 = vunpack.c.l.b16 %v3144
    %v3700 = vunpack.c.h.b16 %v3144
    %v3701 = vunpack.c.l.b16 %v3145
    %v3702 = vunpack.c.h.b16 %v3145
    %v3703 = vunpack.c.l.b16 %v3146
    %v3704 = vunpack.c.h.b16 %v3146
    %v3705 = vunpack.c.l.b16 %v3147
    %v3706 = vunpack.c.h.b16 %v3147
    %v3707 = vunpack.c.l.b16 %v3148
    %v3708 = vunpack.c.h.b16 %v3148
    %v3709 = vunpack.c.l.b16 %v3149
    %v3710 = vunpack.c.h.b16 %v3149
    %v3711 = vunpack.c.l.b16 %v3150
    %v3712 = vunpack.c.h.b16 %v3150
    %v3713 = vunpack.c.l.b16 %v3151
    %v3714 = vunpack.c.h.b16 %v3151
    %v3715 = vunpack.c.l.b16 %v3152
    %v3716 = vunpack.c.h.b16 %v3152
    %v3717 = vunpack.c.l.b16 %v3153
    %v3718 = vunpack.c.h.b16 %v3153
    %v3719 = vunpack.c.l.b16 %v3154
    %v3720 = vunpack.c.h.b16 %v3154
    %v3721 = vunpack.c.l.b16 %v3155
    %v3722 = vunpack.c.h.b16 %v3155
    %v3723 = vunpack.c.l.b16 %v3156
    %v3724 = vunpack.c.h.b16 %v3156
    %v3725 = vunpack.c.l.b16 %v3157
    %v3726 = vunpack.c.h.b16 %v3157
    %v3727 = vunpack.c.l.b16 %v3158
    %v3728 = vunpack.c.h.b16 %v3158
    %v3729 = vunpack.c.l.b16 %v3159
    %v3730 = vunpack.c.h.b16 %v3159
    %v3731 = vunpack.c.l.b16 %v3160
    %v3732 = vunpack.c.h.b16 %v3160
    %v3733 = vunpack.c.l.b16 %v3161
    %v3734 = vunpack.c.h.b16 %v3161
    %v3735 = vunpack.c.l.b16 %v3162
    %v3736 = vunpack.c.h.b16 %v3162
    %v3737 = vunpack.c.l.b16 %v3163
    %v3738 = vunpack.c.h.b16 %v3163
    %v3739 = vunpack.c.l.b16 %v3164
    %v3740 = vunpack.c.h.b16 %v3164
    %v3741 = vunpack.c.l.b16 %v3165
    %v3742 = vunpack.c.h.b16 %v3165
    %v3743 = vunpack.c.l.b16 %v3166
    %v3744 = vunpack.c.h.b16 %v3166
    %v3745 = vunpack.c.l.b16 %v3167
    %v3746 = vunpack.c.h.b16 %v3167
    %v3747 = vunpack.c.l.b16 %v3168
    %v3748 = vunpack.c.h.b16 %v3168
    %v3749 = vunpack.c.l.b16 %v3169
    %v3750 = vunpack.c.h.b16 %v3169
    %v3751 = vunpack.c.l.b16 %v3170
    %v3752 = vunpack.c.h.b16 %v3170
    %v3753 = vunpack.c.l.b16 %v3171
    %v3754 = vunpack.c.h.b16 %v3171
    %v3755 = vunpack.c.l.b16 %v3172
    %v3756 = vunpack.c.h.b16 %v3172
    %v3757 = vunpack.c.l.b16 %v3173
    %v3758 = vunpack.c.h.b16 %v3173
    %v3759 = vunpack.c.l.b16 %v3174
    %v3760 = vunpack.c.h.b16 %v3174
    %v3761 = vunpack.c.l.b16 %v3175
    %v3762 = vunpack.c.h.b16 %v3175
    %v3763 = vunpack.c.l.b16 %v3176
    %v3764 = vunpack.c.h.b16 %v3176
    %v3765 = vunpack.c.l.b16 %v3177
    %v3766 = vunpack.c.h.b16 %v3177
    %v3767 = vunpack.c.l.b16 %v3178
    %v3768 = vunpack.c.h.b16 %v3178
    %v3769 = vpack.c.b16 %v3391, %v3385
    %v3770 = vpack.c.b16 %v3392, %v3386
    %v3771 = vpack.c.b16 %v3393, %v3387
    %v3772 = vpack.c.b16 %v3394, %v3388
    %v3773 = vpack.c.b16 %v3395, %v3389
    %v3774 = vpack.c.b16 %v3396, %v3390
    %v3775 = vpack.c.b16 %v3403, %v3397
    %v3776 = vpack.c.b16 %v3404, %v3398
    %v3777 = vpack.c.b16 %v3405, %v3399
    %v3778 = vpack.c.b16 %v3406, %v3400
    %v3779 = vpack.c.b16 %v3407, %v3401
    %v3780 = vpack.c.b16 %v3408, %v3402
    %v3781 = vpack.c.b16 %v3415, %v3409
    %v3782 = vpack.c.b16 %v3416, %v3410
    %v3783 = vpack.c.b16 %v3417, %v3411
    %v3784 = vpack.c.b16 %v3418, %v3412
    %v3785 = vpack.c.b16 %v3419, %v3413
    %v3786 = vpack.c.b16 %v3420, %v3414
    %v3787 = vpack.c.b16 %v3427, %v3421
    %v3788 = vpack.c.b16 %v3428, %v3422
    %v3789 = vpack.c.b16 %v3429, %v3423
    %v3790 = vpack.c.b16 %v3430, %v3424
    %v3791 = vpack.c.b16 %v3431, %v3425
    %v3792 = vpack.c.b16 %v3432, %v3426
    %v3793 = vpack.c.b16 %v3439, %v3433
    %v3794 = vpack.c.b16 %v3440, %v3434
    %v3795 = vpack.c.b16 %v3441, %v3435
    %v3796 = vpack.c.b16 %v3442, %v3436
    %v3797 = vpack.c.b16 %v3443, %v3437
    %v3798 = vpack.c.b16 %v3444, %v3438
    %v3799 = vpack.c.b16 %v3451, %v3445
    %v3800 = vpack.c.b16 %v3452, %v3446
    %v3801 = vpack.c.b16 %v3453, %v3447
    %v3802 = vpack.c.b16 %v3454, %v3448
    %v3803 = vpack.c.b16 %v3455, %v3449
    %v3804 = vpack.c.b16 %v3456, %v3450
    %v3805 = vpack.c.b16 %v3463, %v3457
    %v3806 = vpack.c.b16 %v3464, %v3458
    %v3807 = vpack.c.b16 %v3465, %v3459
    %v3808 = vpack.c.b16 %v3466, %v3460
    %v3809 = vpack.c.b16 %v3467, %v3461
    %v3810 = vpack.c.b16 %v3468, %v3462
    %v3811 = vpack.c.b16 %v3475, %v3469
    %v3812 = vpack.c.b16 %v3476, %v3470
    %v3813 = vpack.c.b16 %v3477, %v3471
    %v3814 = vpack.c.b16 %v3478, %v3472
    %v3815 = vpack.c.b16 %v3479, %v3473
    %v3816 = vpack.c.b16 %v3480, %v3474
    %v3817 = vpack.c.b16 %v3487, %v3481
    %v3818 = vpack.c.b16 %v3488, %v3482
    %v3819 = vpack.c.b16 %v3489, %v3483
    %v3820 = vpack.c.b16 %v3490, %v3484
    %v3821 = vpack.c.b16 %v3491, %v3485
    %v3822 = vpack.c.b16 %v3492, %v3486
    %v3823 = vpack.c.b16 %v3499, %v3493
    %v3824 = vpack.c.b16 %v3500, %v3494
    %v3825 = vpack.c.b16 %v3501, %v3495
    %v3826 = vpack.c.b16 %v3502, %v3496
    %v3827 = vpack.c.b16 %v3503, %v3497
    %v3828 = vpack.c.b16 %v3504, %v3498
    %v3829 = vpack.c.b16 %v3511, %v3505
    %v3830 = vpack.c.b16 %v3512, %v3506
    %v3831 = vpack.c.b16 %v3513, %v3507
    %v3832 = vpack.c.b16 %v3514, %v3508
    %v3833 = vpack.c.b16 %v3515, %v3509
    %v3834 = vpack.c.b16 %v3516, %v3510
    %v3835 = vpack.c.b16 %v3523, %v3517
    %v3836 = vpack.c.b16 %v3524, %v3518
    %v3837 = vpack.c.b16 %v3525, %v3519
    %v3838 = vpack.c.b16 %v3526, %v3520
    %v3839 = vpack.c.b16 %v3527, %v3521
    %v3840 = vpack.c.b16 %v3528, %v3522
    %v3841 = vpack.c.b16 %v3535, %v3529
    %v3842 = vpack.c.b16 %v3536, %v3530
    %v3843 = vpack.c.b16 %v3537, %v3531
    %v3844 = vpack.c.b16 %v3538, %v3532
    %v3845 = vpack.c.b16 %v3539, %v3533
    %v3846 = vpack.c.b16 %v3540, %v3534
    %v3847 = vpack.c.b16 %v3547, %v3541
    %v3848 = vpack.c.b16 %v3548, %v3542
    %v3849 = vpack.c.b16 %v3549, %v3543
    %v3850 = vpack.c.b16 %v3550, %v3544
    %v3851 = vpack.c.b16 %v3551, %v3545
    %v3852 = vpack.c.b16 %v3552, %v3546
    %v3853 = vpack.c.b16 %v3559, %v3553
    %v3854 = vpack.c.b16 %v3560, %v3554
    %v3855 = vpack.c.b16 %v3561, %v3555
    %v3856 = vpack.c.b16 %v3562, %v3556
    %v3857 = vpack.c.b16 %v3563, %v3557
    %v3858 = vpack.c.b16 %v3564, %v3558
    %v3859 = vpack.c.b16 %v3571, %v3565
    %v3860 = vpack.c.b16 %v3572, %v3566
    %v3861 = vpack.c.b16 %v3573, %v3567
    %v3862 = vpack.c.b16 %v3574, %v3568
    %v3863 = vpack.c.b16 %v3575, %v3569
    %v3864 = vpack.c.b16 %v3576, %v3570
    %v3865 = vpack.c.b16 %v3583, %v3577
    %v3866 = vpack.c.b16 %v3584, %v3578
    %v3867 = vpack.c.b16 %v3585, %v3579
    %v3868 = vpack.c.b16 %v3586, %v3580
    %v3869 = vpack.c.b16 %v3587, %v3581
    %v3870 = vpack.c.b16 %v3588, %v3582
    %v3871 = vpack.c.b16 %v3595, %v3589
    %v3872 = vpack.c.b16 %v3596, %v3590
    %v3873 = vpack.c.b16 %v3597, %v3591
    %v3874 = vpack.c.b16 %v3598, %v3592
    %v3875 = vpack.c.b16 %v3599, %v3593
    %v3876 = vpack.c.b16 %v3600, %v3594
    %v3877 = vpack.c.b16 %v3607, %v3601
    %v3878 = vpack.c.b16 %v3608, %v3602
    %v3879 = vpack.c.b16 %v3609, %v3603
    %v3880 = vpack.c.b16 %v3610, %v3604
    %v3881 = vpack.c.b16 %v3611, %v3605
    %v3882 = vpack.c.b16 %v3612, %v3606
    %v3883 = vpack.c.b16 %v3619, %v3613
    %v3884 = vpack.c.b16 %v3620, %v3614
    %v3885 = vpack.c.b16 %v3621, %v3615
    %v3886 = vpack.c.b16 %v3622, %v3616
    %v3887 = vpack.c.b16 %v3623, %v3617
    %v3888 = vpack.c.b16 %v3624, %v3618
    %v3889 = vpack.c.b16 %v3631, %v3625
    %v3890 = vpack.c.b16 %v3632, %v3626
    %v3891 = vpack.c.b16 %v3633, %v3627
    %v3892 = vpack.c.b16 %v3634, %v3628
    %v3893 = vpack.c.b16 %v3635, %v3629
    %v3894 = vpack.c.b16 %v3636, %v3630
    %v3895 = vpack.c.b16 %v3643, %v3637
    %v3896 = vpack.c.b16 %v3644, %v3638
    %v3897 = vpack.c.b16 %v3645, %v3639
    %v3898 = vpack.c.b16 %v3646, %v3640
    %v3899 = vpack.c.b16 %v3647, %v3641
    %v3900 = vpack.c.b16 %v3648, %v3642
    %v3901 = vpack.c.b16 %v3655, %v3649
    %v3902 = vpack.c.b16 %v3656, %v3650
    %v3903 = vpack.c.b16 %v3657, %v3651
    %v3904 = vpack.c.b16 %v3658, %v3652
    %v3905 = vpack.c.b16 %v3659, %v3653
    %v3906 = vpack.c.b16 %v3660, %v3654
    %v3907 = vpack.c.b16 %v3667, %v3661
    %v3908 = vpack.c.b16 %v3668, %v3662
    %v3909 = vpack.c.b16 %v3669, %v3663
    %v3910 = vpack.c.b16 %v3670, %v3664
    %v3911 = vpack.c.b16 %v3671, %v3665
    %v3912 = vpack.c.b16 %v3672, %v3666
    %v3913 = vpack.c.b16 %v3679, %v3673
    %v3914 = vpack.c.b16 %v3680, %v3674
    %v3915 = vpack.c.b16 %v3681, %v3675
    %v3916 = vpack.c.b16 %v3682, %v3676
    %v3917 = vpack.c.b16 %v3683, %v3677
    %v3918 = vpack.c.b16 %v3684, %v3678
    %v3919 = vpack.c.b16 %v3691, %v3685
    %v3920 = vpack.c.b16 %v3692, %v3686
    %v3921 = vpack.c.b16 %v3693, %v3687
    %v3922 = vpack.c.b16 %v3694, %v3688
    %v3923 = vpack.c.b16 %v3695, %v3689
    %v3924 = vpack.c.b16 %v3696, %v3690
    %v3925 = vpack.c.b16 %v3703, %v3697
    %v3926 = vpack.c.b16 %v3704, %v3698
    %v3927 = vpack.c.b16 %v3705, %v3699
    %v3928 = vpack.c.b16 %v3706, %v3700
    %v3929 = vpack.c.b16 %v3707, %v3701
    %v3930 = vpack.c.b16 %v3708, %v3702
    %v3931 = vpack.c.b16 %v3715, %v3709
    %v3932 = vpack.c.b16 %v3716, %v3710
    %v3933 = vpack.c.b16 %v3717, %v3711
    %v3934 = vpack.c.b16 %v3718, %v3712
    %v3935 = vpack.c.b16 %v3719, %v3713
    %v3936 = vpack.c.b16 %v3720, %v3714
    %v3937 = vpack.c.b16 %v3727, %v3721
    %v3938 = vpack.c.b16 %v3728, %v3722
    %v3939 = vpack.c.b16 %v3729, %v3723
    %v3940 = vpack.c.b16 %v3730, %v3724
    %v3941 = vpack.c.b16 %v3731, %v3725
    %v3942 = vpack.c.b16 %v3732, %v3726
    %v3943 = vpack.c.b16 %v3739, %v3733
    %v3944 = vpack.c.b16 %v3740, %v3734
    %v3945 = vpack.c.b16 %v3741, %v3735
    %v3946 = vpack.c.b16 %v3742, %v3736
    %v3947 = vpack.c.b16 %v3743, %v3737
    %v3948 = vpack.c.b16 %v3744, %v3738
    %v3949 = vpack.c.b16 %v3751, %v3745
    %v3950 = vpack.c.b16 %v3752, %v3746
    %v3951 = vpack.c.b16 %v3753, %v3747
    %v3952 = vpack.c.b16 %v3754, %v3748
    %v3953 = vpack.c.b16 %v3755, %v3749
    %v3954 = vpack.c.b16 %v3756, %v3750
    %v3955 = vpack.c.b16 %v3763, %v3757
    %v3956 = vpack.c.b16 %v3764, %v3758
    %v3957 = vpack.c.b16 %v3765, %v3759
    %v3958 = vpack.c.b16 %v3766, %v3760
    %v3959 = vpack.c.b16 %v3767, %v3761
    %v3960 = vpack.c.b16 %v3768, %v3762
    %4153 = vmatpush.bf16.msra.mxu0 %v3811
    %4154 = vmatpush.bf16.msra.mxu0 %v3805
    %4155 = vmatpush.bf16.msra.mxu0 %v3799
    %4156 = vmatpush.bf16.msra.mxu0 %v3793
    %4157 = vmatpush.bf16.msra.mxu0 %v3787
    %4158 = vmatpush.bf16.msra.mxu0 %v3781
    %4159 = vmatpush.bf16.msra.mxu0 %v3775
    %4160 = vmatpush.bf16.msra.mxu0 %v3769
    %4161 = vmatmul.bf16.gmra.mxu0 %v2983
    %v4162 = vpop.f32.mrf.mxu0
    %v4163 = vadd.f32 %v3181, %v4162
    %v4164 = vpop.f32.mrf.mxu0
    %v4165 = vadd.f32 %v3181, %v4164
    %4166 = vdwg.mxu0
    %4167 = vmatpush.bf16.msra.mxu0 %v3859
    %4168 = vmatpush.bf16.msra.mxu0 %v3853
    %4169 = vmatpush.bf16.msra.mxu0 %v3847
    %4170 = vmatpush.bf16.msra.mxu0 %v3841
    %4171 = vmatpush.bf16.msra.mxu0 %v3835
    %4172 = vmatpush.bf16.msra.mxu0 %v3829
    %4173 = vmatpush.bf16.msra.mxu0 %v3823
    %4174 = vmatpush.bf16.msra.mxu0 %v3817
    %4175 = vmatmul.bf16.gmra.mxu0 %v2984
    %v4176 = vpop.f32.mrf.mxu0
    %v4177 = vadd.f32 %v4163, %v4176
    %v4178 = vpop.f32.mrf.mxu0
    %v4179 = vadd.f32 %v4165, %v4178
    %4180 = vdwg.mxu0
    %4181 = vmatpush.bf16.msra.mxu0 %v3907
    %4182 = vmatpush.bf16.msra.mxu0 %v3901
    %4183 = vmatpush.bf16.msra.mxu0 %v3895
    %4184 = vmatpush.bf16.msra.mxu0 %v3889
    %4185 = vmatpush.bf16.msra.mxu0 %v3883
    %4186 = vmatpush.bf16.msra.mxu0 %v3877
    %4187 = vmatpush.bf16.msra.mxu0 %v3871
    %4188 = vmatpush.bf16.msra.mxu0 %v3865
    %4189 = vmatmul.bf16.gmra.mxu0 %v2985
    %v4190 = vpop.f32.mrf.mxu0
    %v4191 = vadd.f32 %v4177, %v4190
    %v4192 = vpop.f32.mrf.mxu0
    %v4193 = vadd.f32 %v4179, %v4192
    %4194 = vdwg.mxu0
    %4195 = vmatpush.bf16.msra.mxu0 %v3955
    %4196 = vmatpush.bf16.msra.mxu0 %v3949
    %4197 = vmatpush.bf16.msra.mxu0 %v3943
    %4198 = vmatpush.bf16.msra.mxu0 %v3937
    %4199 = vmatpush.bf16.msra.mxu0 %v3931
    %4200 = vmatpush.bf16.msra.mxu0 %v3925
    %4201 = vmatpush.bf16.msra.mxu0 %v3919
    %4202 = vmatpush.bf16.msra.mxu0 %v3913
    %4203 = vmatmul.bf16.gmra.mxu0 %v2986
    %v4204 = vpop.f32.mrf.mxu0
    %v4205 = vadd.f32 %v4191, %v4204
    %v4206 = vpop.f32.mrf.mxu0
    %v4207 = vadd.f32 %v4193, %v4206
    %4208 = vdwg.mxu0
    %4209 = vmatpush.bf16.msra.mxu0 %v3812
    %4210 = vmatpush.bf16.msra.mxu0 %v3806
    %4211 = vmatpush.bf16.msra.mxu0 %v3800
    %4212 = vmatpush.bf16.msra.mxu0 %v3794
    %4213 = vmatpush.bf16.msra.mxu0 %v3788
    %4214 = vmatpush.bf16.msra.mxu0 %v3782
    %4215 = vmatpush.bf16.msra.mxu0 %v3776
    %4216 = vmatpush.bf16.msra.mxu0 %v3770
    %4217 = vmatmul.bf16.gmra.mxu0 %v2983
    %v4218 = vpop.f32.mrf.mxu0
    %v4219 = vadd.f32 %v3182, %v4218
    %v4220 = vpop.f32.mrf.mxu0
    %v4221 = vadd.f32 %v3182, %v4220
    %4222 = vdwg.mxu0
    %4223 = vmatpush.bf16.msra.mxu0 %v3860
    %4224 = vmatpush.bf16.msra.mxu0 %v3854
    %4225 = vmatpush.bf16.msra.mxu0 %v3848
    %4226 = vmatpush.bf16.msra.mxu0 %v3842
    %4227 = vmatpush.bf16.msra.mxu0 %v3836
    %4228 = vmatpush.bf16.msra.mxu0 %v3830
    %4229 = vmatpush.bf16.msra.mxu0 %v3824
    %4230 = vmatpush.bf16.msra.mxu0 %v3818
    %4231 = vmatmul.bf16.gmra.mxu0 %v2984
    %v4232 = vpop.f32.mrf.mxu0
    %v4233 = vadd.f32 %v4219, %v4232
    %v4234 = vpop.f32.mrf.mxu0
    %v4235 = vadd.f32 %v4221, %v4234
    %4236 = vdwg.mxu0
    %4237 = vmatpush.bf16.msra.mxu0 %v3908
    %4238 = vmatpush.bf16.msra.mxu0 %v3902
    %4239 = vmatpush.bf16.msra.mxu0 %v3896
    %4240 = vmatpush.bf16.msra.mxu0 %v3890
    %4241 = vmatpush.bf16.msra.mxu0 %v3884
    %4242 = vmatpush.bf16.msra.mxu0 %v3878
    %4243 = vmatpush.bf16.msra.mxu0 %v3872
    %4244 = vmatpush.bf16.msra.mxu0 %v3866
    %4245 = vmatmul.bf16.gmra.mxu0 %v2985
    %v4246 = vpop.f32.mrf.mxu0
    %v4247 = vadd.f32 %v4233, %v4246
    %v4248 = vpop.f32.mrf.mxu0
    %v4249 = vadd.f32 %v4235, %v4248
    %4250 = vdwg.mxu0
    %4251 = vmatpush.bf16.msra.mxu0 %v3956
    %4252 = vmatpush.bf16.msra.mxu0 %v3950
    %4253 = vmatpush.bf16.msra.mxu0 %v3944
    %4254 = vmatpush.bf16.msra.mxu0 %v3938
    %4255 = vmatpush.bf16.msra.mxu0 %v3932
    %4256 = vmatpush.bf16.msra.mxu0 %v3926
    %4257 = vmatpush.bf16.msra.mxu0 %v3920
    %4258 = vmatpush.bf16.msra.mxu0 %v3914
    %4259 = vmatmul.bf16.gmra.mxu0 %v2986
    %v4260 = vpop.f32.mrf.mxu0
    %v4261 = vadd.f32 %v4247, %v4260
    %v4262 = vpop.f32.mrf.mxu0
    %v4263 = vadd.f32 %v4249, %v4262
    %4264 = vdwg.mxu0
    %4265 = vmatpush.bf16.msra.mxu0 %v3813
    %4266 = vmatpush.bf16.msra.mxu0 %v3807
    %4267 = vmatpush.bf16.msra.mxu0 %v3801
    %4268 = vmatpush.bf16.msra.mxu0 %v3795
    %4269 = vmatpush.bf16.msra.mxu0 %v3789
    %4270 = vmatpush.bf16.msra.mxu0 %v3783
    %4271 = vmatpush.bf16.msra.mxu0 %v3777
    %4272 = vmatpush.bf16.msra.mxu0 %v3771
    %4273 = vmatmul.bf16.gmra.mxu0 %v2983
    %v4274 = vpop.f32.mrf.mxu0
    %v4275 = vadd.f32 %v3183, %v4274
    %v4276 = vpop.f32.mrf.mxu0
    %v4277 = vadd.f32 %v3183, %v4276
    %4278 = vdwg.mxu0
    %4279 = vmatpush.bf16.msra.mxu0 %v3861
    %4280 = vmatpush.bf16.msra.mxu0 %v3855
    %4281 = vmatpush.bf16.msra.mxu0 %v3849
    %4282 = vmatpush.bf16.msra.mxu0 %v3843
    %4283 = vmatpush.bf16.msra.mxu0 %v3837
    %4284 = vmatpush.bf16.msra.mxu0 %v3831
    %4285 = vmatpush.bf16.msra.mxu0 %v3825
    %4286 = vmatpush.bf16.msra.mxu0 %v3819
    %4287 = vmatmul.bf16.gmra.mxu0 %v2984
    %v4288 = vpop.f32.mrf.mxu0
    %v4289 = vadd.f32 %v4275, %v4288
    %v4290 = vpop.f32.mrf.mxu0
    %v4291 = vadd.f32 %v4277, %v4290
    %4292 = vdwg.mxu0
    %4293 = vmatpush.bf16.msra.mxu0 %v3909
    %4294 = vmatpush.bf16.msra.mxu0 %v3903
    %4295 = vmatpush.bf16.msra.mxu0 %v3897
    %4296 = vmatpush.bf16.msra.mxu0 %v3891
    %4297 = vmatpush.bf16.msra.mxu0 %v3885
    %4298 = vmatpush.bf16.msra.mxu0 %v3879
    %4299 = vmatpush.bf16.msra.mxu0 %v3873
    %4300 = vmatpush.bf16.msra.mxu0 %v3867
    %4301 = vmatmul.bf16.gmra.mxu0 %v2985
    %v4302 = vpop.f32.mrf.mxu0
    %v4303 = vadd.f32 %v4289, %v4302
    %v4304 = vpop.f32.mrf.mxu0
    %v4305 = vadd.f32 %v4291, %v4304
    %4306 = vdwg.mxu0
    %4307 = vmatpush.bf16.msra.mxu0 %v3957
    %4308 = vmatpush.bf16.msra.mxu0 %v3951
    %4309 = vmatpush.bf16.msra.mxu0 %v3945
    %4310 = vmatpush.bf16.msra.mxu0 %v3939
    %4311 = vmatpush.bf16.msra.mxu0 %v3933
    %4312 = vmatpush.bf16.msra.mxu0 %v3927
    %4313 = vmatpush.bf16.msra.mxu0 %v3921
    %4314 = vmatpush.bf16.msra.mxu0 %v3915
    %4315 = vmatmul.bf16.gmra.mxu0 %v2986
    %v4316 = vpop.f32.mrf.mxu0
    %v4317 = vadd.f32 %v4303, %v4316
    %v4318 = vpop.f32.mrf.mxu0
    %v4319 = vadd.f32 %v4305, %v4318
    %4320 = vdwg.mxu0
    %4321 = vmatpush.bf16.msra.mxu0 %v3814
    %4322 = vmatpush.bf16.msra.mxu0 %v3808
    %4323 = vmatpush.bf16.msra.mxu0 %v3802
    %4324 = vmatpush.bf16.msra.mxu0 %v3796
    %4325 = vmatpush.bf16.msra.mxu0 %v3790
    %4326 = vmatpush.bf16.msra.mxu0 %v3784
    %4327 = vmatpush.bf16.msra.mxu0 %v3778
    %4328 = vmatpush.bf16.msra.mxu0 %v3772
    %4329 = vmatmul.bf16.gmra.mxu0 %v2983
    %v4330 = vpop.f32.mrf.mxu0
    %v4331 = vadd.f32 %v3184, %v4330
    %v4332 = vpop.f32.mrf.mxu0
    %v4333 = vadd.f32 %v3184, %v4332
    %4334 = vdwg.mxu0
    %4335 = vmatpush.bf16.msra.mxu0 %v3862
    %4336 = vmatpush.bf16.msra.mxu0 %v3856
    %4337 = vmatpush.bf16.msra.mxu0 %v3850
    %4338 = vmatpush.bf16.msra.mxu0 %v3844
    %4339 = vmatpush.bf16.msra.mxu0 %v3838
    %4340 = vmatpush.bf16.msra.mxu0 %v3832
    %4341 = vmatpush.bf16.msra.mxu0 %v3826
    %4342 = vmatpush.bf16.msra.mxu0 %v3820
    %4343 = vmatmul.bf16.gmra.mxu0 %v2984
    %v4344 = vpop.f32.mrf.mxu0
    %v4345 = vadd.f32 %v4331, %v4344
    %v4346 = vpop.f32.mrf.mxu0
    %v4347 = vadd.f32 %v4333, %v4346
    %4348 = vdwg.mxu0
    %4349 = vmatpush.bf16.msra.mxu0 %v3910
    %4350 = vmatpush.bf16.msra.mxu0 %v3904
    %4351 = vmatpush.bf16.msra.mxu0 %v3898
    %4352 = vmatpush.bf16.msra.mxu0 %v3892
    %4353 = vmatpush.bf16.msra.mxu0 %v3886
    %4354 = vmatpush.bf16.msra.mxu0 %v3880
    %4355 = vmatpush.bf16.msra.mxu0 %v3874
    %4356 = vmatpush.bf16.msra.mxu0 %v3868
    %4357 = vmatmul.bf16.gmra.mxu0 %v2985
    %v4358 = vpop.f32.mrf.mxu0
    %v4359 = vadd.f32 %v4345, %v4358
    %v4360 = vpop.f32.mrf.mxu0
    %v4361 = vadd.f32 %v4347, %v4360
    %4362 = vdwg.mxu0
    %4363 = vmatpush.bf16.msra.mxu0 %v3958
    %4364 = vmatpush.bf16.msra.mxu0 %v3952
    %4365 = vmatpush.bf16.msra.mxu0 %v3946
    %4366 = vmatpush.bf16.msra.mxu0 %v3940
    %4367 = vmatpush.bf16.msra.mxu0 %v3934
    %4368 = vmatpush.bf16.msra.mxu0 %v3928
    %4369 = vmatpush.bf16.msra.mxu0 %v3922
    %4370 = vmatpush.bf16.msra.mxu0 %v3916
    %4371 = vmatmul.bf16.gmra.mxu0 %v2986
    %v4372 = vpop.f32.mrf.mxu0
    %v4373 = vadd.f32 %v4359, %v4372
    %v4374 = vpop.f32.mrf.mxu0
    %v4375 = vadd.f32 %v4361, %v4374
    %4376 = vdwg.mxu0
    %4377 = vmatpush.bf16.msra.mxu0 %v3815
    %4378 = vmatpush.bf16.msra.mxu0 %v3809
    %4379 = vmatpush.bf16.msra.mxu0 %v3803
    %4380 = vmatpush.bf16.msra.mxu0 %v3797
    %4381 = vmatpush.bf16.msra.mxu0 %v3791
    %4382 = vmatpush.bf16.msra.mxu0 %v3785
    %4383 = vmatpush.bf16.msra.mxu0 %v3779
    %4384 = vmatpush.bf16.msra.mxu0 %v3773
    %4385 = vmatmul.bf16.gmra.mxu0 %v2983
    %v4386 = vpop.f32.mrf.mxu0
    %v4387 = vadd.f32 %v3185, %v4386
    %v4388 = vpop.f32.mrf.mxu0
    %v4389 = vadd.f32 %v3185, %v4388
    %4390 = vdwg.mxu0
    %4391 = vmatpush.bf16.msra.mxu0 %v3863
    %4392 = vmatpush.bf16.msra.mxu0 %v3857
    %4393 = vmatpush.bf16.msra.mxu0 %v3851
    %4394 = vmatpush.bf16.msra.mxu0 %v3845
    %4395 = vmatpush.bf16.msra.mxu0 %v3839
    %4396 = vmatpush.bf16.msra.mxu0 %v3833
    %4397 = vmatpush.bf16.msra.mxu0 %v3827
    %4398 = vmatpush.bf16.msra.mxu0 %v3821
    %4399 = vmatmul.bf16.gmra.mxu0 %v2984
    %v4400 = vpop.f32.mrf.mxu0
    %v4401 = vadd.f32 %v4387, %v4400
    %v4402 = vpop.f32.mrf.mxu0
    %v4403 = vadd.f32 %v4389, %v4402
    %4404 = vdwg.mxu0
    %4405 = vmatpush.bf16.msra.mxu0 %v3911
    %4406 = vmatpush.bf16.msra.mxu0 %v3905
    %4407 = vmatpush.bf16.msra.mxu0 %v3899
    %4408 = vmatpush.bf16.msra.mxu0 %v3893
    %4409 = vmatpush.bf16.msra.mxu0 %v3887
    %4410 = vmatpush.bf16.msra.mxu0 %v3881
    %4411 = vmatpush.bf16.msra.mxu0 %v3875
    %4412 = vmatpush.bf16.msra.mxu0 %v3869
    %4413 = vmatmul.bf16.gmra.mxu0 %v2985
    %v4414 = vpop.f32.mrf.mxu0
    %v4415 = vadd.f32 %v4401, %v4414
    %v4416 = vpop.f32.mrf.mxu0
    %v4417 = vadd.f32 %v4403, %v4416
    %4418 = vdwg.mxu0
    %4419 = vmatpush.bf16.msra.mxu0 %v3959
    %4420 = vmatpush.bf16.msra.mxu0 %v3953
    %4421 = vmatpush.bf16.msra.mxu0 %v3947
    %4422 = vmatpush.bf16.msra.mxu0 %v3941
    %4423 = vmatpush.bf16.msra.mxu0 %v3935
    %4424 = vmatpush.bf16.msra.mxu0 %v3929
    %4425 = vmatpush.bf16.msra.mxu0 %v3923
    %4426 = vmatpush.bf16.msra.mxu0 %v3917
    %4427 = vmatmul.bf16.gmra.mxu0 %v2986
    %v4428 = vpop.f32.mrf.mxu0
    %v4429 = vadd.f32 %v4415, %v4428
    %v4430 = vpop.f32.mrf.mxu0
    %v4431 = vadd.f32 %v4417, %v4430
    %4432 = vdwg.mxu0
    %4433 = vmatpush.bf16.msra.mxu0 %v3816
    %4434 = vmatpush.bf16.msra.mxu0 %v3810
    %4435 = vmatpush.bf16.msra.mxu0 %v3804
    %4436 = vmatpush.bf16.msra.mxu0 %v3798
    %4437 = vmatpush.bf16.msra.mxu0 %v3792
    %4438 = vmatpush.bf16.msra.mxu0 %v3786
    %4439 = vmatpush.bf16.msra.mxu0 %v3780
    %4440 = vmatpush.bf16.msra.mxu0 %v3774
    %4441 = vmatmul.bf16.gmra.mxu0 %v2983
    %v4442 = vpop.f32.mrf.mxu0
    %v4443 = vadd.f32 %v3186, %v4442
    %v4444 = vpop.f32.mrf.mxu0
    %v4445 = vadd.f32 %v3186, %v4444
    %4446 = vdwg.mxu0
    %4447 = vmatpush.bf16.msra.mxu0 %v3864
    %4448 = vmatpush.bf16.msra.mxu0 %v3858
    %4449 = vmatpush.bf16.msra.mxu0 %v3852
    %4450 = vmatpush.bf16.msra.mxu0 %v3846
    %4451 = vmatpush.bf16.msra.mxu0 %v3840
    %4452 = vmatpush.bf16.msra.mxu0 %v3834
    %4453 = vmatpush.bf16.msra.mxu0 %v3828
    %4454 = vmatpush.bf16.msra.mxu0 %v3822
    %4455 = vmatmul.bf16.gmra.mxu0 %v2984
    %v4456 = vpop.f32.mrf.mxu0
    %v4457 = vadd.f32 %v4443, %v4456
    %v4458 = vpop.f32.mrf.mxu0
    %v4459 = vadd.f32 %v4445, %v4458
    %4460 = vdwg.mxu0
    %4461 = vmatpush.bf16.msra.mxu0 %v3912
    %4462 = vmatpush.bf16.msra.mxu0 %v3906
    %4463 = vmatpush.bf16.msra.mxu0 %v3900
    %4464 = vmatpush.bf16.msra.mxu0 %v3894
    %4465 = vmatpush.bf16.msra.mxu0 %v3888
    %4466 = vmatpush.bf16.msra.mxu0 %v3882
    %4467 = vmatpush.bf16.msra.mxu0 %v3876
    %4468 = vmatpush.bf16.msra.mxu0 %v3870
    %4469 = vmatmul.bf16.gmra.mxu0 %v2985
    %v4470 = vpop.f32.mrf.mxu0
    %v4471 = vadd.f32 %v4457, %v4470
    %v4472 = vpop.f32.mrf.mxu0
    %v4473 = vadd.f32 %v4459, %v4472
    %4474 = vdwg.mxu0
    %4475 = vmatpush.bf16.msra.mxu0 %v3960
    %4476 = vmatpush.bf16.msra.mxu0 %v3954
    %4477 = vmatpush.bf16.msra.mxu0 %v3948
    %4478 = vmatpush.bf16.msra.mxu0 %v3942
    %4479 = vmatpush.bf16.msra.mxu0 %v3936
    %4480 = vmatpush.bf16.msra.mxu0 %v3930
    %4481 = vmatpush.bf16.msra.mxu0 %v3924
    %4482 = vmatpush.bf16.msra.mxu0 %v3918
    %4483 = vmatmul.bf16.gmra.mxu0 %v2986
    %v4484 = vpop.f32.mrf.mxu0
    %v4485 = vadd.f32 %v4471, %v4484
    %v4486 = vpop.f32.mrf.mxu0
    %v4487 = vadd.f32 %v4473, %v4486
    %4488 = vdwg.mxu0
    %4489 = vst [vmem:[#allocation17] sm:$0xff] %v4205
    %4490 = vst [vmem:[#allocation17 + $0x8] sm:$0xff] %v4261
    %4491 = vst [vmem:[#allocation17 + $0x10] sm:$0xff] %v4317
    %4492 = vst [vmem:[#allocation17 + $0x18] sm:$0xff] %v4373
    %4493 = vst [vmem:[#allocation17 + $0x20] sm:$0xff] %v4429
    %4494 = vst [vmem:[#allocation17 + $0x28] sm:$0xff] %v4485
    %4495 = vst [vmem:[#allocation17 + $0x30] sm:$0xff] %v4207
    %4496 = vst [vmem:[#allocation17 + $0x38] sm:$0xff] %v4263
    %4497 = vst [vmem:[#allocation17 + $0x40] sm:$0xff] %v4319
    %4498 = vst [vmem:[#allocation17 + $0x48] sm:$0xff] %v4375
    %4499 = vst [vmem:[#allocation17 + $0x50] sm:$0xff] %v4431
    %4500 = vst [vmem:[#allocation17 + $0x58] sm:$0xff] %v4487
    // Predicated region
    $region82: #{tpu_custom_call.1} parent=1 // pred_check
      _
    $region83: #{tpu_custom_call.1} parent=1 // pred_check_branch
      %4502 = sbr.rel (0) target = $region85
    $region84: #{tpu_custom_call.1} parent=1 // pred_region
      %4504 = vsyncadd [#allocation4], 0
      %s4505 = sshll.u32 [#allocation17], 4
      %s4506 = int_to_ptr.vmem [resolvable:$true] %s4505
      %s4507 = sshll.u32 %s11, 4
      %s4508 = int_to_ptr.hbm [resolvable:$true] %s4507
      %4513 = dma.vmem_to_hbm [thread:$0]  %s4506, 1536, %s4508, [#allocation4], 768, 768, 48
    $region85: #{tpu_custom_call.1} parent=1 // pred_fallthru
      _
    // Predicated region
    $region86: #{tpu_custom_call.1} parent=1 // pred_check
      _
    $region87: #{tpu_custom_call.1} parent=1 // pred_check_branch
      %4515 = sbr.rel (0) target = $region89
    $region88: #{tpu_custom_call.1} parent=1 // pred_region
      %4517 = dma.done [#allocation4], 1536
    $region89: #{tpu_custom_call.1} parent=1 // pred_fallthru
      _
    %4518 = vsyncpa [#allocation3], 1
    %4519 = vsyncpa [#allocation6], 1
    %4520 = vsyncpa [#allocation9], 1
    %4521 = vsyncpa [#allocation12], 1
    %4522 = vsyncpa [#allocation15], 1
    %4523 = vsyncpa [#allocation4], 1

</llo_original>
